<compile_context>
chip_gen: v5e
topology: v5e:2x2
jax: 0.10.0
libtpu: 0.0.40
codegen_flags: <defaults>
</compile_context>

<pallas_src>
import functools

import jax
import jax.numpy as jnp
from jax.experimental import pallas as pl
from jax.experimental.pallas import tpu as pltpu

EPS = 1e-5
LANE = 128
VMEM_LIMIT_BYTES = 32 * 1024 * 1024  # fits the scoped default on all gens


def _cparams():
    return pltpu.CompilerParams(vmem_limit_bytes=VMEM_LIMIT_BYTES)


# ----------------------------- Pallas kernels -----------------------------


def _conv1_shortcut_kernel(x_ref, w_ref, b_ref, y_ref, *, n, h, w, c):
    """Fused 3x3 conv1 + 1x1 shortcut conv (stride 1) on a halo-padded input.

    x_ref: (n, h+2, w+2, c)  bf16, spatial halo 1, channels zero-padded to c
    w_ref: (9*c, 2*c)        bf16, [conv1 | shortcut] columns; shortcut weight
                             occupies the center-tap rows only
    b_ref: (1, 2*c)          f32, zeros for the conv1 half, shortcut bias else
    y_ref: (n*h*w, 2*c)      bf16
    """
    taps = []
    for i in range(3):
        for j in range(3):
            taps.append(x_ref[:, i:i + h, j:j + w, :])       # (n, h, w, c)
    patches = jnp.concatenate(taps, axis=-1)                  # (n, h, w, 9c)
    patches = patches.reshape(n * h * w, 9 * c)
    acc = jnp.dot(patches, w_ref[...], preferred_element_type=jnp.float32)
    y_ref[...] = (acc + b_ref[...]).astype(y_ref.dtype)


def _bn1_conv2_bn2_kernel(y1_ref, res_ref, w2_ref, g1_ref, be1_ref, g2_ref,
                          be2_ref, out_ref, a1h_ref, *, n, ho, wo, c):
    """BN1 (stats + apply) + ReLU + 3x3 conv2 (in-VMEM im2col) + BN2 + add + ReLU.

    y1_ref : (m, c)             bf16 conv1 output  (m = n*ho*wo)
    res_ref: (m, c)             bf16 shortcut
    w2_ref : (9c, c)            bf16 conv2 weight
    g*/be* : (1, c)             f32 BN affine params (padded channels: gamma=0)
    out_ref: (m, c)             f32 block output
    a1h_ref: (n, ho+2, wo+2, c) bf16 VMEM scratch (zero-halo BN1/ReLU output)
    """
    m = n * ho * wo
    inv_m = 1.0 / m

    # BN1 batch statistics (training mode, biased variance, two-pass) + ReLU.
    y1 = y1_ref[...].astype(jnp.float32)
    mean1 = jnp.sum(y1, axis=0, keepdims=True) * inv_m
    d1 = y1 - mean1
    var1 = jnp.sum(d1 * d1, axis=0, keepdims=True) * inv_m
    sc1 = g1_ref[...] * jax.lax.rsqrt(var1 + EPS)
    a1 = jnp.maximum(d1 * sc1 + be1_ref[...], 0.0)            # (m, c) f32

    # Write into the interior of a zero halo scratch, then build the 9 conv2
    # taps with static VMEM slices (in-kernel im2col, padding=1, stride=1).
    a1h_ref[...] = jnp.zeros_like(a1h_ref)
    a1h_ref[:, 1:ho + 1, 1:wo + 1, :] = (
        a1.astype(a1h_ref.dtype).reshape(n, ho, wo, c))
    taps = []
    for i in range(3):
        for j in range(3):
            taps.append(a1h_ref[:, i:i + ho, j:j + wo, :])
    patches = jnp.concatenate(taps, axis=-1).reshape(m, 9 * c)
    y2 = jnp.dot(patches, w2_ref[...], preferred_element_type=jnp.float32)

    # BN2 + residual add + ReLU.
    mean2 = jnp.sum(y2, axis=0, keepdims=True) * inv_m
    d2 = y2 - mean2
    var2 = jnp.sum(d2 * d2, axis=0, keepdims=True) * inv_m
    sc2 = g2_ref[...] * jax.lax.rsqrt(var2 + EPS)
    out_ref[...] = jnp.maximum(
        d2 * sc2 + be2_ref[...] + res_ref[...].astype(jnp.float32), 0.0)


# ------------------------------- JAX glue ----------------------------------


def _pad_row(v, c):
    return jnp.pad(v.astype(jnp.float32), (0, c - v.shape[0])).reshape(1, c)


def _conv1_shortcut_weight(w1, w3_2d, b3, c):
    """Fused (9c, 2c) [conv1 | shortcut] weight and (1, 2c) bias row."""
    co, ci, kh, kw = w1.shape
    wk = jnp.transpose(w1, (2, 3, 1, 0))                      # (3, 3, ci, co)
    wk = jnp.pad(wk, ((0, 0), (0, 0), (0, c - ci), (0, c - co)))
    wk = wk.reshape(kh * kw * c, c)                            # conv1 columns
    ws = jnp.zeros((kh * kw * c, c), w1.dtype)                 # shortcut columns
    ws = ws.at[4 * c:4 * c + ci, :co].set(w3_2d)               # center tap rows
    wc = jnp.concatenate([wk, ws], axis=1).astype(jnp.bfloat16)
    bias = jnp.concatenate(
        [jnp.zeros((1, c), jnp.float32), _pad_row(b3, c)], axis=1)
    return wc, bias


def _conv2_weight(w2, c):
    co, ci, kh, kw = w2.shape
    wk = jnp.transpose(w2, (2, 3, 1, 0))
    wk = jnp.pad(wk, ((0, 0), (0, 0), (0, c - ci), (0, c - co)))
    return wk.reshape(kh * kw * c, c).astype(jnp.bfloat16)


@functools.partial(jax.jit, static_argnames=("stride", "use_conv1"))
def resnet_forward_pallas(x_nchw, params, stride=1, use_conv1=True):
    x = jnp.transpose(x_nchw, (0, 2, 3, 1)).astype(jnp.float32)  # NCHW -> NHWC
    N, H, W, Cin = x.shape
    Cout = params["w1"].shape[0]
    C = LANE
    assert Cin <= C and Cout <= C
    # in-kernel reshapes require the (strided) W extent to stay 8-aligned
    assert W % 8 == 0 and (W // stride) % 8 == 0
    assert H % stride == 0 and W % stride == 0
    if not use_conv1:
        assert stride == 1 and Cin == Cout, \
            "identity shortcut requires stride=1 and Cin == Cout"

    # ---- kernel 1: fused conv1 (stride-1) + 1x1 shortcut on halo-padded x ----
    xp = jnp.pad(x, ((0, 0), (1, 1), (1, 1), (0, C - Cin))).astype(jnp.bfloat16)
    if use_conv1:
        w3_2d = jnp.transpose(params["w3"][:, :, 0, 0])        # (Cin, Cout)
        b3 = params["b3"]
    else:
        # identity shortcut == 1x1 conv with identity weight and zero bias
        w3_2d = jnp.eye(Cin, dtype=params["w1"].dtype)
        b3 = jnp.zeros((Cout,), params["w1"].dtype)
    wc, bias = _conv1_shortcut_weight(params["w1"], w3_2d, b3, C)
    # conv1 / conv2 biases are dropped: training-mode BN cancels them exactly.
    y = pl.pallas_call(
        functools.partial(_conv1_shortcut_kernel, n=N, h=H, w=W, c=C),
        out_shape=jax.ShapeDtypeStruct((N * H * W, 2 * C), jnp.bfloat16),
        compiler_params=_cparams(),
    )(xp, wc, bias)

    # Stride handling: a stride-s 3x3(pad1) / 1x1(pad0) conv equals the
    # stride-1 result subsampled at [::s, ::s]; this tiny XLA slice keeps all
    # in-kernel slicing contiguous.
    y = y.reshape(N, H, W, 2 * C)
    if stride != 1:
        y = y[:, ::stride, ::stride, :]
    Ho, Wo = y.shape[1], y.shape[2]
    M = N * Ho * Wo
    y1 = y[..., :C].reshape(M, C)      # conv1 output (bf16)
    res = y[..., C:].reshape(M, C)     # shortcut (bf16, bias already applied)

    # ---- kernel 2: BN1 + ReLU + conv2 + BN2 + residual add + ReLU ----
    out = pl.pallas_call(
        functools.partial(_bn1_conv2_bn2_kernel, n=N, ho=Ho, wo=Wo, c=C),
        out_shape=jax.ShapeDtypeStruct((M, C), jnp.float32),
        scratch_shapes=[pltpu.VMEM((N, Ho + 2, Wo + 2, C), jnp.bfloat16)],
        compiler_params=_cparams(),
    )(y1, res, _conv2_weight(params["w2"], C),
      _pad_row(params["g1"], C), _pad_row(params["be1"], C),
      _pad_row(params["g2"], C), _pad_row(params["be2"], C))

    out = out[:, :Cout].reshape(N, Ho, Wo, Cout)
    return jnp.transpose(out, (0, 3, 1, 2))  # back to NCHW


# --------- Independent pure-JAX reference (lax conv + explicit BN) ----------


def resnet_forward_ref(x_nchw, p, stride=1, use_conv1=True):
    x = jnp.transpose(x_nchw, (0, 2, 3, 1)).astype(jnp.float32)

    def conv(inp, w_oihw, b, s, pad):
        w = jnp.transpose(w_oihw, (2, 3, 1, 0))  # OIHW -> HWIO
        y = jax.lax.conv_general_dilated(
            inp, w, window_strides=(s, s),
            padding=((pad, pad), (pad, pad)),
            dimension_numbers=("NHWC", "HWIO", "NHWC"),
            precision=jax.lax.Precision.HIGHEST)
        return y + b

    def bn(y, g, b):
        mean = jnp.mean(y, axis=(0, 1, 2), keepdims=True)
        var = jnp.mean(jnp.square(y - mean), axis=(0, 1, 2), keepdims=True)
        return (y - mean) * jax.lax.rsqrt(var + EPS) * g + b

    y = jax.nn.relu(bn(conv(x, p["w1"], p["b1"], stride, 1), p["g1"], p["be1"]))
    y = bn(conv(y, p["w2"], p["b2"], 1, 1), p["g2"], p["be2"])
    sc = conv(x, p["w3"], p["b3"], stride, 0) if use_conv1 else x
    out = jax.nn.relu(y + sc)
    return jnp.transpose(out, (0, 3, 1, 2))


# --------------------------------- main -------------------------------------


def make_params(key, cin, cout):
    ks = jax.random.split(key, 10)
    return {
        "w1": 0.1 * jax.random.normal(ks[0], (cout, cin, 3, 3), jnp.float32),
        "b1": 0.1 * jax.random.normal(ks[1], (cout,), jnp.float32),
        "w2": 0.1 * jax.random.normal(ks[2], (cout, cout, 3, 3), jnp.float32),
        "b2": 0.1 * jax.random.normal(ks[3], (cout,), jnp.float32),
        "w3": 0.1 * jax.random.normal(ks[4], (cout, cin, 1, 1), jnp.float32),
        "b3": 0.1 * jax.random.normal(ks[5], (cout,), jnp.float32),
        "g1": 1.0 + 0.1 * jax.random.normal(ks[6], (cout,), jnp.float32),
        "be1": 0.1 * jax.random.normal(ks[7], (cout,), jnp.float32),
        "g2": 1.0 + 0.1 * jax.random.normal(ks[8], (cout,), jnp.float32),
        "be2": 0.1 * jax.random.normal(ks[9], (cout,), jnp.float32),
    }


if __name__ == "__main__":
    key = jax.random.PRNGKey(0)
    kx, kp, kp2 = jax.random.split(key, 3)

    # Resnet(in_channels=4, out_channels=8, use_conv1=True, stride=1)
    batch, cin, cout, spatial = 2, 4, 8, 16
    x = jax.random.normal(kx, (batch, cin, spatial, spatial), jnp.float32)
    params = make_params(kp, cin, cout)

    out = jax.block_until_ready(
        resnet_forward_pallas(x, params, stride=1, use_conv1=True))
    ref = jax.block_until_ready(
        resnet_forward_ref(x, params, stride=1, use_conv1=True))
    assert out.shape == (batch, cout, spatial, spatial), out.shape
    assert bool(jnp.all(jnp.isfinite(out)))
    assert bool(jnp.allclose(out, ref, atol=5e-2, rtol=5e-2))

    # Stride-2 projection block (exercises the subsampled conv1/shortcut path)
    x2 = jax.random.normal(jax.random.PRNGKey(1),
                           (batch, cin, spatial, spatial), jnp.float32)
    out2 = jax.block_until_ready(
        resnet_forward_pallas(x2, params, stride=2, use_conv1=True))
    ref2 = jax.block_until_ready(
        resnet_forward_ref(x2, params, stride=2, use_conv1=True))
    assert out2.shape == (batch, cout, spatial // 2, spatial // 2), out2.shape
    assert bool(jnp.all(jnp.isfinite(out2)))
    assert bool(jnp.allclose(out2, ref2, atol=5e-2, rtol=5e-2))

    # Identity-shortcut block (use_conv1=False, Cin == Cout, stride 1)
    params3 = make_params(kp2, cout, cout)
    x3 = jax.random.normal(jax.random.PRNGKey(2),
                           (batch, cout, spatial, spatial), jnp.float32)
    out3 = jax.block_until_ready(
        resnet_forward_pallas(x3, params3, stride=1, use_conv1=False))
    ref3 = jax.block_until_ready(
        resnet_forward_ref(x3, params3, stride=1, use_conv1=False))
    assert out3.shape == (batch, cout, spatial, spatial), out3.shape
    assert bool(jnp.all(jnp.isfinite(out3)))
    assert bool(jnp.allclose(out3, ref3, atol=5e-2, rtol=5e-2))

    print("KERNEL_OK")
</pallas_src>

<mosaic_0001>
module attributes {stable_mosaic.version = 11 : i64} {
  func.func @_conv1_shortcut_kernel(%arg0: memref<2x18x18x128xbf16, #tpu.memory_space<vmem>>, %arg1: memref<1152x256xbf16, #tpu.memory_space<vmem>>, %arg2: memref<1x256xf32, #tpu.memory_space<vmem>>, %arg3: memref<512x256xbf16, #tpu.memory_space<vmem>>) attributes {dimension_semantics = [], scalar_prefetch = 0 : i64, scratch_operands = 0 : i64, tpu.core_type = #tpu.core_type<tc>} {
    %c0 = arith.constant 0 : index
    %c0_0 = arith.constant 0 : index
    %c0_1 = arith.constant 0 : index
    %c0_2 = arith.constant 0 : index
    %0 = vector.load %arg0[%c0, %c0_0, %c0_1, %c0_2] : memref<2x18x18x128xbf16, #tpu.memory_space<vmem>>, vector<2x16x16x128xbf16>
    %c0_3 = arith.constant 0 : index
    %c0_4 = arith.constant 0 : index
    %c1 = arith.constant 1 : index
    %c0_5 = arith.constant 0 : index
    %1 = vector.load %arg0[%c0_3, %c0_4, %c1, %c0_5] : memref<2x18x18x128xbf16, #tpu.memory_space<vmem>>, vector<2x16x16x128xbf16>
    %c0_6 = arith.constant 0 : index
    %c0_7 = arith.constant 0 : index
    %c2 = arith.constant 2 : index
    %c0_8 = arith.constant 0 : index
    %2 = vector.load %arg0[%c0_6, %c0_7, %c2, %c0_8] : memref<2x18x18x128xbf16, #tpu.memory_space<vmem>>, vector<2x16x16x128xbf16>
    %c0_9 = arith.constant 0 : index
    %c1_10 = arith.constant 1 : index
    %c0_11 = arith.constant 0 : index
    %c0_12 = arith.constant 0 : index
    %3 = vector.load %arg0[%c0_9, %c1_10, %c0_11, %c0_12] : memref<2x18x18x128xbf16, #tpu.memory_space<vmem>>, vector<2x16x16x128xbf16>
    %c0_13 = arith.constant 0 : index
    %c1_14 = arith.constant 1 : index
    %c1_15 = arith.constant 1 : index
    %c0_16 = arith.constant 0 : index
    %4 = vector.load %arg0[%c0_13, %c1_14, %c1_15, %c0_16] : memref<2x18x18x128xbf16, #tpu.memory_space<vmem>>, vector<2x16x16x128xbf16>
    %c0_17 = arith.constant 0 : index
    %c1_18 = arith.constant 1 : index
    %c2_19 = arith.constant 2 : index
    %c0_20 = arith.constant 0 : index
    %5 = vector.load %arg0[%c0_17, %c1_18, %c2_19, %c0_20] : memref<2x18x18x128xbf16, #tpu.memory_space<vmem>>, vector<2x16x16x128xbf16>
    %c0_21 = arith.constant 0 : index
    %c2_22 = arith.constant 2 : index
    %c0_23 = arith.constant 0 : index
    %c0_24 = arith.constant 0 : index
    %6 = vector.load %arg0[%c0_21, %c2_22, %c0_23, %c0_24] : memref<2x18x18x128xbf16, #tpu.memory_space<vmem>>, vector<2x16x16x128xbf16>
    %c0_25 = arith.constant 0 : index
    %c2_26 = arith.constant 2 : index
    %c1_27 = arith.constant 1 : index
    %c0_28 = arith.constant 0 : index
    %7 = vector.load %arg0[%c0_25, %c2_26, %c1_27, %c0_28] : memref<2x18x18x128xbf16, #tpu.memory_space<vmem>>, vector<2x16x16x128xbf16>
    %c0_29 = arith.constant 0 : index
    %c2_30 = arith.constant 2 : index
    %c2_31 = arith.constant 2 : index
    %c0_32 = arith.constant 0 : index
    %8 = vector.load %arg0[%c0_29, %c2_30, %c2_31, %c0_32] : memref<2x18x18x128xbf16, #tpu.memory_space<vmem>>, vector<2x16x16x128xbf16>
    %9 = tpu.concatenate %0, %1, %2, %3, %4, %5, %6, %7, %8 in 3 : vector<2x16x16x128xbf16>, vector<2x16x16x128xbf16>, vector<2x16x16x128xbf16>, vector<2x16x16x128xbf16>, vector<2x16x16x128xbf16>, vector<2x16x16x128xbf16>, vector<2x16x16x128xbf16>, vector<2x16x16x128xbf16>, vector<2x16x16x128xbf16> -> vector<2x16x16x1152xbf16>
    %10 = vector.shape_cast %9 : vector<2x16x16x1152xbf16> to vector<512x1152xbf16>
    %c0_33 = arith.constant 0 : index
    %c0_34 = arith.constant 0 : index
    %11 = vector.load %arg1[%c0_33, %c0_34] : memref<1152x256xbf16, #tpu.memory_space<vmem>>, vector<1152x256xbf16>
    %cst = arith.constant dense<0.000000e+00> : vector<512x256xf32>
    %12 = tpu.matmul %10, %11, %cst {dimension_numbers = #tpu.dot_dimension_numbers<[1], [0], [0], [1], [0, 0, 1, 1], [], []>} : vector<512x1152xbf16>, vector<1152x256xbf16>, vector<512x256xf32> -> vector<512x256xf32>
    %c0_35 = arith.constant 0 : index
    %c0_36 = arith.constant 0 : index
    %13 = vector.load %arg2[%c0_35, %c0_36] : memref<1x256xf32, #tpu.memory_space<vmem>>, vector<1x256xf32>
    %14 = vector.broadcast %13 : vector<1x256xf32> to vector<512x256xf32>
    %15 = arith.addf %12, %14 : vector<512x256xf32>
    %16 = arith.truncf %15 : vector<512x256xf32> to vector<512x256xbf16>
    %c0_37 = arith.constant 0 : index
    %c0_38 = arith.constant 0 : index
    %17 = vector.load %arg3[%c0_37, %c0_38] : memref<512x256xbf16, #tpu.memory_space<vmem>>, vector<512x256xbf16>
    tpu.vector_store %arg3[%c0_37, %c0_38], %16 {strides = array<i32>} : memref<512x256xbf16, #tpu.memory_space<vmem>>, vector<512x256xbf16>,
    return
  }
}

module attributes {stable_mosaic.version = 11 : i64} {
  func.func @_bn1_conv2_bn2_kernel(%arg0: memref<512x128xbf16, #tpu.memory_space<vmem>>, %arg1: memref<512x128xbf16, #tpu.memory_space<vmem>>, %arg2: memref<1152x128xbf16, #tpu.memory_space<vmem>>, %arg3: memref<1x128xf32, #tpu.memory_space<vmem>>, %arg4: memref<1x128xf32, #tpu.memory_space<vmem>>, %arg5: memref<1x128xf32, #tpu.memory_space<vmem>>, %arg6: memref<1x128xf32, #tpu.memory_space<vmem>>, %arg7: memref<512x128xf32, #tpu.memory_space<vmem>>, %arg8: memref<2x18x18x128xbf16, #tpu.memory_space<vmem>>) attributes {dimension_semantics = [], scalar_prefetch = 0 : i64, scratch_operands = 1 : i64, tpu.core_type = #tpu.core_type<tc>} {
    %c0 = arith.constant 0 : index
    %c0_0 = arith.constant 0 : index
    %0 = vector.load %arg0[%c0, %c0_0] : memref<512x128xbf16, #tpu.memory_space<vmem>>, vector<512x128xbf16>
    %1 = arith.extf %0 : vector<512x128xbf16> to vector<512x128xf32>
    %cst = arith.constant dense<0.000000e+00> : vector<128xf32>
    %2 = vector.multi_reduction <add>, %1, %cst [0] : vector<512x128xf32> to vector<128xf32>
    %3 = vector.shape_cast %2 : vector<128xf32> to vector<1x128xf32>
    %cst_1 = arith.constant 0.001953125 : f32
    %4 = vector.broadcast %cst_1 : f32 to vector<1x128xf32>
    %5 = arith.mulf %3, %4 : vector<1x128xf32>
    %6 = vector.broadcast %5 : vector<1x128xf32> to vector<512x128xf32>
    %7 = arith.subf %1, %6 : vector<512x128xf32>
    %8 = arith.mulf %7, %7 : vector<512x128xf32>
    %cst_2 = arith.constant dense<0.000000e+00> : vector<128xf32>
    %9 = vector.multi_reduction <add>, %8, %cst_2 [0] : vector<512x128xf32> to vector<128xf32>
    %10 = vector.shape_cast %9 : vector<128xf32> to vector<1x128xf32>
    %cst_3 = arith.constant 0.001953125 : f32
    %11 = vector.broadcast %cst_3 : f32 to vector<1x128xf32>
    %12 = arith.mulf %10, %11 : vector<1x128xf32>
    %c0_4 = arith.constant 0 : index
    %c0_5 = arith.constant 0 : index
    %13 = vector.load %arg3[%c0_4, %c0_5] : memref<1x128xf32, #tpu.memory_space<vmem>>, vector<1x128xf32>
    %cst_6 = arith.constant 9.99999974E-6 : f32
    %14 = vector.broadcast %cst_6 : f32 to vector<1x128xf32>
    %15 = arith.addf %12, %14 : vector<1x128xf32>
    %16 = math.rsqrt %15 : vector<1x128xf32>
    %17 = arith.mulf %13, %16 : vector<1x128xf32>
    %18 = vector.broadcast %17 : vector<1x128xf32> to vector<512x128xf32>
    %19 = arith.mulf %7, %18 : vector<512x128xf32>
    %c0_7 = arith.constant 0 : index
    %c0_8 = arith.constant 0 : index
    %20 = vector.load %arg4[%c0_7, %c0_8] : memref<1x128xf32, #tpu.memory_space<vmem>>, vector<1x128xf32>
    %21 = vector.broadcast %20 : vector<1x128xf32> to vector<512x128xf32>
    %22 = arith.addf %19, %21 : vector<512x128xf32>
    %cst_9 = arith.constant 0.000000e+00 : f32
    %23 = vector.broadcast %cst_9 : f32 to vector<512x128xf32>
    %24 = arith.maximumf %22, %23 : vector<512x128xf32>
    %cst_10 = arith.constant 0.000000e+00 : bf16
    %25 = vector.broadcast %cst_10 : bf16 to vector<2x18x18x128xbf16>
    %c0_11 = arith.constant 0 : index
    %c0_12 = arith.constant 0 : index
    %c0_13 = arith.constant 0 : index
    %c0_14 = arith.constant 0 : index
    %26 = vector.load %arg8[%c0_11, %c0_12, %c0_13, %c0_14] : memref<2x18x18x128xbf16, #tpu.memory_space<vmem>>, vector<2x18x18x128xbf16>
    tpu.vector_store %arg8[%c0_11, %c0_12, %c0_13, %c0_14], %25 {strides = array<i32>} : memref<2x18x18x128xbf16, #tpu.memory_space<vmem>>, vector<2x18x18x128xbf16>,
    %27 = arith.truncf %24 : vector<512x128xf32> to vector<512x128xbf16>
    %28 = vector.shape_cast %27 : vector<512x128xbf16> to vector<2x16x16x128xbf16>
    %c0_15 = arith.constant 0 : index
    %c1 = arith.constant 1 : index
    %c1_16 = arith.constant 1 : index
    %c0_17 = arith.constant 0 : index
    %29 = vector.load %arg8[%c0_15, %c1, %c1_16, %c0_17] : memref<2x18x18x128xbf16, #tpu.memory_space<vmem>>, vector<2x16x16x128xbf16>
    tpu.vector_store %arg8[%c0_15, %c1, %c1_16, %c0_17], %28 {strides = array<i32>} : memref<2x18x18x128xbf16, #tpu.memory_space<vmem>>, vector<2x16x16x128xbf16>,
    %c0_18 = arith.constant 0 : index
    %c0_19 = arith.constant 0 : index
    %c0_20 = arith.constant 0 : index
    %c0_21 = arith.constant 0 : index
    %30 = vector.load %arg8[%c0_18, %c0_19, %c0_20, %c0_21] : memref<2x18x18x128xbf16, #tpu.memory_space<vmem>>, vector<2x16x16x128xbf16>
    %c0_22 = arith.constant 0 : index
    %c0_23 = arith.constant 0 : index
    %c1_24 = arith.constant 1 : index
    %c0_25 = arith.constant 0 : index
    %31 = vector.load %arg8[%c0_22, %c0_23, %c1_24, %c0_25] : memref<2x18x18x128xbf16, #tpu.memory_space<vmem>>, vector<2x16x16x128xbf16>
    %c0_26 = arith.constant 0 : index
    %c0_27 = arith.constant 0 : index
    %c2 = arith.constant 2 : index
    %c0_28 = arith.constant 0 : index
    %32 = vector.load %arg8[%c0_26, %c0_27, %c2, %c0_28] : memref<2x18x18x128xbf16, #tpu.memory_space<vmem>>, vector<2x16x16x128xbf16>
    %c0_29 = arith.constant 0 : index
    %c1_30 = arith.constant 1 : index
    %c0_31 = arith.constant 0 : index
    %c0_32 = arith.constant 0 : index
    %33 = vector.load %arg8[%c0_29, %c1_30, %c0_31, %c0_32] : memref<2x18x18x128xbf16, #tpu.memory_space<vmem>>, vector<2x16x16x128xbf16>
    %c0_33 = arith.constant 0 : index
    %c1_34 = arith.constant 1 : index
    %c1_35 = arith.constant 1 : index
    %c0_36 = arith.constant 0 : index
    %34 = vector.load %arg8[%c0_33, %c1_34, %c1_35, %c0_36] : memref<2x18x18x128xbf16, #tpu.memory_space<vmem>>, vector<2x16x16x128xbf16>
    %c0_37 = arith.constant 0 : index
    %c1_38 = arith.constant 1 : index
    %c2_39 = arith.constant 2 : index
    %c0_40 = arith.constant 0 : index
    %35 = vector.load %arg8[%c0_37, %c1_38, %c2_39, %c0_40] : memref<2x18x18x128xbf16, #tpu.memory_space<vmem>>, vector<2x16x16x128xbf16>
    %c0_41 = arith.constant 0 : index
    %c2_42 = arith.constant 2 : index
    %c0_43 = arith.constant 0 : index
    %c0_44 = arith.constant 0 : index
    %36 = vector.load %arg8[%c0_41, %c2_42, %c0_43, %c0_44] : memref<2x18x18x128xbf16, #tpu.memory_space<vmem>>, vector<2x16x16x128xbf16>
    %c0_45 = arith.constant 0 : index
    %c2_46 = arith.constant 2 : index
    %c1_47 = arith.constant 1 : index
    %c0_48 = arith.constant 0 : index
    %37 = vector.load %arg8[%c0_45, %c2_46, %c1_47, %c0_48] : memref<2x18x18x128xbf16, #tpu.memory_space<vmem>>, vector<2x16x16x128xbf16>
    %c0_49 = arith.constant 0 : index
    %c2_50 = arith.constant 2 : index
    %c2_51 = arith.constant 2 : index
    %c0_52 = arith.constant 0 : index
    %38 = vector.load %arg8[%c0_49, %c2_50, %c2_51, %c0_52] : memref<2x18x18x128xbf16, #tpu.memory_space<vmem>>, vector<2x16x16x128xbf16>
    %39 = tpu.concatenate %30, %31, %32, %33, %34, %35, %36, %37, %38 in 3 : vector<2x16x16x128xbf16>, vector<2x16x16x128xbf16>, vector<2x16x16x128xbf16>, vector<2x16x16x128xbf16>, vector<2x16x16x128xbf16>, vector<2x16x16x128xbf16>, vector<2x16x16x128xbf16>, vector<2x16x16x128xbf16>, vector<2x16x16x128xbf16> -> vector<2x16x16x1152xbf16>
    %40 = vector.shape_cast %39 : vector<2x16x16x1152xbf16> to vector<512x1152xbf16>
    %c0_53 = arith.constant 0 : index
    %c0_54 = arith.constant 0 : index
    %41 = vector.load %arg2[%c0_53, %c0_54] : memref<1152x128xbf16, #tpu.memory_space<vmem>>, vector<1152x128xbf16>
    %cst_55 = arith.constant dense<0.000000e+00> : vector<512x128xf32>
    %42 = tpu.matmul %40, %41, %cst_55 {dimension_numbers = #tpu.dot_dimension_numbers<[1], [0], [0], [1], [0, 0, 1, 1], [], []>} : vector<512x1152xbf16>, vector<1152x128xbf16>, vector<512x128xf32> -> vector<512x128xf32>
    %cst_56 = arith.constant dense<0.000000e+00> : vector<128xf32>
    %43 = vector.multi_reduction <add>, %42, %cst_56 [0] : vector<512x128xf32> to vector<128xf32>
    %44 = vector.shape_cast %43 : vector<128xf32> to vector<1x128xf32>
    %cst_57 = arith.constant 0.001953125 : f32
    %45 = vector.broadcast %cst_57 : f32 to vector<1x128xf32>
    %46 = arith.mulf %44, %45 : vector<1x128xf32>
    %47 = vector.broadcast %46 : vector<1x128xf32> to vector<512x128xf32>
    %48 = arith.subf %42, %47 : vector<512x128xf32>
    %49 = arith.mulf %48, %48 : vector<512x128xf32>
    %cst_58 = arith.constant dense<0.000000e+00> : vector<128xf32>
    %50 = vector.multi_reduction <add>, %49, %cst_58 [0] : vector<512x128xf32> to vector<128xf32>
    %51 = vector.shape_cast %50 : vector<128xf32> to vector<1x128xf32>
    %cst_59 = arith.constant 0.001953125 : f32
    %52 = vector.broadcast %cst_59 : f32 to vector<1x128xf32>
    %53 = arith.mulf %51, %52 : vector<1x128xf32>
    %c0_60 = arith.constant 0 : index
    %c0_61 = arith.constant 0 : index
    %54 = vector.load %arg5[%c0_60, %c0_61] : memref<1x128xf32, #tpu.memory_space<vmem>>, vector<1x128xf32>
    %cst_62 = arith.constant 9.99999974E-6 : f32
    %55 = vector.broadcast %cst_62 : f32 to vector<1x128xf32>
    %56 = arith.addf %53, %55 : vector<1x128xf32>
    %57 = math.rsqrt %56 : vector<1x128xf32>
    %58 = arith.mulf %54, %57 : vector<1x128xf32>
    %59 = vector.broadcast %58 : vector<1x128xf32> to vector<512x128xf32>
    %60 = arith.mulf %48, %59 : vector<512x128xf32>
    %c0_63 = arith.constant 0 : index
    %c0_64 = arith.constant 0 : index
    %61 = vector.load %arg6[%c0_63, %c0_64] : memref<1x128xf32, #tpu.memory_space<vmem>>, vector<1x128xf32>
    %62 = vector.broadcast %61 : vector<1x128xf32> to vector<512x128xf32>
    %63 = arith.addf %60, %62 : vector<512x128xf32>
    %c0_65 = arith.constant 0 : index
    %c0_66 = arith.constant 0 : index
    %64 = vector.load %arg1[%c0_65, %c0_66] : memref<512x128xbf16, #tpu.memory_space<vmem>>, vector<512x128xbf16>
    %65 = arith.extf %64 : vector<512x128xbf16> to vector<512x128xf32>
    %66 = arith.addf %63, %65 : vector<512x128xf32>
    %cst_67 = arith.constant 0.000000e+00 : f32
    %67 = vector.broadcast %cst_67 : f32 to vector<512x128xf32>
    %68 = arith.maximumf %66, %67 : vector<512x128xf32>
    %c0_68 = arith.constant 0 : index
    %c0_69 = arith.constant 0 : index
    %69 = vector.load %arg7[%c0_68, %c0_69] : memref<512x128xf32, #tpu.memory_space<vmem>>, vector<512x128xf32>
    tpu.vector_store %arg7[%c0_68, %c0_69], %68 {strides = array<i32>} : memref<512x128xf32, #tpu.memory_space<vmem>>, vector<512x128xf32>,
    return
  }
}

</mosaic_0001>

<llo_original>
// kernel: resnet_forward_pallas.2
$region0: #{resnet_forward_pallas.2}
  #allocation0 [shape = 'u32[]', space=smem, size = 0x4, offset = 0x4, fixed_abs, tag = 'smem constant byte address 0x4 - core index']
  #allocation1 [shape = 'u32[72,128]{1,0:T(1,128)}', space=vmem, size = 0x9000, scoped, tag = 'internal scratch']
  %s0 = inlined_call_operand.vmem [shape: bf16[2,18,18,128], index: 0, kind: input, shape index: {}]
  %s1 = inlined_call_operand.vmem [shape: bf16[1152,256], index: 1, kind: input, shape index: {}]
  %s2 = inlined_call_operand.vmem [shape: f32[1,256], index: 2, kind: input, shape index: {}]
  %s3 = inlined_call_operand.vmem [shape: bf16[512,256], index: 3, kind: output, shape index: {}]
  %s4 = sld [smem:[#allocation0]]
  $region22: #{resnet_forward_pallas.2} parent=0
    _
  %s6 = ssub.s32 1, %s4
  %s7 = scalar_select 0, %s6, %s4
  // Predicated region
  $region2: #{resnet_forward_pallas.2} parent=0 // pred_check
    _
  $region3: #{resnet_forward_pallas.2} parent=0 // pred_check_branch
    %9 = sbr.rel (0) target = $region5
  $region4: #{resnet_forward_pallas.2} parent=0 // pred_region
    _
  $region5: #{resnet_forward_pallas.2} parent=0 // pred_fallthru
    _
  // Predicated region
  $region6: #{resnet_forward_pallas.2} parent=0 // pred_check
    _
  $region7: #{resnet_forward_pallas.2} parent=0 // pred_check_branch
    %11 = sbr.rel (0) target = $region9
  $region8: #{resnet_forward_pallas.2} parent=0 // pred_region
    _
  $region9: #{resnet_forward_pallas.2} parent=0 // pred_fallthru
    _
  // Predicated region
  $region10: #{resnet_forward_pallas.2} parent=0 // pred_check
    _
  $region11: #{resnet_forward_pallas.2} parent=0 // pred_check_branch
    %13 = sbr.rel (0) target = $region13
  $region12: #{resnet_forward_pallas.2} parent=0 // pred_region
    _
  $region13: #{resnet_forward_pallas.2} parent=0 // pred_fallthru
    _
  %v14 = vld [vmem:[%s0] sm:$0xf]
  %v15 = vld [vmem:[%s0 + $0x4] sm:$0xf]
  %v16 = vld [vmem:[%s0 + $0xc] sm:$0xf]
  %v17 = vld [vmem:[%s0 + $0x10] sm:$0xf]
  %v18 = vld [vmem:[%s0 + $0x18] sm:$0xf]
  %v19 = vld [vmem:[%s0 + $0x1c] sm:$0xf]
  %v20 = vld [vmem:[%s0 + $0x24] sm:$0xf]
  %v21 = vld [vmem:[%s0 + $0x28] sm:$0xf]
  %v22 = vld [vmem:[%s0 + $0x30] sm:$0xf]
  %v23 = vld [vmem:[%s0 + $0x34] sm:$0xf]
  %v24 = vld [vmem:[%s0 + $0x3c] sm:$0xf]
  %v25 = vld [vmem:[%s0 + $0x40] sm:$0xf]
  %v26 = vld [vmem:[%s0 + $0x48] sm:$0xf]
  %v27 = vld [vmem:[%s0 + $0x4c] sm:$0xf]
  %v28 = vld [vmem:[%s0 + $0x54] sm:$0xf]
  %v29 = vld [vmem:[%s0 + $0x58] sm:$0xf]
  %v30 = vld [vmem:[%s0 + $0x60] sm:$0xf]
  %v31 = vld [vmem:[%s0 + $0x64] sm:$0xf]
  %v32 = vld [vmem:[%s0 + $0x6c] sm:$0xf]
  %v33 = vld [vmem:[%s0 + $0x70] sm:$0xf]
  %v34 = vld [vmem:[%s0 + $0x78] sm:$0xf]
  %v35 = vld [vmem:[%s0 + $0x7c] sm:$0xf]
  %v36 = vld [vmem:[%s0 + $0x84] sm:$0xf]
  %v37 = vld [vmem:[%s0 + $0x88] sm:$0xf]
  %v38 = vld [vmem:[%s0 + $0x90] sm:$0xf]
  %v39 = vld [vmem:[%s0 + $0x94] sm:$0xf]
  %v40 = vld [vmem:[%s0 + $0x9c] sm:$0xf]
  %v41 = vld [vmem:[%s0 + $0xa0] sm:$0xf]
  %v42 = vld [vmem:[%s0 + $0xa8] sm:$0xf]
  %v43 = vld [vmem:[%s0 + $0xac] sm:$0xf]
  %v44 = vld [vmem:[%s0 + $0xb4] sm:$0xf]
  %v45 = vld [vmem:[%s0 + $0xb8] sm:$0xf]
  %v46 = vld [vmem:[%s0 + $0xd8] sm:$0xf]
  %v47 = vld [vmem:[%s0 + $0xdc] sm:$0xf]
  %v48 = vld [vmem:[%s0 + $0xe4] sm:$0xf]
  %v49 = vld [vmem:[%s0 + $0xe8] sm:$0xf]
  %v50 = vld [vmem:[%s0 + $0xf0] sm:$0xf]
  %v51 = vld [vmem:[%s0 + $0xf4] sm:$0xf]
  %v52 = vld [vmem:[%s0 + $0xfc] sm:$0xf]
  %v53 = vld [vmem:[%s0 + $0x100] sm:$0xf]
  %v54 = vld [vmem:[%s0 + $0x108] sm:$0xf]
  %v55 = vld [vmem:[%s0 + $0x10c] sm:$0xf]
  %v56 = vld [vmem:[%s0 + $0x114] sm:$0xf]
  %v57 = vld [vmem:[%s0 + $0x118] sm:$0xf]
  %v58 = vld [vmem:[%s0 + $0x120] sm:$0xf]
  %v59 = vld [vmem:[%s0 + $0x124] sm:$0xf]
  %v60 = vld [vmem:[%s0 + $0x12c] sm:$0xf]
  %v61 = vld [vmem:[%s0 + $0x130] sm:$0xf]
  %v62 = vld [vmem:[%s0 + $0x138] sm:$0xf]
  %v63 = vld [vmem:[%s0 + $0x13c] sm:$0xf]
  %v64 = vld [vmem:[%s0 + $0x144] sm:$0xf]
  %v65 = vld [vmem:[%s0 + $0x148] sm:$0xf]
  %v66 = vld [vmem:[%s0 + $0x150] sm:$0xf]
  %v67 = vld [vmem:[%s0 + $0x154] sm:$0xf]
  %v68 = vld [vmem:[%s0 + $0x15c] sm:$0xf]
  %v69 = vld [vmem:[%s0 + $0x160] sm:$0xf]
  %v70 = vld [vmem:[%s0 + $0x168] sm:$0xf]
  %v71 = vld [vmem:[%s0 + $0x16c] sm:$0xf]
  %v72 = vld [vmem:[%s0 + $0x174] sm:$0xf]
  %v73 = vld [vmem:[%s0 + $0x178] sm:$0xf]
  %v74 = vld [vmem:[%s0 + $0x180] sm:$0xf]
  %v75 = vld [vmem:[%s0 + $0x184] sm:$0xf]
  %v76 = vld [vmem:[%s0 + $0x18c] sm:$0xf]
  %v77 = vld [vmem:[%s0 + $0x190] sm:$0xf]
  %v78 = vld [vmem:[%s0 + $0x8] sm:$0x1]
  %v79 = vld [vmem:[%s0 + $0x14] sm:$0x1]
  %v80 = vld [vmem:[%s0 + $0x20] sm:$0x1]
  %v81 = vld [vmem:[%s0 + $0x2c] sm:$0x1]
  %v82 = vld [vmem:[%s0 + $0x38] sm:$0x1]
  %v83 = vld [vmem:[%s0 + $0x44] sm:$0x1]
  %v84 = vld [vmem:[%s0 + $0x50] sm:$0x1]
  %v85 = vld [vmem:[%s0 + $0x5c] sm:$0x1]
  %v86 = vld [vmem:[%s0 + $0x68] sm:$0x1]
  %v87 = vld [vmem:[%s0 + $0x74] sm:$0x1]
  %v88 = vld [vmem:[%s0 + $0x80] sm:$0x1]
  %v89 = vld [vmem:[%s0 + $0x8c] sm:$0x1]
  %v90 = vld [vmem:[%s0 + $0x98] sm:$0x1]
  %v91 = vld [vmem:[%s0 + $0xa4] sm:$0x1]
  %v92 = vld [vmem:[%s0 + $0xb0] sm:$0x1]
  %v93 = vld [vmem:[%s0 + $0xbc] sm:$0x1]
  %v94 = vld [vmem:[%s0 + $0xe0] sm:$0x1]
  %v95 = vld [vmem:[%s0 + $0xec] sm:$0x1]
  %v96 = vld [vmem:[%s0 + $0xf8] sm:$0x1]
  %v97 = vld [vmem:[%s0 + $0x104] sm:$0x1]
  %v98 = vld [vmem:[%s0 + $0x110] sm:$0x1]
  %v99 = vld [vmem:[%s0 + $0x11c] sm:$0x1]
  %v100 = vld [vmem:[%s0 + $0x128] sm:$0x1]
  %v101 = vld [vmem:[%s0 + $0x134] sm:$0x1]
  %v102 = vld [vmem:[%s0 + $0x140] sm:$0x1]
  %v103 = vld [vmem:[%s0 + $0x14c] sm:$0x1]
  %v104 = vld [vmem:[%s0 + $0x158] sm:$0x1]
  %v105 = vld [vmem:[%s0 + $0x164] sm:$0x1]
  %v106 = vld [vmem:[%s0 + $0x170] sm:$0x1]
  %v107 = vld [vmem:[%s0 + $0x17c] sm:$0x1]
  %v108 = vld [vmem:[%s0 + $0x188] sm:$0x1]
  %v109 = vld [vmem:[%s0 + $0x194] sm:$0x1]
  %v110 = vld [vmem:[%s0] sm:$0xe]
  %v111 = vld [vmem:[%s0 + $0xc] sm:$0xe]
  %v112 = vld [vmem:[%s0 + $0x18] sm:$0xe]
  %v113 = vld [vmem:[%s0 + $0x24] sm:$0xe]
  %v114 = vld [vmem:[%s0 + $0x30] sm:$0xe]
  %v115 = vld [vmem:[%s0 + $0x3c] sm:$0xe]
  %v116 = vld [vmem:[%s0 + $0x48] sm:$0xe]
  %v117 = vld [vmem:[%s0 + $0x54] sm:$0xe]
  %v118 = vld [vmem:[%s0 + $0x60] sm:$0xe]
  %v119 = vld [vmem:[%s0 + $0x6c] sm:$0xe]
  %v120 = vld [vmem:[%s0 + $0x78] sm:$0xe]
  %v121 = vld [vmem:[%s0 + $0x84] sm:$0xe]
  %v122 = vld [vmem:[%s0 + $0x90] sm:$0xe]
  %v123 = vld [vmem:[%s0 + $0x9c] sm:$0xe]
  %v124 = vld [vmem:[%s0 + $0xa8] sm:$0xe]
  %v125 = vld [vmem:[%s0 + $0xb4] sm:$0xe]
  %v126 = vld [vmem:[%s0 + $0xd8] sm:$0xe]
  %v127 = vld [vmem:[%s0 + $0xe4] sm:$0xe]
  %v128 = vld [vmem:[%s0 + $0xf0] sm:$0xe]
  %v129 = vld [vmem:[%s0 + $0xfc] sm:$0xe]
  %v130 = vld [vmem:[%s0 + $0x108] sm:$0xe]
  %v131 = vld [vmem:[%s0 + $0x114] sm:$0xe]
  %v132 = vld [vmem:[%s0 + $0x120] sm:$0xe]
  %v133 = vld [vmem:[%s0 + $0x12c] sm:$0xe]
  %v134 = vld [vmem:[%s0 + $0x138] sm:$0xe]
  %v135 = vld [vmem:[%s0 + $0x144] sm:$0xe]
  %v136 = vld [vmem:[%s0 + $0x150] sm:$0xe]
  %v137 = vld [vmem:[%s0 + $0x15c] sm:$0xe]
  %v138 = vld [vmem:[%s0 + $0x168] sm:$0xe]
  %v139 = vld [vmem:[%s0 + $0x174] sm:$0xe]
  %v140 = vld [vmem:[%s0 + $0x180] sm:$0xe]
  %v141 = vld [vmem:[%s0 + $0x18c] sm:$0xe]
  %s142 = scalar_lea.vmem %s0, 12
  %v143 = vld [vmem:[%s142] sm:$0xf]
  %v144 = vld [vmem:[%s142 + $0x4] sm:$0xf]
  %v145 = vld [vmem:[%s142 + $0xc] sm:$0xf]
  %v146 = vld [vmem:[%s142 + $0x10] sm:$0xf]
  %v147 = vld [vmem:[%s142 + $0x18] sm:$0xf]
  %v148 = vld [vmem:[%s142 + $0x1c] sm:$0xf]
  %v149 = vld [vmem:[%s142 + $0x24] sm:$0xf]
  %v150 = vld [vmem:[%s142 + $0x28] sm:$0xf]
  %v151 = vld [vmem:[%s142 + $0x30] sm:$0xf]
  %v152 = vld [vmem:[%s142 + $0x34] sm:$0xf]
  %v153 = vld [vmem:[%s142 + $0x3c] sm:$0xf]
  %v154 = vld [vmem:[%s142 + $0x40] sm:$0xf]
  %v155 = vld [vmem:[%s142 + $0x48] sm:$0xf]
  %v156 = vld [vmem:[%s142 + $0x4c] sm:$0xf]
  %v157 = vld [vmem:[%s142 + $0x54] sm:$0xf]
  %v158 = vld [vmem:[%s142 + $0x58] sm:$0xf]
  %v159 = vld [vmem:[%s142 + $0x60] sm:$0xf]
  %v160 = vld [vmem:[%s142 + $0x64] sm:$0xf]
  %v161 = vld [vmem:[%s142 + $0x6c] sm:$0xf]
  %v162 = vld [vmem:[%s142 + $0x70] sm:$0xf]
  %v163 = vld [vmem:[%s142 + $0x78] sm:$0xf]
  %v164 = vld [vmem:[%s142 + $0x7c] sm:$0xf]
  %v165 = vld [vmem:[%s142 + $0x84] sm:$0xf]
  %v166 = vld [vmem:[%s142 + $0x88] sm:$0xf]
  %v167 = vld [vmem:[%s142 + $0x90] sm:$0xf]
  %v168 = vld [vmem:[%s142 + $0x94] sm:$0xf]
  %v169 = vld [vmem:[%s142 + $0x9c] sm:$0xf]
  %v170 = vld [vmem:[%s142 + $0xa0] sm:$0xf]
  %v171 = vld [vmem:[%s142 + $0xa8] sm:$0xf]
  %v172 = vld [vmem:[%s142 + $0xac] sm:$0xf]
  %v173 = vld [vmem:[%s142 + $0xb4] sm:$0xf]
  %v174 = vld [vmem:[%s142 + $0xb8] sm:$0xf]
  %v175 = vld [vmem:[%s142 + $0xd8] sm:$0xf]
  %v176 = vld [vmem:[%s142 + $0xdc] sm:$0xf]
  %v177 = vld [vmem:[%s142 + $0xe4] sm:$0xf]
  %v178 = vld [vmem:[%s142 + $0xe8] sm:$0xf]
  %v179 = vld [vmem:[%s142 + $0xf0] sm:$0xf]
  %v180 = vld [vmem:[%s142 + $0xf4] sm:$0xf]
  %v181 = vld [vmem:[%s142 + $0xfc] sm:$0xf]
  %v182 = vld [vmem:[%s142 + $0x100] sm:$0xf]
  %v183 = vld [vmem:[%s142 + $0x108] sm:$0xf]
  %v184 = vld [vmem:[%s142 + $0x10c] sm:$0xf]
  %v185 = vld [vmem:[%s142 + $0x114] sm:$0xf]
  %v186 = vld [vmem:[%s142 + $0x118] sm:$0xf]
  %v187 = vld [vmem:[%s142 + $0x120] sm:$0xf]
  %v188 = vld [vmem:[%s142 + $0x124] sm:$0xf]
  %v189 = vld [vmem:[%s142 + $0x12c] sm:$0xf]
  %v190 = vld [vmem:[%s142 + $0x130] sm:$0xf]
  %v191 = vld [vmem:[%s142 + $0x138] sm:$0xf]
  %v192 = vld [vmem:[%s142 + $0x13c] sm:$0xf]
  %v193 = vld [vmem:[%s142 + $0x144] sm:$0xf]
  %v194 = vld [vmem:[%s142 + $0x148] sm:$0xf]
  %v195 = vld [vmem:[%s142 + $0x150] sm:$0xf]
  %v196 = vld [vmem:[%s142 + $0x154] sm:$0xf]
  %v197 = vld [vmem:[%s142 + $0x15c] sm:$0xf]
  %v198 = vld [vmem:[%s142 + $0x160] sm:$0xf]
  %v199 = vld [vmem:[%s142 + $0x168] sm:$0xf]
  %v200 = vld [vmem:[%s142 + $0x16c] sm:$0xf]
  %v201 = vld [vmem:[%s142 + $0x174] sm:$0xf]
  %v202 = vld [vmem:[%s142 + $0x178] sm:$0xf]
  %v203 = vld [vmem:[%s142 + $0x180] sm:$0xf]
  %v204 = vld [vmem:[%s142 + $0x184] sm:$0xf]
  %v205 = vld [vmem:[%s142 + $0x18c] sm:$0xf]
  %v206 = vld [vmem:[%s142 + $0x190] sm:$0xf]
  %v207 = vld [vmem:[%s142 + $0x8] sm:$0x1]
  %v208 = vld [vmem:[%s142 + $0x14] sm:$0x1]
  %v209 = vld [vmem:[%s142 + $0x20] sm:$0x1]
  %v210 = vld [vmem:[%s142 + $0x2c] sm:$0x1]
  %v211 = vld [vmem:[%s142 + $0x38] sm:$0x1]
  %v212 = vld [vmem:[%s142 + $0x44] sm:$0x1]
  %v213 = vld [vmem:[%s142 + $0x50] sm:$0x1]
  %v214 = vld [vmem:[%s142 + $0x5c] sm:$0x1]
  %v215 = vld [vmem:[%s142 + $0x68] sm:$0x1]
  %v216 = vld [vmem:[%s142 + $0x74] sm:$0x1]
  %v217 = vld [vmem:[%s142 + $0x80] sm:$0x1]
  %v218 = vld [vmem:[%s142 + $0x8c] sm:$0x1]
  %v219 = vld [vmem:[%s142 + $0x98] sm:$0x1]
  %v220 = vld [vmem:[%s142 + $0xa4] sm:$0x1]
  %v221 = vld [vmem:[%s142 + $0xb0] sm:$0x1]
  %v222 = vld [vmem:[%s142 + $0xbc] sm:$0x1]
  %v223 = vld [vmem:[%s142 + $0xe0] sm:$0x1]
  %v224 = vld [vmem:[%s142 + $0xec] sm:$0x1]
  %v225 = vld [vmem:[%s142 + $0xf8] sm:$0x1]
  %v226 = vld [vmem:[%s142 + $0x104] sm:$0x1]
  %v227 = vld [vmem:[%s142 + $0x110] sm:$0x1]
  %v228 = vld [vmem:[%s142 + $0x11c] sm:$0x1]
  %v229 = vld [vmem:[%s142 + $0x128] sm:$0x1]
  %v230 = vld [vmem:[%s142 + $0x134] sm:$0x1]
  %v231 = vld [vmem:[%s142 + $0x140] sm:$0x1]
  %v232 = vld [vmem:[%s142 + $0x14c] sm:$0x1]
  %v233 = vld [vmem:[%s142 + $0x158] sm:$0x1]
  %v234 = vld [vmem:[%s142 + $0x164] sm:$0x1]
  %v235 = vld [vmem:[%s142 + $0x170] sm:$0x1]
  %v236 = vld [vmem:[%s142 + $0x17c] sm:$0x1]
  %v237 = vld [vmem:[%s142 + $0x188] sm:$0x1]
  %v238 = vld [vmem:[%s142 + $0x194] sm:$0x1]
  %v239 = vld [vmem:[%s142] sm:$0xe]
  %v240 = vld [vmem:[%s142 + $0xc] sm:$0xe]
  %v241 = vld [vmem:[%s142 + $0x18] sm:$0xe]
  %v242 = vld [vmem:[%s142 + $0x24] sm:$0xe]
  %v243 = vld [vmem:[%s142 + $0x30] sm:$0xe]
  %v244 = vld [vmem:[%s142 + $0x3c] sm:$0xe]
  %v245 = vld [vmem:[%s142 + $0x48] sm:$0xe]
  %v246 = vld [vmem:[%s142 + $0x54] sm:$0xe]
  %v247 = vld [vmem:[%s142 + $0x60] sm:$0xe]
  %v248 = vld [vmem:[%s142 + $0x6c] sm:$0xe]
  %v249 = vld [vmem:[%s142 + $0x78] sm:$0xe]
  %v250 = vld [vmem:[%s142 + $0x84] sm:$0xe]
  %v251 = vld [vmem:[%s142 + $0x90] sm:$0xe]
  %v252 = vld [vmem:[%s142 + $0x9c] sm:$0xe]
  %v253 = vld [vmem:[%s142 + $0xa8] sm:$0xe]
  %v254 = vld [vmem:[%s142 + $0xb4] sm:$0xe]
  %v255 = vld [vmem:[%s142 + $0xd8] sm:$0xe]
  %v256 = vld [vmem:[%s142 + $0xe4] sm:$0xe]
  %v257 = vld [vmem:[%s142 + $0xf0] sm:$0xe]
  %v258 = vld [vmem:[%s142 + $0xfc] sm:$0xe]
  %v259 = vld [vmem:[%s142 + $0x108] sm:$0xe]
  %v260 = vld [vmem:[%s142 + $0x114] sm:$0xe]
  %v261 = vld [vmem:[%s142 + $0x120] sm:$0xe]
  %v262 = vld [vmem:[%s142 + $0x12c] sm:$0xe]
  %v263 = vld [vmem:[%s142 + $0x138] sm:$0xe]
  %v264 = vld [vmem:[%s142 + $0x144] sm:$0xe]
  %v265 = vld [vmem:[%s142 + $0x150] sm:$0xe]
  %v266 = vld [vmem:[%s142 + $0x15c] sm:$0xe]
  %v267 = vld [vmem:[%s142 + $0x168] sm:$0xe]
  %v268 = vld [vmem:[%s142 + $0x174] sm:$0xe]
  %v269 = vld [vmem:[%s142 + $0x180] sm:$0xe]
  %v270 = vld [vmem:[%s142 + $0x18c] sm:$0xe]
  %s271 = scalar_lea.vmem %s0, 24
  %v272 = vld [vmem:[%s271] sm:$0xf]
  %v273 = vld [vmem:[%s271 + $0x4] sm:$0xf]
  %v274 = vld [vmem:[%s271 + $0xc] sm:$0xf]
  %v275 = vld [vmem:[%s271 + $0x10] sm:$0xf]
  %v276 = vld [vmem:[%s271 + $0x18] sm:$0xf]
  %v277 = vld [vmem:[%s271 + $0x1c] sm:$0xf]
  %v278 = vld [vmem:[%s271 + $0x24] sm:$0xf]
  %v279 = vld [vmem:[%s271 + $0x28] sm:$0xf]
  %v280 = vld [vmem:[%s271 + $0x30] sm:$0xf]
  %v281 = vld [vmem:[%s271 + $0x34] sm:$0xf]
  %v282 = vld [vmem:[%s271 + $0x3c] sm:$0xf]
  %v283 = vld [vmem:[%s271 + $0x40] sm:$0xf]
  %v284 = vld [vmem:[%s271 + $0x48] sm:$0xf]
  %v285 = vld [vmem:[%s271 + $0x4c] sm:$0xf]
  %v286 = vld [vmem:[%s271 + $0x54] sm:$0xf]
  %v287 = vld [vmem:[%s271 + $0x58] sm:$0xf]
  %v288 = vld [vmem:[%s271 + $0x60] sm:$0xf]
  %v289 = vld [vmem:[%s271 + $0x64] sm:$0xf]
  %v290 = vld [vmem:[%s271 + $0x6c] sm:$0xf]
  %v291 = vld [vmem:[%s271 + $0x70] sm:$0xf]
  %v292 = vld [vmem:[%s271 + $0x78] sm:$0xf]
  %v293 = vld [vmem:[%s271 + $0x7c] sm:$0xf]
  %v294 = vld [vmem:[%s271 + $0x84] sm:$0xf]
  %v295 = vld [vmem:[%s271 + $0x88] sm:$0xf]
  %v296 = vld [vmem:[%s271 + $0x90] sm:$0xf]
  %v297 = vld [vmem:[%s271 + $0x94] sm:$0xf]
  %v298 = vld [vmem:[%s271 + $0x9c] sm:$0xf]
  %v299 = vld [vmem:[%s271 + $0xa0] sm:$0xf]
  %v300 = vld [vmem:[%s271 + $0xa8] sm:$0xf]
  %v301 = vld [vmem:[%s271 + $0xac] sm:$0xf]
  %v302 = vld [vmem:[%s271 + $0xb4] sm:$0xf]
  %v303 = vld [vmem:[%s271 + $0xb8] sm:$0xf]
  %v304 = vld [vmem:[%s271 + $0xd8] sm:$0xf]
  %v305 = vld [vmem:[%s271 + $0xdc] sm:$0xf]
  %v306 = vld [vmem:[%s271 + $0xe4] sm:$0xf]
  %v307 = vld [vmem:[%s271 + $0xe8] sm:$0xf]
  %v308 = vld [vmem:[%s271 + $0xf0] sm:$0xf]
  %v309 = vld [vmem:[%s271 + $0xf4] sm:$0xf]
  %v310 = vld [vmem:[%s271 + $0xfc] sm:$0xf]
  %v311 = vld [vmem:[%s271 + $0x100] sm:$0xf]
  %v312 = vld [vmem:[%s271 + $0x108] sm:$0xf]
  %v313 = vld [vmem:[%s271 + $0x10c] sm:$0xf]
  %v314 = vld [vmem:[%s271 + $0x114] sm:$0xf]
  %v315 = vld [vmem:[%s271 + $0x118] sm:$0xf]
  %v316 = vld [vmem:[%s271 + $0x120] sm:$0xf]
  %v317 = vld [vmem:[%s271 + $0x124] sm:$0xf]
  %v318 = vld [vmem:[%s271 + $0x12c] sm:$0xf]
  %v319 = vld [vmem:[%s271 + $0x130] sm:$0xf]
  %v320 = vld [vmem:[%s271 + $0x138] sm:$0xf]
  %v321 = vld [vmem:[%s271 + $0x13c] sm:$0xf]
  %v322 = vld [vmem:[%s271 + $0x144] sm:$0xf]
  %v323 = vld [vmem:[%s271 + $0x148] sm:$0xf]
  %v324 = vld [vmem:[%s271 + $0x150] sm:$0xf]
  %v325 = vld [vmem:[%s271 + $0x154] sm:$0xf]
  %v326 = vld [vmem:[%s271 + $0x15c] sm:$0xf]
  %v327 = vld [vmem:[%s271 + $0x160] sm:$0xf]
  %v328 = vld [vmem:[%s271 + $0x168] sm:$0xf]
  %v329 = vld [vmem:[%s271 + $0x16c] sm:$0xf]
  %v330 = vld [vmem:[%s271 + $0x174] sm:$0xf]
  %v331 = vld [vmem:[%s271 + $0x178] sm:$0xf]
  %v332 = vld [vmem:[%s271 + $0x180] sm:$0xf]
  %v333 = vld [vmem:[%s271 + $0x184] sm:$0xf]
  %v334 = vld [vmem:[%s271 + $0x18c] sm:$0xf]
  %v335 = vld [vmem:[%s271 + $0x190] sm:$0xf]
  %v336 = vld [vmem:[%s271 + $0x8] sm:$0x1]
  %v337 = vld [vmem:[%s271 + $0x14] sm:$0x1]
  %v338 = vld [vmem:[%s271 + $0x20] sm:$0x1]
  %v339 = vld [vmem:[%s271 + $0x2c] sm:$0x1]
  %v340 = vld [vmem:[%s271 + $0x38] sm:$0x1]
  %v341 = vld [vmem:[%s271 + $0x44] sm:$0x1]
  %v342 = vld [vmem:[%s271 + $0x50] sm:$0x1]
  %v343 = vld [vmem:[%s271 + $0x5c] sm:$0x1]
  %v344 = vld [vmem:[%s271 + $0x68] sm:$0x1]
  %v345 = vld [vmem:[%s271 + $0x74] sm:$0x1]
  %v346 = vld [vmem:[%s271 + $0x80] sm:$0x1]
  %v347 = vld [vmem:[%s271 + $0x8c] sm:$0x1]
  %v348 = vld [vmem:[%s271 + $0x98] sm:$0x1]
  %v349 = vld [vmem:[%s271 + $0xa4] sm:$0x1]
  %v350 = vld [vmem:[%s271 + $0xb0] sm:$0x1]
  %v351 = vld [vmem:[%s271 + $0xbc] sm:$0x1]
  %v352 = vld [vmem:[%s271 + $0xe0] sm:$0x1]
  %v353 = vld [vmem:[%s271 + $0xec] sm:$0x1]
  %v354 = vld [vmem:[%s271 + $0xf8] sm:$0x1]
  %v355 = vld [vmem:[%s271 + $0x104] sm:$0x1]
  %v356 = vld [vmem:[%s271 + $0x110] sm:$0x1]
  %v357 = vld [vmem:[%s271 + $0x11c] sm:$0x1]
  %v358 = vld [vmem:[%s271 + $0x128] sm:$0x1]
  %v359 = vld [vmem:[%s271 + $0x134] sm:$0x1]
  %v360 = vld [vmem:[%s271 + $0x140] sm:$0x1]
  %v361 = vld [vmem:[%s271 + $0x14c] sm:$0x1]
  %v362 = vld [vmem:[%s271 + $0x158] sm:$0x1]
  %v363 = vld [vmem:[%s271 + $0x164] sm:$0x1]
  %v364 = vld [vmem:[%s271 + $0x170] sm:$0x1]
  %v365 = vld [vmem:[%s271 + $0x17c] sm:$0x1]
  %v366 = vld [vmem:[%s271 + $0x188] sm:$0x1]
  %v367 = vld [vmem:[%s271 + $0x194] sm:$0x1]
  %v368 = vld [vmem:[%s271] sm:$0xe]
  %v369 = vld [vmem:[%s271 + $0xc] sm:$0xe]
  %v370 = vld [vmem:[%s271 + $0x18] sm:$0xe]
  %v371 = vld [vmem:[%s271 + $0x24] sm:$0xe]
  %v372 = vld [vmem:[%s271 + $0x30] sm:$0xe]
  %v373 = vld [vmem:[%s271 + $0x3c] sm:$0xe]
  %v374 = vld [vmem:[%s271 + $0x48] sm:$0xe]
  %v375 = vld [vmem:[%s271 + $0x54] sm:$0xe]
  %v376 = vld [vmem:[%s271 + $0x60] sm:$0xe]
  %v377 = vld [vmem:[%s271 + $0x6c] sm:$0xe]
  %v378 = vld [vmem:[%s271 + $0x78] sm:$0xe]
  %v379 = vld [vmem:[%s271 + $0x84] sm:$0xe]
  %v380 = vld [vmem:[%s271 + $0x90] sm:$0xe]
  %v381 = vld [vmem:[%s271 + $0x9c] sm:$0xe]
  %v382 = vld [vmem:[%s271 + $0xa8] sm:$0xe]
  %v383 = vld [vmem:[%s271 + $0xb4] sm:$0xe]
  %v384 = vld [vmem:[%s271 + $0xd8] sm:$0xe]
  %v385 = vld [vmem:[%s271 + $0xe4] sm:$0xe]
  %v386 = vld [vmem:[%s271 + $0xf0] sm:$0xe]
  %v387 = vld [vmem:[%s271 + $0xfc] sm:$0xe]
  %v388 = vld [vmem:[%s271 + $0x108] sm:$0xe]
  %v389 = vld [vmem:[%s271 + $0x114] sm:$0xe]
  %v390 = vld [vmem:[%s271 + $0x120] sm:$0xe]
  %v391 = vld [vmem:[%s271 + $0x12c] sm:$0xe]
  %v392 = vld [vmem:[%s271 + $0x138] sm:$0xe]
  %v393 = vld [vmem:[%s271 + $0x144] sm:$0xe]
  %v394 = vld [vmem:[%s271 + $0x150] sm:$0xe]
  %v395 = vld [vmem:[%s271 + $0x15c] sm:$0xe]
  %v396 = vld [vmem:[%s271 + $0x168] sm:$0xe]
  %v397 = vld [vmem:[%s271 + $0x174] sm:$0xe]
  %v398 = vld [vmem:[%s271 + $0x180] sm:$0xe]
  %v399 = vld [vmem:[%s271 + $0x18c] sm:$0xe]
  %v464 = vunpack.c.l.b16 %v14
  %v465 = vunpack.c.l.b16 %v15
  %v466 = vunpack.c.l.b16 %v16
  %v467 = vunpack.c.l.b16 %v17
  %v468 = vunpack.c.l.b16 %v18
  %v469 = vunpack.c.l.b16 %v19
  %v470 = vunpack.c.l.b16 %v20
  %v471 = vunpack.c.l.b16 %v21
  %v472 = vunpack.c.l.b16 %v22
  %v473 = vunpack.c.l.b16 %v23
  %v474 = vunpack.c.l.b16 %v24
  %v475 = vunpack.c.l.b16 %v25
  %v476 = vunpack.c.l.b16 %v26
  %v477 = vunpack.c.l.b16 %v27
  %v478 = vunpack.c.l.b16 %v28
  %v479 = vunpack.c.l.b16 %v29
  %v480 = vunpack.c.l.b16 %v30
  %v481 = vunpack.c.l.b16 %v31
  %v482 = vunpack.c.l.b16 %v32
  %v483 = vunpack.c.l.b16 %v33
  %v484 = vunpack.c.l.b16 %v34
  %v485 = vunpack.c.l.b16 %v35
  %v486 = vunpack.c.l.b16 %v36
  %v487 = vunpack.c.l.b16 %v37
  %v488 = vunpack.c.l.b16 %v38
  %v489 = vunpack.c.l.b16 %v39
  %v490 = vunpack.c.l.b16 %v40
  %v491 = vunpack.c.l.b16 %v41
  %v492 = vunpack.c.l.b16 %v42
  %v493 = vunpack.c.l.b16 %v43
  %v494 = vunpack.c.l.b16 %v44
  %v495 = vunpack.c.l.b16 %v45
  %v496 = vunpack.c.l.b16 %v46
  %v497 = vunpack.c.l.b16 %v47
  %v498 = vunpack.c.l.b16 %v48
  %v499 = vunpack.c.l.b16 %v49
  %v500 = vunpack.c.l.b16 %v50
  %v501 = vunpack.c.l.b16 %v51
  %v502 = vunpack.c.l.b16 %v52
  %v503 = vunpack.c.l.b16 %v53
  %v504 = vunpack.c.l.b16 %v54
  %v505 = vunpack.c.l.b16 %v55
  %v506 = vunpack.c.l.b16 %v56
  %v507 = vunpack.c.l.b16 %v57
  %v508 = vunpack.c.l.b16 %v58
  %v509 = vunpack.c.l.b16 %v59
  %v510 = vunpack.c.l.b16 %v60
  %v511 = vunpack.c.l.b16 %v61
  %v512 = vunpack.c.l.b16 %v62
  %v513 = vunpack.c.l.b16 %v63
  %v514 = vunpack.c.l.b16 %v64
  %v515 = vunpack.c.l.b16 %v65
  %v516 = vunpack.c.l.b16 %v66
  %v517 = vunpack.c.l.b16 %v67
  %v518 = vunpack.c.l.b16 %v68
  %v519 = vunpack.c.l.b16 %v69
  %v520 = vunpack.c.l.b16 %v70
  %v521 = vunpack.c.l.b16 %v71
  %v522 = vunpack.c.l.b16 %v72
  %v523 = vunpack.c.l.b16 %v73
  %v524 = vunpack.c.l.b16 %v74
  %v525 = vunpack.c.l.b16 %v75
  %v526 = vunpack.c.l.b16 %v76
  %v527 = vunpack.c.l.b16 %v77
  %v528 = vpack.c.b16 %v465, %v464
  %v529 = vpack.c.b16 %v467, %v466
  %v530 = vpack.c.b16 %v469, %v468
  %v531 = vpack.c.b16 %v471, %v470
  %v532 = vpack.c.b16 %v473, %v472
  %v533 = vpack.c.b16 %v475, %v474
  %v534 = vpack.c.b16 %v477, %v476
  %v535 = vpack.c.b16 %v479, %v478
  %v536 = vpack.c.b16 %v481, %v480
  %v537 = vpack.c.b16 %v483, %v482
  %v538 = vpack.c.b16 %v485, %v484
  %v539 = vpack.c.b16 %v487, %v486
  %v540 = vpack.c.b16 %v489, %v488
  %v541 = vpack.c.b16 %v491, %v490
  %v542 = vpack.c.b16 %v493, %v492
  %v543 = vpack.c.b16 %v495, %v494
  %v544 = vpack.c.b16 %v497, %v496
  %v545 = vpack.c.b16 %v499, %v498
  %v546 = vpack.c.b16 %v501, %v500
  %v547 = vpack.c.b16 %v503, %v502
  %v548 = vpack.c.b16 %v505, %v504
  %v549 = vpack.c.b16 %v507, %v506
  %v550 = vpack.c.b16 %v509, %v508
  %v551 = vpack.c.b16 %v511, %v510
  %v552 = vpack.c.b16 %v513, %v512
  %v553 = vpack.c.b16 %v515, %v514
  %v554 = vpack.c.b16 %v517, %v516
  %v555 = vpack.c.b16 %v519, %v518
  %v556 = vpack.c.b16 %v521, %v520
  %v557 = vpack.c.b16 %v523, %v522
  %v558 = vpack.c.b16 %v525, %v524
  %v559 = vpack.c.b16 %v527, %v526
  %v624 = vunpack.c.l.b16 %v78
  %v625 = vunpack.c.l.b16 %v79
  %v626 = vunpack.c.l.b16 %v80
  %v627 = vunpack.c.l.b16 %v81
  %v628 = vunpack.c.l.b16 %v82
  %v629 = vunpack.c.l.b16 %v83
  %v630 = vunpack.c.l.b16 %v84
  %v631 = vunpack.c.l.b16 %v85
  %v632 = vunpack.c.l.b16 %v86
  %v633 = vunpack.c.l.b16 %v87
  %v634 = vunpack.c.l.b16 %v88
  %v635 = vunpack.c.l.b16 %v89
  %v636 = vunpack.c.l.b16 %v90
  %v637 = vunpack.c.l.b16 %v91
  %v638 = vunpack.c.l.b16 %v92
  %v639 = vunpack.c.l.b16 %v93
  %v640 = vunpack.c.l.b16 %v94
  %v641 = vunpack.c.l.b16 %v95
  %v642 = vunpack.c.l.b16 %v96
  %v643 = vunpack.c.l.b16 %v97
  %v644 = vunpack.c.l.b16 %v98
  %v645 = vunpack.c.l.b16 %v99
  %v646 = vunpack.c.l.b16 %v100
  %v647 = vunpack.c.l.b16 %v101
  %v648 = vunpack.c.l.b16 %v102
  %v649 = vunpack.c.l.b16 %v103
  %v650 = vunpack.c.l.b16 %v104
  %v651 = vunpack.c.l.b16 %v105
  %v652 = vunpack.c.l.b16 %v106
  %v653 = vunpack.c.l.b16 %v107
  %v654 = vunpack.c.l.b16 %v108
  %v655 = vunpack.c.l.b16 %v109
  %v656 = vpack.c.b16 %v624, %v624
  %v657 = vpack.c.b16 %v625, %v625
  %v658 = vpack.c.b16 %v626, %v626
  %v659 = vpack.c.b16 %v627, %v627
  %v660 = vpack.c.b16 %v628, %v628
  %v661 = vpack.c.b16 %v629, %v629
  %v662 = vpack.c.b16 %v630, %v630
  %v663 = vpack.c.b16 %v631, %v631
  %v664 = vpack.c.b16 %v632, %v632
  %v665 = vpack.c.b16 %v633, %v633
  %v666 = vpack.c.b16 %v634, %v634
  %v667 = vpack.c.b16 %v635, %v635
  %v668 = vpack.c.b16 %v636, %v636
  %v669 = vpack.c.b16 %v637, %v637
  %v670 = vpack.c.b16 %v638, %v638
  %v671 = vpack.c.b16 %v639, %v639
  %v672 = vpack.c.b16 %v640, %v640
  %v673 = vpack.c.b16 %v641, %v641
  %v674 = vpack.c.b16 %v642, %v642
  %v675 = vpack.c.b16 %v643, %v643
  %v676 = vpack.c.b16 %v644, %v644
  %v677 = vpack.c.b16 %v645, %v645
  %v678 = vpack.c.b16 %v646, %v646
  %v679 = vpack.c.b16 %v647, %v647
  %v680 = vpack.c.b16 %v648, %v648
  %v681 = vpack.c.b16 %v649, %v649
  %v682 = vpack.c.b16 %v650, %v650
  %v683 = vpack.c.b16 %v651, %v651
  %v684 = vpack.c.b16 %v652, %v652
  %v685 = vpack.c.b16 %v653, %v653
  %v686 = vpack.c.b16 %v654, %v654
  %v687 = vpack.c.b16 %v655, %v655
  %vm688 = vsmask.f32 7424
  %v690 = vshrl.u32 %v528, 16
  %v692 = vshll.u32 %v528, 16
  %v694 = vrot.slane %v692, 1
  %v695 = vor.u32 %v690, %v694
  %v697 = vshll.u32 %v656, 16
  %v699 = vrot.slane %v697, 1
  %v700 = vsel %vm688, %v695, %v699
  %v702 = vshrl.u32 %v529, 16
  %v704 = vshll.u32 %v529, 16
  %v706 = vrot.slane %v704, 1
  %v707 = vor.u32 %v702, %v706
  %v709 = vshll.u32 %v657, 16
  %v711 = vrot.slane %v709, 1
  %v712 = vsel %vm688, %v707, %v711
  %v714 = vshrl.u32 %v530, 16
  %v716 = vshll.u32 %v530, 16
  %v718 = vrot.slane %v716, 1
  %v719 = vor.u32 %v714, %v718
  %v721 = vshll.u32 %v658, 16
  %v723 = vrot.slane %v721, 1
  %v724 = vsel %vm688, %v719, %v723
  %v726 = vshrl.u32 %v531, 16
  %v728 = vshll.u32 %v531, 16
  %v730 = vrot.slane %v728, 1
  %v731 = vor.u32 %v726, %v730
  %v733 = vshll.u32 %v659, 16
  %v735 = vrot.slane %v733, 1
  %v736 = vsel %vm688, %v731, %v735
  %v738 = vshrl.u32 %v532, 16
  %v740 = vshll.u32 %v532, 16
  %v742 = vrot.slane %v740, 1
  %v743 = vor.u32 %v738, %v742
  %v745 = vshll.u32 %v660, 16
  %v747 = vrot.slane %v745, 1
  %v748 = vsel %vm688, %v743, %v747
  %v750 = vshrl.u32 %v533, 16
  %v752 = vshll.u32 %v533, 16
  %v754 = vrot.slane %v752, 1
  %v755 = vor.u32 %v750, %v754
  %v757 = vshll.u32 %v661, 16
  %v759 = vrot.slane %v757, 1
  %v760 = vsel %vm688, %v755, %v759
  %v762 = vshrl.u32 %v534, 16
  %v764 = vshll.u32 %v534, 16
  %v766 = vrot.slane %v764, 1
  %v767 = vor.u32 %v762, %v766
  %v769 = vshll.u32 %v662, 16
  %v771 = vrot.slane %v769, 1
  %v772 = vsel %vm688, %v767, %v771
  %v774 = vshrl.u32 %v535, 16
  %v776 = vshll.u32 %v535, 16
  %v778 = vrot.slane %v776, 1
  %v779 = vor.u32 %v774, %v778
  %v781 = vshll.u32 %v663, 16
  %v783 = vrot.slane %v781, 1
  %v784 = vsel %vm688, %v779, %v783
  %v786 = vshrl.u32 %v536, 16
  %v788 = vshll.u32 %v536, 16
  %v790 = vrot.slane %v788, 1
  %v791 = vor.u32 %v786, %v790
  %v793 = vshll.u32 %v664, 16
  %v795 = vrot.slane %v793, 1
  %v796 = vsel %vm688, %v791, %v795
  %v798 = vshrl.u32 %v537, 16
  %v800 = vshll.u32 %v537, 16
  %v802 = vrot.slane %v800, 1
  %v803 = vor.u32 %v798, %v802
  %v805 = vshll.u32 %v665, 16
  %v807 = vrot.slane %v805, 1
  %v808 = vsel %vm688, %v803, %v807
  %v810 = vshrl.u32 %v538, 16
  %v812 = vshll.u32 %v538, 16
  %v814 = vrot.slane %v812, 1
  %v815 = vor.u32 %v810, %v814
  %v817 = vshll.u32 %v666, 16
  %v819 = vrot.slane %v817, 1
  %v820 = vsel %vm688, %v815, %v819
  %v822 = vshrl.u32 %v539, 16
  %v824 = vshll.u32 %v539, 16
  %v826 = vrot.slane %v824, 1
  %v827 = vor.u32 %v822, %v826
  %v829 = vshll.u32 %v667, 16
  %v831 = vrot.slane %v829, 1
  %v832 = vsel %vm688, %v827, %v831
  %v834 = vshrl.u32 %v540, 16
  %v836 = vshll.u32 %v540, 16
  %v838 = vrot.slane %v836, 1
  %v839 = vor.u32 %v834, %v838
  %v841 = vshll.u32 %v668, 16
  %v843 = vrot.slane %v841, 1
  %v844 = vsel %vm688, %v839, %v843
  %v846 = vshrl.u32 %v541, 16
  %v848 = vshll.u32 %v541, 16
  %v850 = vrot.slane %v848, 1
  %v851 = vor.u32 %v846, %v850
  %v853 = vshll.u32 %v669, 16
  %v855 = vrot.slane %v853, 1
  %v856 = vsel %vm688, %v851, %v855
  %v858 = vshrl.u32 %v542, 16
  %v860 = vshll.u32 %v542, 16
  %v862 = vrot.slane %v860, 1
  %v863 = vor.u32 %v858, %v862
  %v865 = vshll.u32 %v670, 16
  %v867 = vrot.slane %v865, 1
  %v868 = vsel %vm688, %v863, %v867
  %v870 = vshrl.u32 %v543, 16
  %v872 = vshll.u32 %v543, 16
  %v874 = vrot.slane %v872, 1
  %v875 = vor.u32 %v870, %v874
  %v877 = vshll.u32 %v671, 16
  %v879 = vrot.slane %v877, 1
  %v880 = vsel %vm688, %v875, %v879
  %v882 = vshrl.u32 %v544, 16
  %v884 = vshll.u32 %v544, 16
  %v886 = vrot.slane %v884, 1
  %v887 = vor.u32 %v882, %v886
  %v889 = vshll.u32 %v672, 16
  %v891 = vrot.slane %v889, 1
  %v892 = vsel %vm688, %v887, %v891
  %v894 = vshrl.u32 %v545, 16
  %v896 = vshll.u32 %v545, 16
  %v898 = vrot.slane %v896, 1
  %v899 = vor.u32 %v894, %v898
  %v901 = vshll.u32 %v673, 16
  %v903 = vrot.slane %v901, 1
  %v904 = vsel %vm688, %v899, %v903
  %v906 = vshrl.u32 %v546, 16
  %v908 = vshll.u32 %v546, 16
  %v910 = vrot.slane %v908, 1
  %v911 = vor.u32 %v906, %v910
  %v913 = vshll.u32 %v674, 16
  %v915 = vrot.slane %v913, 1
  %v916 = vsel %vm688, %v911, %v915
  %v918 = vshrl.u32 %v547, 16
  %v920 = vshll.u32 %v547, 16
  %v922 = vrot.slane %v920, 1
  %v923 = vor.u32 %v918, %v922
  %v925 = vshll.u32 %v675, 16
  %v927 = vrot.slane %v925, 1
  %v928 = vsel %vm688, %v923, %v927
  %v930 = vshrl.u32 %v548, 16
  %v932 = vshll.u32 %v548, 16
  %v934 = vrot.slane %v932, 1
  %v935 = vor.u32 %v930, %v934
  %v937 = vshll.u32 %v676, 16
  %v939 = vrot.slane %v937, 1
  %v940 = vsel %vm688, %v935, %v939
  %v942 = vshrl.u32 %v549, 16
  %v944 = vshll.u32 %v549, 16
  %v946 = vrot.slane %v944, 1
  %v947 = vor.u32 %v942, %v946
  %v949 = vshll.u32 %v677, 16
  %v951 = vrot.slane %v949, 1
  %v952 = vsel %vm688, %v947, %v951
  %v954 = vshrl.u32 %v550, 16
  %v956 = vshll.u32 %v550, 16
  %v958 = vrot.slane %v956, 1
  %v959 = vor.u32 %v954, %v958
  %v961 = vshll.u32 %v678, 16
  %v963 = vrot.slane %v961, 1
  %v964 = vsel %vm688, %v959, %v963
  %v966 = vshrl.u32 %v551, 16
  %v968 = vshll.u32 %v551, 16
  %v970 = vrot.slane %v968, 1
  %v971 = vor.u32 %v966, %v970
  %v973 = vshll.u32 %v679, 16
  %v975 = vrot.slane %v973, 1
  %v976 = vsel %vm688, %v971, %v975
  %v978 = vshrl.u32 %v552, 16
  %v980 = vshll.u32 %v552, 16
  %v982 = vrot.slane %v980, 1
  %v983 = vor.u32 %v978, %v982
  %v985 = vshll.u32 %v680, 16
  %v987 = vrot.slane %v985, 1
  %v988 = vsel %vm688, %v983, %v987
  %v990 = vshrl.u32 %v553, 16
  %v992 = vshll.u32 %v553, 16
  %v994 = vrot.slane %v992, 1
  %v995 = vor.u32 %v990, %v994
  %v997 = vshll.u32 %v681, 16
  %v999 = vrot.slane %v997, 1
  %v1000 = vsel %vm688, %v995, %v999
  %v1002 = vshrl.u32 %v554, 16
  %v1004 = vshll.u32 %v554, 16
  %v1006 = vrot.slane %v1004, 1
  %v1007 = vor.u32 %v1002, %v1006
  %v1009 = vshll.u32 %v682, 16
  %v1011 = vrot.slane %v1009, 1
  %v1012 = vsel %vm688, %v1007, %v1011
  %v1014 = vshrl.u32 %v555, 16
  %v1016 = vshll.u32 %v555, 16
  %v1018 = vrot.slane %v1016, 1
  %v1019 = vor.u32 %v1014, %v1018
  %v1021 = vshll.u32 %v683, 16
  %v1023 = vrot.slane %v1021, 1
  %v1024 = vsel %vm688, %v1019, %v1023
  %v1026 = vshrl.u32 %v556, 16
  %v1028 = vshll.u32 %v556, 16
  %v1030 = vrot.slane %v1028, 1
  %v1031 = vor.u32 %v1026, %v1030
  %v1033 = vshll.u32 %v684, 16
  %v1035 = vrot.slane %v1033, 1
  %v1036 = vsel %vm688, %v1031, %v1035
  %v1038 = vshrl.u32 %v557, 16
  %v1040 = vshll.u32 %v557, 16
  %v1042 = vrot.slane %v1040, 1
  %v1043 = vor.u32 %v1038, %v1042
  %v1045 = vshll.u32 %v685, 16
  %v1047 = vrot.slane %v1045, 1
  %v1048 = vsel %vm688, %v1043, %v1047
  %v1050 = vshrl.u32 %v558, 16
  %v1052 = vshll.u32 %v558, 16
  %v1054 = vrot.slane %v1052, 1
  %v1055 = vor.u32 %v1050, %v1054
  %v1057 = vshll.u32 %v686, 16
  %v1059 = vrot.slane %v1057, 1
  %v1060 = vsel %vm688, %v1055, %v1059
  %v1062 = vshrl.u32 %v559, 16
  %v1064 = vshll.u32 %v559, 16
  %v1066 = vrot.slane %v1064, 1
  %v1067 = vor.u32 %v1062, %v1066
  %v1069 = vshll.u32 %v687, 16
  %v1071 = vrot.slane %v1069, 1
  %v1072 = vsel %vm688, %v1067, %v1071
  %v1137 = vunpack.c.l.b16 %v110
  %v1138 = vunpack.c.l.b16 %v111
  %v1139 = vunpack.c.l.b16 %v112
  %v1140 = vunpack.c.l.b16 %v113
  %v1141 = vunpack.c.l.b16 %v114
  %v1142 = vunpack.c.l.b16 %v115
  %v1143 = vunpack.c.l.b16 %v116
  %v1144 = vunpack.c.l.b16 %v117
  %v1145 = vunpack.c.l.b16 %v118
  %v1146 = vunpack.c.l.b16 %v119
  %v1147 = vunpack.c.l.b16 %v120
  %v1148 = vunpack.c.l.b16 %v121
  %v1149 = vunpack.c.l.b16 %v122
  %v1150 = vunpack.c.l.b16 %v123
  %v1151 = vunpack.c.l.b16 %v124
  %v1152 = vunpack.c.l.b16 %v125
  %v1153 = vunpack.c.l.b16 %v126
  %v1154 = vunpack.c.l.b16 %v127
  %v1155 = vunpack.c.l.b16 %v128
  %v1156 = vunpack.c.l.b16 %v129
  %v1157 = vunpack.c.l.b16 %v130
  %v1158 = vunpack.c.l.b16 %v131
  %v1159 = vunpack.c.l.b16 %v132
  %v1160 = vunpack.c.l.b16 %v133
  %v1161 = vunpack.c.l.b16 %v134
  %v1162 = vunpack.c.l.b16 %v135
  %v1163 = vunpack.c.l.b16 %v136
  %v1164 = vunpack.c.l.b16 %v137
  %v1165 = vunpack.c.l.b16 %v138
  %v1166 = vunpack.c.l.b16 %v139
  %v1167 = vunpack.c.l.b16 %v140
  %v1168 = vunpack.c.l.b16 %v141
  %v1169 = vpack.c.b16 %v465, %v1137
  %v1170 = vpack.c.b16 %v467, %v1138
  %v1171 = vpack.c.b16 %v469, %v1139
  %v1172 = vpack.c.b16 %v471, %v1140
  %v1173 = vpack.c.b16 %v473, %v1141
  %v1174 = vpack.c.b16 %v475, %v1142
  %v1175 = vpack.c.b16 %v477, %v1143
  %v1176 = vpack.c.b16 %v479, %v1144
  %v1177 = vpack.c.b16 %v481, %v1145
  %v1178 = vpack.c.b16 %v483, %v1146
  %v1179 = vpack.c.b16 %v485, %v1147
  %v1180 = vpack.c.b16 %v487, %v1148
  %v1181 = vpack.c.b16 %v489, %v1149
  %v1182 = vpack.c.b16 %v491, %v1150
  %v1183 = vpack.c.b16 %v493, %v1151
  %v1184 = vpack.c.b16 %v495, %v1152
  %v1185 = vpack.c.b16 %v497, %v1153
  %v1186 = vpack.c.b16 %v499, %v1154
  %v1187 = vpack.c.b16 %v501, %v1155
  %v1188 = vpack.c.b16 %v503, %v1156
  %v1189 = vpack.c.b16 %v505, %v1157
  %v1190 = vpack.c.b16 %v507, %v1158
  %v1191 = vpack.c.b16 %v509, %v1159
  %v1192 = vpack.c.b16 %v511, %v1160
  %v1193 = vpack.c.b16 %v513, %v1161
  %v1194 = vpack.c.b16 %v515, %v1162
  %v1195 = vpack.c.b16 %v517, %v1163
  %v1196 = vpack.c.b16 %v519, %v1164
  %v1197 = vpack.c.b16 %v521, %v1165
  %v1198 = vpack.c.b16 %v523, %v1166
  %v1199 = vpack.c.b16 %v525, %v1167
  %v1200 = vpack.c.b16 %v527, %v1168
  %vm1201 = vcmask 1046528
  %v1202 = vrot.slane %v1169, 1
  %v1203 = vrot.slane %v656, 1
  %v1204 = vsel %vm1201, %v1202, %v1203
  %v1205 = vrot.slane %v1170, 1
  %v1206 = vrot.slane %v657, 1
  %v1207 = vsel %vm1201, %v1205, %v1206
  %v1208 = vrot.slane %v1171, 1
  %v1209 = vrot.slane %v658, 1
  %v1210 = vsel %vm1201, %v1208, %v1209
  %v1211 = vrot.slane %v1172, 1
  %v1212 = vrot.slane %v659, 1
  %v1213 = vsel %vm1201, %v1211, %v1212
  %v1214 = vrot.slane %v1173, 1
  %v1215 = vrot.slane %v660, 1
  %v1216 = vsel %vm1201, %v1214, %v1215
  %v1217 = vrot.slane %v1174, 1
  %v1218 = vrot.slane %v661, 1
  %v1219 = vsel %vm1201, %v1217, %v1218
  %v1220 = vrot.slane %v1175, 1
  %v1221 = vrot.slane %v662, 1
  %v1222 = vsel %vm1201, %v1220, %v1221
  %v1223 = vrot.slane %v1176, 1
  %v1224 = vrot.slane %v663, 1
  %v1225 = vsel %vm1201, %v1223, %v1224
  %v1226 = vrot.slane %v1177, 1
  %v1227 = vrot.slane %v664, 1
  %v1228 = vsel %vm1201, %v1226, %v1227
  %v1229 = vrot.slane %v1178, 1
  %v1230 = vrot.slane %v665, 1
  %v1231 = vsel %vm1201, %v1229, %v1230
  %v1232 = vrot.slane %v1179, 1
  %v1233 = vrot.slane %v666, 1
  %v1234 = vsel %vm1201, %v1232, %v1233
  %v1235 = vrot.slane %v1180, 1
  %v1236 = vrot.slane %v667, 1
  %v1237 = vsel %vm1201, %v1235, %v1236
  %v1238 = vrot.slane %v1181, 1
  %v1239 = vrot.slane %v668, 1
  %v1240 = vsel %vm1201, %v1238, %v1239
  %v1241 = vrot.slane %v1182, 1
  %v1242 = vrot.slane %v669, 1
  %v1243 = vsel %vm1201, %v1241, %v1242
  %v1244 = vrot.slane %v1183, 1
  %v1245 = vrot.slane %v670, 1
  %v1246 = vsel %vm1201, %v1244, %v1245
  %v1247 = vrot.slane %v1184, 1
  %v1248 = vrot.slane %v671, 1
  %v1249 = vsel %vm1201, %v1247, %v1248
  %v1250 = vrot.slane %v1185, 1
  %v1251 = vrot.slane %v672, 1
  %v1252 = vsel %vm1201, %v1250, %v1251
  %v1253 = vrot.slane %v1186, 1
  %v1254 = vrot.slane %v673, 1
  %v1255 = vsel %vm1201, %v1253, %v1254
  %v1256 = vrot.slane %v1187, 1
  %v1257 = vrot.slane %v674, 1
  %v1258 = vsel %vm1201, %v1256, %v1257
  %v1259 = vrot.slane %v1188, 1
  %v1260 = vrot.slane %v675, 1
  %v1261 = vsel %vm1201, %v1259, %v1260
  %v1262 = vrot.slane %v1189, 1
  %v1263 = vrot.slane %v676, 1
  %v1264 = vsel %vm1201, %v1262, %v1263
  %v1265 = vrot.slane %v1190, 1
  %v1266 = vrot.slane %v677, 1
  %v1267 = vsel %vm1201, %v1265, %v1266
  %v1268 = vrot.slane %v1191, 1
  %v1269 = vrot.slane %v678, 1
  %v1270 = vsel %vm1201, %v1268, %v1269
  %v1271 = vrot.slane %v1192, 1
  %v1272 = vrot.slane %v679, 1
  %v1273 = vsel %vm1201, %v1271, %v1272
  %v1274 = vrot.slane %v1193, 1
  %v1275 = vrot.slane %v680, 1
  %v1276 = vsel %vm1201, %v1274, %v1275
  %v1277 = vrot.slane %v1194, 1
  %v1278 = vrot.slane %v681, 1
  %v1279 = vsel %vm1201, %v1277, %v1278
  %v1280 = vrot.slane %v1195, 1
  %v1281 = vrot.slane %v682, 1
  %v1282 = vsel %vm1201, %v1280, %v1281
  %v1283 = vrot.slane %v1196, 1
  %v1284 = vrot.slane %v683, 1
  %v1285 = vsel %vm1201, %v1283, %v1284
  %v1286 = vrot.slane %v1197, 1
  %v1287 = vrot.slane %v684, 1
  %v1288 = vsel %vm1201, %v1286, %v1287
  %v1289 = vrot.slane %v1198, 1
  %v1290 = vrot.slane %v685, 1
  %v1291 = vsel %vm1201, %v1289, %v1290
  %v1292 = vrot.slane %v1199, 1
  %v1293 = vrot.slane %v686, 1
  %v1294 = vsel %vm1201, %v1292, %v1293
  %v1295 = vrot.slane %v1200, 1
  %v1296 = vrot.slane %v687, 1
  %v1297 = vsel %vm1201, %v1295, %v1296
  %v1394 = vunpack.c.l.b16 %v143
  %v1395 = vunpack.c.l.b16 %v144
  %v1396 = vunpack.c.l.b16 %v145
  %v1397 = vunpack.c.l.b16 %v146
  %v1398 = vunpack.c.l.b16 %v147
  %v1399 = vunpack.c.l.b16 %v148
  %v1400 = vunpack.c.l.b16 %v149
  %v1401 = vunpack.c.l.b16 %v150
  %v1402 = vunpack.c.l.b16 %v151
  %v1403 = vunpack.c.l.b16 %v152
  %v1404 = vunpack.c.l.b16 %v153
  %v1405 = vunpack.c.l.b16 %v154
  %v1406 = vunpack.c.l.b16 %v155
  %v1407 = vunpack.c.l.b16 %v156
  %v1408 = vunpack.c.l.b16 %v157
  %v1409 = vunpack.c.l.b16 %v158
  %v1410 = vunpack.c.l.b16 %v159
  %v1411 = vunpack.c.l.b16 %v160
  %v1412 = vunpack.c.l.b16 %v161
  %v1413 = vunpack.c.l.b16 %v162
  %v1414 = vunpack.c.l.b16 %v163
  %v1415 = vunpack.c.l.b16 %v164
  %v1416 = vunpack.c.l.b16 %v165
  %v1417 = vunpack.c.l.b16 %v166
  %v1418 = vunpack.c.l.b16 %v167
  %v1419 = vunpack.c.l.b16 %v168
  %v1420 = vunpack.c.l.b16 %v169
  %v1421 = vunpack.c.l.b16 %v170
  %v1422 = vunpack.c.l.b16 %v171
  %v1423 = vunpack.c.l.b16 %v172
  %v1424 = vunpack.c.l.b16 %v173
  %v1425 = vunpack.c.l.b16 %v174
  %v1426 = vunpack.c.l.b16 %v175
  %v1427 = vunpack.c.l.b16 %v176
  %v1428 = vunpack.c.l.b16 %v177
  %v1429 = vunpack.c.l.b16 %v178
  %v1430 = vunpack.c.l.b16 %v179
  %v1431 = vunpack.c.l.b16 %v180
  %v1432 = vunpack.c.l.b16 %v181
  %v1433 = vunpack.c.l.b16 %v182
  %v1434 = vunpack.c.l.b16 %v183
  %v1435 = vunpack.c.l.b16 %v184
  %v1436 = vunpack.c.l.b16 %v185
  %v1437 = vunpack.c.l.b16 %v186
  %v1438 = vunpack.c.l.b16 %v187
  %v1439 = vunpack.c.l.b16 %v188
  %v1440 = vunpack.c.l.b16 %v189
  %v1441 = vunpack.c.l.b16 %v190
  %v1442 = vunpack.c.l.b16 %v191
  %v1443 = vunpack.c.l.b16 %v192
  %v1444 = vunpack.c.l.b16 %v193
  %v1445 = vunpack.c.l.b16 %v194
  %v1446 = vunpack.c.l.b16 %v195
  %v1447 = vunpack.c.l.b16 %v196
  %v1448 = vunpack.c.l.b16 %v197
  %v1449 = vunpack.c.l.b16 %v198
  %v1450 = vunpack.c.l.b16 %v199
  %v1451 = vunpack.c.l.b16 %v200
  %v1452 = vunpack.c.l.b16 %v201
  %v1453 = vunpack.c.l.b16 %v202
  %v1454 = vunpack.c.l.b16 %v203
  %v1455 = vunpack.c.l.b16 %v204
  %v1456 = vunpack.c.l.b16 %v205
  %v1457 = vunpack.c.l.b16 %v206
  %v1458 = vpack.c.b16 %v1395, %v1394
  %v1459 = vpack.c.b16 %v1397, %v1396
  %v1460 = vpack.c.b16 %v1399, %v1398
  %v1461 = vpack.c.b16 %v1401, %v1400
  %v1462 = vpack.c.b16 %v1403, %v1402
  %v1463 = vpack.c.b16 %v1405, %v1404
  %v1464 = vpack.c.b16 %v1407, %v1406
  %v1465 = vpack.c.b16 %v1409, %v1408
  %v1466 = vpack.c.b16 %v1411, %v1410
  %v1467 = vpack.c.b16 %v1413, %v1412
  %v1468 = vpack.c.b16 %v1415, %v1414
  %v1469 = vpack.c.b16 %v1417, %v1416
  %v1470 = vpack.c.b16 %v1419, %v1418
  %v1471 = vpack.c.b16 %v1421, %v1420
  %v1472 = vpack.c.b16 %v1423, %v1422
  %v1473 = vpack.c.b16 %v1425, %v1424
  %v1474 = vpack.c.b16 %v1427, %v1426
  %v1475 = vpack.c.b16 %v1429, %v1428
  %v1476 = vpack.c.b16 %v1431, %v1430
  %v1477 = vpack.c.b16 %v1433, %v1432
  %v1478 = vpack.c.b16 %v1435, %v1434
  %v1479 = vpack.c.b16 %v1437, %v1436
  %v1480 = vpack.c.b16 %v1439, %v1438
  %v1481 = vpack.c.b16 %v1441, %v1440
  %v1482 = vpack.c.b16 %v1443, %v1442
  %v1483 = vpack.c.b16 %v1445, %v1444
  %v1484 = vpack.c.b16 %v1447, %v1446
  %v1485 = vpack.c.b16 %v1449, %v1448
  %v1486 = vpack.c.b16 %v1451, %v1450
  %v1487 = vpack.c.b16 %v1453, %v1452
  %v1488 = vpack.c.b16 %v1455, %v1454
  %v1489 = vpack.c.b16 %v1457, %v1456
  %v1554 = vunpack.c.l.b16 %v207
  %v1555 = vunpack.c.l.b16 %v208
  %v1556 = vunpack.c.l.b16 %v209
  %v1557 = vunpack.c.l.b16 %v210
  %v1558 = vunpack.c.l.b16 %v211
  %v1559 = vunpack.c.l.b16 %v212
  %v1560 = vunpack.c.l.b16 %v213
  %v1561 = vunpack.c.l.b16 %v214
  %v1562 = vunpack.c.l.b16 %v215
  %v1563 = vunpack.c.l.b16 %v216
  %v1564 = vunpack.c.l.b16 %v217
  %v1565 = vunpack.c.l.b16 %v218
  %v1566 = vunpack.c.l.b16 %v219
  %v1567 = vunpack.c.l.b16 %v220
  %v1568 = vunpack.c.l.b16 %v221
  %v1569 = vunpack.c.l.b16 %v222
  %v1570 = vunpack.c.l.b16 %v223
  %v1571 = vunpack.c.l.b16 %v224
  %v1572 = vunpack.c.l.b16 %v225
  %v1573 = vunpack.c.l.b16 %v226
  %v1574 = vunpack.c.l.b16 %v227
  %v1575 = vunpack.c.l.b16 %v228
  %v1576 = vunpack.c.l.b16 %v229
  %v1577 = vunpack.c.l.b16 %v230
  %v1578 = vunpack.c.l.b16 %v231
  %v1579 = vunpack.c.l.b16 %v232
  %v1580 = vunpack.c.l.b16 %v233
  %v1581 = vunpack.c.l.b16 %v234
  %v1582 = vunpack.c.l.b16 %v235
  %v1583 = vunpack.c.l.b16 %v236
  %v1584 = vunpack.c.l.b16 %v237
  %v1585 = vunpack.c.l.b16 %v238
  %v1586 = vpack.c.b16 %v1554, %v1554
  %v1587 = vpack.c.b16 %v1555, %v1555
  %v1588 = vpack.c.b16 %v1556, %v1556
  %v1589 = vpack.c.b16 %v1557, %v1557
  %v1590 = vpack.c.b16 %v1558, %v1558
  %v1591 = vpack.c.b16 %v1559, %v1559
  %v1592 = vpack.c.b16 %v1560, %v1560
  %v1593 = vpack.c.b16 %v1561, %v1561
  %v1594 = vpack.c.b16 %v1562, %v1562
  %v1595 = vpack.c.b16 %v1563, %v1563
  %v1596 = vpack.c.b16 %v1564, %v1564
  %v1597 = vpack.c.b16 %v1565, %v1565
  %v1598 = vpack.c.b16 %v1566, %v1566
  %v1599 = vpack.c.b16 %v1567, %v1567
  %v1600 = vpack.c.b16 %v1568, %v1568
  %v1601 = vpack.c.b16 %v1569, %v1569
  %v1602 = vpack.c.b16 %v1570, %v1570
  %v1603 = vpack.c.b16 %v1571, %v1571
  %v1604 = vpack.c.b16 %v1572, %v1572
  %v1605 = vpack.c.b16 %v1573, %v1573
  %v1606 = vpack.c.b16 %v1574, %v1574
  %v1607 = vpack.c.b16 %v1575, %v1575
  %v1608 = vpack.c.b16 %v1576, %v1576
  %v1609 = vpack.c.b16 %v1577, %v1577
  %v1610 = vpack.c.b16 %v1578, %v1578
  %v1611 = vpack.c.b16 %v1579, %v1579
  %v1612 = vpack.c.b16 %v1580, %v1580
  %v1613 = vpack.c.b16 %v1581, %v1581
  %v1614 = vpack.c.b16 %v1582, %v1582
  %v1615 = vpack.c.b16 %v1583, %v1583
  %v1616 = vpack.c.b16 %v1584, %v1584
  %v1617 = vpack.c.b16 %v1585, %v1585
  %v1619 = vshrl.u32 %v1458, 16
  %v1621 = vshll.u32 %v1458, 16
  %v1623 = vrot.slane %v1621, 1
  %v1624 = vor.u32 %v1619, %v1623
  %v1626 = vshll.u32 %v1586, 16
  %v1628 = vrot.slane %v1626, 1
  %v1629 = vsel %vm688, %v1624, %v1628
  %v1631 = vshrl.u32 %v1459, 16
  %v1633 = vshll.u32 %v1459, 16
  %v1635 = vrot.slane %v1633, 1
  %v1636 = vor.u32 %v1631, %v1635
  %v1638 = vshll.u32 %v1587, 16
  %v1640 = vrot.slane %v1638, 1
  %v1641 = vsel %vm688, %v1636, %v1640
  %v1643 = vshrl.u32 %v1460, 16
  %v1645 = vshll.u32 %v1460, 16
  %v1647 = vrot.slane %v1645, 1
  %v1648 = vor.u32 %v1643, %v1647
  %v1650 = vshll.u32 %v1588, 16
  %v1652 = vrot.slane %v1650, 1
  %v1653 = vsel %vm688, %v1648, %v1652
  %v1655 = vshrl.u32 %v1461, 16
  %v1657 = vshll.u32 %v1461, 16
  %v1659 = vrot.slane %v1657, 1
  %v1660 = vor.u32 %v1655, %v1659
  %v1662 = vshll.u32 %v1589, 16
  %v1664 = vrot.slane %v1662, 1
  %v1665 = vsel %vm688, %v1660, %v1664
  %v1667 = vshrl.u32 %v1462, 16
  %v1669 = vshll.u32 %v1462, 16
  %v1671 = vrot.slane %v1669, 1
  %v1672 = vor.u32 %v1667, %v1671
  %v1674 = vshll.u32 %v1590, 16
  %v1676 = vrot.slane %v1674, 1
  %v1677 = vsel %vm688, %v1672, %v1676
  %v1679 = vshrl.u32 %v1463, 16
  %v1681 = vshll.u32 %v1463, 16
  %v1683 = vrot.slane %v1681, 1
  %v1684 = vor.u32 %v1679, %v1683
  %v1686 = vshll.u32 %v1591, 16
  %v1688 = vrot.slane %v1686, 1
  %v1689 = vsel %vm688, %v1684, %v1688
  %v1691 = vshrl.u32 %v1464, 16
  %v1693 = vshll.u32 %v1464, 16
  %v1695 = vrot.slane %v1693, 1
  %v1696 = vor.u32 %v1691, %v1695
  %v1698 = vshll.u32 %v1592, 16
  %v1700 = vrot.slane %v1698, 1
  %v1701 = vsel %vm688, %v1696, %v1700
  %v1703 = vshrl.u32 %v1465, 16
  %v1705 = vshll.u32 %v1465, 16
  %v1707 = vrot.slane %v1705, 1
  %v1708 = vor.u32 %v1703, %v1707
  %v1710 = vshll.u32 %v1593, 16
  %v1712 = vrot.slane %v1710, 1
  %v1713 = vsel %vm688, %v1708, %v1712
  %v1715 = vshrl.u32 %v1466, 16
  %v1717 = vshll.u32 %v1466, 16
  %v1719 = vrot.slane %v1717, 1
  %v1720 = vor.u32 %v1715, %v1719
  %v1722 = vshll.u32 %v1594, 16
  %v1724 = vrot.slane %v1722, 1
  %v1725 = vsel %vm688, %v1720, %v1724
  %v1727 = vshrl.u32 %v1467, 16
  %v1729 = vshll.u32 %v1467, 16
  %v1731 = vrot.slane %v1729, 1
  %v1732 = vor.u32 %v1727, %v1731
  %v1734 = vshll.u32 %v1595, 16
  %v1736 = vrot.slane %v1734, 1
  %v1737 = vsel %vm688, %v1732, %v1736
  %v1739 = vshrl.u32 %v1468, 16
  %v1741 = vshll.u32 %v1468, 16
  %v1743 = vrot.slane %v1741, 1
  %v1744 = vor.u32 %v1739, %v1743
  %v1746 = vshll.u32 %v1596, 16
  %v1748 = vrot.slane %v1746, 1
  %v1749 = vsel %vm688, %v1744, %v1748
  %v1751 = vshrl.u32 %v1469, 16
  %v1753 = vshll.u32 %v1469, 16
  %v1755 = vrot.slane %v1753, 1
  %v1756 = vor.u32 %v1751, %v1755
  %v1758 = vshll.u32 %v1597, 16
  %v1760 = vrot.slane %v1758, 1
  %v1761 = vsel %vm688, %v1756, %v1760
  %v1763 = vshrl.u32 %v1470, 16
  %v1765 = vshll.u32 %v1470, 16
  %v1767 = vrot.slane %v1765, 1
  %v1768 = vor.u32 %v1763, %v1767
  %v1770 = vshll.u32 %v1598, 16
  %v1772 = vrot.slane %v1770, 1
  %v1773 = vsel %vm688, %v1768, %v1772
  %v1775 = vshrl.u32 %v1471, 16
  %v1777 = vshll.u32 %v1471, 16
  %v1779 = vrot.slane %v1777, 1
  %v1780 = vor.u32 %v1775, %v1779
  %v1782 = vshll.u32 %v1599, 16
  %v1784 = vrot.slane %v1782, 1
  %v1785 = vsel %vm688, %v1780, %v1784
  %v1787 = vshrl.u32 %v1472, 16
  %v1789 = vshll.u32 %v1472, 16
  %v1791 = vrot.slane %v1789, 1
  %v1792 = vor.u32 %v1787, %v1791
  %v1794 = vshll.u32 %v1600, 16
  %v1796 = vrot.slane %v1794, 1
  %v1797 = vsel %vm688, %v1792, %v1796
  %v1799 = vshrl.u32 %v1473, 16
  %v1801 = vshll.u32 %v1473, 16
  %v1803 = vrot.slane %v1801, 1
  %v1804 = vor.u32 %v1799, %v1803
  %v1806 = vshll.u32 %v1601, 16
  %v1808 = vrot.slane %v1806, 1
  %v1809 = vsel %vm688, %v1804, %v1808
  %v1811 = vshrl.u32 %v1474, 16
  %v1813 = vshll.u32 %v1474, 16
  %v1815 = vrot.slane %v1813, 1
  %v1816 = vor.u32 %v1811, %v1815
  %v1818 = vshll.u32 %v1602, 16
  %v1820 = vrot.slane %v1818, 1
  %v1821 = vsel %vm688, %v1816, %v1820
  %v1823 = vshrl.u32 %v1475, 16
  %v1825 = vshll.u32 %v1475, 16
  %v1827 = vrot.slane %v1825, 1
  %v1828 = vor.u32 %v1823, %v1827
  %v1830 = vshll.u32 %v1603, 16
  %v1832 = vrot.slane %v1830, 1
  %v1833 = vsel %vm688, %v1828, %v1832
  %v1835 = vshrl.u32 %v1476, 16
  %v1837 = vshll.u32 %v1476, 16
  %v1839 = vrot.slane %v1837, 1
  %v1840 = vor.u32 %v1835, %v1839
  %v1842 = vshll.u32 %v1604, 16
  %v1844 = vrot.slane %v1842, 1
  %v1845 = vsel %vm688, %v1840, %v1844
  %v1847 = vshrl.u32 %v1477, 16
  %v1849 = vshll.u32 %v1477, 16
  %v1851 = vrot.slane %v1849, 1
  %v1852 = vor.u32 %v1847, %v1851
  %v1854 = vshll.u32 %v1605, 16
  %v1856 = vrot.slane %v1854, 1
  %v1857 = vsel %vm688, %v1852, %v1856
  %v1859 = vshrl.u32 %v1478, 16
  %v1861 = vshll.u32 %v1478, 16
  %v1863 = vrot.slane %v1861, 1
  %v1864 = vor.u32 %v1859, %v1863
  %v1866 = vshll.u32 %v1606, 16
  %v1868 = vrot.slane %v1866, 1
  %v1869 = vsel %vm688, %v1864, %v1868
  %v1871 = vshrl.u32 %v1479, 16
  %v1873 = vshll.u32 %v1479, 16
  %v1875 = vrot.slane %v1873, 1
  %v1876 = vor.u32 %v1871, %v1875
  %v1878 = vshll.u32 %v1607, 16
  %v1880 = vrot.slane %v1878, 1
  %v1881 = vsel %vm688, %v1876, %v1880
  %v1883 = vshrl.u32 %v1480, 16
  %v1885 = vshll.u32 %v1480, 16
  %v1887 = vrot.slane %v1885, 1
  %v1888 = vor.u32 %v1883, %v1887
  %v1890 = vshll.u32 %v1608, 16
  %v1892 = vrot.slane %v1890, 1
  %v1893 = vsel %vm688, %v1888, %v1892
  %v1895 = vshrl.u32 %v1481, 16
  %v1897 = vshll.u32 %v1481, 16
  %v1899 = vrot.slane %v1897, 1
  %v1900 = vor.u32 %v1895, %v1899
  %v1902 = vshll.u32 %v1609, 16
  %v1904 = vrot.slane %v1902, 1
  %v1905 = vsel %vm688, %v1900, %v1904
  %v1907 = vshrl.u32 %v1482, 16
  %v1909 = vshll.u32 %v1482, 16
  %v1911 = vrot.slane %v1909, 1
  %v1912 = vor.u32 %v1907, %v1911
  %v1914 = vshll.u32 %v1610, 16
  %v1916 = vrot.slane %v1914, 1
  %v1917 = vsel %vm688, %v1912, %v1916
  %v1919 = vshrl.u32 %v1483, 16
  %v1921 = vshll.u32 %v1483, 16
  %v1923 = vrot.slane %v1921, 1
  %v1924 = vor.u32 %v1919, %v1923
  %v1926 = vshll.u32 %v1611, 16
  %v1928 = vrot.slane %v1926, 1
  %v1929 = vsel %vm688, %v1924, %v1928
  %v1931 = vshrl.u32 %v1484, 16
  %v1933 = vshll.u32 %v1484, 16
  %v1935 = vrot.slane %v1933, 1
  %v1936 = vor.u32 %v1931, %v1935
  %v1938 = vshll.u32 %v1612, 16
  %v1940 = vrot.slane %v1938, 1
  %v1941 = vsel %vm688, %v1936, %v1940
  %v1943 = vshrl.u32 %v1485, 16
  %v1945 = vshll.u32 %v1485, 16
  %v1947 = vrot.slane %v1945, 1
  %v1948 = vor.u32 %v1943, %v1947
  %v1950 = vshll.u32 %v1613, 16
  %v1952 = vrot.slane %v1950, 1
  %v1953 = vsel %vm688, %v1948, %v1952
  %v1955 = vshrl.u32 %v1486, 16
  %v1957 = vshll.u32 %v1486, 16
  %v1959 = vrot.slane %v1957, 1
  %v1960 = vor.u32 %v1955, %v1959
  %v1962 = vshll.u32 %v1614, 16
  %v1964 = vrot.slane %v1962, 1
  %v1965 = vsel %vm688, %v1960, %v1964
  %v1967 = vshrl.u32 %v1487, 16
  %v1969 = vshll.u32 %v1487, 16
  %v1971 = vrot.slane %v1969, 1
  %v1972 = vor.u32 %v1967, %v1971
  %v1974 = vshll.u32 %v1615, 16
  %v1976 = vrot.slane %v1974, 1
  %v1977 = vsel %vm688, %v1972, %v1976
  %v1979 = vshrl.u32 %v1488, 16
  %v1981 = vshll.u32 %v1488, 16
  %v1983 = vrot.slane %v1981, 1
  %v1984 = vor.u32 %v1979, %v1983
  %v1986 = vshll.u32 %v1616, 16
  %v1988 = vrot.slane %v1986, 1
  %v1989 = vsel %vm688, %v1984, %v1988
  %v1991 = vshrl.u32 %v1489, 16
  %v1993 = vshll.u32 %v1489, 16
  %v1995 = vrot.slane %v1993, 1
  %v1996 = vor.u32 %v1991, %v1995
  %v1998 = vshll.u32 %v1617, 16
  %v2000 = vrot.slane %v1998, 1
  %v2001 = vsel %vm688, %v1996, %v2000
  %v2066 = vunpack.c.l.b16 %v239
  %v2067 = vunpack.c.l.b16 %v240
  %v2068 = vunpack.c.l.b16 %v241
  %v2069 = vunpack.c.l.b16 %v242
  %v2070 = vunpack.c.l.b16 %v243
  %v2071 = vunpack.c.l.b16 %v244
  %v2072 = vunpack.c.l.b16 %v245
  %v2073 = vunpack.c.l.b16 %v246
  %v2074 = vunpack.c.l.b16 %v247
  %v2075 = vunpack.c.l.b16 %v248
  %v2076 = vunpack.c.l.b16 %v249
  %v2077 = vunpack.c.l.b16 %v250
  %v2078 = vunpack.c.l.b16 %v251
  %v2079 = vunpack.c.l.b16 %v252
  %v2080 = vunpack.c.l.b16 %v253
  %v2081 = vunpack.c.l.b16 %v254
  %v2082 = vunpack.c.l.b16 %v255
  %v2083 = vunpack.c.l.b16 %v256
  %v2084 = vunpack.c.l.b16 %v257
  %v2085 = vunpack.c.l.b16 %v258
  %v2086 = vunpack.c.l.b16 %v259
  %v2087 = vunpack.c.l.b16 %v260
  %v2088 = vunpack.c.l.b16 %v261
  %v2089 = vunpack.c.l.b16 %v262
  %v2090 = vunpack.c.l.b16 %v263
  %v2091 = vunpack.c.l.b16 %v264
  %v2092 = vunpack.c.l.b16 %v265
  %v2093 = vunpack.c.l.b16 %v266
  %v2094 = vunpack.c.l.b16 %v267
  %v2095 = vunpack.c.l.b16 %v268
  %v2096 = vunpack.c.l.b16 %v269
  %v2097 = vunpack.c.l.b16 %v270
  %v2098 = vpack.c.b16 %v1395, %v2066
  %v2099 = vpack.c.b16 %v1397, %v2067
  %v2100 = vpack.c.b16 %v1399, %v2068
  %v2101 = vpack.c.b16 %v1401, %v2069
  %v2102 = vpack.c.b16 %v1403, %v2070
  %v2103 = vpack.c.b16 %v1405, %v2071
  %v2104 = vpack.c.b16 %v1407, %v2072
  %v2105 = vpack.c.b16 %v1409, %v2073
  %v2106 = vpack.c.b16 %v1411, %v2074
  %v2107 = vpack.c.b16 %v1413, %v2075
  %v2108 = vpack.c.b16 %v1415, %v2076
  %v2109 = vpack.c.b16 %v1417, %v2077
  %v2110 = vpack.c.b16 %v1419, %v2078
  %v2111 = vpack.c.b16 %v1421, %v2079
  %v2112 = vpack.c.b16 %v1423, %v2080
  %v2113 = vpack.c.b16 %v1425, %v2081
  %v2114 = vpack.c.b16 %v1427, %v2082
  %v2115 = vpack.c.b16 %v1429, %v2083
  %v2116 = vpack.c.b16 %v1431, %v2084
  %v2117 = vpack.c.b16 %v1433, %v2085
  %v2118 = vpack.c.b16 %v1435, %v2086
  %v2119 = vpack.c.b16 %v1437, %v2087
  %v2120 = vpack.c.b16 %v1439, %v2088
  %v2121 = vpack.c.b16 %v1441, %v2089
  %v2122 = vpack.c.b16 %v1443, %v2090
  %v2123 = vpack.c.b16 %v1445, %v2091
  %v2124 = vpack.c.b16 %v1447, %v2092
  %v2125 = vpack.c.b16 %v1449, %v2093
  %v2126 = vpack.c.b16 %v1451, %v2094
  %v2127 = vpack.c.b16 %v1453, %v2095
  %v2128 = vpack.c.b16 %v1455, %v2096
  %v2129 = vpack.c.b16 %v1457, %v2097
  %v2130 = vrot.slane %v2098, 1
  %v2131 = vrot.slane %v1586, 1
  %v2132 = vsel %vm1201, %v2130, %v2131
  %v2133 = vrot.slane %v2099, 1
  %v2134 = vrot.slane %v1587, 1
  %v2135 = vsel %vm1201, %v2133, %v2134
  %v2136 = vrot.slane %v2100, 1
  %v2137 = vrot.slane %v1588, 1
  %v2138 = vsel %vm1201, %v2136, %v2137
  %v2139 = vrot.slane %v2101, 1
  %v2140 = vrot.slane %v1589, 1
  %v2141 = vsel %vm1201, %v2139, %v2140
  %v2142 = vrot.slane %v2102, 1
  %v2143 = vrot.slane %v1590, 1
  %v2144 = vsel %vm1201, %v2142, %v2143
  %v2145 = vrot.slane %v2103, 1
  %v2146 = vrot.slane %v1591, 1
  %v2147 = vsel %vm1201, %v2145, %v2146
  %v2148 = vrot.slane %v2104, 1
  %v2149 = vrot.slane %v1592, 1
  %v2150 = vsel %vm1201, %v2148, %v2149
  %v2151 = vrot.slane %v2105, 1
  %v2152 = vrot.slane %v1593, 1
  %v2153 = vsel %vm1201, %v2151, %v2152
  %v2154 = vrot.slane %v2106, 1
  %v2155 = vrot.slane %v1594, 1
  %v2156 = vsel %vm1201, %v2154, %v2155
  %v2157 = vrot.slane %v2107, 1
  %v2158 = vrot.slane %v1595, 1
  %v2159 = vsel %vm1201, %v2157, %v2158
  %v2160 = vrot.slane %v2108, 1
  %v2161 = vrot.slane %v1596, 1
  %v2162 = vsel %vm1201, %v2160, %v2161
  %v2163 = vrot.slane %v2109, 1
  %v2164 = vrot.slane %v1597, 1
  %v2165 = vsel %vm1201, %v2163, %v2164
  %v2166 = vrot.slane %v2110, 1
  %v2167 = vrot.slane %v1598, 1
  %v2168 = vsel %vm1201, %v2166, %v2167
  %v2169 = vrot.slane %v2111, 1
  %v2170 = vrot.slane %v1599, 1
  %v2171 = vsel %vm1201, %v2169, %v2170
  %v2172 = vrot.slane %v2112, 1
  %v2173 = vrot.slane %v1600, 1
  %v2174 = vsel %vm1201, %v2172, %v2173
  %v2175 = vrot.slane %v2113, 1
  %v2176 = vrot.slane %v1601, 1
  %v2177 = vsel %vm1201, %v2175, %v2176
  %v2178 = vrot.slane %v2114, 1
  %v2179 = vrot.slane %v1602, 1
  %v2180 = vsel %vm1201, %v2178, %v2179
  %v2181 = vrot.slane %v2115, 1
  %v2182 = vrot.slane %v1603, 1
  %v2183 = vsel %vm1201, %v2181, %v2182
  %v2184 = vrot.slane %v2116, 1
  %v2185 = vrot.slane %v1604, 1
  %v2186 = vsel %vm1201, %v2184, %v2185
  %v2187 = vrot.slane %v2117, 1
  %v2188 = vrot.slane %v1605, 1
  %v2189 = vsel %vm1201, %v2187, %v2188
  %v2190 = vrot.slane %v2118, 1
  %v2191 = vrot.slane %v1606, 1
  %v2192 = vsel %vm1201, %v2190, %v2191
  %v2193 = vrot.slane %v2119, 1
  %v2194 = vrot.slane %v1607, 1
  %v2195 = vsel %vm1201, %v2193, %v2194
  %v2196 = vrot.slane %v2120, 1
  %v2197 = vrot.slane %v1608, 1
  %v2198 = vsel %vm1201, %v2196, %v2197
  %v2199 = vrot.slane %v2121, 1
  %v2200 = vrot.slane %v1609, 1
  %v2201 = vsel %vm1201, %v2199, %v2200
  %v2202 = vrot.slane %v2122, 1
  %v2203 = vrot.slane %v1610, 1
  %v2204 = vsel %vm1201, %v2202, %v2203
  %v2205 = vrot.slane %v2123, 1
  %v2206 = vrot.slane %v1611, 1
  %v2207 = vsel %vm1201, %v2205, %v2206
  %v2208 = vrot.slane %v2124, 1
  %v2209 = vrot.slane %v1612, 1
  %v2210 = vsel %vm1201, %v2208, %v2209
  %v2211 = vrot.slane %v2125, 1
  %v2212 = vrot.slane %v1613, 1
  %v2213 = vsel %vm1201, %v2211, %v2212
  %v2214 = vrot.slane %v2126, 1
  %v2215 = vrot.slane %v1614, 1
  %v2216 = vsel %vm1201, %v2214, %v2215
  %v2217 = vrot.slane %v2127, 1
  %v2218 = vrot.slane %v1615, 1
  %v2219 = vsel %vm1201, %v2217, %v2218
  %v2220 = vrot.slane %v2128, 1
  %v2221 = vrot.slane %v1616, 1
  %v2222 = vsel %vm1201, %v2220, %v2221
  %v2223 = vrot.slane %v2129, 1
  %v2224 = vrot.slane %v1617, 1
  %v2225 = vsel %vm1201, %v2223, %v2224
  %v2322 = vunpack.c.l.b16 %v272
  %v2323 = vunpack.c.l.b16 %v273
  %v2324 = vunpack.c.l.b16 %v274
  %v2325 = vunpack.c.l.b16 %v275
  %v2326 = vunpack.c.l.b16 %v276
  %v2327 = vunpack.c.l.b16 %v277
  %v2328 = vunpack.c.l.b16 %v278
  %v2329 = vunpack.c.l.b16 %v279
  %v2330 = vunpack.c.l.b16 %v280
  %v2331 = vunpack.c.l.b16 %v281
  %v2332 = vunpack.c.l.b16 %v282
  %v2333 = vunpack.c.l.b16 %v283
  %v2334 = vunpack.c.l.b16 %v284
  %v2335 = vunpack.c.l.b16 %v285
  %v2336 = vunpack.c.l.b16 %v286
  %v2337 = vunpack.c.l.b16 %v287
  %v2338 = vunpack.c.l.b16 %v288
  %v2339 = vunpack.c.l.b16 %v289
  %v2340 = vunpack.c.l.b16 %v290
  %v2341 = vunpack.c.l.b16 %v291
  %v2342 = vunpack.c.l.b16 %v292
  %v2343 = vunpack.c.l.b16 %v293
  %v2344 = vunpack.c.l.b16 %v294
  %v2345 = vunpack.c.l.b16 %v295
  %v2346 = vunpack.c.l.b16 %v296
  %v2347 = vunpack.c.l.b16 %v297
  %v2348 = vunpack.c.l.b16 %v298
  %v2349 = vunpack.c.l.b16 %v299
  %v2350 = vunpack.c.l.b16 %v300
  %v2351 = vunpack.c.l.b16 %v301
  %v2352 = vunpack.c.l.b16 %v302
  %v2353 = vunpack.c.l.b16 %v303
  %v2354 = vunpack.c.l.b16 %v304
  %v2355 = vunpack.c.l.b16 %v305
  %v2356 = vunpack.c.l.b16 %v306
  %v2357 = vunpack.c.l.b16 %v307
  %v2358 = vunpack.c.l.b16 %v308
  %v2359 = vunpack.c.l.b16 %v309
  %v2360 = vunpack.c.l.b16 %v310
  %v2361 = vunpack.c.l.b16 %v311
  %v2362 = vunpack.c.l.b16 %v312
  %v2363 = vunpack.c.l.b16 %v313
  %v2364 = vunpack.c.l.b16 %v314
  %v2365 = vunpack.c.l.b16 %v315
  %v2366 = vunpack.c.l.b16 %v316
  %v2367 = vunpack.c.l.b16 %v317
  %v2368 = vunpack.c.l.b16 %v318
  %v2369 = vunpack.c.l.b16 %v319
  %v2370 = vunpack.c.l.b16 %v320
  %v2371 = vunpack.c.l.b16 %v321
  %v2372 = vunpack.c.l.b16 %v322
  %v2373 = vunpack.c.l.b16 %v323
  %v2374 = vunpack.c.l.b16 %v324
  %v2375 = vunpack.c.l.b16 %v325
  %v2376 = vunpack.c.l.b16 %v326
  %v2377 = vunpack.c.l.b16 %v327
  %v2378 = vunpack.c.l.b16 %v328
  %v2379 = vunpack.c.l.b16 %v329
  %v2380 = vunpack.c.l.b16 %v330
  %v2381 = vunpack.c.l.b16 %v331
  %v2382 = vunpack.c.l.b16 %v332
  %v2383 = vunpack.c.l.b16 %v333
  %v2384 = vunpack.c.l.b16 %v334
  %v2385 = vunpack.c.l.b16 %v335
  %v2386 = vpack.c.b16 %v2323, %v2322
  %v2387 = vpack.c.b16 %v2325, %v2324
  %v2388 = vpack.c.b16 %v2327, %v2326
  %v2389 = vpack.c.b16 %v2329, %v2328
  %v2390 = vpack.c.b16 %v2331, %v2330
  %v2391 = vpack.c.b16 %v2333, %v2332
  %v2392 = vpack.c.b16 %v2335, %v2334
  %v2393 = vpack.c.b16 %v2337, %v2336
  %v2394 = vpack.c.b16 %v2339, %v2338
  %v2395 = vpack.c.b16 %v2341, %v2340
  %v2396 = vpack.c.b16 %v2343, %v2342
  %v2397 = vpack.c.b16 %v2345, %v2344
  %v2398 = vpack.c.b16 %v2347, %v2346
  %v2399 = vpack.c.b16 %v2349, %v2348
  %v2400 = vpack.c.b16 %v2351, %v2350
  %v2401 = vpack.c.b16 %v2353, %v2352
  %v2402 = vpack.c.b16 %v2355, %v2354
  %v2403 = vpack.c.b16 %v2357, %v2356
  %v2404 = vpack.c.b16 %v2359, %v2358
  %v2405 = vpack.c.b16 %v2361, %v2360
  %v2406 = vpack.c.b16 %v2363, %v2362
  %v2407 = vpack.c.b16 %v2365, %v2364
  %v2408 = vpack.c.b16 %v2367, %v2366
  %v2409 = vpack.c.b16 %v2369, %v2368
  %v2410 = vpack.c.b16 %v2371, %v2370
  %v2411 = vpack.c.b16 %v2373, %v2372
  %v2412 = vpack.c.b16 %v2375, %v2374
  %v2413 = vpack.c.b16 %v2377, %v2376
  %v2414 = vpack.c.b16 %v2379, %v2378
  %v2415 = vpack.c.b16 %v2381, %v2380
  %v2416 = vpack.c.b16 %v2383, %v2382
  %v2417 = vpack.c.b16 %v2385, %v2384
  %v2482 = vunpack.c.l.b16 %v336
  %v2483 = vunpack.c.l.b16 %v337
  %v2484 = vunpack.c.l.b16 %v338
  %v2485 = vunpack.c.l.b16 %v339
  %v2486 = vunpack.c.l.b16 %v340
  %v2487 = vunpack.c.l.b16 %v341
  %v2488 = vunpack.c.l.b16 %v342
  %v2489 = vunpack.c.l.b16 %v343
  %v2490 = vunpack.c.l.b16 %v344
  %v2491 = vunpack.c.l.b16 %v345
  %v2492 = vunpack.c.l.b16 %v346
  %v2493 = vunpack.c.l.b16 %v347
  %v2494 = vunpack.c.l.b16 %v348
  %v2495 = vunpack.c.l.b16 %v349
  %v2496 = vunpack.c.l.b16 %v350
  %v2497 = vunpack.c.l.b16 %v351
  %v2498 = vunpack.c.l.b16 %v352
  %v2499 = vunpack.c.l.b16 %v353
  %v2500 = vunpack.c.l.b16 %v354
  %v2501 = vunpack.c.l.b16 %v355
  %v2502 = vunpack.c.l.b16 %v356
  %v2503 = vunpack.c.l.b16 %v357
  %v2504 = vunpack.c.l.b16 %v358
  %v2505 = vunpack.c.l.b16 %v359
  %v2506 = vunpack.c.l.b16 %v360
  %v2507 = vunpack.c.l.b16 %v361
  %v2508 = vunpack.c.l.b16 %v362
  %v2509 = vunpack.c.l.b16 %v363
  %v2510 = vunpack.c.l.b16 %v364
  %v2511 = vunpack.c.l.b16 %v365
  %v2512 = vunpack.c.l.b16 %v366
  %v2513 = vunpack.c.l.b16 %v367
  %v2514 = vpack.c.b16 %v2482, %v2482
  %v2515 = vpack.c.b16 %v2483, %v2483
  %v2516 = vpack.c.b16 %v2484, %v2484
  %v2517 = vpack.c.b16 %v2485, %v2485
  %v2518 = vpack.c.b16 %v2486, %v2486
  %v2519 = vpack.c.b16 %v2487, %v2487
  %v2520 = vpack.c.b16 %v2488, %v2488
  %v2521 = vpack.c.b16 %v2489, %v2489
  %v2522 = vpack.c.b16 %v2490, %v2490
  %v2523 = vpack.c.b16 %v2491, %v2491
  %v2524 = vpack.c.b16 %v2492, %v2492
  %v2525 = vpack.c.b16 %v2493, %v2493
  %v2526 = vpack.c.b16 %v2494, %v2494
  %v2527 = vpack.c.b16 %v2495, %v2495
  %v2528 = vpack.c.b16 %v2496, %v2496
  %v2529 = vpack.c.b16 %v2497, %v2497
  %v2530 = vpack.c.b16 %v2498, %v2498
  %v2531 = vpack.c.b16 %v2499, %v2499
  %v2532 = vpack.c.b16 %v2500, %v2500
  %v2533 = vpack.c.b16 %v2501, %v2501
  %v2534 = vpack.c.b16 %v2502, %v2502
  %v2535 = vpack.c.b16 %v2503, %v2503
  %v2536 = vpack.c.b16 %v2504, %v2504
  %v2537 = vpack.c.b16 %v2505, %v2505
  %v2538 = vpack.c.b16 %v2506, %v2506
  %v2539 = vpack.c.b16 %v2507, %v2507
  %v2540 = vpack.c.b16 %v2508, %v2508
  %v2541 = vpack.c.b16 %v2509, %v2509
  %v2542 = vpack.c.b16 %v2510, %v2510
  %v2543 = vpack.c.b16 %v2511, %v2511
  %v2544 = vpack.c.b16 %v2512, %v2512
  %v2545 = vpack.c.b16 %v2513, %v2513
  %v2547 = vshrl.u32 %v2386, 16
  %v2549 = vshll.u32 %v2386, 16
  %v2551 = vrot.slane %v2549, 1
  %v2552 = vor.u32 %v2547, %v2551
  %v2554 = vshll.u32 %v2514, 16
  %v2556 = vrot.slane %v2554, 1
  %v2557 = vsel %vm688, %v2552, %v2556
  %v2559 = vshrl.u32 %v2387, 16
  %v2561 = vshll.u32 %v2387, 16
  %v2563 = vrot.slane %v2561, 1
  %v2564 = vor.u32 %v2559, %v2563
  %v2566 = vshll.u32 %v2515, 16
  %v2568 = vrot.slane %v2566, 1
  %v2569 = vsel %vm688, %v2564, %v2568
  %v2571 = vshrl.u32 %v2388, 16
  %v2573 = vshll.u32 %v2388, 16
  %v2575 = vrot.slane %v2573, 1
  %v2576 = vor.u32 %v2571, %v2575
  %v2578 = vshll.u32 %v2516, 16
  %v2580 = vrot.slane %v2578, 1
  %v2581 = vsel %vm688, %v2576, %v2580
  %v2583 = vshrl.u32 %v2389, 16
  %v2585 = vshll.u32 %v2389, 16
  %v2587 = vrot.slane %v2585, 1
  %v2588 = vor.u32 %v2583, %v2587
  %v2590 = vshll.u32 %v2517, 16
  %v2592 = vrot.slane %v2590, 1
  %v2593 = vsel %vm688, %v2588, %v2592
  %v2595 = vshrl.u32 %v2390, 16
  %v2597 = vshll.u32 %v2390, 16
  %v2599 = vrot.slane %v2597, 1
  %v2600 = vor.u32 %v2595, %v2599
  %v2602 = vshll.u32 %v2518, 16
  %v2604 = vrot.slane %v2602, 1
  %v2605 = vsel %vm688, %v2600, %v2604
  %v2607 = vshrl.u32 %v2391, 16
  %v2609 = vshll.u32 %v2391, 16
  %v2611 = vrot.slane %v2609, 1
  %v2612 = vor.u32 %v2607, %v2611
  %v2614 = vshll.u32 %v2519, 16
  %v2616 = vrot.slane %v2614, 1
  %v2617 = vsel %vm688, %v2612, %v2616
  %v2619 = vshrl.u32 %v2392, 16
  %v2621 = vshll.u32 %v2392, 16
  %v2623 = vrot.slane %v2621, 1
  %v2624 = vor.u32 %v2619, %v2623
  %v2626 = vshll.u32 %v2520, 16
  %v2628 = vrot.slane %v2626, 1
  %v2629 = vsel %vm688, %v2624, %v2628
  %v2631 = vshrl.u32 %v2393, 16
  %v2633 = vshll.u32 %v2393, 16
  %v2635 = vrot.slane %v2633, 1
  %v2636 = vor.u32 %v2631, %v2635
  %v2638 = vshll.u32 %v2521, 16
  %v2640 = vrot.slane %v2638, 1
  %v2641 = vsel %vm688, %v2636, %v2640
  %v2643 = vshrl.u32 %v2394, 16
  %v2645 = vshll.u32 %v2394, 16
  %v2647 = vrot.slane %v2645, 1
  %v2648 = vor.u32 %v2643, %v2647
  %v2650 = vshll.u32 %v2522, 16
  %v2652 = vrot.slane %v2650, 1
  %v2653 = vsel %vm688, %v2648, %v2652
  %v2655 = vshrl.u32 %v2395, 16
  %v2657 = vshll.u32 %v2395, 16
  %v2659 = vrot.slane %v2657, 1
  %v2660 = vor.u32 %v2655, %v2659
  %v2662 = vshll.u32 %v2523, 16
  %v2664 = vrot.slane %v2662, 1
  %v2665 = vsel %vm688, %v2660, %v2664
  %v2667 = vshrl.u32 %v2396, 16
  %v2669 = vshll.u32 %v2396, 16
  %v2671 = vrot.slane %v2669, 1
  %v2672 = vor.u32 %v2667, %v2671
  %v2674 = vshll.u32 %v2524, 16
  %v2676 = vrot.slane %v2674, 1
  %v2677 = vsel %vm688, %v2672, %v2676
  %v2679 = vshrl.u32 %v2397, 16
  %v2681 = vshll.u32 %v2397, 16
  %v2683 = vrot.slane %v2681, 1
  %v2684 = vor.u32 %v2679, %v2683
  %v2686 = vshll.u32 %v2525, 16
  %v2688 = vrot.slane %v2686, 1
  %v2689 = vsel %vm688, %v2684, %v2688
  %v2691 = vshrl.u32 %v2398, 16
  %v2693 = vshll.u32 %v2398, 16
  %v2695 = vrot.slane %v2693, 1
  %v2696 = vor.u32 %v2691, %v2695
  %v2698 = vshll.u32 %v2526, 16
  %v2700 = vrot.slane %v2698, 1
  %v2701 = vsel %vm688, %v2696, %v2700
  %v2703 = vshrl.u32 %v2399, 16
  %v2705 = vshll.u32 %v2399, 16
  %v2707 = vrot.slane %v2705, 1
  %v2708 = vor.u32 %v2703, %v2707
  %v2710 = vshll.u32 %v2527, 16
  %v2712 = vrot.slane %v2710, 1
  %v2713 = vsel %vm688, %v2708, %v2712
  %v2715 = vshrl.u32 %v2400, 16
  %v2717 = vshll.u32 %v2400, 16
  %v2719 = vrot.slane %v2717, 1
  %v2720 = vor.u32 %v2715, %v2719
  %v2722 = vshll.u32 %v2528, 16
  %v2724 = vrot.slane %v2722, 1
  %v2725 = vsel %vm688, %v2720, %v2724
  %v2727 = vshrl.u32 %v2401, 16
  %v2729 = vshll.u32 %v2401, 16
  %v2731 = vrot.slane %v2729, 1
  %v2732 = vor.u32 %v2727, %v2731
  %v2734 = vshll.u32 %v2529, 16
  %v2736 = vrot.slane %v2734, 1
  %v2737 = vsel %vm688, %v2732, %v2736
  %v2739 = vshrl.u32 %v2402, 16
  %v2741 = vshll.u32 %v2402, 16
  %v2743 = vrot.slane %v2741, 1
  %v2744 = vor.u32 %v2739, %v2743
  %v2746 = vshll.u32 %v2530, 16
  %v2748 = vrot.slane %v2746, 1
  %v2749 = vsel %vm688, %v2744, %v2748
  %v2751 = vshrl.u32 %v2403, 16
  %v2753 = vshll.u32 %v2403, 16
  %v2755 = vrot.slane %v2753, 1
  %v2756 = vor.u32 %v2751, %v2755
  %v2758 = vshll.u32 %v2531, 16
  %v2760 = vrot.slane %v2758, 1
  %v2761 = vsel %vm688, %v2756, %v2760
  %v2763 = vshrl.u32 %v2404, 16
  %v2765 = vshll.u32 %v2404, 16
  %v2767 = vrot.slane %v2765, 1
  %v2768 = vor.u32 %v2763, %v2767
  %v2770 = vshll.u32 %v2532, 16
  %v2772 = vrot.slane %v2770, 1
  %v2773 = vsel %vm688, %v2768, %v2772
  %v2775 = vshrl.u32 %v2405, 16
  %v2777 = vshll.u32 %v2405, 16
  %v2779 = vrot.slane %v2777, 1
  %v2780 = vor.u32 %v2775, %v2779
  %v2782 = vshll.u32 %v2533, 16
  %v2784 = vrot.slane %v2782, 1
  %v2785 = vsel %vm688, %v2780, %v2784
  %v2787 = vshrl.u32 %v2406, 16
  %v2789 = vshll.u32 %v2406, 16
  %v2791 = vrot.slane %v2789, 1
  %v2792 = vor.u32 %v2787, %v2791
  %v2794 = vshll.u32 %v2534, 16
  %v2796 = vrot.slane %v2794, 1
  %v2797 = vsel %vm688, %v2792, %v2796
  %v2799 = vshrl.u32 %v2407, 16
  %v2801 = vshll.u32 %v2407, 16
  %v2803 = vrot.slane %v2801, 1
  %v2804 = vor.u32 %v2799, %v2803
  %v2806 = vshll.u32 %v2535, 16
  %v2808 = vrot.slane %v2806, 1
  %v2809 = vsel %vm688, %v2804, %v2808
  %v2811 = vshrl.u32 %v2408, 16
  %v2813 = vshll.u32 %v2408, 16
  %v2815 = vrot.slane %v2813, 1
  %v2816 = vor.u32 %v2811, %v2815
  %v2818 = vshll.u32 %v2536, 16
  %v2820 = vrot.slane %v2818, 1
  %v2821 = vsel %vm688, %v2816, %v2820
  %v2823 = vshrl.u32 %v2409, 16
  %v2825 = vshll.u32 %v2409, 16
  %v2827 = vrot.slane %v2825, 1
  %v2828 = vor.u32 %v2823, %v2827
  %v2830 = vshll.u32 %v2537, 16
  %v2832 = vrot.slane %v2830, 1
  %v2833 = vsel %vm688, %v2828, %v2832
  %v2835 = vshrl.u32 %v2410, 16
  %v2837 = vshll.u32 %v2410, 16
  %v2839 = vrot.slane %v2837, 1
  %v2840 = vor.u32 %v2835, %v2839
  %v2842 = vshll.u32 %v2538, 16
  %v2844 = vrot.slane %v2842, 1
  %v2845 = vsel %vm688, %v2840, %v2844
  %v2847 = vshrl.u32 %v2411, 16
  %v2849 = vshll.u32 %v2411, 16
  %v2851 = vrot.slane %v2849, 1
  %v2852 = vor.u32 %v2847, %v2851
  %v2854 = vshll.u32 %v2539, 16
  %v2856 = vrot.slane %v2854, 1
  %v2857 = vsel %vm688, %v2852, %v2856
  %v2859 = vshrl.u32 %v2412, 16
  %v2861 = vshll.u32 %v2412, 16
  %v2863 = vrot.slane %v2861, 1
  %v2864 = vor.u32 %v2859, %v2863
  %v2866 = vshll.u32 %v2540, 16
  %v2868 = vrot.slane %v2866, 1
  %v2869 = vsel %vm688, %v2864, %v2868
  %v2871 = vshrl.u32 %v2413, 16
  %v2873 = vshll.u32 %v2413, 16
  %v2875 = vrot.slane %v2873, 1
  %v2876 = vor.u32 %v2871, %v2875
  %v2878 = vshll.u32 %v2541, 16
  %v2880 = vrot.slane %v2878, 1
  %v2881 = vsel %vm688, %v2876, %v2880
  %v2883 = vshrl.u32 %v2414, 16
  %v2885 = vshll.u32 %v2414, 16
  %v2887 = vrot.slane %v2885, 1
  %v2888 = vor.u32 %v2883, %v2887
  %v2890 = vshll.u32 %v2542, 16
  %v2892 = vrot.slane %v2890, 1
  %v2893 = vsel %vm688, %v2888, %v2892
  %v2895 = vshrl.u32 %v2415, 16
  %v2897 = vshll.u32 %v2415, 16
  %v2899 = vrot.slane %v2897, 1
  %v2900 = vor.u32 %v2895, %v2899
  %v2902 = vshll.u32 %v2543, 16
  %v2904 = vrot.slane %v2902, 1
  %v2905 = vsel %vm688, %v2900, %v2904
  %v2907 = vshrl.u32 %v2416, 16
  %v2909 = vshll.u32 %v2416, 16
  %v2911 = vrot.slane %v2909, 1
  %v2912 = vor.u32 %v2907, %v2911
  %v2914 = vshll.u32 %v2544, 16
  %v2916 = vrot.slane %v2914, 1
  %v2917 = vsel %vm688, %v2912, %v2916
  %v2919 = vshrl.u32 %v2417, 16
  %v2921 = vshll.u32 %v2417, 16
  %v2923 = vrot.slane %v2921, 1
  %v2924 = vor.u32 %v2919, %v2923
  %v2926 = vshll.u32 %v2545, 16
  %v2928 = vrot.slane %v2926, 1
  %v2929 = vsel %vm688, %v2924, %v2928
  %v2994 = vunpack.c.l.b16 %v368
  %v2995 = vunpack.c.l.b16 %v369
  %v2996 = vunpack.c.l.b16 %v370
  %v2997 = vunpack.c.l.b16 %v371
  %v2998 = vunpack.c.l.b16 %v372
  %v2999 = vunpack.c.l.b16 %v373
  %v3000 = vunpack.c.l.b16 %v374
  %v3001 = vunpack.c.l.b16 %v375
  %v3002 = vunpack.c.l.b16 %v376
  %v3003 = vunpack.c.l.b16 %v377
  %v3004 = vunpack.c.l.b16 %v378
  %v3005 = vunpack.c.l.b16 %v379
  %v3006 = vunpack.c.l.b16 %v380
  %v3007 = vunpack.c.l.b16 %v381
  %v3008 = vunpack.c.l.b16 %v382
  %v3009 = vunpack.c.l.b16 %v383
  %v3010 = vunpack.c.l.b16 %v384
  %v3011 = vunpack.c.l.b16 %v385
  %v3012 = vunpack.c.l.b16 %v386
  %v3013 = vunpack.c.l.b16 %v387
  %v3014 = vunpack.c.l.b16 %v388
  %v3015 = vunpack.c.l.b16 %v389
  %v3016 = vunpack.c.l.b16 %v390
  %v3017 = vunpack.c.l.b16 %v391
  %v3018 = vunpack.c.l.b16 %v392
  %v3019 = vunpack.c.l.b16 %v393
  %v3020 = vunpack.c.l.b16 %v394
  %v3021 = vunpack.c.l.b16 %v395
  %v3022 = vunpack.c.l.b16 %v396
  %v3023 = vunpack.c.l.b16 %v397
  %v3024 = vunpack.c.l.b16 %v398
  %v3025 = vunpack.c.l.b16 %v399
  %v3026 = vpack.c.b16 %v2323, %v2994
  %v3027 = vpack.c.b16 %v2325, %v2995
  %v3028 = vpack.c.b16 %v2327, %v2996
  %v3029 = vpack.c.b16 %v2329, %v2997
  %v3030 = vpack.c.b16 %v2331, %v2998
  %v3031 = vpack.c.b16 %v2333, %v2999
  %v3032 = vpack.c.b16 %v2335, %v3000
  %v3033 = vpack.c.b16 %v2337, %v3001
  %v3034 = vpack.c.b16 %v2339, %v3002
  %v3035 = vpack.c.b16 %v2341, %v3003
  %v3036 = vpack.c.b16 %v2343, %v3004
  %v3037 = vpack.c.b16 %v2345, %v3005
  %v3038 = vpack.c.b16 %v2347, %v3006
  %v3039 = vpack.c.b16 %v2349, %v3007
  %v3040 = vpack.c.b16 %v2351, %v3008
  %v3041 = vpack.c.b16 %v2353, %v3009
  %v3042 = vpack.c.b16 %v2355, %v3010
  %v3043 = vpack.c.b16 %v2357, %v3011
  %v3044 = vpack.c.b16 %v2359, %v3012
  %v3045 = vpack.c.b16 %v2361, %v3013
  %v3046 = vpack.c.b16 %v2363, %v3014
  %v3047 = vpack.c.b16 %v2365, %v3015
  %v3048 = vpack.c.b16 %v2367, %v3016
  %v3049 = vpack.c.b16 %v2369, %v3017
  %v3050 = vpack.c.b16 %v2371, %v3018
  %v3051 = vpack.c.b16 %v2373, %v3019
  %v3052 = vpack.c.b16 %v2375, %v3020
  %v3053 = vpack.c.b16 %v2377, %v3021
  %v3054 = vpack.c.b16 %v2379, %v3022
  %v3055 = vpack.c.b16 %v2381, %v3023
  %v3056 = vpack.c.b16 %v2383, %v3024
  %v3057 = vpack.c.b16 %v2385, %v3025
  %v3058 = vrot.slane %v3026, 1
  %v3059 = vrot.slane %v2514, 1
  %v3060 = vsel %vm1201, %v3058, %v3059
  %v3061 = vrot.slane %v3027, 1
  %v3062 = vrot.slane %v2515, 1
  %v3063 = vsel %vm1201, %v3061, %v3062
  %v3064 = vrot.slane %v3028, 1
  %v3065 = vrot.slane %v2516, 1
  %v3066 = vsel %vm1201, %v3064, %v3065
  %v3067 = vrot.slane %v3029, 1
  %v3068 = vrot.slane %v2517, 1
  %v3069 = vsel %vm1201, %v3067, %v3068
  %v3070 = vrot.slane %v3030, 1
  %v3071 = vrot.slane %v2518, 1
  %v3072 = vsel %vm1201, %v3070, %v3071
  %v3073 = vrot.slane %v3031, 1
  %v3074 = vrot.slane %v2519, 1
  %v3075 = vsel %vm1201, %v3073, %v3074
  %v3076 = vrot.slane %v3032, 1
  %v3077 = vrot.slane %v2520, 1
  %v3078 = vsel %vm1201, %v3076, %v3077
  %v3079 = vrot.slane %v3033, 1
  %v3080 = vrot.slane %v2521, 1
  %v3081 = vsel %vm1201, %v3079, %v3080
  %v3082 = vrot.slane %v3034, 1
  %v3083 = vrot.slane %v2522, 1
  %v3084 = vsel %vm1201, %v3082, %v3083
  %v3085 = vrot.slane %v3035, 1
  %v3086 = vrot.slane %v2523, 1
  %v3087 = vsel %vm1201, %v3085, %v3086
  %v3088 = vrot.slane %v3036, 1
  %v3089 = vrot.slane %v2524, 1
  %v3090 = vsel %vm1201, %v3088, %v3089
  %v3091 = vrot.slane %v3037, 1
  %v3092 = vrot.slane %v2525, 1
  %v3093 = vsel %vm1201, %v3091, %v3092
  %v3094 = vrot.slane %v3038, 1
  %v3095 = vrot.slane %v2526, 1
  %v3096 = vsel %vm1201, %v3094, %v3095
  %v3097 = vrot.slane %v3039, 1
  %v3098 = vrot.slane %v2527, 1
  %v3099 = vsel %vm1201, %v3097, %v3098
  %v3100 = vrot.slane %v3040, 1
  %v3101 = vrot.slane %v2528, 1
  %v3102 = vsel %vm1201, %v3100, %v3101
  %v3103 = vrot.slane %v3041, 1
  %v3104 = vrot.slane %v2529, 1
  %v3105 = vsel %vm1201, %v3103, %v3104
  %v3106 = vrot.slane %v3042, 1
  %v3107 = vrot.slane %v2530, 1
  %v3108 = vsel %vm1201, %v3106, %v3107
  %v3109 = vrot.slane %v3043, 1
  %v3110 = vrot.slane %v2531, 1
  %v3111 = vsel %vm1201, %v3109, %v3110
  %v3112 = vrot.slane %v3044, 1
  %v3113 = vrot.slane %v2532, 1
  %v3114 = vsel %vm1201, %v3112, %v3113
  %v3115 = vrot.slane %v3045, 1
  %v3116 = vrot.slane %v2533, 1
  %v3117 = vsel %vm1201, %v3115, %v3116
  %v3118 = vrot.slane %v3046, 1
  %v3119 = vrot.slane %v2534, 1
  %v3120 = vsel %vm1201, %v3118, %v3119
  %v3121 = vrot.slane %v3047, 1
  %v3122 = vrot.slane %v2535, 1
  %v3123 = vsel %vm1201, %v3121, %v3122
  %v3124 = vrot.slane %v3048, 1
  %v3125 = vrot.slane %v2536, 1
  %v3126 = vsel %vm1201, %v3124, %v3125
  %v3127 = vrot.slane %v3049, 1
  %v3128 = vrot.slane %v2537, 1
  %v3129 = vsel %vm1201, %v3127, %v3128
  %v3130 = vrot.slane %v3050, 1
  %v3131 = vrot.slane %v2538, 1
  %v3132 = vsel %vm1201, %v3130, %v3131
  %v3133 = vrot.slane %v3051, 1
  %v3134 = vrot.slane %v2539, 1
  %v3135 = vsel %vm1201, %v3133, %v3134
  %v3136 = vrot.slane %v3052, 1
  %v3137 = vrot.slane %v2540, 1
  %v3138 = vsel %vm1201, %v3136, %v3137
  %v3139 = vrot.slane %v3053, 1
  %v3140 = vrot.slane %v2541, 1
  %v3141 = vsel %vm1201, %v3139, %v3140
  %v3142 = vrot.slane %v3054, 1
  %v3143 = vrot.slane %v2542, 1
  %v3144 = vsel %vm1201, %v3142, %v3143
  %v3145 = vrot.slane %v3055, 1
  %v3146 = vrot.slane %v2543, 1
  %v3147 = vsel %vm1201, %v3145, %v3146
  %v3148 = vrot.slane %v3056, 1
  %v3149 = vrot.slane %v2544, 1
  %v3150 = vsel %vm1201, %v3148, %v3149
  %v3151 = vrot.slane %v3057, 1
  %v3152 = vrot.slane %v2545, 1
  %v3153 = vsel %vm1201, %v3151, %v3152
  %v3186 = vld [vmem:[%s1] sm:$0xff]
  %v3187 = vld [vmem:[%s1 + $0x8] sm:$0xff]
  %v3188 = vld [vmem:[%s1 + $0x10] sm:$0xff]
  %v3189 = vld [vmem:[%s1 + $0x18] sm:$0xff]
  %v3190 = vld [vmem:[%s1 + $0x20] sm:$0xff]
  %v3191 = vld [vmem:[%s1 + $0x28] sm:$0xff]
  %v3192 = vld [vmem:[%s1 + $0x30] sm:$0xff]
  %v3193 = vld [vmem:[%s1 + $0x38] sm:$0xff]
  %v3194 = vld [vmem:[%s1 + $0x40] sm:$0xff]
  %v3195 = vld [vmem:[%s1 + $0x48] sm:$0xff]
  %v3196 = vld [vmem:[%s1 + $0x50] sm:$0xff]
  %v3197 = vld [vmem:[%s1 + $0x58] sm:$0xff]
  %v3198 = vld [vmem:[%s1 + $0x60] sm:$0xff]
  %v3199 = vld [vmem:[%s1 + $0x68] sm:$0xff]
  %v3200 = vld [vmem:[%s1 + $0x70] sm:$0xff]
  %v3201 = vld [vmem:[%s1 + $0x78] sm:$0xff]
  %v3202 = vld [vmem:[%s1 + $0x80] sm:$0xff]
  %v3203 = vld [vmem:[%s1 + $0x88] sm:$0xff]
  %v3204 = vld [vmem:[%s1 + $0x90] sm:$0xff]
  %v3205 = vld [vmem:[%s1 + $0x98] sm:$0xff]
  %v3206 = vld [vmem:[%s1 + $0xa0] sm:$0xff]
  %v3207 = vld [vmem:[%s1 + $0xa8] sm:$0xff]
  %v3208 = vld [vmem:[%s1 + $0xb0] sm:$0xff]
  %v3209 = vld [vmem:[%s1 + $0xb8] sm:$0xff]
  %v3210 = vld [vmem:[%s1 + $0xc0] sm:$0xff]
  %v3211 = vld [vmem:[%s1 + $0xc8] sm:$0xff]
  %v3212 = vld [vmem:[%s1 + $0xd0] sm:$0xff]
  %v3213 = vld [vmem:[%s1 + $0xd8] sm:$0xff]
  %v3214 = vld [vmem:[%s1 + $0xe0] sm:$0xff]
  %v3215 = vld [vmem:[%s1 + $0xe8] sm:$0xff]
  %v3216 = vld [vmem:[%s1 + $0xf0] sm:$0xff]
  %v3217 = vld [vmem:[%s1 + $0xf8] sm:$0xff]
  %v3218 = vld [vmem:[%s1 + $0x100] sm:$0xff]
  %v3219 = vld [vmem:[%s1 + $0x108] sm:$0xff]
  %v3220 = vld [vmem:[%s1 + $0x110] sm:$0xff]
  %v3221 = vld [vmem:[%s1 + $0x118] sm:$0xff]
  %v3222 = vld [vmem:[%s1 + $0x120] sm:$0xff]
  %v3223 = vld [vmem:[%s1 + $0x128] sm:$0xff]
  %v3224 = vld [vmem:[%s1 + $0x130] sm:$0xff]
  %v3225 = vld [vmem:[%s1 + $0x138] sm:$0xff]
  %v3226 = vld [vmem:[%s1 + $0x140] sm:$0xff]
  %v3227 = vld [vmem:[%s1 + $0x148] sm:$0xff]
  %v3228 = vld [vmem:[%s1 + $0x150] sm:$0xff]
  %v3229 = vld [vmem:[%s1 + $0x158] sm:$0xff]
  %v3230 = vld [vmem:[%s1 + $0x160] sm:$0xff]
  %v3231 = vld [vmem:[%s1 + $0x168] sm:$0xff]
  %v3232 = vld [vmem:[%s1 + $0x170] sm:$0xff]
  %v3233 = vld [vmem:[%s1 + $0x178] sm:$0xff]
  %v3234 = vld [vmem:[%s1 + $0x180] sm:$0xff]
  %v3235 = vld [vmem:[%s1 + $0x188] sm:$0xff]
  %v3236 = vld [vmem:[%s1 + $0x190] sm:$0xff]
  %v3237 = vld [vmem:[%s1 + $0x198] sm:$0xff]
  %v3238 = vld [vmem:[%s1 + $0x1a0] sm:$0xff]
  %v3239 = vld [vmem:[%s1 + $0x1a8] sm:$0xff]
  %v3240 = vld [vmem:[%s1 + $0x1b0] sm:$0xff]
  %v3241 = vld [vmem:[%s1 + $0x1b8] sm:$0xff]
  %v3242 = vld [vmem:[%s1 + $0x1c0] sm:$0xff]
  %v3243 = vld [vmem:[%s1 + $0x1c8] sm:$0xff]
  %v3244 = vld [vmem:[%s1 + $0x1d0] sm:$0xff]
  %v3245 = vld [vmem:[%s1 + $0x1d8] sm:$0xff]
  %v3246 = vld [vmem:[%s1 + $0x1e0] sm:$0xff]
  %v3247 = vld [vmem:[%s1 + $0x1e8] sm:$0xff]
  %v3248 = vld [vmem:[%s1 + $0x1f0] sm:$0xff]
  %v3249 = vld [vmem:[%s1 + $0x1f8] sm:$0xff]
  %v3250 = vld [vmem:[%s1 + $0x200] sm:$0xff]
  %v3251 = vld [vmem:[%s1 + $0x208] sm:$0xff]
  %v3252 = vld [vmem:[%s1 + $0x210] sm:$0xff]
  %v3253 = vld [vmem:[%s1 + $0x218] sm:$0xff]
  %v3254 = vld [vmem:[%s1 + $0x220] sm:$0xff]
  %v3255 = vld [vmem:[%s1 + $0x228] sm:$0xff]
  %v3256 = vld [vmem:[%s1 + $0x230] sm:$0xff]
  %v3257 = vld [vmem:[%s1 + $0x238] sm:$0xff]
  %v3258 = vld [vmem:[%s1 + $0x240] sm:$0xff]
  %v3259 = vld [vmem:[%s1 + $0x248] sm:$0xff]
  %v3260 = vld [vmem:[%s1 + $0x250] sm:$0xff]
  %v3261 = vld [vmem:[%s1 + $0x258] sm:$0xff]
  %v3262 = vld [vmem:[%s1 + $0x260] sm:$0xff]
  %v3263 = vld [vmem:[%s1 + $0x268] sm:$0xff]
  %v3264 = vld [vmem:[%s1 + $0x270] sm:$0xff]
  %v3265 = vld [vmem:[%s1 + $0x278] sm:$0xff]
  %v3266 = vld [vmem:[%s1 + $0x280] sm:$0xff]
  %v3267 = vld [vmem:[%s1 + $0x288] sm:$0xff]
  %v3268 = vld [vmem:[%s1 + $0x290] sm:$0xff]
  %v3269 = vld [vmem:[%s1 + $0x298] sm:$0xff]
  %v3270 = vld [vmem:[%s1 + $0x2a0] sm:$0xff]
  %v3271 = vld [vmem:[%s1 + $0x2a8] sm:$0xff]
  %v3272 = vld [vmem:[%s1 + $0x2b0] sm:$0xff]
  %v3273 = vld [vmem:[%s1 + $0x2b8] sm:$0xff]
  %v3274 = vld [vmem:[%s1 + $0x2c0] sm:$0xff]
  %v3275 = vld [vmem:[%s1 + $0x2c8] sm:$0xff]
  %v3276 = vld [vmem:[%s1 + $0x2d0] sm:$0xff]
  %v3277 = vld [vmem:[%s1 + $0x2d8] sm:$0xff]
  %v3278 = vld [vmem:[%s1 + $0x2e0] sm:$0xff]
  %v3279 = vld [vmem:[%s1 + $0x2e8] sm:$0xff]
  %v3280 = vld [vmem:[%s1 + $0x2f0] sm:$0xff]
  %v3281 = vld [vmem:[%s1 + $0x2f8] sm:$0xff]
  %v3282 = vld [vmem:[%s1 + $0x300] sm:$0xff]
  %v3283 = vld [vmem:[%s1 + $0x308] sm:$0xff]
  %v3284 = vld [vmem:[%s1 + $0x310] sm:$0xff]
  %v3285 = vld [vmem:[%s1 + $0x318] sm:$0xff]
  %v3286 = vld [vmem:[%s1 + $0x320] sm:$0xff]
  %v3287 = vld [vmem:[%s1 + $0x328] sm:$0xff]
  %v3288 = vld [vmem:[%s1 + $0x330] sm:$0xff]
  %v3289 = vld [vmem:[%s1 + $0x338] sm:$0xff]
  %v3290 = vld [vmem:[%s1 + $0x340] sm:$0xff]
  %v3291 = vld [vmem:[%s1 + $0x348] sm:$0xff]
  %v3292 = vld [vmem:[%s1 + $0x350] sm:$0xff]
  %v3293 = vld [vmem:[%s1 + $0x358] sm:$0xff]
  %v3294 = vld [vmem:[%s1 + $0x360] sm:$0xff]
  %v3295 = vld [vmem:[%s1 + $0x368] sm:$0xff]
  %v3296 = vld [vmem:[%s1 + $0x370] sm:$0xff]
  %v3297 = vld [vmem:[%s1 + $0x378] sm:$0xff]
  %v3298 = vld [vmem:[%s1 + $0x380] sm:$0xff]
  %v3299 = vld [vmem:[%s1 + $0x388] sm:$0xff]
  %v3300 = vld [vmem:[%s1 + $0x390] sm:$0xff]
  %v3301 = vld [vmem:[%s1 + $0x398] sm:$0xff]
  %v3302 = vld [vmem:[%s1 + $0x3a0] sm:$0xff]
  %v3303 = vld [vmem:[%s1 + $0x3a8] sm:$0xff]
  %v3304 = vld [vmem:[%s1 + $0x3b0] sm:$0xff]
  %v3305 = vld [vmem:[%s1 + $0x3b8] sm:$0xff]
  %v3306 = vld [vmem:[%s1 + $0x3c0] sm:$0xff]
  %v3307 = vld [vmem:[%s1 + $0x3c8] sm:$0xff]
  %v3308 = vld [vmem:[%s1 + $0x3d0] sm:$0xff]
  %v3309 = vld [vmem:[%s1 + $0x3d8] sm:$0xff]
  %v3310 = vld [vmem:[%s1 + $0x3e0] sm:$0xff]
  %v3311 = vld [vmem:[%s1 + $0x3e8] sm:$0xff]
  %v3312 = vld [vmem:[%s1 + $0x3f0] sm:$0xff]
  %v3313 = vld [vmem:[%s1 + $0x3f8] sm:$0xff]
  %v3314 = vld [vmem:[%s1 + $0x400] sm:$0xff]
  %v3315 = vld [vmem:[%s1 + $0x408] sm:$0xff]
  %v3316 = vld [vmem:[%s1 + $0x410] sm:$0xff]
  %v3317 = vld [vmem:[%s1 + $0x418] sm:$0xff]
  %v3318 = vld [vmem:[%s1 + $0x420] sm:$0xff]
  %v3319 = vld [vmem:[%s1 + $0x428] sm:$0xff]
  %v3320 = vld [vmem:[%s1 + $0x430] sm:$0xff]
  %v3321 = vld [vmem:[%s1 + $0x438] sm:$0xff]
  %v3322 = vld [vmem:[%s1 + $0x440] sm:$0xff]
  %v3323 = vld [vmem:[%s1 + $0x448] sm:$0xff]
  %v3324 = vld [vmem:[%s1 + $0x450] sm:$0xff]
  %v3325 = vld [vmem:[%s1 + $0x458] sm:$0xff]
  %v3326 = vld [vmem:[%s1 + $0x460] sm:$0xff]
  %v3327 = vld [vmem:[%s1 + $0x468] sm:$0xff]
  %v3328 = vld [vmem:[%s1 + $0x470] sm:$0xff]
  %v3329 = vld [vmem:[%s1 + $0x478] sm:$0xff]
  %v3330 = vld [vmem:[%s2] sm:$0x3]
  %v3332 = vperm.slane %v3330, 0
  %v3333 = vperm.slane %v3330, 1
  %v3480 = vunpack.c.l.b16 %v3186
  %v3481 = vunpack.c.h.b16 %v3186
  %v3482 = vunpack.c.l.b16 %v3187
  %v3483 = vunpack.c.h.b16 %v3187
  %v3484 = vunpack.c.l.b16 %v3188
  %v3485 = vunpack.c.h.b16 %v3188
  %v3486 = vunpack.c.l.b16 %v3189
  %v3487 = vunpack.c.h.b16 %v3189
  %v3488 = vunpack.c.l.b16 %v3190
  %v3489 = vunpack.c.h.b16 %v3190
  %v3490 = vunpack.c.l.b16 %v3191
  %v3491 = vunpack.c.h.b16 %v3191
  %v3492 = vunpack.c.l.b16 %v3192
  %v3493 = vunpack.c.h.b16 %v3192
  %v3494 = vunpack.c.l.b16 %v3193
  %v3495 = vunpack.c.h.b16 %v3193
  %v3496 = vunpack.c.l.b16 %v3194
  %v3497 = vunpack.c.h.b16 %v3194
  %v3498 = vunpack.c.l.b16 %v3195
  %v3499 = vunpack.c.h.b16 %v3195
  %v3500 = vunpack.c.l.b16 %v3196
  %v3501 = vunpack.c.h.b16 %v3196
  %v3502 = vunpack.c.l.b16 %v3197
  %v3503 = vunpack.c.h.b16 %v3197
  %v3504 = vunpack.c.l.b16 %v3198
  %v3505 = vunpack.c.h.b16 %v3198
  %v3506 = vunpack.c.l.b16 %v3199
  %v3507 = vunpack.c.h.b16 %v3199
  %v3508 = vunpack.c.l.b16 %v3200
  %v3509 = vunpack.c.h.b16 %v3200
  %v3510 = vunpack.c.l.b16 %v3201
  %v3511 = vunpack.c.h.b16 %v3201
  %v3512 = vunpack.c.l.b16 %v3202
  %v3513 = vunpack.c.h.b16 %v3202
  %v3514 = vunpack.c.l.b16 %v3203
  %v3515 = vunpack.c.h.b16 %v3203
  %v3516 = vunpack.c.l.b16 %v3204
  %v3517 = vunpack.c.h.b16 %v3204
  %v3518 = vunpack.c.l.b16 %v3205
  %v3519 = vunpack.c.h.b16 %v3205
  %v3520 = vunpack.c.l.b16 %v3206
  %v3521 = vunpack.c.h.b16 %v3206
  %v3522 = vunpack.c.l.b16 %v3207
  %v3523 = vunpack.c.h.b16 %v3207
  %v3524 = vunpack.c.l.b16 %v3208
  %v3525 = vunpack.c.h.b16 %v3208
  %v3526 = vunpack.c.l.b16 %v3209
  %v3527 = vunpack.c.h.b16 %v3209
  %v3528 = vunpack.c.l.b16 %v3210
  %v3529 = vunpack.c.h.b16 %v3210
  %v3530 = vunpack.c.l.b16 %v3211
  %v3531 = vunpack.c.h.b16 %v3211
  %v3532 = vunpack.c.l.b16 %v3212
  %v3533 = vunpack.c.h.b16 %v3212
  %v3534 = vunpack.c.l.b16 %v3213
  %v3535 = vunpack.c.h.b16 %v3213
  %v3536 = vunpack.c.l.b16 %v3214
  %v3537 = vunpack.c.h.b16 %v3214
  %v3538 = vunpack.c.l.b16 %v3215
  %v3539 = vunpack.c.h.b16 %v3215
  %v3540 = vunpack.c.l.b16 %v3216
  %v3541 = vunpack.c.h.b16 %v3216
  %v3542 = vunpack.c.l.b16 %v3217
  %v3543 = vunpack.c.h.b16 %v3217
  %v3544 = vunpack.c.l.b16 %v3218
  %v3545 = vunpack.c.h.b16 %v3218
  %v3546 = vunpack.c.l.b16 %v3219
  %v3547 = vunpack.c.h.b16 %v3219
  %v3548 = vunpack.c.l.b16 %v3220
  %v3549 = vunpack.c.h.b16 %v3220
  %v3550 = vunpack.c.l.b16 %v3221
  %v3551 = vunpack.c.h.b16 %v3221
  %v3552 = vunpack.c.l.b16 %v3222
  %v3553 = vunpack.c.h.b16 %v3222
  %v3554 = vunpack.c.l.b16 %v3223
  %v3555 = vunpack.c.h.b16 %v3223
  %v3556 = vunpack.c.l.b16 %v3224
  %v3557 = vunpack.c.h.b16 %v3224
  %v3558 = vunpack.c.l.b16 %v3225
  %v3559 = vunpack.c.h.b16 %v3225
  %v3560 = vunpack.c.l.b16 %v3226
  %v3561 = vunpack.c.h.b16 %v3226
  %v3562 = vunpack.c.l.b16 %v3227
  %v3563 = vunpack.c.h.b16 %v3227
  %v3564 = vunpack.c.l.b16 %v3228
  %v3565 = vunpack.c.h.b16 %v3228
  %v3566 = vunpack.c.l.b16 %v3229
  %v3567 = vunpack.c.h.b16 %v3229
  %v3568 = vunpack.c.l.b16 %v3230
  %v3569 = vunpack.c.h.b16 %v3230
  %v3570 = vunpack.c.l.b16 %v3231
  %v3571 = vunpack.c.h.b16 %v3231
  %v3572 = vunpack.c.l.b16 %v3232
  %v3573 = vunpack.c.h.b16 %v3232
  %v3574 = vunpack.c.l.b16 %v3233
  %v3575 = vunpack.c.h.b16 %v3233
  %v3576 = vunpack.c.l.b16 %v3234
  %v3577 = vunpack.c.h.b16 %v3234
  %v3578 = vunpack.c.l.b16 %v3235
  %v3579 = vunpack.c.h.b16 %v3235
  %v3580 = vunpack.c.l.b16 %v3236
  %v3581 = vunpack.c.h.b16 %v3236
  %v3582 = vunpack.c.l.b16 %v3237
  %v3583 = vunpack.c.h.b16 %v3237
  %v3584 = vunpack.c.l.b16 %v3238
  %v3585 = vunpack.c.h.b16 %v3238
  %v3586 = vunpack.c.l.b16 %v3239
  %v3587 = vunpack.c.h.b16 %v3239
  %v3588 = vunpack.c.l.b16 %v3240
  %v3589 = vunpack.c.h.b16 %v3240
  %v3590 = vunpack.c.l.b16 %v3241
  %v3591 = vunpack.c.h.b16 %v3241
  %v3592 = vunpack.c.l.b16 %v3242
  %v3593 = vunpack.c.h.b16 %v3242
  %v3594 = vunpack.c.l.b16 %v3243
  %v3595 = vunpack.c.h.b16 %v3243
  %v3596 = vunpack.c.l.b16 %v3244
  %v3597 = vunpack.c.h.b16 %v3244
  %v3598 = vunpack.c.l.b16 %v3245
  %v3599 = vunpack.c.h.b16 %v3245
  %v3600 = vunpack.c.l.b16 %v3246
  %v3601 = vunpack.c.h.b16 %v3246
  %v3602 = vunpack.c.l.b16 %v3247
  %v3603 = vunpack.c.h.b16 %v3247
  %v3604 = vunpack.c.l.b16 %v3248
  %v3605 = vunpack.c.h.b16 %v3248
  %v3606 = vunpack.c.l.b16 %v3249
  %v3607 = vunpack.c.h.b16 %v3249
  %v3608 = vunpack.c.l.b16 %v3250
  %v3609 = vunpack.c.h.b16 %v3250
  %v3610 = vunpack.c.l.b16 %v3251
  %v3611 = vunpack.c.h.b16 %v3251
  %v3612 = vunpack.c.l.b16 %v3252
  %v3613 = vunpack.c.h.b16 %v3252
  %v3614 = vunpack.c.l.b16 %v3253
  %v3615 = vunpack.c.h.b16 %v3253
  %v3616 = vunpack.c.l.b16 %v3254
  %v3617 = vunpack.c.h.b16 %v3254
  %v3618 = vunpack.c.l.b16 %v3255
  %v3619 = vunpack.c.h.b16 %v3255
  %v3620 = vunpack.c.l.b16 %v3256
  %v3621 = vunpack.c.h.b16 %v3256
  %v3622 = vunpack.c.l.b16 %v3257
  %v3623 = vunpack.c.h.b16 %v3257
  %v3624 = vunpack.c.l.b16 %v3258
  %v3625 = vunpack.c.h.b16 %v3258
  %v3626 = vunpack.c.l.b16 %v3259
  %v3627 = vunpack.c.h.b16 %v3259
  %v3628 = vunpack.c.l.b16 %v3260
  %v3629 = vunpack.c.h.b16 %v3260
  %v3630 = vunpack.c.l.b16 %v3261
  %v3631 = vunpack.c.h.b16 %v3261
  %v3632 = vunpack.c.l.b16 %v3262
  %v3633 = vunpack.c.h.b16 %v3262
  %v3634 = vunpack.c.l.b16 %v3263
  %v3635 = vunpack.c.h.b16 %v3263
  %v3636 = vunpack.c.l.b16 %v3264
  %v3637 = vunpack.c.h.b16 %v3264
  %v3638 = vunpack.c.l.b16 %v3265
  %v3639 = vunpack.c.h.b16 %v3265
  %v3640 = vunpack.c.l.b16 %v3266
  %v3641 = vunpack.c.h.b16 %v3266
  %v3642 = vunpack.c.l.b16 %v3267
  %v3643 = vunpack.c.h.b16 %v3267
  %v3644 = vunpack.c.l.b16 %v3268
  %v3645 = vunpack.c.h.b16 %v3268
  %v3646 = vunpack.c.l.b16 %v3269
  %v3647 = vunpack.c.h.b16 %v3269
  %v3648 = vunpack.c.l.b16 %v3270
  %v3649 = vunpack.c.h.b16 %v3270
  %v3650 = vunpack.c.l.b16 %v3271
  %v3651 = vunpack.c.h.b16 %v3271
  %v3652 = vunpack.c.l.b16 %v3272
  %v3653 = vunpack.c.h.b16 %v3272
  %v3654 = vunpack.c.l.b16 %v3273
  %v3655 = vunpack.c.h.b16 %v3273
  %v3656 = vunpack.c.l.b16 %v3274
  %v3657 = vunpack.c.h.b16 %v3274
  %v3658 = vunpack.c.l.b16 %v3275
  %v3659 = vunpack.c.h.b16 %v3275
  %v3660 = vunpack.c.l.b16 %v3276
  %v3661 = vunpack.c.h.b16 %v3276
  %v3662 = vunpack.c.l.b16 %v3277
  %v3663 = vunpack.c.h.b16 %v3277
  %v3664 = vunpack.c.l.b16 %v3278
  %v3665 = vunpack.c.h.b16 %v3278
  %v3666 = vunpack.c.l.b16 %v3279
  %v3667 = vunpack.c.h.b16 %v3279
  %v3668 = vunpack.c.l.b16 %v3280
  %v3669 = vunpack.c.h.b16 %v3280
  %v3670 = vunpack.c.l.b16 %v3281
  %v3671 = vunpack.c.h.b16 %v3281
  %v3672 = vunpack.c.l.b16 %v3282
  %v3673 = vunpack.c.h.b16 %v3282
  %v3674 = vunpack.c.l.b16 %v3283
  %v3675 = vunpack.c.h.b16 %v3283
  %v3676 = vunpack.c.l.b16 %v3284
  %v3677 = vunpack.c.h.b16 %v3284
  %v3678 = vunpack.c.l.b16 %v3285
  %v3679 = vunpack.c.h.b16 %v3285
  %v3680 = vunpack.c.l.b16 %v3286
  %v3681 = vunpack.c.h.b16 %v3286
  %v3682 = vunpack.c.l.b16 %v3287
  %v3683 = vunpack.c.h.b16 %v3287
  %v3684 = vunpack.c.l.b16 %v3288
  %v3685 = vunpack.c.h.b16 %v3288
  %v3686 = vunpack.c.l.b16 %v3289
  %v3687 = vunpack.c.h.b16 %v3289
  %v3688 = vunpack.c.l.b16 %v3290
  %v3689 = vunpack.c.h.b16 %v3290
  %v3690 = vunpack.c.l.b16 %v3291
  %v3691 = vunpack.c.h.b16 %v3291
  %v3692 = vunpack.c.l.b16 %v3292
  %v3693 = vunpack.c.h.b16 %v3292
  %v3694 = vunpack.c.l.b16 %v3293
  %v3695 = vunpack.c.h.b16 %v3293
  %v3696 = vunpack.c.l.b16 %v3294
  %v3697 = vunpack.c.h.b16 %v3294
  %v3698 = vunpack.c.l.b16 %v3295
  %v3699 = vunpack.c.h.b16 %v3295
  %v3700 = vunpack.c.l.b16 %v3296
  %v3701 = vunpack.c.h.b16 %v3296
  %v3702 = vunpack.c.l.b16 %v3297
  %v3703 = vunpack.c.h.b16 %v3297
  %v3704 = vunpack.c.l.b16 %v3298
  %v3705 = vunpack.c.h.b16 %v3298
  %v3706 = vunpack.c.l.b16 %v3299
  %v3707 = vunpack.c.h.b16 %v3299
  %v3708 = vunpack.c.l.b16 %v3300
  %v3709 = vunpack.c.h.b16 %v3300
  %v3710 = vunpack.c.l.b16 %v3301
  %v3711 = vunpack.c.h.b16 %v3301
  %v3712 = vunpack.c.l.b16 %v3302
  %v3713 = vunpack.c.h.b16 %v3302
  %v3714 = vunpack.c.l.b16 %v3303
  %v3715 = vunpack.c.h.b16 %v3303
  %v3716 = vunpack.c.l.b16 %v3304
  %v3717 = vunpack.c.h.b16 %v3304
  %v3718 = vunpack.c.l.b16 %v3305
  %v3719 = vunpack.c.h.b16 %v3305
  %v3720 = vunpack.c.l.b16 %v3306
  %v3721 = vunpack.c.h.b16 %v3306
  %v3722 = vunpack.c.l.b16 %v3307
  %v3723 = vunpack.c.h.b16 %v3307
  %v3724 = vunpack.c.l.b16 %v3308
  %v3725 = vunpack.c.h.b16 %v3308
  %v3726 = vunpack.c.l.b16 %v3309
  %v3727 = vunpack.c.h.b16 %v3309
  %v3728 = vunpack.c.l.b16 %v3310
  %v3729 = vunpack.c.h.b16 %v3310
  %v3730 = vunpack.c.l.b16 %v3311
  %v3731 = vunpack.c.h.b16 %v3311
  %v3732 = vunpack.c.l.b16 %v3312
  %v3733 = vunpack.c.h.b16 %v3312
  %v3734 = vunpack.c.l.b16 %v3313
  %v3735 = vunpack.c.h.b16 %v3313
  %v3736 = vunpack.c.l.b16 %v3314
  %v3737 = vunpack.c.h.b16 %v3314
  %v3738 = vunpack.c.l.b16 %v3315
  %v3739 = vunpack.c.h.b16 %v3315
  %v3740 = vunpack.c.l.b16 %v3316
  %v3741 = vunpack.c.h.b16 %v3316
  %v3742 = vunpack.c.l.b16 %v3317
  %v3743 = vunpack.c.h.b16 %v3317
  %v3744 = vunpack.c.l.b16 %v3318
  %v3745 = vunpack.c.h.b16 %v3318
  %v3746 = vunpack.c.l.b16 %v3319
  %v3747 = vunpack.c.h.b16 %v3319
  %v3748 = vunpack.c.l.b16 %v3320
  %v3749 = vunpack.c.h.b16 %v3320
  %v3750 = vunpack.c.l.b16 %v3321
  %v3751 = vunpack.c.h.b16 %v3321
  %v3752 = vunpack.c.l.b16 %v3322
  %v3753 = vunpack.c.h.b16 %v3322
  %v3754 = vunpack.c.l.b16 %v3323
  %v3755 = vunpack.c.h.b16 %v3323
  %v3756 = vunpack.c.l.b16 %v3324
  %v3757 = vunpack.c.h.b16 %v3324
  %v3758 = vunpack.c.l.b16 %v3325
  %v3759 = vunpack.c.h.b16 %v3325
  %v3760 = vunpack.c.l.b16 %v3326
  %v3761 = vunpack.c.h.b16 %v3326
  %v3762 = vunpack.c.l.b16 %v3327
  %v3763 = vunpack.c.h.b16 %v3327
  %v3764 = vunpack.c.l.b16 %v3328
  %v3765 = vunpack.c.h.b16 %v3328
  %v3766 = vunpack.c.l.b16 %v3329
  %v3767 = vunpack.c.h.b16 %v3329
  %v3768 = vpack.c.b16 %v3482, %v3480
  %v3769 = vpack.c.b16 %v3483, %v3481
  %v3770 = vpack.c.b16 %v3486, %v3484
  %v3771 = vpack.c.b16 %v3487, %v3485
  %v3772 = vpack.c.b16 %v3490, %v3488
  %v3773 = vpack.c.b16 %v3491, %v3489
  %v3774 = vpack.c.b16 %v3494, %v3492
  %v3775 = vpack.c.b16 %v3495, %v3493
  %v3776 = vpack.c.b16 %v3498, %v3496
  %v3777 = vpack.c.b16 %v3499, %v3497
  %v3778 = vpack.c.b16 %v3502, %v3500
  %v3779 = vpack.c.b16 %v3503, %v3501
  %v3780 = vpack.c.b16 %v3506, %v3504
  %v3781 = vpack.c.b16 %v3507, %v3505
  %v3782 = vpack.c.b16 %v3510, %v3508
  %v3783 = vpack.c.b16 %v3511, %v3509
  %v3784 = vpack.c.b16 %v3514, %v3512
  %v3785 = vpack.c.b16 %v3515, %v3513
  %v3786 = vpack.c.b16 %v3518, %v3516
  %v3787 = vpack.c.b16 %v3519, %v3517
  %v3788 = vpack.c.b16 %v3522, %v3520
  %v3789 = vpack.c.b16 %v3523, %v3521
  %v3790 = vpack.c.b16 %v3526, %v3524
  %v3791 = vpack.c.b16 %v3527, %v3525
  %v3792 = vpack.c.b16 %v3530, %v3528
  %v3793 = vpack.c.b16 %v3531, %v3529
  %v3794 = vpack.c.b16 %v3534, %v3532
  %v3795 = vpack.c.b16 %v3535, %v3533
  %v3796 = vpack.c.b16 %v3538, %v3536
  %v3797 = vpack.c.b16 %v3539, %v3537
  %v3798 = vpack.c.b16 %v3542, %v3540
  %v3799 = vpack.c.b16 %v3543, %v3541
  %v3800 = vpack.c.b16 %v3546, %v3544
  %v3801 = vpack.c.b16 %v3547, %v3545
  %v3802 = vpack.c.b16 %v3550, %v3548
  %v3803 = vpack.c.b16 %v3551, %v3549
  %v3804 = vpack.c.b16 %v3554, %v3552
  %v3805 = vpack.c.b16 %v3555, %v3553
  %v3806 = vpack.c.b16 %v3558, %v3556
  %v3807 = vpack.c.b16 %v3559, %v3557
  %v3808 = vpack.c.b16 %v3562, %v3560
  %v3809 = vpack.c.b16 %v3563, %v3561
  %v3810 = vpack.c.b16 %v3566, %v3564
  %v3811 = vpack.c.b16 %v3567, %v3565
  %v3812 = vpack.c.b16 %v3570, %v3568
  %v3813 = vpack.c.b16 %v3571, %v3569
  %v3814 = vpack.c.b16 %v3574, %v3572
  %v3815 = vpack.c.b16 %v3575, %v3573
  %v3816 = vpack.c.b16 %v3578, %v3576
  %v3817 = vpack.c.b16 %v3579, %v3577
  %v3818 = vpack.c.b16 %v3582, %v3580
  %v3819 = vpack.c.b16 %v3583, %v3581
  %v3820 = vpack.c.b16 %v3586, %v3584
  %v3821 = vpack.c.b16 %v3587, %v3585
  %v3822 = vpack.c.b16 %v3590, %v3588
  %v3823 = vpack.c.b16 %v3591, %v3589
  %v3824 = vpack.c.b16 %v3594, %v3592
  %v3825 = vpack.c.b16 %v3595, %v3593
  %v3826 = vpack.c.b16 %v3598, %v3596
  %v3827 = vpack.c.b16 %v3599, %v3597
  %v3828 = vpack.c.b16 %v3602, %v3600
  %v3829 = vpack.c.b16 %v3603, %v3601
  %v3830 = vpack.c.b16 %v3606, %v3604
  %v3831 = vpack.c.b16 %v3607, %v3605
  %v3832 = vpack.c.b16 %v3610, %v3608
  %v3833 = vpack.c.b16 %v3611, %v3609
  %v3834 = vpack.c.b16 %v3614, %v3612
  %v3835 = vpack.c.b16 %v3615, %v3613
  %v3836 = vpack.c.b16 %v3618, %v3616
  %v3837 = vpack.c.b16 %v3619, %v3617
  %v3838 = vpack.c.b16 %v3622, %v3620
  %v3839 = vpack.c.b16 %v3623, %v3621
  %v3840 = vpack.c.b16 %v3626, %v3624
  %v3841 = vpack.c.b16 %v3627, %v3625
  %v3842 = vpack.c.b16 %v3630, %v3628
  %v3843 = vpack.c.b16 %v3631, %v3629
  %v3844 = vpack.c.b16 %v3634, %v3632
  %v3845 = vpack.c.b16 %v3635, %v3633
  %v3846 = vpack.c.b16 %v3638, %v3636
  %v3847 = vpack.c.b16 %v3639, %v3637
  %v3848 = vpack.c.b16 %v3642, %v3640
  %v3849 = vpack.c.b16 %v3643, %v3641
  %v3850 = vpack.c.b16 %v3646, %v3644
  %v3851 = vpack.c.b16 %v3647, %v3645
  %v3852 = vpack.c.b16 %v3650, %v3648
  %v3853 = vpack.c.b16 %v3651, %v3649
  %v3854 = vpack.c.b16 %v3654, %v3652
  %v3855 = vpack.c.b16 %v3655, %v3653
  %v3856 = vpack.c.b16 %v3658, %v3656
  %v3857 = vpack.c.b16 %v3659, %v3657
  %v3858 = vpack.c.b16 %v3662, %v3660
  %v3859 = vpack.c.b16 %v3663, %v3661
  %v3860 = vpack.c.b16 %v3666, %v3664
  %v3861 = vpack.c.b16 %v3667, %v3665
  %v3862 = vpack.c.b16 %v3670, %v3668
  %v3863 = vpack.c.b16 %v3671, %v3669
  %v3864 = vpack.c.b16 %v3674, %v3672
  %v3865 = vpack.c.b16 %v3675, %v3673
  %v3866 = vpack.c.b16 %v3678, %v3676
  %v3867 = vpack.c.b16 %v3679, %v3677
  %v3868 = vpack.c.b16 %v3682, %v3680
  %v3869 = vpack.c.b16 %v3683, %v3681
  %v3870 = vpack.c.b16 %v3686, %v3684
  %v3871 = vpack.c.b16 %v3687, %v3685
  %v3872 = vpack.c.b16 %v3690, %v3688
  %v3873 = vpack.c.b16 %v3691, %v3689
  %v3874 = vpack.c.b16 %v3694, %v3692
  %v3875 = vpack.c.b16 %v3695, %v3693
  %v3876 = vpack.c.b16 %v3698, %v3696
  %v3877 = vpack.c.b16 %v3699, %v3697
  %v3878 = vpack.c.b16 %v3702, %v3700
  %v3879 = vpack.c.b16 %v3703, %v3701
  %v3880 = vpack.c.b16 %v3706, %v3704
  %v3881 = vpack.c.b16 %v3707, %v3705
  %v3882 = vpack.c.b16 %v3710, %v3708
  %v3883 = vpack.c.b16 %v3711, %v3709
  %v3884 = vpack.c.b16 %v3714, %v3712
  %v3885 = vpack.c.b16 %v3715, %v3713
  %v3886 = vpack.c.b16 %v3718, %v3716
  %v3887 = vpack.c.b16 %v3719, %v3717
  %v3888 = vpack.c.b16 %v3722, %v3720
  %v3889 = vpack.c.b16 %v3723, %v3721
  %v3890 = vpack.c.b16 %v3726, %v3724
  %v3891 = vpack.c.b16 %v3727, %v3725
  %v3892 = vpack.c.b16 %v3730, %v3728
  %v3893 = vpack.c.b16 %v3731, %v3729
  %v3894 = vpack.c.b16 %v3734, %v3732
  %v3895 = vpack.c.b16 %v3735, %v3733
  %v3896 = vpack.c.b16 %v3738, %v3736
  %v3897 = vpack.c.b16 %v3739, %v3737
  %v3898 = vpack.c.b16 %v3742, %v3740
  %v3899 = vpack.c.b16 %v3743, %v3741
  %v3900 = vpack.c.b16 %v3746, %v3744
  %v3901 = vpack.c.b16 %v3747, %v3745
  %v3902 = vpack.c.b16 %v3750, %v3748
  %v3903 = vpack.c.b16 %v3751, %v3749
  %v3904 = vpack.c.b16 %v3754, %v3752
  %v3905 = vpack.c.b16 %v3755, %v3753
  %v3906 = vpack.c.b16 %v3758, %v3756
  %v3907 = vpack.c.b16 %v3759, %v3757
  %v3908 = vpack.c.b16 %v3762, %v3760
  %v3909 = vpack.c.b16 %v3763, %v3761
  %v3910 = vpack.c.b16 %v3766, %v3764
  %v3911 = vpack.c.b16 %v3767, %v3765
  %4056 = vmatpush.bf16.msra.mxu0 %v3782
  %4057 = vmatpush.bf16.msra.mxu0 %v3780
  %4058 = vmatpush.bf16.msra.mxu0 %v3778
  %4059 = vmatpush.bf16.msra.mxu0 %v3776
  %4060 = vmatpush.bf16.msra.mxu0 %v3774
  %4061 = vmatpush.bf16.msra.mxu0 %v3772
  %4062 = vmatpush.bf16.msra.mxu0 %v3770
  %4063 = vmatpush.bf16.msra.mxu0 %v3768
  %4064 = vmatmul.bf16.gmra.mxu0 %v528
  %v4065 = vpop.f32.mrf.mxu0
  %v4066 = vadd.f32 %v3332, %v4065
  %v4067 = vpop.f32.mrf.mxu0
  %v4068 = vadd.f32 %v3332, %v4067
  %4069 = vmatmul.bf16.gmra.mxu0 %v529
  %v4070 = vpop.f32.mrf.mxu0
  %v4071 = vadd.f32 %v3332, %v4070
  %v4072 = vpop.f32.mrf.mxu0
  %v4073 = vadd.f32 %v3332, %v4072
  %4074 = vmatmul.bf16.gmra.mxu0 %v530
  %v4075 = vpop.f32.mrf.mxu0
  %v4076 = vadd.f32 %v3332, %v4075
  %v4077 = vpop.f32.mrf.mxu0
  %v4078 = vadd.f32 %v3332, %v4077
  %4079 = vmatmul.bf16.gmra.mxu0 %v531
  %v4080 = vpop.f32.mrf.mxu0
  %v4081 = vadd.f32 %v3332, %v4080
  %v4082 = vpop.f32.mrf.mxu0
  %v4083 = vadd.f32 %v3332, %v4082
  %4084 = vmatmul.bf16.gmra.mxu0 %v532
  %v4085 = vpop.f32.mrf.mxu0
  %v4086 = vadd.f32 %v3332, %v4085
  %v4087 = vpop.f32.mrf.mxu0
  %v4088 = vadd.f32 %v3332, %v4087
  %4089 = vmatmul.bf16.gmra.mxu0 %v533
  %v4090 = vpop.f32.mrf.mxu0
  %v4091 = vadd.f32 %v3332, %v4090
  %v4092 = vpop.f32.mrf.mxu0
  %v4093 = vadd.f32 %v3332, %v4092
  %4094 = vmatmul.bf16.gmra.mxu0 %v534
  %v4095 = vpop.f32.mrf.mxu0
  %v4096 = vadd.f32 %v3332, %v4095
  %v4097 = vpop.f32.mrf.mxu0
  %v4098 = vadd.f32 %v3332, %v4097
  %4099 = vmatmul.bf16.gmra.mxu0 %v535
  %v4100 = vpop.f32.mrf.mxu0
  %v4101 = vadd.f32 %v3332, %v4100
  %v4102 = vpop.f32.mrf.mxu0
  %v4103 = vadd.f32 %v3332, %v4102
  %4104 = vmatmul.bf16.gmra.mxu0 %v536
  %v4105 = vpop.f32.mrf.mxu0
  %v4106 = vadd.f32 %v3332, %v4105
  %v4107 = vpop.f32.mrf.mxu0
  %v4108 = vadd.f32 %v3332, %v4107
  %4109 = vmatmul.bf16.gmra.mxu0 %v537
  %v4110 = vpop.f32.mrf.mxu0
  %v4111 = vadd.f32 %v3332, %v4110
  %v4112 = vpop.f32.mrf.mxu0
  %v4113 = vadd.f32 %v3332, %v4112
  %4114 = vmatmul.bf16.gmra.mxu0 %v538
  %v4115 = vpop.f32.mrf.mxu0
  %v4116 = vadd.f32 %v3332, %v4115
  %v4117 = vpop.f32.mrf.mxu0
  %v4118 = vadd.f32 %v3332, %v4117
  %4119 = vmatmul.bf16.gmra.mxu0 %v539
  %v4120 = vpop.f32.mrf.mxu0
  %v4121 = vadd.f32 %v3332, %v4120
  %v4122 = vpop.f32.mrf.mxu0
  %v4123 = vadd.f32 %v3332, %v4122
  %4124 = vmatmul.bf16.gmra.mxu0 %v540
  %v4125 = vpop.f32.mrf.mxu0
  %v4126 = vadd.f32 %v3332, %v4125
  %v4127 = vpop.f32.mrf.mxu0
  %v4128 = vadd.f32 %v3332, %v4127
  %4129 = vmatmul.bf16.gmra.mxu0 %v541
  %v4130 = vpop.f32.mrf.mxu0
  %v4131 = vadd.f32 %v3332, %v4130
  %v4132 = vpop.f32.mrf.mxu0
  %v4133 = vadd.f32 %v3332, %v4132
  %4134 = vmatmul.bf16.gmra.mxu0 %v542
  %v4135 = vpop.f32.mrf.mxu0
  %v4136 = vadd.f32 %v3332, %v4135
  %v4137 = vpop.f32.mrf.mxu0
  %v4138 = vadd.f32 %v3332, %v4137
  %4139 = vmatmul.bf16.gmra.mxu0 %v543
  %v4140 = vpop.f32.mrf.mxu0
  %v4141 = vadd.f32 %v3332, %v4140
  %v4142 = vpop.f32.mrf.mxu0
  %v4143 = vadd.f32 %v3332, %v4142
  %4144 = vmatmul.bf16.gmra.mxu0 %v544
  %v4145 = vpop.f32.mrf.mxu0
  %v4146 = vadd.f32 %v3332, %v4145
  %v4147 = vpop.f32.mrf.mxu0
  %v4148 = vadd.f32 %v3332, %v4147
  %4149 = vmatmul.bf16.gmra.mxu0 %v545
  %v4150 = vpop.f32.mrf.mxu0
  %v4151 = vadd.f32 %v3332, %v4150
  %v4152 = vpop.f32.mrf.mxu0
  %v4153 = vadd.f32 %v3332, %v4152
  %4154 = vmatmul.bf16.gmra.mxu0 %v546
  %v4155 = vpop.f32.mrf.mxu0
  %v4156 = vadd.f32 %v3332, %v4155
  %v4157 = vpop.f32.mrf.mxu0
  %v4158 = vadd.f32 %v3332, %v4157
  %4159 = vmatmul.bf16.gmra.mxu0 %v547
  %v4160 = vpop.f32.mrf.mxu0
  %v4161 = vadd.f32 %v3332, %v4160
  %v4162 = vpop.f32.mrf.mxu0
  %v4163 = vadd.f32 %v3332, %v4162
  %4164 = vmatmul.bf16.gmra.mxu0 %v548
  %v4165 = vpop.f32.mrf.mxu0
  %v4166 = vadd.f32 %v3332, %v4165
  %v4167 = vpop.f32.mrf.mxu0
  %v4168 = vadd.f32 %v3332, %v4167
  %4169 = vmatmul.bf16.gmra.mxu0 %v549
  %v4170 = vpop.f32.mrf.mxu0
  %v4171 = vadd.f32 %v3332, %v4170
  %v4172 = vpop.f32.mrf.mxu0
  %v4173 = vadd.f32 %v3332, %v4172
  %4174 = vmatmul.bf16.gmra.mxu0 %v550
  %v4175 = vpop.f32.mrf.mxu0
  %v4176 = vadd.f32 %v3332, %v4175
  %v4177 = vpop.f32.mrf.mxu0
  %v4178 = vadd.f32 %v3332, %v4177
  %4179 = vmatmul.bf16.gmra.mxu0 %v551
  %v4180 = vpop.f32.mrf.mxu0
  %v4181 = vadd.f32 %v3332, %v4180
  %v4182 = vpop.f32.mrf.mxu0
  %v4183 = vadd.f32 %v3332, %v4182
  %4184 = vmatmul.bf16.gmra.mxu0 %v552
  %v4185 = vpop.f32.mrf.mxu0
  %v4186 = vadd.f32 %v3332, %v4185
  %v4187 = vpop.f32.mrf.mxu0
  %v4188 = vadd.f32 %v3332, %v4187
  %4189 = vmatmul.bf16.gmra.mxu0 %v553
  %v4190 = vpop.f32.mrf.mxu0
  %v4191 = vadd.f32 %v3332, %v4190
  %v4192 = vpop.f32.mrf.mxu0
  %v4193 = vadd.f32 %v3332, %v4192
  %4194 = vmatmul.bf16.gmra.mxu0 %v554
  %v4195 = vpop.f32.mrf.mxu0
  %v4196 = vadd.f32 %v3332, %v4195
  %v4197 = vpop.f32.mrf.mxu0
  %v4198 = vadd.f32 %v3332, %v4197
  %4199 = vmatmul.bf16.gmra.mxu0 %v555
  %v4200 = vpop.f32.mrf.mxu0
  %v4201 = vadd.f32 %v3332, %v4200
  %v4202 = vpop.f32.mrf.mxu0
  %v4203 = vadd.f32 %v3332, %v4202
  %4204 = vmatmul.bf16.gmra.mxu0 %v556
  %v4205 = vpop.f32.mrf.mxu0
  %v4206 = vadd.f32 %v3332, %v4205
  %v4207 = vpop.f32.mrf.mxu0
  %v4208 = vadd.f32 %v3332, %v4207
  %4209 = vmatmul.bf16.gmra.mxu0 %v557
  %v4210 = vpop.f32.mrf.mxu0
  %v4211 = vadd.f32 %v3332, %v4210
  %v4212 = vpop.f32.mrf.mxu0
  %v4213 = vadd.f32 %v3332, %v4212
  %4214 = vmatmul.bf16.gmra.mxu0 %v558
  %v4215 = vpop.f32.mrf.mxu0
  %v4216 = vadd.f32 %v3332, %v4215
  %v4217 = vpop.f32.mrf.mxu0
  %v4218 = vadd.f32 %v3332, %v4217
  %4219 = vmatmul.bf16.gmra.mxu0 %v559
  %v4220 = vpop.f32.mrf.mxu0
  %v4221 = vadd.f32 %v3332, %v4220
  %v4222 = vpop.f32.mrf.mxu0
  %v4223 = vadd.f32 %v3332, %v4222
  %4224 = vdwg.mxu0
  %4225 = vmatpush.bf16.msra.mxu0 %v3798
  %4226 = vmatpush.bf16.msra.mxu0 %v3796
  %4227 = vmatpush.bf16.msra.mxu0 %v3794
  %4228 = vmatpush.bf16.msra.mxu0 %v3792
  %4229 = vmatpush.bf16.msra.mxu0 %v3790
  %4230 = vmatpush.bf16.msra.mxu0 %v3788
  %4231 = vmatpush.bf16.msra.mxu0 %v3786
  %4232 = vmatpush.bf16.msra.mxu0 %v3784
  %4233 = vmatmul.bf16.gmra.mxu0 %v700
  %v4234 = vpop.f32.mrf.mxu0
  %v4235 = vadd.f32 %v4066, %v4234
  %v4236 = vpop.f32.mrf.mxu0
  %v4237 = vadd.f32 %v4068, %v4236
  %4238 = vmatmul.bf16.gmra.mxu0 %v712
  %v4239 = vpop.f32.mrf.mxu0
  %v4240 = vadd.f32 %v4071, %v4239
  %v4241 = vpop.f32.mrf.mxu0
  %v4242 = vadd.f32 %v4073, %v4241
  %4243 = vmatmul.bf16.gmra.mxu0 %v724
  %v4244 = vpop.f32.mrf.mxu0
  %v4245 = vadd.f32 %v4076, %v4244
  %v4246 = vpop.f32.mrf.mxu0
  %v4247 = vadd.f32 %v4078, %v4246
  %4248 = vmatmul.bf16.gmra.mxu0 %v736
  %v4249 = vpop.f32.mrf.mxu0
  %v4250 = vadd.f32 %v4081, %v4249
  %v4251 = vpop.f32.mrf.mxu0
  %v4252 = vadd.f32 %v4083, %v4251
  %4253 = vmatmul.bf16.gmra.mxu0 %v748
  %v4254 = vpop.f32.mrf.mxu0
  %v4255 = vadd.f32 %v4086, %v4254
  %v4256 = vpop.f32.mrf.mxu0
  %v4257 = vadd.f32 %v4088, %v4256
  %4258 = vmatmul.bf16.gmra.mxu0 %v760
  %v4259 = vpop.f32.mrf.mxu0
  %v4260 = vadd.f32 %v4091, %v4259
  %v4261 = vpop.f32.mrf.mxu0
  %v4262 = vadd.f32 %v4093, %v4261
  %4263 = vmatmul.bf16.gmra.mxu0 %v772
  %v4264 = vpop.f32.mrf.mxu0
  %v4265 = vadd.f32 %v4096, %v4264
  %v4266 = vpop.f32.mrf.mxu0
  %v4267 = vadd.f32 %v4098, %v4266
  %4268 = vmatmul.bf16.gmra.mxu0 %v784
  %v4269 = vpop.f32.mrf.mxu0
  %v4270 = vadd.f32 %v4101, %v4269
  %v4271 = vpop.f32.mrf.mxu0
  %v4272 = vadd.f32 %v4103, %v4271
  %4273 = vmatmul.bf16.gmra.mxu0 %v796
  %v4274 = vpop.f32.mrf.mxu0
  %v4275 = vadd.f32 %v4106, %v4274
  %v4276 = vpop.f32.mrf.mxu0
  %v4277 = vadd.f32 %v4108, %v4276
  %4278 = vmatmul.bf16.gmra.mxu0 %v808
  %v4279 = vpop.f32.mrf.mxu0
  %v4280 = vadd.f32 %v4111, %v4279
  %v4281 = vpop.f32.mrf.mxu0
  %v4282 = vadd.f32 %v4113, %v4281
  %4283 = vmatmul.bf16.gmra.mxu0 %v820
  %v4284 = vpop.f32.mrf.mxu0
  %v4285 = vadd.f32 %v4116, %v4284
  %v4286 = vpop.f32.mrf.mxu0
  %v4287 = vadd.f32 %v4118, %v4286
  %4288 = vmatmul.bf16.gmra.mxu0 %v832
  %v4289 = vpop.f32.mrf.mxu0
  %v4290 = vadd.f32 %v4121, %v4289
  %v4291 = vpop.f32.mrf.mxu0
  %v4292 = vadd.f32 %v4123, %v4291
  %4293 = vmatmul.bf16.gmra.mxu0 %v844
  %v4294 = vpop.f32.mrf.mxu0
  %v4295 = vadd.f32 %v4126, %v4294
  %v4296 = vpop.f32.mrf.mxu0
  %v4297 = vadd.f32 %v4128, %v4296
  %4298 = vmatmul.bf16.gmra.mxu0 %v856
  %v4299 = vpop.f32.mrf.mxu0
  %v4300 = vadd.f32 %v4131, %v4299
  %v4301 = vpop.f32.mrf.mxu0
  %v4302 = vadd.f32 %v4133, %v4301
  %4303 = vmatmul.bf16.gmra.mxu0 %v868
  %v4304 = vpop.f32.mrf.mxu0
  %v4305 = vadd.f32 %v4136, %v4304
  %v4306 = vpop.f32.mrf.mxu0
  %v4307 = vadd.f32 %v4138, %v4306
  %4308 = vmatmul.bf16.gmra.mxu0 %v880
  %v4309 = vpop.f32.mrf.mxu0
  %v4310 = vadd.f32 %v4141, %v4309
  %v4311 = vpop.f32.mrf.mxu0
  %v4312 = vadd.f32 %v4143, %v4311
  %4313 = vmatmul.bf16.gmra.mxu0 %v892
  %v4314 = vpop.f32.mrf.mxu0
  %v4315 = vadd.f32 %v4146, %v4314
  %v4316 = vpop.f32.mrf.mxu0
  %v4317 = vadd.f32 %v4148, %v4316
  %4318 = vmatmul.bf16.gmra.mxu0 %v904
  %v4319 = vpop.f32.mrf.mxu0
  %v4320 = vadd.f32 %v4151, %v4319
  %v4321 = vpop.f32.mrf.mxu0
  %v4322 = vadd.f32 %v4153, %v4321
  %4323 = vmatmul.bf16.gmra.mxu0 %v916
  %v4324 = vpop.f32.mrf.mxu0
  %v4325 = vadd.f32 %v4156, %v4324
  %v4326 = vpop.f32.mrf.mxu0
  %v4327 = vadd.f32 %v4158, %v4326
  %4328 = vmatmul.bf16.gmra.mxu0 %v928
  %v4329 = vpop.f32.mrf.mxu0
  %v4330 = vadd.f32 %v4161, %v4329
  %v4331 = vpop.f32.mrf.mxu0
  %v4332 = vadd.f32 %v4163, %v4331
  %4333 = vmatmul.bf16.gmra.mxu0 %v940
  %v4334 = vpop.f32.mrf.mxu0
  %v4335 = vadd.f32 %v4166, %v4334
  %v4336 = vpop.f32.mrf.mxu0
  %v4337 = vadd.f32 %v4168, %v4336
  %4338 = vmatmul.bf16.gmra.mxu0 %v952
  %v4339 = vpop.f32.mrf.mxu0
  %v4340 = vadd.f32 %v4171, %v4339
  %v4341 = vpop.f32.mrf.mxu0
  %v4342 = vadd.f32 %v4173, %v4341
  %4343 = vmatmul.bf16.gmra.mxu0 %v964
  %v4344 = vpop.f32.mrf.mxu0
  %v4345 = vadd.f32 %v4176, %v4344
  %v4346 = vpop.f32.mrf.mxu0
  %v4347 = vadd.f32 %v4178, %v4346
  %4348 = vmatmul.bf16.gmra.mxu0 %v976
  %v4349 = vpop.f32.mrf.mxu0
  %v4350 = vadd.f32 %v4181, %v4349
  %v4351 = vpop.f32.mrf.mxu0
  %v4352 = vadd.f32 %v4183, %v4351
  %4353 = vmatmul.bf16.gmra.mxu0 %v988
  %v4354 = vpop.f32.mrf.mxu0
  %v4355 = vadd.f32 %v4186, %v4354
  %v4356 = vpop.f32.mrf.mxu0
  %v4357 = vadd.f32 %v4188, %v4356
  %4358 = vmatmul.bf16.gmra.mxu0 %v1000
  %v4359 = vpop.f32.mrf.mxu0
  %v4360 = vadd.f32 %v4191, %v4359
  %v4361 = vpop.f32.mrf.mxu0
  %v4362 = vadd.f32 %v4193, %v4361
  %4363 = vmatmul.bf16.gmra.mxu0 %v1012
  %v4364 = vpop.f32.mrf.mxu0
  %v4365 = vadd.f32 %v4196, %v4364
  %v4366 = vpop.f32.mrf.mxu0
  %v4367 = vadd.f32 %v4198, %v4366
  %4368 = vmatmul.bf16.gmra.mxu0 %v1024
  %v4369 = vpop.f32.mrf.mxu0
  %v4370 = vadd.f32 %v4201, %v4369
  %v4371 = vpop.f32.mrf.mxu0
  %v4372 = vadd.f32 %v4203, %v4371
  %4373 = vmatmul.bf16.gmra.mxu0 %v1036
  %v4374 = vpop.f32.mrf.mxu0
  %v4375 = vadd.f32 %v4206, %v4374
  %v4376 = vpop.f32.mrf.mxu0
  %v4377 = vadd.f32 %v4208, %v4376
  %4378 = vmatmul.bf16.gmra.mxu0 %v1048
  %v4379 = vpop.f32.mrf.mxu0
  %v4380 = vadd.f32 %v4211, %v4379
  %v4381 = vpop.f32.mrf.mxu0
  %v4382 = vadd.f32 %v4213, %v4381
  %4383 = vmatmul.bf16.gmra.mxu0 %v1060
  %v4384 = vpop.f32.mrf.mxu0
  %v4385 = vadd.f32 %v4216, %v4384
  %v4386 = vpop.f32.mrf.mxu0
  %v4387 = vadd.f32 %v4218, %v4386
  %4388 = vmatmul.bf16.gmra.mxu0 %v1072
  %v4389 = vpop.f32.mrf.mxu0
  %v4390 = vadd.f32 %v4221, %v4389
  %v4391 = vpop.f32.mrf.mxu0
  %v4392 = vadd.f32 %v4223, %v4391
  %4393 = vdwg.mxu0
  %4394 = vmatpush.bf16.msra.mxu0 %v3814
  %4395 = vmatpush.bf16.msra.mxu0 %v3812
  %4396 = vmatpush.bf16.msra.mxu0 %v3810
  %4397 = vmatpush.bf16.msra.mxu0 %v3808
  %4398 = vmatpush.bf16.msra.mxu0 %v3806
  %4399 = vmatpush.bf16.msra.mxu0 %v3804
  %4400 = vmatpush.bf16.msra.mxu0 %v3802
  %4401 = vmatpush.bf16.msra.mxu0 %v3800
  %4402 = vmatmul.bf16.gmra.mxu0 %v1204
  %v4403 = vpop.f32.mrf.mxu0
  %v4404 = vadd.f32 %v4235, %v4403
  %v4405 = vpop.f32.mrf.mxu0
  %v4406 = vadd.f32 %v4237, %v4405
  %4407 = vmatmul.bf16.gmra.mxu0 %v1207
  %v4408 = vpop.f32.mrf.mxu0
  %v4409 = vadd.f32 %v4240, %v4408
  %v4410 = vpop.f32.mrf.mxu0
  %v4411 = vadd.f32 %v4242, %v4410
  %4412 = vmatmul.bf16.gmra.mxu0 %v1210
  %v4413 = vpop.f32.mrf.mxu0
  %v4414 = vadd.f32 %v4245, %v4413
  %v4415 = vpop.f32.mrf.mxu0
  %v4416 = vadd.f32 %v4247, %v4415
  %4417 = vmatmul.bf16.gmra.mxu0 %v1213
  %v4418 = vpop.f32.mrf.mxu0
  %v4419 = vadd.f32 %v4250, %v4418
  %v4420 = vpop.f32.mrf.mxu0
  %v4421 = vadd.f32 %v4252, %v4420
  %4422 = vmatmul.bf16.gmra.mxu0 %v1216
  %v4423 = vpop.f32.mrf.mxu0
  %v4424 = vadd.f32 %v4255, %v4423
  %v4425 = vpop.f32.mrf.mxu0
  %v4426 = vadd.f32 %v4257, %v4425
  %4427 = vmatmul.bf16.gmra.mxu0 %v1219
  %v4428 = vpop.f32.mrf.mxu0
  %v4429 = vadd.f32 %v4260, %v4428
  %v4430 = vpop.f32.mrf.mxu0
  %v4431 = vadd.f32 %v4262, %v4430
  %4432 = vmatmul.bf16.gmra.mxu0 %v1222
  %v4433 = vpop.f32.mrf.mxu0
  %v4434 = vadd.f32 %v4265, %v4433
  %v4435 = vpop.f32.mrf.mxu0
  %v4436 = vadd.f32 %v4267, %v4435
  %4437 = vmatmul.bf16.gmra.mxu0 %v1225
  %v4438 = vpop.f32.mrf.mxu0
  %v4439 = vadd.f32 %v4270, %v4438
  %v4440 = vpop.f32.mrf.mxu0
  %v4441 = vadd.f32 %v4272, %v4440
  %4442 = vmatmul.bf16.gmra.mxu0 %v1228
  %v4443 = vpop.f32.mrf.mxu0
  %v4444 = vadd.f32 %v4275, %v4443
  %v4445 = vpop.f32.mrf.mxu0
  %v4446 = vadd.f32 %v4277, %v4445
  %4447 = vmatmul.bf16.gmra.mxu0 %v1231
  %v4448 = vpop.f32.mrf.mxu0
  %v4449 = vadd.f32 %v4280, %v4448
  %v4450 = vpop.f32.mrf.mxu0
  %v4451 = vadd.f32 %v4282, %v4450
  %4452 = vmatmul.bf16.gmra.mxu0 %v1234
  %v4453 = vpop.f32.mrf.mxu0
  %v4454 = vadd.f32 %v4285, %v4453
  %v4455 = vpop.f32.mrf.mxu0
  %v4456 = vadd.f32 %v4287, %v4455
  %4457 = vmatmul.bf16.gmra.mxu0 %v1237
  %v4458 = vpop.f32.mrf.mxu0
  %v4459 = vadd.f32 %v4290, %v4458
  %v4460 = vpop.f32.mrf.mxu0
  %v4461 = vadd.f32 %v4292, %v4460
  %4462 = vmatmul.bf16.gmra.mxu0 %v1240
  %v4463 = vpop.f32.mrf.mxu0
  %v4464 = vadd.f32 %v4295, %v4463
  %v4465 = vpop.f32.mrf.mxu0
  %v4466 = vadd.f32 %v4297, %v4465
  %4467 = vmatmul.bf16.gmra.mxu0 %v1243
  %v4468 = vpop.f32.mrf.mxu0
  %v4469 = vadd.f32 %v4300, %v4468
  %v4470 = vpop.f32.mrf.mxu0
  %v4471 = vadd.f32 %v4302, %v4470
  %4472 = vmatmul.bf16.gmra.mxu0 %v1246
  %v4473 = vpop.f32.mrf.mxu0
  %v4474 = vadd.f32 %v4305, %v4473
  %v4475 = vpop.f32.mrf.mxu0
  %v4476 = vadd.f32 %v4307, %v4475
  %4477 = vmatmul.bf16.gmra.mxu0 %v1249
  %v4478 = vpop.f32.mrf.mxu0
  %v4479 = vadd.f32 %v4310, %v4478
  %v4480 = vpop.f32.mrf.mxu0
  %v4481 = vadd.f32 %v4312, %v4480
  %4482 = vmatmul.bf16.gmra.mxu0 %v1252
  %v4483 = vpop.f32.mrf.mxu0
  %v4484 = vadd.f32 %v4315, %v4483
  %v4485 = vpop.f32.mrf.mxu0
  %v4486 = vadd.f32 %v4317, %v4485
  %4487 = vmatmul.bf16.gmra.mxu0 %v1255
  %v4488 = vpop.f32.mrf.mxu0
  %v4489 = vadd.f32 %v4320, %v4488
  %v4490 = vpop.f32.mrf.mxu0
  %v4491 = vadd.f32 %v4322, %v4490
  %4492 = vmatmul.bf16.gmra.mxu0 %v1258
  %v4493 = vpop.f32.mrf.mxu0
  %v4494 = vadd.f32 %v4325, %v4493
  %v4495 = vpop.f32.mrf.mxu0
  %v4496 = vadd.f32 %v4327, %v4495
  %4497 = vmatmul.bf16.gmra.mxu0 %v1261
  %v4498 = vpop.f32.mrf.mxu0
  %v4499 = vadd.f32 %v4330, %v4498
  %v4500 = vpop.f32.mrf.mxu0
  %v4501 = vadd.f32 %v4332, %v4500
  %4502 = vmatmul.bf16.gmra.mxu0 %v1264
  %v4503 = vpop.f32.mrf.mxu0
  %v4504 = vadd.f32 %v4335, %v4503
  %v4505 = vpop.f32.mrf.mxu0
  %v4506 = vadd.f32 %v4337, %v4505
  %4507 = vmatmul.bf16.gmra.mxu0 %v1267
  %v4508 = vpop.f32.mrf.mxu0
  %v4509 = vadd.f32 %v4340, %v4508
  %v4510 = vpop.f32.mrf.mxu0
  %v4511 = vadd.f32 %v4342, %v4510
  %4512 = vmatmul.bf16.gmra.mxu0 %v1270
  %v4513 = vpop.f32.mrf.mxu0
  %v4514 = vadd.f32 %v4345, %v4513
  %v4515 = vpop.f32.mrf.mxu0
  %v4516 = vadd.f32 %v4347, %v4515
  %4517 = vmatmul.bf16.gmra.mxu0 %v1273
  %v4518 = vpop.f32.mrf.mxu0
  %v4519 = vadd.f32 %v4350, %v4518
  %v4520 = vpop.f32.mrf.mxu0
  %v4521 = vadd.f32 %v4352, %v4520
  %4522 = vmatmul.bf16.gmra.mxu0 %v1276
  %v4523 = vpop.f32.mrf.mxu0
  %v4524 = vadd.f32 %v4355, %v4523
  %v4525 = vpop.f32.mrf.mxu0
  %v4526 = vadd.f32 %v4357, %v4525
  %4527 = vmatmul.bf16.gmra.mxu0 %v1279
  %v4528 = vpop.f32.mrf.mxu0
  %v4529 = vadd.f32 %v4360, %v4528
  %v4530 = vpop.f32.mrf.mxu0
  %v4531 = vadd.f32 %v4362, %v4530
  %4532 = vmatmul.bf16.gmra.mxu0 %v1282
  %v4533 = vpop.f32.mrf.mxu0
  %v4534 = vadd.f32 %v4365, %v4533
  %v4535 = vpop.f32.mrf.mxu0
  %v4536 = vadd.f32 %v4367, %v4535
  %4537 = vmatmul.bf16.gmra.mxu0 %v1285
  %v4538 = vpop.f32.mrf.mxu0
  %v4539 = vadd.f32 %v4370, %v4538
  %v4540 = vpop.f32.mrf.mxu0
  %v4541 = vadd.f32 %v4372, %v4540
  %4542 = vmatmul.bf16.gmra.mxu0 %v1288
  %v4543 = vpop.f32.mrf.mxu0
  %v4544 = vadd.f32 %v4375, %v4543
  %v4545 = vpop.f32.mrf.mxu0
  %v4546 = vadd.f32 %v4377, %v4545
  %4547 = vmatmul.bf16.gmra.mxu0 %v1291
  %v4548 = vpop.f32.mrf.mxu0
  %v4549 = vadd.f32 %v4380, %v4548
  %v4550 = vpop.f32.mrf.mxu0
  %v4551 = vadd.f32 %v4382, %v4550
  %4552 = vmatmul.bf16.gmra.mxu0 %v1294
  %v4553 = vpop.f32.mrf.mxu0
  %v4554 = vadd.f32 %v4385, %v4553
  %v4555 = vpop.f32.mrf.mxu0
  %v4556 = vadd.f32 %v4387, %v4555
  %4557 = vmatmul.bf16.gmra.mxu0 %v1297
  %v4558 = vpop.f32.mrf.mxu0
  %v4559 = vadd.f32 %v4390, %v4558
  %v4560 = vpop.f32.mrf.mxu0
  %v4561 = vadd.f32 %v4392, %v4560
  %4562 = vdwg.mxu0
  %4563 = vmatpush.bf16.msra.mxu0 %v3830
  %4564 = vmatpush.bf16.msra.mxu0 %v3828
  %4565 = vmatpush.bf16.msra.mxu0 %v3826
  %4566 = vmatpush.bf16.msra.mxu0 %v3824
  %4567 = vmatpush.bf16.msra.mxu0 %v3822
  %4568 = vmatpush.bf16.msra.mxu0 %v3820
  %4569 = vmatpush.bf16.msra.mxu0 %v3818
  %4570 = vmatpush.bf16.msra.mxu0 %v3816
  %4571 = vmatmul.bf16.gmra.mxu0 %v1458
  %v4572 = vpop.f32.mrf.mxu0
  %v4573 = vadd.f32 %v4404, %v4572
  %v4574 = vpop.f32.mrf.mxu0
  %v4575 = vadd.f32 %v4406, %v4574
  %4576 = vmatmul.bf16.gmra.mxu0 %v1459
  %v4577 = vpop.f32.mrf.mxu0
  %v4578 = vadd.f32 %v4409, %v4577
  %v4579 = vpop.f32.mrf.mxu0
  %v4580 = vadd.f32 %v4411, %v4579
  %4581 = vmatmul.bf16.gmra.mxu0 %v1460
  %v4582 = vpop.f32.mrf.mxu0
  %v4583 = vadd.f32 %v4414, %v4582
  %v4584 = vpop.f32.mrf.mxu0
  %v4585 = vadd.f32 %v4416, %v4584
  %4586 = vmatmul.bf16.gmra.mxu0 %v1461
  %v4587 = vpop.f32.mrf.mxu0
  %v4588 = vadd.f32 %v4419, %v4587
  %v4589 = vpop.f32.mrf.mxu0
  %v4590 = vadd.f32 %v4421, %v4589
  %4591 = vmatmul.bf16.gmra.mxu0 %v1462
  %v4592 = vpop.f32.mrf.mxu0
  %v4593 = vadd.f32 %v4424, %v4592
  %v4594 = vpop.f32.mrf.mxu0
  %v4595 = vadd.f32 %v4426, %v4594
  %4596 = vmatmul.bf16.gmra.mxu0 %v1463
  %v4597 = vpop.f32.mrf.mxu0
  %v4598 = vadd.f32 %v4429, %v4597
  %v4599 = vpop.f32.mrf.mxu0
  %v4600 = vadd.f32 %v4431, %v4599
  %4601 = vmatmul.bf16.gmra.mxu0 %v1464
  %v4602 = vpop.f32.mrf.mxu0
  %v4603 = vadd.f32 %v4434, %v4602
  %v4604 = vpop.f32.mrf.mxu0
  %v4605 = vadd.f32 %v4436, %v4604
  %4606 = vmatmul.bf16.gmra.mxu0 %v1465
  %v4607 = vpop.f32.mrf.mxu0
  %v4608 = vadd.f32 %v4439, %v4607
  %v4609 = vpop.f32.mrf.mxu0
  %v4610 = vadd.f32 %v4441, %v4609
  %4611 = vmatmul.bf16.gmra.mxu0 %v1466
  %v4612 = vpop.f32.mrf.mxu0
  %v4613 = vadd.f32 %v4444, %v4612
  %v4614 = vpop.f32.mrf.mxu0
  %v4615 = vadd.f32 %v4446, %v4614
  %4616 = vmatmul.bf16.gmra.mxu0 %v1467
  %v4617 = vpop.f32.mrf.mxu0
  %v4618 = vadd.f32 %v4449, %v4617
  %v4619 = vpop.f32.mrf.mxu0
  %v4620 = vadd.f32 %v4451, %v4619
  %4621 = vmatmul.bf16.gmra.mxu0 %v1468
  %v4622 = vpop.f32.mrf.mxu0
  %v4623 = vadd.f32 %v4454, %v4622
  %v4624 = vpop.f32.mrf.mxu0
  %v4625 = vadd.f32 %v4456, %v4624
  %4626 = vmatmul.bf16.gmra.mxu0 %v1469
  %v4627 = vpop.f32.mrf.mxu0
  %v4628 = vadd.f32 %v4459, %v4627
  %v4629 = vpop.f32.mrf.mxu0
  %v4630 = vadd.f32 %v4461, %v4629
  %4631 = vmatmul.bf16.gmra.mxu0 %v1470
  %v4632 = vpop.f32.mrf.mxu0
  %v4633 = vadd.f32 %v4464, %v4632
  %v4634 = vpop.f32.mrf.mxu0
  %v4635 = vadd.f32 %v4466, %v4634
  %4636 = vmatmul.bf16.gmra.mxu0 %v1471
  %v4637 = vpop.f32.mrf.mxu0
  %v4638 = vadd.f32 %v4469, %v4637
  %v4639 = vpop.f32.mrf.mxu0
  %v4640 = vadd.f32 %v4471, %v4639
  %4641 = vmatmul.bf16.gmra.mxu0 %v1472
  %v4642 = vpop.f32.mrf.mxu0
  %v4643 = vadd.f32 %v4474, %v4642
  %v4644 = vpop.f32.mrf.mxu0
  %v4645 = vadd.f32 %v4476, %v4644
  %4646 = vmatmul.bf16.gmra.mxu0 %v1473
  %v4647 = vpop.f32.mrf.mxu0
  %v4648 = vadd.f32 %v4479, %v4647
  %v4649 = vpop.f32.mrf.mxu0
  %v4650 = vadd.f32 %v4481, %v4649
  %4651 = vmatmul.bf16.gmra.mxu0 %v1474
  %v4652 = vpop.f32.mrf.mxu0
  %v4653 = vadd.f32 %v4484, %v4652
  %v4654 = vpop.f32.mrf.mxu0
  %v4655 = vadd.f32 %v4486, %v4654
  %4656 = vmatmul.bf16.gmra.mxu0 %v1475
  %v4657 = vpop.f32.mrf.mxu0
  %v4658 = vadd.f32 %v4489, %v4657
  %v4659 = vpop.f32.mrf.mxu0
  %v4660 = vadd.f32 %v4491, %v4659
  %4661 = vmatmul.bf16.gmra.mxu0 %v1476
  %v4662 = vpop.f32.mrf.mxu0
  %v4663 = vadd.f32 %v4494, %v4662
  %v4664 = vpop.f32.mrf.mxu0
  %v4665 = vadd.f32 %v4496, %v4664
  %4666 = vmatmul.bf16.gmra.mxu0 %v1477
  %v4667 = vpop.f32.mrf.mxu0
  %v4668 = vadd.f32 %v4499, %v4667
  %v4669 = vpop.f32.mrf.mxu0
  %v4670 = vadd.f32 %v4501, %v4669
  %4671 = vmatmul.bf16.gmra.mxu0 %v1478
  %v4672 = vpop.f32.mrf.mxu0
  %v4673 = vadd.f32 %v4504, %v4672
  %v4674 = vpop.f32.mrf.mxu0
  %v4675 = vadd.f32 %v4506, %v4674
  %4676 = vmatmul.bf16.gmra.mxu0 %v1479
  %v4677 = vpop.f32.mrf.mxu0
  %v4678 = vadd.f32 %v4509, %v4677
  %v4679 = vpop.f32.mrf.mxu0
  %v4680 = vadd.f32 %v4511, %v4679
  %4681 = vmatmul.bf16.gmra.mxu0 %v1480
  %v4682 = vpop.f32.mrf.mxu0
  %v4683 = vadd.f32 %v4514, %v4682
  %v4684 = vpop.f32.mrf.mxu0
  %v4685 = vadd.f32 %v4516, %v4684
  %4686 = vmatmul.bf16.gmra.mxu0 %v1481
  %v4687 = vpop.f32.mrf.mxu0
  %v4688 = vadd.f32 %v4519, %v4687
  %v4689 = vpop.f32.mrf.mxu0
  %v4690 = vadd.f32 %v4521, %v4689
  %4691 = vmatmul.bf16.gmra.mxu0 %v1482
  %v4692 = vpop.f32.mrf.mxu0
  %v4693 = vadd.f32 %v4524, %v4692
  %v4694 = vpop.f32.mrf.mxu0
  %v4695 = vadd.f32 %v4526, %v4694
  %4696 = vmatmul.bf16.gmra.mxu0 %v1483
  %v4697 = vpop.f32.mrf.mxu0
  %v4698 = vadd.f32 %v4529, %v4697
  %v4699 = vpop.f32.mrf.mxu0
  %v4700 = vadd.f32 %v4531, %v4699
  %4701 = vmatmul.bf16.gmra.mxu0 %v1484
  %v4702 = vpop.f32.mrf.mxu0
  %v4703 = vadd.f32 %v4534, %v4702
  %v4704 = vpop.f32.mrf.mxu0
  %v4705 = vadd.f32 %v4536, %v4704
  %4706 = vmatmul.bf16.gmra.mxu0 %v1485
  %v4707 = vpop.f32.mrf.mxu0
  %v4708 = vadd.f32 %v4539, %v4707
  %v4709 = vpop.f32.mrf.mxu0
  %v4710 = vadd.f32 %v4541, %v4709
  %4711 = vmatmul.bf16.gmra.mxu0 %v1486
  %v4712 = vpop.f32.mrf.mxu0
  %v4713 = vadd.f32 %v4544, %v4712
  %v4714 = vpop.f32.mrf.mxu0
  %v4715 = vadd.f32 %v4546, %v4714
  %4716 = vmatmul.bf16.gmra.mxu0 %v1487
  %v4717 = vpop.f32.mrf.mxu0
  %v4718 = vadd.f32 %v4549, %v4717
  %v4719 = vpop.f32.mrf.mxu0
  %v4720 = vadd.f32 %v4551, %v4719
  %4721 = vmatmul.bf16.gmra.mxu0 %v1488
  %v4722 = vpop.f32.mrf.mxu0
  %v4723 = vadd.f32 %v4554, %v4722
  %v4724 = vpop.f32.mrf.mxu0
  %v4725 = vadd.f32 %v4556, %v4724
  %4726 = vmatmul.bf16.gmra.mxu0 %v1489
  %v4727 = vpop.f32.mrf.mxu0
  %v4728 = vadd.f32 %v4559, %v4727
  %v4729 = vpop.f32.mrf.mxu0
  %v4730 = vadd.f32 %v4561, %v4729
  %4731 = vdwg.mxu0
  %4732 = vmatpush.bf16.msra.mxu0 %v3846
  %4733 = vmatpush.bf16.msra.mxu0 %v3844
  %4734 = vmatpush.bf16.msra.mxu0 %v3842
  %4735 = vmatpush.bf16.msra.mxu0 %v3840
  %4736 = vmatpush.bf16.msra.mxu0 %v3838
  %4737 = vmatpush.bf16.msra.mxu0 %v3836
  %4738 = vmatpush.bf16.msra.mxu0 %v3834
  %4739 = vmatpush.bf16.msra.mxu0 %v3832
  %4740 = vmatmul.bf16.gmra.mxu0 %v1629
  %v4741 = vpop.f32.mrf.mxu0
  %v4742 = vadd.f32 %v4573, %v4741
  %v4743 = vpop.f32.mrf.mxu0
  %v4744 = vadd.f32 %v4575, %v4743
  %4745 = vmatmul.bf16.gmra.mxu0 %v1641
  %v4746 = vpop.f32.mrf.mxu0
  %v4747 = vadd.f32 %v4578, %v4746
  %v4748 = vpop.f32.mrf.mxu0
  %v4749 = vadd.f32 %v4580, %v4748
  %4750 = vmatmul.bf16.gmra.mxu0 %v1653
  %v4751 = vpop.f32.mrf.mxu0
  %v4752 = vadd.f32 %v4583, %v4751
  %v4753 = vpop.f32.mrf.mxu0
  %v4754 = vadd.f32 %v4585, %v4753
  %4755 = vmatmul.bf16.gmra.mxu0 %v1665
  %v4756 = vpop.f32.mrf.mxu0
  %v4757 = vadd.f32 %v4588, %v4756
  %v4758 = vpop.f32.mrf.mxu0
  %v4759 = vadd.f32 %v4590, %v4758
  %4760 = vmatmul.bf16.gmra.mxu0 %v1677
  %v4761 = vpop.f32.mrf.mxu0
  %v4762 = vadd.f32 %v4593, %v4761
  %v4763 = vpop.f32.mrf.mxu0
  %v4764 = vadd.f32 %v4595, %v4763
  %4765 = vmatmul.bf16.gmra.mxu0 %v1689
  %v4766 = vpop.f32.mrf.mxu0
  %v4767 = vadd.f32 %v4598, %v4766
  %v4768 = vpop.f32.mrf.mxu0
  %v4769 = vadd.f32 %v4600, %v4768
  %4770 = vmatmul.bf16.gmra.mxu0 %v1701
  %v4771 = vpop.f32.mrf.mxu0
  %v4772 = vadd.f32 %v4603, %v4771
  %v4773 = vpop.f32.mrf.mxu0
  %v4774 = vadd.f32 %v4605, %v4773
  %4775 = vmatmul.bf16.gmra.mxu0 %v1713
  %v4776 = vpop.f32.mrf.mxu0
  %v4777 = vadd.f32 %v4608, %v4776
  %v4778 = vpop.f32.mrf.mxu0
  %v4779 = vadd.f32 %v4610, %v4778
  %4780 = vmatmul.bf16.gmra.mxu0 %v1725
  %v4781 = vpop.f32.mrf.mxu0
  %v4782 = vadd.f32 %v4613, %v4781
  %v4783 = vpop.f32.mrf.mxu0
  %v4784 = vadd.f32 %v4615, %v4783
  %4785 = vmatmul.bf16.gmra.mxu0 %v1737
  %v4786 = vpop.f32.mrf.mxu0
  %v4787 = vadd.f32 %v4618, %v4786
  %v4788 = vpop.f32.mrf.mxu0
  %v4789 = vadd.f32 %v4620, %v4788
  %4790 = vmatmul.bf16.gmra.mxu0 %v1749
  %v4791 = vpop.f32.mrf.mxu0
  %v4792 = vadd.f32 %v4623, %v4791
  %v4793 = vpop.f32.mrf.mxu0
  %v4794 = vadd.f32 %v4625, %v4793
  %4795 = vmatmul.bf16.gmra.mxu0 %v1761
  %v4796 = vpop.f32.mrf.mxu0
  %v4797 = vadd.f32 %v4628, %v4796
  %v4798 = vpop.f32.mrf.mxu0
  %v4799 = vadd.f32 %v4630, %v4798
  %4800 = vmatmul.bf16.gmra.mxu0 %v1773
  %v4801 = vpop.f32.mrf.mxu0
  %v4802 = vadd.f32 %v4633, %v4801
  %v4803 = vpop.f32.mrf.mxu0
  %v4804 = vadd.f32 %v4635, %v4803
  %4805 = vmatmul.bf16.gmra.mxu0 %v1785
  %v4806 = vpop.f32.mrf.mxu0
  %v4807 = vadd.f32 %v4638, %v4806
  %v4808 = vpop.f32.mrf.mxu0
  %v4809 = vadd.f32 %v4640, %v4808
  %4810 = vmatmul.bf16.gmra.mxu0 %v1797
  %v4811 = vpop.f32.mrf.mxu0
  %v4812 = vadd.f32 %v4643, %v4811
  %v4813 = vpop.f32.mrf.mxu0
  %v4814 = vadd.f32 %v4645, %v4813
  %4815 = vmatmul.bf16.gmra.mxu0 %v1809
  %v4816 = vpop.f32.mrf.mxu0
  %v4817 = vadd.f32 %v4648, %v4816
  %v4818 = vpop.f32.mrf.mxu0
  %v4819 = vadd.f32 %v4650, %v4818
  %4820 = vmatmul.bf16.gmra.mxu0 %v1821
  %v4821 = vpop.f32.mrf.mxu0
  %v4822 = vadd.f32 %v4653, %v4821
  %v4823 = vpop.f32.mrf.mxu0
  %v4824 = vadd.f32 %v4655, %v4823
  %4825 = vmatmul.bf16.gmra.mxu0 %v1833
  %v4826 = vpop.f32.mrf.mxu0
  %v4827 = vadd.f32 %v4658, %v4826
  %v4828 = vpop.f32.mrf.mxu0
  %v4829 = vadd.f32 %v4660, %v4828
  %4830 = vmatmul.bf16.gmra.mxu0 %v1845
  %v4831 = vpop.f32.mrf.mxu0
  %v4832 = vadd.f32 %v4663, %v4831
  %v4833 = vpop.f32.mrf.mxu0
  %v4834 = vadd.f32 %v4665, %v4833
  %4835 = vmatmul.bf16.gmra.mxu0 %v1857
  %v4836 = vpop.f32.mrf.mxu0
  %v4837 = vadd.f32 %v4668, %v4836
  %v4838 = vpop.f32.mrf.mxu0
  %v4839 = vadd.f32 %v4670, %v4838
  %4840 = vmatmul.bf16.gmra.mxu0 %v1869
  %v4841 = vpop.f32.mrf.mxu0
  %v4842 = vadd.f32 %v4673, %v4841
  %v4843 = vpop.f32.mrf.mxu0
  %v4844 = vadd.f32 %v4675, %v4843
  %4845 = vmatmul.bf16.gmra.mxu0 %v1881
  %v4846 = vpop.f32.mrf.mxu0
  %v4847 = vadd.f32 %v4678, %v4846
  %v4848 = vpop.f32.mrf.mxu0
  %v4849 = vadd.f32 %v4680, %v4848
  %4850 = vmatmul.bf16.gmra.mxu0 %v1893
  %v4851 = vpop.f32.mrf.mxu0
  %v4852 = vadd.f32 %v4683, %v4851
  %v4853 = vpop.f32.mrf.mxu0
  %v4854 = vadd.f32 %v4685, %v4853
  %4855 = vmatmul.bf16.gmra.mxu0 %v1905
  %v4856 = vpop.f32.mrf.mxu0
  %v4857 = vadd.f32 %v4688, %v4856
  %v4858 = vpop.f32.mrf.mxu0
  %v4859 = vadd.f32 %v4690, %v4858
  %4860 = vmatmul.bf16.gmra.mxu0 %v1917
  %v4861 = vpop.f32.mrf.mxu0
  %v4862 = vadd.f32 %v4693, %v4861
  %v4863 = vpop.f32.mrf.mxu0
  %v4864 = vadd.f32 %v4695, %v4863
  %4865 = vmatmul.bf16.gmra.mxu0 %v1929
  %v4866 = vpop.f32.mrf.mxu0
  %v4867 = vadd.f32 %v4698, %v4866
  %v4868 = vpop.f32.mrf.mxu0
  %v4869 = vadd.f32 %v4700, %v4868
  %4870 = vmatmul.bf16.gmra.mxu0 %v1941
  %v4871 = vpop.f32.mrf.mxu0
  %v4872 = vadd.f32 %v4703, %v4871
  %v4873 = vpop.f32.mrf.mxu0
  %v4874 = vadd.f32 %v4705, %v4873
  %4875 = vmatmul.bf16.gmra.mxu0 %v1953
  %v4876 = vpop.f32.mrf.mxu0
  %v4877 = vadd.f32 %v4708, %v4876
  %v4878 = vpop.f32.mrf.mxu0
  %v4879 = vadd.f32 %v4710, %v4878
  %4880 = vmatmul.bf16.gmra.mxu0 %v1965
  %v4881 = vpop.f32.mrf.mxu0
  %v4882 = vadd.f32 %v4713, %v4881
  %v4883 = vpop.f32.mrf.mxu0
  %v4884 = vadd.f32 %v4715, %v4883
  %4885 = vmatmul.bf16.gmra.mxu0 %v1977
  %v4886 = vpop.f32.mrf.mxu0
  %v4887 = vadd.f32 %v4718, %v4886
  %v4888 = vpop.f32.mrf.mxu0
  %v4889 = vadd.f32 %v4720, %v4888
  %4890 = vmatmul.bf16.gmra.mxu0 %v1989
  %v4891 = vpop.f32.mrf.mxu0
  %v4892 = vadd.f32 %v4723, %v4891
  %v4893 = vpop.f32.mrf.mxu0
  %v4894 = vadd.f32 %v4725, %v4893
  %4895 = vmatmul.bf16.gmra.mxu0 %v2001
  %v4896 = vpop.f32.mrf.mxu0
  %v4897 = vadd.f32 %v4728, %v4896
  %v4898 = vpop.f32.mrf.mxu0
  %v4899 = vadd.f32 %v4730, %v4898
  %4900 = vdwg.mxu0
  %4901 = vmatpush.bf16.msra.mxu0 %v3862
  %4902 = vmatpush.bf16.msra.mxu0 %v3860
  %4903 = vmatpush.bf16.msra.mxu0 %v3858
  %4904 = vmatpush.bf16.msra.mxu0 %v3856
  %4905 = vmatpush.bf16.msra.mxu0 %v3854
  %4906 = vmatpush.bf16.msra.mxu0 %v3852
  %4907 = vmatpush.bf16.msra.mxu0 %v3850
  %4908 = vmatpush.bf16.msra.mxu0 %v3848
  %4909 = vmatmul.bf16.gmra.mxu0 %v2132
  %v4910 = vpop.f32.mrf.mxu0
  %v4911 = vadd.f32 %v4742, %v4910
  %v4912 = vpop.f32.mrf.mxu0
  %v4913 = vadd.f32 %v4744, %v4912
  %4914 = vmatmul.bf16.gmra.mxu0 %v2135
  %v4915 = vpop.f32.mrf.mxu0
  %v4916 = vadd.f32 %v4747, %v4915
  %v4917 = vpop.f32.mrf.mxu0
  %v4918 = vadd.f32 %v4749, %v4917
  %4919 = vmatmul.bf16.gmra.mxu0 %v2138
  %v4920 = vpop.f32.mrf.mxu0
  %v4921 = vadd.f32 %v4752, %v4920
  %v4922 = vpop.f32.mrf.mxu0
  %v4923 = vadd.f32 %v4754, %v4922
  %4924 = vmatmul.bf16.gmra.mxu0 %v2141
  %v4925 = vpop.f32.mrf.mxu0
  %v4926 = vadd.f32 %v4757, %v4925
  %v4927 = vpop.f32.mrf.mxu0
  %v4928 = vadd.f32 %v4759, %v4927
  %4929 = vmatmul.bf16.gmra.mxu0 %v2144
  %v4930 = vpop.f32.mrf.mxu0
  %v4931 = vadd.f32 %v4762, %v4930
  %v4932 = vpop.f32.mrf.mxu0
  %v4933 = vadd.f32 %v4764, %v4932
  %4934 = vmatmul.bf16.gmra.mxu0 %v2147
  %v4935 = vpop.f32.mrf.mxu0
  %v4936 = vadd.f32 %v4767, %v4935
  %v4937 = vpop.f32.mrf.mxu0
  %v4938 = vadd.f32 %v4769, %v4937
  %4939 = vmatmul.bf16.gmra.mxu0 %v2150
  %v4940 = vpop.f32.mrf.mxu0
  %v4941 = vadd.f32 %v4772, %v4940
  %v4942 = vpop.f32.mrf.mxu0
  %v4943 = vadd.f32 %v4774, %v4942
  %4944 = vmatmul.bf16.gmra.mxu0 %v2153
  %v4945 = vpop.f32.mrf.mxu0
  %v4946 = vadd.f32 %v4777, %v4945
  %v4947 = vpop.f32.mrf.mxu0
  %v4948 = vadd.f32 %v4779, %v4947
  %4949 = vmatmul.bf16.gmra.mxu0 %v2156
  %v4950 = vpop.f32.mrf.mxu0
  %v4951 = vadd.f32 %v4782, %v4950
  %v4952 = vpop.f32.mrf.mxu0
  %v4953 = vadd.f32 %v4784, %v4952
  %4954 = vmatmul.bf16.gmra.mxu0 %v2159
  %v4955 = vpop.f32.mrf.mxu0
  %v4956 = vadd.f32 %v4787, %v4955
  %v4957 = vpop.f32.mrf.mxu0
  %v4958 = vadd.f32 %v4789, %v4957
  %4959 = vmatmul.bf16.gmra.mxu0 %v2162
  %v4960 = vpop.f32.mrf.mxu0
  %v4961 = vadd.f32 %v4792, %v4960
  %v4962 = vpop.f32.mrf.mxu0
  %v4963 = vadd.f32 %v4794, %v4962
  %4964 = vmatmul.bf16.gmra.mxu0 %v2165
  %v4965 = vpop.f32.mrf.mxu0
  %v4966 = vadd.f32 %v4797, %v4965
  %v4967 = vpop.f32.mrf.mxu0
  %v4968 = vadd.f32 %v4799, %v4967
  %4969 = vmatmul.bf16.gmra.mxu0 %v2168
  %v4970 = vpop.f32.mrf.mxu0
  %v4971 = vadd.f32 %v4802, %v4970
  %v4972 = vpop.f32.mrf.mxu0
  %v4973 = vadd.f32 %v4804, %v4972
  %4974 = vmatmul.bf16.gmra.mxu0 %v2171
  %v4975 = vpop.f32.mrf.mxu0
  %v4976 = vadd.f32 %v4807, %v4975
  %v4977 = vpop.f32.mrf.mxu0
  %v4978 = vadd.f32 %v4809, %v4977
  %4979 = vmatmul.bf16.gmra.mxu0 %v2174
  %v4980 = vpop.f32.mrf.mxu0
  %v4981 = vadd.f32 %v4812, %v4980
  %v4982 = vpop.f32.mrf.mxu0
  %v4983 = vadd.f32 %v4814, %v4982
  %4984 = vmatmul.bf16.gmra.mxu0 %v2177
  %v4985 = vpop.f32.mrf.mxu0
  %v4986 = vadd.f32 %v4817, %v4985
  %v4987 = vpop.f32.mrf.mxu0
  %v4988 = vadd.f32 %v4819, %v4987
  %4989 = vmatmul.bf16.gmra.mxu0 %v2180
  %v4990 = vpop.f32.mrf.mxu0
  %v4991 = vadd.f32 %v4822, %v4990
  %v4992 = vpop.f32.mrf.mxu0
  %v4993 = vadd.f32 %v4824, %v4992
  %4994 = vmatmul.bf16.gmra.mxu0 %v2183
  %v4995 = vpop.f32.mrf.mxu0
  %v4996 = vadd.f32 %v4827, %v4995
  %v4997 = vpop.f32.mrf.mxu0
  %v4998 = vadd.f32 %v4829, %v4997
  %4999 = vmatmul.bf16.gmra.mxu0 %v2186
  %v5000 = vpop.f32.mrf.mxu0
  %v5001 = vadd.f32 %v4832, %v5000
  %v5002 = vpop.f32.mrf.mxu0
  %v5003 = vadd.f32 %v4834, %v5002
  %5004 = vmatmul.bf16.gmra.mxu0 %v2189
  %v5005 = vpop.f32.mrf.mxu0
  %v5006 = vadd.f32 %v4837, %v5005
  %v5007 = vpop.f32.mrf.mxu0
  %v5008 = vadd.f32 %v4839, %v5007
  %5009 = vmatmul.bf16.gmra.mxu0 %v2192
  %v5010 = vpop.f32.mrf.mxu0
  %v5011 = vadd.f32 %v4842, %v5010
  %v5012 = vpop.f32.mrf.mxu0
  %v5013 = vadd.f32 %v4844, %v5012
  %5014 = vmatmul.bf16.gmra.mxu0 %v2195
  %v5015 = vpop.f32.mrf.mxu0
  %v5016 = vadd.f32 %v4847, %v5015
  %v5017 = vpop.f32.mrf.mxu0
  %v5018 = vadd.f32 %v4849, %v5017
  %5019 = vmatmul.bf16.gmra.mxu0 %v2198
  %v5020 = vpop.f32.mrf.mxu0
  %v5021 = vadd.f32 %v4852, %v5020
  %v5022 = vpop.f32.mrf.mxu0
  %v5023 = vadd.f32 %v4854, %v5022
  %5024 = vmatmul.bf16.gmra.mxu0 %v2201
  %v5025 = vpop.f32.mrf.mxu0
  %v5026 = vadd.f32 %v4857, %v5025
  %v5027 = vpop.f32.mrf.mxu0
  %v5028 = vadd.f32 %v4859, %v5027
  %5029 = vmatmul.bf16.gmra.mxu0 %v2204
  %v5030 = vpop.f32.mrf.mxu0
  %v5031 = vadd.f32 %v4862, %v5030
  %v5032 = vpop.f32.mrf.mxu0
  %v5033 = vadd.f32 %v4864, %v5032
  %5034 = vmatmul.bf16.gmra.mxu0 %v2207
  %v5035 = vpop.f32.mrf.mxu0
  %v5036 = vadd.f32 %v4867, %v5035
  %v5037 = vpop.f32.mrf.mxu0
  %v5038 = vadd.f32 %v4869, %v5037
  %5039 = vmatmul.bf16.gmra.mxu0 %v2210
  %v5040 = vpop.f32.mrf.mxu0
  %v5041 = vadd.f32 %v4872, %v5040
  %v5042 = vpop.f32.mrf.mxu0
  %v5043 = vadd.f32 %v4874, %v5042
  %5044 = vmatmul.bf16.gmra.mxu0 %v2213
  %v5045 = vpop.f32.mrf.mxu0
  %v5046 = vadd.f32 %v4877, %v5045
  %v5047 = vpop.f32.mrf.mxu0
  %v5048 = vadd.f32 %v4879, %v5047
  %5049 = vmatmul.bf16.gmra.mxu0 %v2216
  %v5050 = vpop.f32.mrf.mxu0
  %v5051 = vadd.f32 %v4882, %v5050
  %v5052 = vpop.f32.mrf.mxu0
  %v5053 = vadd.f32 %v4884, %v5052
  %5054 = vmatmul.bf16.gmra.mxu0 %v2219
  %v5055 = vpop.f32.mrf.mxu0
  %v5056 = vadd.f32 %v4887, %v5055
  %v5057 = vpop.f32.mrf.mxu0
  %v5058 = vadd.f32 %v4889, %v5057
  %5059 = vmatmul.bf16.gmra.mxu0 %v2222
  %v5060 = vpop.f32.mrf.mxu0
  %v5061 = vadd.f32 %v4892, %v5060
  %v5062 = vpop.f32.mrf.mxu0
  %v5063 = vadd.f32 %v4894, %v5062
  %5064 = vmatmul.bf16.gmra.mxu0 %v2225
  %v5065 = vpop.f32.mrf.mxu0
  %v5066 = vadd.f32 %v4897, %v5065
  %v5067 = vpop.f32.mrf.mxu0
  %v5068 = vadd.f32 %v4899, %v5067
  %5069 = vdwg.mxu0
  %5070 = vmatpush.bf16.msra.mxu0 %v3878
  %5071 = vmatpush.bf16.msra.mxu0 %v3876
  %5072 = vmatpush.bf16.msra.mxu0 %v3874
  %5073 = vmatpush.bf16.msra.mxu0 %v3872
  %5074 = vmatpush.bf16.msra.mxu0 %v3870
  %5075 = vmatpush.bf16.msra.mxu0 %v3868
  %5076 = vmatpush.bf16.msra.mxu0 %v3866
  %5077 = vmatpush.bf16.msra.mxu0 %v3864
  %5078 = vmatmul.bf16.gmra.mxu0 %v2386
  %v5079 = vpop.f32.mrf.mxu0
  %v5080 = vadd.f32 %v4911, %v5079
  %v5081 = vpop.f32.mrf.mxu0
  %v5082 = vadd.f32 %v4913, %v5081
  %5083 = vmatmul.bf16.gmra.mxu0 %v2387
  %v5084 = vpop.f32.mrf.mxu0
  %v5085 = vadd.f32 %v4916, %v5084
  %v5086 = vpop.f32.mrf.mxu0
  %v5087 = vadd.f32 %v4918, %v5086
  %5088 = vmatmul.bf16.gmra.mxu0 %v2388
  %v5089 = vpop.f32.mrf.mxu0
  %v5090 = vadd.f32 %v4921, %v5089
  %v5091 = vpop.f32.mrf.mxu0
  %v5092 = vadd.f32 %v4923, %v5091
  %5093 = vmatmul.bf16.gmra.mxu0 %v2389
  %v5094 = vpop.f32.mrf.mxu0
  %v5095 = vadd.f32 %v4926, %v5094
  %v5096 = vpop.f32.mrf.mxu0
  %v5097 = vadd.f32 %v4928, %v5096
  %5098 = vmatmul.bf16.gmra.mxu0 %v2390
  %v5099 = vpop.f32.mrf.mxu0
  %v5100 = vadd.f32 %v4931, %v5099
  %v5101 = vpop.f32.mrf.mxu0
  %v5102 = vadd.f32 %v4933, %v5101
  %5103 = vmatmul.bf16.gmra.mxu0 %v2391
  %v5104 = vpop.f32.mrf.mxu0
  %v5105 = vadd.f32 %v4936, %v5104
  %v5106 = vpop.f32.mrf.mxu0
  %v5107 = vadd.f32 %v4938, %v5106
  %5108 = vmatmul.bf16.gmra.mxu0 %v2392
  %v5109 = vpop.f32.mrf.mxu0
  %v5110 = vadd.f32 %v4941, %v5109
  %v5111 = vpop.f32.mrf.mxu0
  %v5112 = vadd.f32 %v4943, %v5111
  %5113 = vmatmul.bf16.gmra.mxu0 %v2393
  %v5114 = vpop.f32.mrf.mxu0
  %v5115 = vadd.f32 %v4946, %v5114
  %v5116 = vpop.f32.mrf.mxu0
  %v5117 = vadd.f32 %v4948, %v5116
  %5118 = vmatmul.bf16.gmra.mxu0 %v2394
  %v5119 = vpop.f32.mrf.mxu0
  %v5120 = vadd.f32 %v4951, %v5119
  %v5121 = vpop.f32.mrf.mxu0
  %v5122 = vadd.f32 %v4953, %v5121
  %5123 = vmatmul.bf16.gmra.mxu0 %v2395
  %v5124 = vpop.f32.mrf.mxu0
  %v5125 = vadd.f32 %v4956, %v5124
  %v5126 = vpop.f32.mrf.mxu0
  %v5127 = vadd.f32 %v4958, %v5126
  %5128 = vmatmul.bf16.gmra.mxu0 %v2396
  %v5129 = vpop.f32.mrf.mxu0
  %v5130 = vadd.f32 %v4961, %v5129
  %v5131 = vpop.f32.mrf.mxu0
  %v5132 = vadd.f32 %v4963, %v5131
  %5133 = vmatmul.bf16.gmra.mxu0 %v2397
  %v5134 = vpop.f32.mrf.mxu0
  %v5135 = vadd.f32 %v4966, %v5134
  %v5136 = vpop.f32.mrf.mxu0
  %v5137 = vadd.f32 %v4968, %v5136
  %5138 = vmatmul.bf16.gmra.mxu0 %v2398
  %v5139 = vpop.f32.mrf.mxu0
  %v5140 = vadd.f32 %v4971, %v5139
  %v5141 = vpop.f32.mrf.mxu0
  %v5142 = vadd.f32 %v4973, %v5141
  %5143 = vmatmul.bf16.gmra.mxu0 %v2399
  %v5144 = vpop.f32.mrf.mxu0
  %v5145 = vadd.f32 %v4976, %v5144
  %v5146 = vpop.f32.mrf.mxu0
  %v5147 = vadd.f32 %v4978, %v5146
  %5148 = vmatmul.bf16.gmra.mxu0 %v2400
  %v5149 = vpop.f32.mrf.mxu0
  %v5150 = vadd.f32 %v4981, %v5149
  %v5151 = vpop.f32.mrf.mxu0
  %v5152 = vadd.f32 %v4983, %v5151
  %5153 = vmatmul.bf16.gmra.mxu0 %v2401
  %v5154 = vpop.f32.mrf.mxu0
  %v5155 = vadd.f32 %v4986, %v5154
  %v5156 = vpop.f32.mrf.mxu0
  %v5157 = vadd.f32 %v4988, %v5156
  %5158 = vmatmul.bf16.gmra.mxu0 %v2402
  %v5159 = vpop.f32.mrf.mxu0
  %v5160 = vadd.f32 %v4991, %v5159
  %v5161 = vpop.f32.mrf.mxu0
  %v5162 = vadd.f32 %v4993, %v5161
  %5163 = vmatmul.bf16.gmra.mxu0 %v2403
  %v5164 = vpop.f32.mrf.mxu0
  %v5165 = vadd.f32 %v4996, %v5164
  %v5166 = vpop.f32.mrf.mxu0
  %v5167 = vadd.f32 %v4998, %v5166
  %5168 = vmatmul.bf16.gmra.mxu0 %v2404
  %v5169 = vpop.f32.mrf.mxu0
  %v5170 = vadd.f32 %v5001, %v5169
  %v5171 = vpop.f32.mrf.mxu0
  %v5172 = vadd.f32 %v5003, %v5171
  %5173 = vmatmul.bf16.gmra.mxu0 %v2405
  %v5174 = vpop.f32.mrf.mxu0
  %v5175 = vadd.f32 %v5006, %v5174
  %v5176 = vpop.f32.mrf.mxu0
  %v5177 = vadd.f32 %v5008, %v5176
  %5178 = vmatmul.bf16.gmra.mxu0 %v2406
  %v5179 = vpop.f32.mrf.mxu0
  %v5180 = vadd.f32 %v5011, %v5179
  %v5181 = vpop.f32.mrf.mxu0
  %v5182 = vadd.f32 %v5013, %v5181
  %5183 = vmatmul.bf16.gmra.mxu0 %v2407
  %v5184 = vpop.f32.mrf.mxu0
  %v5185 = vadd.f32 %v5016, %v5184
  %v5186 = vpop.f32.mrf.mxu0
  %v5187 = vadd.f32 %v5018, %v5186
  %5188 = vmatmul.bf16.gmra.mxu0 %v2408
  %v5189 = vpop.f32.mrf.mxu0
  %v5190 = vadd.f32 %v5021, %v5189
  %v5191 = vpop.f32.mrf.mxu0
  %v5192 = vadd.f32 %v5023, %v5191
  %5193 = vmatmul.bf16.gmra.mxu0 %v2409
  %v5194 = vpop.f32.mrf.mxu0
  %v5195 = vadd.f32 %v5026, %v5194
  %v5196 = vpop.f32.mrf.mxu0
  %v5197 = vadd.f32 %v5028, %v5196
  %5198 = vmatmul.bf16.gmra.mxu0 %v2410
  %v5199 = vpop.f32.mrf.mxu0
  %v5200 = vadd.f32 %v5031, %v5199
  %v5201 = vpop.f32.mrf.mxu0
  %v5202 = vadd.f32 %v5033, %v5201
  %5203 = vmatmul.bf16.gmra.mxu0 %v2411
  %v5204 = vpop.f32.mrf.mxu0
  %v5205 = vadd.f32 %v5036, %v5204
  %v5206 = vpop.f32.mrf.mxu0
  %v5207 = vadd.f32 %v5038, %v5206
  %5208 = vmatmul.bf16.gmra.mxu0 %v2412
  %v5209 = vpop.f32.mrf.mxu0
  %v5210 = vadd.f32 %v5041, %v5209
  %v5211 = vpop.f32.mrf.mxu0
  %v5212 = vadd.f32 %v5043, %v5211
  %5213 = vmatmul.bf16.gmra.mxu0 %v2413
  %v5214 = vpop.f32.mrf.mxu0
  %v5215 = vadd.f32 %v5046, %v5214
  %v5216 = vpop.f32.mrf.mxu0
  %v5217 = vadd.f32 %v5048, %v5216
  %5218 = vmatmul.bf16.gmra.mxu0 %v2414
  %v5219 = vpop.f32.mrf.mxu0
  %v5220 = vadd.f32 %v5051, %v5219
  %v5221 = vpop.f32.mrf.mxu0
  %v5222 = vadd.f32 %v5053, %v5221
  %5223 = vmatmul.bf16.gmra.mxu0 %v2415
  %v5224 = vpop.f32.mrf.mxu0
  %v5225 = vadd.f32 %v5056, %v5224
  %v5226 = vpop.f32.mrf.mxu0
  %v5227 = vadd.f32 %v5058, %v5226
  %5228 = vmatmul.bf16.gmra.mxu0 %v2416
  %v5229 = vpop.f32.mrf.mxu0
  %v5230 = vadd.f32 %v5061, %v5229
  %v5231 = vpop.f32.mrf.mxu0
  %v5232 = vadd.f32 %v5063, %v5231
  %5233 = vmatmul.bf16.gmra.mxu0 %v2417
  %v5234 = vpop.f32.mrf.mxu0
  %v5235 = vadd.f32 %v5066, %v5234
  %v5236 = vpop.f32.mrf.mxu0
  %v5237 = vadd.f32 %v5068, %v5236
  %5238 = vdwg.mxu0
  %5239 = vmatpush.bf16.msra.mxu0 %v3894
  %5240 = vmatpush.bf16.msra.mxu0 %v3892
  %5241 = vmatpush.bf16.msra.mxu0 %v3890
  %5242 = vmatpush.bf16.msra.mxu0 %v3888
  %5243 = vmatpush.bf16.msra.mxu0 %v3886
  %5244 = vmatpush.bf16.msra.mxu0 %v3884
  %5245 = vmatpush.bf16.msra.mxu0 %v3882
  %5246 = vmatpush.bf16.msra.mxu0 %v3880
  %5247 = vmatmul.bf16.gmra.mxu0 %v2557
  %v5248 = vpop.f32.mrf.mxu0
  %v5249 = vadd.f32 %v5080, %v5248
  %v5250 = vpop.f32.mrf.mxu0
  %v5251 = vadd.f32 %v5082, %v5250
  %5252 = vmatmul.bf16.gmra.mxu0 %v2569
  %v5253 = vpop.f32.mrf.mxu0
  %v5254 = vadd.f32 %v5085, %v5253
  %v5255 = vpop.f32.mrf.mxu0
  %v5256 = vadd.f32 %v5087, %v5255
  %5257 = vmatmul.bf16.gmra.mxu0 %v2581
  %v5258 = vpop.f32.mrf.mxu0
  %v5259 = vadd.f32 %v5090, %v5258
  %v5260 = vpop.f32.mrf.mxu0
  %v5261 = vadd.f32 %v5092, %v5260
  %5262 = vmatmul.bf16.gmra.mxu0 %v2593
  %v5263 = vpop.f32.mrf.mxu0
  %v5264 = vadd.f32 %v5095, %v5263
  %v5265 = vpop.f32.mrf.mxu0
  %v5266 = vadd.f32 %v5097, %v5265
  %5267 = vmatmul.bf16.gmra.mxu0 %v2605
  %v5268 = vpop.f32.mrf.mxu0
  %v5269 = vadd.f32 %v5100, %v5268
  %v5270 = vpop.f32.mrf.mxu0
  %v5271 = vadd.f32 %v5102, %v5270
  %5272 = vmatmul.bf16.gmra.mxu0 %v2617
  %v5273 = vpop.f32.mrf.mxu0
  %v5274 = vadd.f32 %v5105, %v5273
  %v5275 = vpop.f32.mrf.mxu0
  %v5276 = vadd.f32 %v5107, %v5275
  %5277 = vmatmul.bf16.gmra.mxu0 %v2629
  %v5278 = vpop.f32.mrf.mxu0
  %v5279 = vadd.f32 %v5110, %v5278
  %v5280 = vpop.f32.mrf.mxu0
  %v5281 = vadd.f32 %v5112, %v5280
  %5282 = vmatmul.bf16.gmra.mxu0 %v2641
  %v5283 = vpop.f32.mrf.mxu0
  %v5284 = vadd.f32 %v5115, %v5283
  %v5285 = vpop.f32.mrf.mxu0
  %v5286 = vadd.f32 %v5117, %v5285
  %5287 = vmatmul.bf16.gmra.mxu0 %v2653
  %v5288 = vpop.f32.mrf.mxu0
  %v5289 = vadd.f32 %v5120, %v5288
  %v5290 = vpop.f32.mrf.mxu0
  %v5291 = vadd.f32 %v5122, %v5290
  %5292 = vmatmul.bf16.gmra.mxu0 %v2665
  %v5293 = vpop.f32.mrf.mxu0
  %v5294 = vadd.f32 %v5125, %v5293
  %v5295 = vpop.f32.mrf.mxu0
  %v5296 = vadd.f32 %v5127, %v5295
  %5297 = vmatmul.bf16.gmra.mxu0 %v2677
  %v5298 = vpop.f32.mrf.mxu0
  %v5299 = vadd.f32 %v5130, %v5298
  %v5300 = vpop.f32.mrf.mxu0
  %v5301 = vadd.f32 %v5132, %v5300
  %5302 = vmatmul.bf16.gmra.mxu0 %v2689
  %v5303 = vpop.f32.mrf.mxu0
  %v5304 = vadd.f32 %v5135, %v5303
  %v5305 = vpop.f32.mrf.mxu0
  %v5306 = vadd.f32 %v5137, %v5305
  %5307 = vmatmul.bf16.gmra.mxu0 %v2701
  %v5308 = vpop.f32.mrf.mxu0
  %v5309 = vadd.f32 %v5140, %v5308
  %v5310 = vpop.f32.mrf.mxu0
  %v5311 = vadd.f32 %v5142, %v5310
  %5312 = vmatmul.bf16.gmra.mxu0 %v2713
  %v5313 = vpop.f32.mrf.mxu0
  %v5314 = vadd.f32 %v5145, %v5313
  %v5315 = vpop.f32.mrf.mxu0
  %v5316 = vadd.f32 %v5147, %v5315
  %5317 = vmatmul.bf16.gmra.mxu0 %v2725
  %v5318 = vpop.f32.mrf.mxu0
  %v5319 = vadd.f32 %v5150, %v5318
  %v5320 = vpop.f32.mrf.mxu0
  %v5321 = vadd.f32 %v5152, %v5320
  %5322 = vmatmul.bf16.gmra.mxu0 %v2737
  %v5323 = vpop.f32.mrf.mxu0
  %v5324 = vadd.f32 %v5155, %v5323
  %v5325 = vpop.f32.mrf.mxu0
  %v5326 = vadd.f32 %v5157, %v5325
  %5327 = vmatmul.bf16.gmra.mxu0 %v2749
  %v5328 = vpop.f32.mrf.mxu0
  %v5329 = vadd.f32 %v5160, %v5328
  %v5330 = vpop.f32.mrf.mxu0
  %v5331 = vadd.f32 %v5162, %v5330
  %5332 = vmatmul.bf16.gmra.mxu0 %v2761
  %v5333 = vpop.f32.mrf.mxu0
  %v5334 = vadd.f32 %v5165, %v5333
  %v5335 = vpop.f32.mrf.mxu0
  %v5336 = vadd.f32 %v5167, %v5335
  %5337 = vmatmul.bf16.gmra.mxu0 %v2773
  %v5338 = vpop.f32.mrf.mxu0
  %v5339 = vadd.f32 %v5170, %v5338
  %v5340 = vpop.f32.mrf.mxu0
  %v5341 = vadd.f32 %v5172, %v5340
  %5342 = vmatmul.bf16.gmra.mxu0 %v2785
  %v5343 = vpop.f32.mrf.mxu0
  %v5344 = vadd.f32 %v5175, %v5343
  %v5345 = vpop.f32.mrf.mxu0
  %v5346 = vadd.f32 %v5177, %v5345
  %5347 = vmatmul.bf16.gmra.mxu0 %v2797
  %v5348 = vpop.f32.mrf.mxu0
  %v5349 = vadd.f32 %v5180, %v5348
  %v5350 = vpop.f32.mrf.mxu0
  %v5351 = vadd.f32 %v5182, %v5350
  %5352 = vmatmul.bf16.gmra.mxu0 %v2809
  %v5353 = vpop.f32.mrf.mxu0
  %v5354 = vadd.f32 %v5185, %v5353
  %v5355 = vpop.f32.mrf.mxu0
  %v5356 = vadd.f32 %v5187, %v5355
  %5357 = vmatmul.bf16.gmra.mxu0 %v2821
  %v5358 = vpop.f32.mrf.mxu0
  %v5359 = vadd.f32 %v5190, %v5358
  %v5360 = vpop.f32.mrf.mxu0
  %v5361 = vadd.f32 %v5192, %v5360
  %5362 = vmatmul.bf16.gmra.mxu0 %v2833
  %v5363 = vpop.f32.mrf.mxu0
  %v5364 = vadd.f32 %v5195, %v5363
  %v5365 = vpop.f32.mrf.mxu0
  %v5366 = vadd.f32 %v5197, %v5365
  %5367 = vmatmul.bf16.gmra.mxu0 %v2845
  %v5368 = vpop.f32.mrf.mxu0
  %v5369 = vadd.f32 %v5200, %v5368
  %v5370 = vpop.f32.mrf.mxu0
  %v5371 = vadd.f32 %v5202, %v5370
  %5372 = vmatmul.bf16.gmra.mxu0 %v2857
  %v5373 = vpop.f32.mrf.mxu0
  %v5374 = vadd.f32 %v5205, %v5373
  %v5375 = vpop.f32.mrf.mxu0
  %v5376 = vadd.f32 %v5207, %v5375
  %5377 = vmatmul.bf16.gmra.mxu0 %v2869
  %v5378 = vpop.f32.mrf.mxu0
  %v5379 = vadd.f32 %v5210, %v5378
  %v5380 = vpop.f32.mrf.mxu0
  %v5381 = vadd.f32 %v5212, %v5380
  %5382 = vmatmul.bf16.gmra.mxu0 %v2881
  %v5383 = vpop.f32.mrf.mxu0
  %v5384 = vadd.f32 %v5215, %v5383
  %v5385 = vpop.f32.mrf.mxu0
  %v5386 = vadd.f32 %v5217, %v5385
  %5387 = vmatmul.bf16.gmra.mxu0 %v2893
  %v5388 = vpop.f32.mrf.mxu0
  %v5389 = vadd.f32 %v5220, %v5388
  %v5390 = vpop.f32.mrf.mxu0
  %v5391 = vadd.f32 %v5222, %v5390
  %5392 = vmatmul.bf16.gmra.mxu0 %v2905
  %v5393 = vpop.f32.mrf.mxu0
  %v5394 = vadd.f32 %v5225, %v5393
  %v5395 = vpop.f32.mrf.mxu0
  %v5396 = vadd.f32 %v5227, %v5395
  %5397 = vmatmul.bf16.gmra.mxu0 %v2917
  %v5398 = vpop.f32.mrf.mxu0
  %v5399 = vadd.f32 %v5230, %v5398
  %v5400 = vpop.f32.mrf.mxu0
  %v5401 = vadd.f32 %v5232, %v5400
  %5402 = vmatmul.bf16.gmra.mxu0 %v2929
  %v5403 = vpop.f32.mrf.mxu0
  %v5404 = vadd.f32 %v5235, %v5403
  %v5405 = vpop.f32.mrf.mxu0
  %v5406 = vadd.f32 %v5237, %v5405
  %5407 = vdwg.mxu0
  %5408 = vmatpush.bf16.msra.mxu0 %v3910
  %5409 = vmatpush.bf16.msra.mxu0 %v3908
  %5410 = vmatpush.bf16.msra.mxu0 %v3906
  %5411 = vmatpush.bf16.msra.mxu0 %v3904
  %5412 = vmatpush.bf16.msra.mxu0 %v3902
  %5413 = vmatpush.bf16.msra.mxu0 %v3900
  %5414 = vmatpush.bf16.msra.mxu0 %v3898
  %5415 = vmatpush.bf16.msra.mxu0 %v3896
  %5416 = vmatmul.bf16.gmra.mxu0 %v3060
  %v5417 = vpop.f32.mrf.mxu0
  %v5418 = vadd.f32 %v5249, %v5417
  %v5419 = vpop.f32.mrf.mxu0
  %v5420 = vadd.f32 %v5251, %v5419
  %5421 = vmatmul.bf16.gmra.mxu0 %v3063
  %v5422 = vpop.f32.mrf.mxu0
  %v5423 = vadd.f32 %v5254, %v5422
  %v5424 = vpop.f32.mrf.mxu0
  %v5425 = vadd.f32 %v5256, %v5424
  %5426 = vmatmul.bf16.gmra.mxu0 %v3066
  %v5427 = vpop.f32.mrf.mxu0
  %v5428 = vadd.f32 %v5259, %v5427
  %v5429 = vpop.f32.mrf.mxu0
  %v5430 = vadd.f32 %v5261, %v5429
  %5431 = vmatmul.bf16.gmra.mxu0 %v3069
  %v5432 = vpop.f32.mrf.mxu0
  %v5433 = vadd.f32 %v5264, %v5432
  %v5434 = vpop.f32.mrf.mxu0
  %v5435 = vadd.f32 %v5266, %v5434
  %5436 = vmatmul.bf16.gmra.mxu0 %v3072
  %v5437 = vpop.f32.mrf.mxu0
  %v5438 = vadd.f32 %v5269, %v5437
  %v5439 = vpop.f32.mrf.mxu0
  %v5440 = vadd.f32 %v5271, %v5439
  %5441 = vmatmul.bf16.gmra.mxu0 %v3075
  %v5442 = vpop.f32.mrf.mxu0
  %v5443 = vadd.f32 %v5274, %v5442
  %v5444 = vpop.f32.mrf.mxu0
  %v5445 = vadd.f32 %v5276, %v5444
  %5446 = vmatmul.bf16.gmra.mxu0 %v3078
  %v5447 = vpop.f32.mrf.mxu0
  %v5448 = vadd.f32 %v5279, %v5447
  %v5449 = vpop.f32.mrf.mxu0
  %v5450 = vadd.f32 %v5281, %v5449
  %5451 = vmatmul.bf16.gmra.mxu0 %v3081
  %v5452 = vpop.f32.mrf.mxu0
  %v5453 = vadd.f32 %v5284, %v5452
  %v5454 = vpop.f32.mrf.mxu0
  %v5455 = vadd.f32 %v5286, %v5454
  %5456 = vmatmul.bf16.gmra.mxu0 %v3084
  %v5457 = vpop.f32.mrf.mxu0
  %v5458 = vadd.f32 %v5289, %v5457
  %v5459 = vpop.f32.mrf.mxu0
  %v5460 = vadd.f32 %v5291, %v5459
  %5461 = vmatmul.bf16.gmra.mxu0 %v3087
  %v5462 = vpop.f32.mrf.mxu0
  %v5463 = vadd.f32 %v5294, %v5462
  %v5464 = vpop.f32.mrf.mxu0
  %v5465 = vadd.f32 %v5296, %v5464
  %5466 = vmatmul.bf16.gmra.mxu0 %v3090
  %v5467 = vpop.f32.mrf.mxu0
  %v5468 = vadd.f32 %v5299, %v5467
  %v5469 = vpop.f32.mrf.mxu0
  %v5470 = vadd.f32 %v5301, %v5469
  %5471 = vmatmul.bf16.gmra.mxu0 %v3093
  %v5472 = vpop.f32.mrf.mxu0
  %v5473 = vadd.f32 %v5304, %v5472
  %v5474 = vpop.f32.mrf.mxu0
  %v5475 = vadd.f32 %v5306, %v5474
  %5476 = vmatmul.bf16.gmra.mxu0 %v3096
  %v5477 = vpop.f32.mrf.mxu0
  %v5478 = vadd.f32 %v5309, %v5477
  %v5479 = vpop.f32.mrf.mxu0
  %v5480 = vadd.f32 %v5311, %v5479
  %5481 = vmatmul.bf16.gmra.mxu0 %v3099
  %v5482 = vpop.f32.mrf.mxu0
  %v5483 = vadd.f32 %v5314, %v5482
  %v5484 = vpop.f32.mrf.mxu0
  %v5485 = vadd.f32 %v5316, %v5484
  %5486 = vmatmul.bf16.gmra.mxu0 %v3102
  %v5487 = vpop.f32.mrf.mxu0
  %v5488 = vadd.f32 %v5319, %v5487
  %v5489 = vpop.f32.mrf.mxu0
  %v5490 = vadd.f32 %v5321, %v5489
  %5491 = vmatmul.bf16.gmra.mxu0 %v3105
  %v5492 = vpop.f32.mrf.mxu0
  %v5493 = vadd.f32 %v5324, %v5492
  %v5494 = vpop.f32.mrf.mxu0
  %v5495 = vadd.f32 %v5326, %v5494
  %5496 = vmatmul.bf16.gmra.mxu0 %v3108
  %v5497 = vpop.f32.mrf.mxu0
  %v5498 = vadd.f32 %v5329, %v5497
  %v5499 = vpop.f32.mrf.mxu0
  %v5500 = vadd.f32 %v5331, %v5499
  %5501 = vmatmul.bf16.gmra.mxu0 %v3111
  %v5502 = vpop.f32.mrf.mxu0
  %v5503 = vadd.f32 %v5334, %v5502
  %v5504 = vpop.f32.mrf.mxu0
  %v5505 = vadd.f32 %v5336, %v5504
  %5506 = vmatmul.bf16.gmra.mxu0 %v3114
  %v5507 = vpop.f32.mrf.mxu0
  %v5508 = vadd.f32 %v5339, %v5507
  %v5509 = vpop.f32.mrf.mxu0
  %v5510 = vadd.f32 %v5341, %v5509
  %5511 = vmatmul.bf16.gmra.mxu0 %v3117
  %v5512 = vpop.f32.mrf.mxu0
  %v5513 = vadd.f32 %v5344, %v5512
  %v5514 = vpop.f32.mrf.mxu0
  %v5515 = vadd.f32 %v5346, %v5514
  %5516 = vmatmul.bf16.gmra.mxu0 %v3120
  %v5517 = vpop.f32.mrf.mxu0
  %v5518 = vadd.f32 %v5349, %v5517
  %v5519 = vpop.f32.mrf.mxu0
  %v5520 = vadd.f32 %v5351, %v5519
  %5521 = vmatmul.bf16.gmra.mxu0 %v3123
  %v5522 = vpop.f32.mrf.mxu0
  %v5523 = vadd.f32 %v5354, %v5522
  %v5524 = vpop.f32.mrf.mxu0
  %v5525 = vadd.f32 %v5356, %v5524
  %5526 = vmatmul.bf16.gmra.mxu0 %v3126
  %v5527 = vpop.f32.mrf.mxu0
  %v5528 = vadd.f32 %v5359, %v5527
  %v5529 = vpop.f32.mrf.mxu0
  %v5530 = vadd.f32 %v5361, %v5529
  %5531 = vmatmul.bf16.gmra.mxu0 %v3129
  %v5532 = vpop.f32.mrf.mxu0
  %v5533 = vadd.f32 %v5364, %v5532
  %v5534 = vpop.f32.mrf.mxu0
  %v5535 = vadd.f32 %v5366, %v5534
  %5536 = vmatmul.bf16.gmra.mxu0 %v3132
  %v5537 = vpop.f32.mrf.mxu0
  %v5538 = vadd.f32 %v5369, %v5537
  %v5539 = vpop.f32.mrf.mxu0
  %v5540 = vadd.f32 %v5371, %v5539
  %5541 = vmatmul.bf16.gmra.mxu0 %v3135
  %v5542 = vpop.f32.mrf.mxu0
  %v5543 = vadd.f32 %v5374, %v5542
  %v5544 = vpop.f32.mrf.mxu0
  %v5545 = vadd.f32 %v5376, %v5544
  %5546 = vmatmul.bf16.gmra.mxu0 %v3138
  %v5547 = vpop.f32.mrf.mxu0
  %v5548 = vadd.f32 %v5379, %v5547
  %v5549 = vpop.f32.mrf.mxu0
  %v5550 = vadd.f32 %v5381, %v5549
  %5551 = vmatmul.bf16.gmra.mxu0 %v3141
  %v5552 = vpop.f32.mrf.mxu0
  %v5553 = vadd.f32 %v5384, %v5552
  %v5554 = vpop.f32.mrf.mxu0
  %v5555 = vadd.f32 %v5386, %v5554
  %5556 = vmatmul.bf16.gmra.mxu0 %v3144
  %v5557 = vpop.f32.mrf.mxu0
  %v5558 = vadd.f32 %v5389, %v5557
  %v5559 = vpop.f32.mrf.mxu0
  %v5560 = vadd.f32 %v5391, %v5559
  %5561 = vmatmul.bf16.gmra.mxu0 %v3147
  %v5562 = vpop.f32.mrf.mxu0
  %v5563 = vadd.f32 %v5394, %v5562
  %v5564 = vpop.f32.mrf.mxu0
  %v5565 = vadd.f32 %v5396, %v5564
  %5566 = vmatmul.bf16.gmra.mxu0 %v3150
  %v5567 = vpop.f32.mrf.mxu0
  %v5568 = vadd.f32 %v5399, %v5567
  %v5569 = vpop.f32.mrf.mxu0
  %v5570 = vadd.f32 %v5401, %v5569
  %5571 = vmatmul.bf16.gmra.mxu0 %v3153
  %v5572 = vpop.f32.mrf.mxu0
  %v5573 = vadd.f32 %v5404, %v5572
  %v5574 = vpop.f32.mrf.mxu0
  %v5575 = vadd.f32 %v5406, %v5574
  %5576 = vdwg.mxu0
  %5577 = vmatpush.bf16.msra.mxu0 %v3783
  %5578 = vmatpush.bf16.msra.mxu0 %v3781
  %5579 = vmatpush.bf16.msra.mxu0 %v3779
  %5580 = vmatpush.bf16.msra.mxu0 %v3777
  %5581 = vmatpush.bf16.msra.mxu0 %v3775
  %5582 = vmatpush.bf16.msra.mxu0 %v3773
  %5583 = vmatpush.bf16.msra.mxu0 %v3771
  %5584 = vmatpush.bf16.msra.mxu0 %v3769
  %5585 = vmatmul.bf16.gmra.mxu0 %v528
  %v5586 = vpop.f32.mrf.mxu0
  %v5587 = vadd.f32 %v3333, %v5586
  %v5588 = vpop.f32.mrf.mxu0
  %v5589 = vadd.f32 %v3333, %v5588
  %5590 = vmatmul.bf16.gmra.mxu0 %v529
  %v5591 = vpop.f32.mrf.mxu0
  %v5592 = vadd.f32 %v3333, %v5591
  %v5593 = vpop.f32.mrf.mxu0
  %v5594 = vadd.f32 %v3333, %v5593
  %5595 = vmatmul.bf16.gmra.mxu0 %v530
  %v5596 = vpop.f32.mrf.mxu0
  %v5597 = vadd.f32 %v3333, %v5596
  %v5598 = vpop.f32.mrf.mxu0
  %v5599 = vadd.f32 %v3333, %v5598
  %5600 = vmatmul.bf16.gmra.mxu0 %v531
  %v5601 = vpop.f32.mrf.mxu0
  %v5602 = vadd.f32 %v3333, %v5601
  %v5603 = vpop.f32.mrf.mxu0
  %v5604 = vadd.f32 %v3333, %v5603
  %5605 = vmatmul.bf16.gmra.mxu0 %v532
  %v5606 = vpop.f32.mrf.mxu0
  %v5607 = vadd.f32 %v3333, %v5606
  %v5608 = vpop.f32.mrf.mxu0
  %v5609 = vadd.f32 %v3333, %v5608
  %5610 = vmatmul.bf16.gmra.mxu0 %v533
  %v5611 = vpop.f32.mrf.mxu0
  %v5612 = vadd.f32 %v3333, %v5611
  %v5613 = vpop.f32.mrf.mxu0
  %v5614 = vadd.f32 %v3333, %v5613
  %5615 = vmatmul.bf16.gmra.mxu0 %v534
  %v5616 = vpop.f32.mrf.mxu0
  %v5617 = vadd.f32 %v3333, %v5616
  %v5618 = vpop.f32.mrf.mxu0
  %v5619 = vadd.f32 %v3333, %v5618
  %5620 = vmatmul.bf16.gmra.mxu0 %v535
  %v5621 = vpop.f32.mrf.mxu0
  %v5622 = vadd.f32 %v3333, %v5621
  %v5623 = vpop.f32.mrf.mxu0
  %v5624 = vadd.f32 %v3333, %v5623
  %5625 = vmatmul.bf16.gmra.mxu0 %v536
  %v5626 = vpop.f32.mrf.mxu0
  %v5627 = vadd.f32 %v3333, %v5626
  %v5628 = vpop.f32.mrf.mxu0
  %v5629 = vadd.f32 %v3333, %v5628
  %5630 = vmatmul.bf16.gmra.mxu0 %v537
  %v5631 = vpop.f32.mrf.mxu0
  %v5632 = vadd.f32 %v3333, %v5631
  %v5633 = vpop.f32.mrf.mxu0
  %v5634 = vadd.f32 %v3333, %v5633
  %5635 = vmatmul.bf16.gmra.mxu0 %v538
  %v5636 = vpop.f32.mrf.mxu0
  %v5637 = vadd.f32 %v3333, %v5636
  %v5638 = vpop.f32.mrf.mxu0
  %v5639 = vadd.f32 %v3333, %v5638
  %5640 = vmatmul.bf16.gmra.mxu0 %v539
  %v5641 = vpop.f32.mrf.mxu0
  %v5642 = vadd.f32 %v3333, %v5641
  %v5643 = vpop.f32.mrf.mxu0
  %v5644 = vadd.f32 %v3333, %v5643
  %5645 = vmatmul.bf16.gmra.mxu0 %v540
  %v5646 = vpop.f32.mrf.mxu0
  %v5647 = vadd.f32 %v3333, %v5646
  %v5648 = vpop.f32.mrf.mxu0
  %v5649 = vadd.f32 %v3333, %v5648
  %5650 = vmatmul.bf16.gmra.mxu0 %v541
  %v5651 = vpop.f32.mrf.mxu0
  %v5652 = vadd.f32 %v3333, %v5651
  %v5653 = vpop.f32.mrf.mxu0
  %v5654 = vadd.f32 %v3333, %v5653
  %5655 = vmatmul.bf16.gmra.mxu0 %v542
  %v5656 = vpop.f32.mrf.mxu0
  %v5657 = vadd.f32 %v3333, %v5656
  %v5658 = vpop.f32.mrf.mxu0
  %v5659 = vadd.f32 %v3333, %v5658
  %5660 = vmatmul.bf16.gmra.mxu0 %v543
  %v5661 = vpop.f32.mrf.mxu0
  %v5662 = vadd.f32 %v3333, %v5661
  %v5663 = vpop.f32.mrf.mxu0
  %v5664 = vadd.f32 %v3333, %v5663
  %5665 = vmatmul.bf16.gmra.mxu0 %v544
  %v5666 = vpop.f32.mrf.mxu0
  %v5667 = vadd.f32 %v3333, %v5666
  %v5668 = vpop.f32.mrf.mxu0
  %v5669 = vadd.f32 %v3333, %v5668
  %5670 = vmatmul.bf16.gmra.mxu0 %v545
  %v5671 = vpop.f32.mrf.mxu0
  %v5672 = vadd.f32 %v3333, %v5671
  %v5673 = vpop.f32.mrf.mxu0
  %v5674 = vadd.f32 %v3333, %v5673
  %5675 = vmatmul.bf16.gmra.mxu0 %v546
  %v5676 = vpop.f32.mrf.mxu0
  %v5677 = vadd.f32 %v3333, %v5676
  %v5678 = vpop.f32.mrf.mxu0
  %v5679 = vadd.f32 %v3333, %v5678
  %5680 = vmatmul.bf16.gmra.mxu0 %v547
  %v5681 = vpop.f32.mrf.mxu0
  %v5682 = vadd.f32 %v3333, %v5681
  %v5683 = vpop.f32.mrf.mxu0
  %v5684 = vadd.f32 %v3333, %v5683
  %5685 = vmatmul.bf16.gmra.mxu0 %v548
  %v5686 = vpop.f32.mrf.mxu0
  %v5687 = vadd.f32 %v3333, %v5686
  %v5688 = vpop.f32.mrf.mxu0
  %v5689 = vadd.f32 %v3333, %v5688
  %5690 = vmatmul.bf16.gmra.mxu0 %v549
  %v5691 = vpop.f32.mrf.mxu0
  %v5692 = vadd.f32 %v3333, %v5691
  %v5693 = vpop.f32.mrf.mxu0
  %v5694 = vadd.f32 %v3333, %v5693
  %5695 = vmatmul.bf16.gmra.mxu0 %v550
  %v5696 = vpop.f32.mrf.mxu0
  %v5697 = vadd.f32 %v3333, %v5696
  %v5698 = vpop.f32.mrf.mxu0
  %v5699 = vadd.f32 %v3333, %v5698
  %5700 = vmatmul.bf16.gmra.mxu0 %v551
  %v5701 = vpop.f32.mrf.mxu0
  %v5702 = vadd.f32 %v3333, %v5701
  %v5703 = vpop.f32.mrf.mxu0
  %v5704 = vadd.f32 %v3333, %v5703
  %5705 = vmatmul.bf16.gmra.mxu0 %v552
  %v5706 = vpop.f32.mrf.mxu0
  %v5707 = vadd.f32 %v3333, %v5706
  %v5708 = vpop.f32.mrf.mxu0
  %v5709 = vadd.f32 %v3333, %v5708
  %5710 = vmatmul.bf16.gmra.mxu0 %v553
  %v5711 = vpop.f32.mrf.mxu0
  %v5712 = vadd.f32 %v3333, %v5711
  %v5713 = vpop.f32.mrf.mxu0
  %v5714 = vadd.f32 %v3333, %v5713
  %5715 = vmatmul.bf16.gmra.mxu0 %v554
  %v5716 = vpop.f32.mrf.mxu0
  %v5717 = vadd.f32 %v3333, %v5716
  %v5718 = vpop.f32.mrf.mxu0
  %v5719 = vadd.f32 %v3333, %v5718
  %5720 = vmatmul.bf16.gmra.mxu0 %v555
  %v5721 = vpop.f32.mrf.mxu0
  %v5722 = vadd.f32 %v3333, %v5721
  %v5723 = vpop.f32.mrf.mxu0
  %v5724 = vadd.f32 %v3333, %v5723
  %5725 = vmatmul.bf16.gmra.mxu0 %v556
  %v5726 = vpop.f32.mrf.mxu0
  %v5727 = vadd.f32 %v3333, %v5726
  %v5728 = vpop.f32.mrf.mxu0
  %v5729 = vadd.f32 %v3333, %v5728
  %5730 = vmatmul.bf16.gmra.mxu0 %v557
  %v5731 = vpop.f32.mrf.mxu0
  %v5732 = vadd.f32 %v3333, %v5731
  %v5733 = vpop.f32.mrf.mxu0
  %v5734 = vadd.f32 %v3333, %v5733
  %5735 = vmatmul.bf16.gmra.mxu0 %v558
  %v5736 = vpop.f32.mrf.mxu0
  %v5737 = vadd.f32 %v3333, %v5736
  %v5738 = vpop.f32.mrf.mxu0
  %v5739 = vadd.f32 %v3333, %v5738
  %5740 = vmatmul.bf16.gmra.mxu0 %v559
  %v5741 = vpop.f32.mrf.mxu0
  %v5742 = vadd.f32 %v3333, %v5741
  %v5743 = vpop.f32.mrf.mxu0
  %v5744 = vadd.f32 %v3333, %v5743
  %5745 = vdwg.mxu0
  %5746 = vmatpush.bf16.msra.mxu0 %v3799
  %5747 = vmatpush.bf16.msra.mxu0 %v3797
  %5748 = vmatpush.bf16.msra.mxu0 %v3795
  %5749 = vmatpush.bf16.msra.mxu0 %v3793
  %5750 = vmatpush.bf16.msra.mxu0 %v3791
  %5751 = vmatpush.bf16.msra.mxu0 %v3789
  %5752 = vmatpush.bf16.msra.mxu0 %v3787
  %5753 = vmatpush.bf16.msra.mxu0 %v3785
  %5754 = vmatmul.bf16.gmra.mxu0 %v700
  %v5755 = vpop.f32.mrf.mxu0
  %v5756 = vadd.f32 %v5587, %v5755
  %v5757 = vpop.f32.mrf.mxu0
  %v5758 = vadd.f32 %v5589, %v5757
  %5759 = vmatmul.bf16.gmra.mxu0 %v712
  %v5760 = vpop.f32.mrf.mxu0
  %v5761 = vadd.f32 %v5592, %v5760
  %v5762 = vpop.f32.mrf.mxu0
  %v5763 = vadd.f32 %v5594, %v5762
  %5764 = vmatmul.bf16.gmra.mxu0 %v724
  %v5765 = vpop.f32.mrf.mxu0
  %v5766 = vadd.f32 %v5597, %v5765
  %v5767 = vpop.f32.mrf.mxu0
  %v5768 = vadd.f32 %v5599, %v5767
  %5769 = vmatmul.bf16.gmra.mxu0 %v736
  %v5770 = vpop.f32.mrf.mxu0
  %v5771 = vadd.f32 %v5602, %v5770
  %v5772 = vpop.f32.mrf.mxu0
  %v5773 = vadd.f32 %v5604, %v5772
  %5774 = vmatmul.bf16.gmra.mxu0 %v748
  %v5775 = vpop.f32.mrf.mxu0
  %v5776 = vadd.f32 %v5607, %v5775
  %v5777 = vpop.f32.mrf.mxu0
  %v5778 = vadd.f32 %v5609, %v5777
  %5779 = vmatmul.bf16.gmra.mxu0 %v760
  %v5780 = vpop.f32.mrf.mxu0
  %v5781 = vadd.f32 %v5612, %v5780
  %v5782 = vpop.f32.mrf.mxu0
  %v5783 = vadd.f32 %v5614, %v5782
  %5784 = vmatmul.bf16.gmra.mxu0 %v772
  %v5785 = vpop.f32.mrf.mxu0
  %v5786 = vadd.f32 %v5617, %v5785
  %v5787 = vpop.f32.mrf.mxu0
  %v5788 = vadd.f32 %v5619, %v5787
  %5789 = vmatmul.bf16.gmra.mxu0 %v784
  %v5790 = vpop.f32.mrf.mxu0
  %v5791 = vadd.f32 %v5622, %v5790
  %v5792 = vpop.f32.mrf.mxu0
  %v5793 = vadd.f32 %v5624, %v5792
  %5794 = vmatmul.bf16.gmra.mxu0 %v796
  %v5795 = vpop.f32.mrf.mxu0
  %v5796 = vadd.f32 %v5627, %v5795
  %v5797 = vpop.f32.mrf.mxu0
  %v5798 = vadd.f32 %v5629, %v5797
  %5799 = vmatmul.bf16.gmra.mxu0 %v808
  %v5800 = vpop.f32.mrf.mxu0
  %v5801 = vadd.f32 %v5632, %v5800
  %v5802 = vpop.f32.mrf.mxu0
  %v5803 = vadd.f32 %v5634, %v5802
  %5804 = vmatmul.bf16.gmra.mxu0 %v820
  %v5805 = vpop.f32.mrf.mxu0
  %v5806 = vadd.f32 %v5637, %v5805
  %v5807 = vpop.f32.mrf.mxu0
  %v5808 = vadd.f32 %v5639, %v5807
  %5809 = vmatmul.bf16.gmra.mxu0 %v832
  %v5810 = vpop.f32.mrf.mxu0
  %v5811 = vadd.f32 %v5642, %v5810
  %v5812 = vpop.f32.mrf.mxu0
  %v5813 = vadd.f32 %v5644, %v5812
  %5814 = vmatmul.bf16.gmra.mxu0 %v844
  %v5815 = vpop.f32.mrf.mxu0
  %v5816 = vadd.f32 %v5647, %v5815
  %v5817 = vpop.f32.mrf.mxu0
  %v5818 = vadd.f32 %v5649, %v5817
  %5819 = vmatmul.bf16.gmra.mxu0 %v856
  %v5820 = vpop.f32.mrf.mxu0
  %v5821 = vadd.f32 %v5652, %v5820
  %v5822 = vpop.f32.mrf.mxu0
  %v5823 = vadd.f32 %v5654, %v5822
  %5824 = vmatmul.bf16.gmra.mxu0 %v868
  %v5825 = vpop.f32.mrf.mxu0
  %v5826 = vadd.f32 %v5657, %v5825
  %v5827 = vpop.f32.mrf.mxu0
  %v5828 = vadd.f32 %v5659, %v5827
  %5829 = vmatmul.bf16.gmra.mxu0 %v880
  %v5830 = vpop.f32.mrf.mxu0
  %v5831 = vadd.f32 %v5662, %v5830
  %v5832 = vpop.f32.mrf.mxu0
  %v5833 = vadd.f32 %v5664, %v5832
  %5834 = vmatmul.bf16.gmra.mxu0 %v892
  %v5835 = vpop.f32.mrf.mxu0
  %v5836 = vadd.f32 %v5667, %v5835
  %v5837 = vpop.f32.mrf.mxu0
  %v5838 = vadd.f32 %v5669, %v5837
  %5839 = vmatmul.bf16.gmra.mxu0 %v904
  %v5840 = vpop.f32.mrf.mxu0
  %v5841 = vadd.f32 %v5672, %v5840
  %v5842 = vpop.f32.mrf.mxu0
  %v5843 = vadd.f32 %v5674, %v5842
  %5844 = vmatmul.bf16.gmra.mxu0 %v916
  %v5845 = vpop.f32.mrf.mxu0
  %v5846 = vadd.f32 %v5677, %v5845
  %v5847 = vpop.f32.mrf.mxu0
  %v5848 = vadd.f32 %v5679, %v5847
  %5849 = vmatmul.bf16.gmra.mxu0 %v928
  %v5850 = vpop.f32.mrf.mxu0
  %v5851 = vadd.f32 %v5682, %v5850
  %v5852 = vpop.f32.mrf.mxu0
  %v5853 = vadd.f32 %v5684, %v5852
  %5854 = vmatmul.bf16.gmra.mxu0 %v940
  %v5855 = vpop.f32.mrf.mxu0
  %v5856 = vadd.f32 %v5687, %v5855
  %v5857 = vpop.f32.mrf.mxu0
  %v5858 = vadd.f32 %v5689, %v5857
  %5859 = vmatmul.bf16.gmra.mxu0 %v952
  %v5860 = vpop.f32.mrf.mxu0
  %v5861 = vadd.f32 %v5692, %v5860
  %v5862 = vpop.f32.mrf.mxu0
  %v5863 = vadd.f32 %v5694, %v5862
  %5864 = vmatmul.bf16.gmra.mxu0 %v964
  %v5865 = vpop.f32.mrf.mxu0
  %v5866 = vadd.f32 %v5697, %v5865
  %v5867 = vpop.f32.mrf.mxu0
  %v5868 = vadd.f32 %v5699, %v5867
  %5869 = vmatmul.bf16.gmra.mxu0 %v976
  %v5870 = vpop.f32.mrf.mxu0
  %v5871 = vadd.f32 %v5702, %v5870
  %v5872 = vpop.f32.mrf.mxu0
  %v5873 = vadd.f32 %v5704, %v5872
  %5874 = vmatmul.bf16.gmra.mxu0 %v988
  %v5875 = vpop.f32.mrf.mxu0
  %v5876 = vadd.f32 %v5707, %v5875
  %v5877 = vpop.f32.mrf.mxu0
  %v5878 = vadd.f32 %v5709, %v5877
  %5879 = vmatmul.bf16.gmra.mxu0 %v1000
  %v5880 = vpop.f32.mrf.mxu0
  %v5881 = vadd.f32 %v5712, %v5880
  %v5882 = vpop.f32.mrf.mxu0
  %v5883 = vadd.f32 %v5714, %v5882
  %5884 = vmatmul.bf16.gmra.mxu0 %v1012
  %v5885 = vpop.f32.mrf.mxu0
  %v5886 = vadd.f32 %v5717, %v5885
  %v5887 = vpop.f32.mrf.mxu0
  %v5888 = vadd.f32 %v5719, %v5887
  %5889 = vmatmul.bf16.gmra.mxu0 %v1024
  %v5890 = vpop.f32.mrf.mxu0
  %v5891 = vadd.f32 %v5722, %v5890
  %v5892 = vpop.f32.mrf.mxu0
  %v5893 = vadd.f32 %v5724, %v5892
  %5894 = vmatmul.bf16.gmra.mxu0 %v1036
  %v5895 = vpop.f32.mrf.mxu0
  %v5896 = vadd.f32 %v5727, %v5895
  %v5897 = vpop.f32.mrf.mxu0
  %v5898 = vadd.f32 %v5729, %v5897
  %5899 = vmatmul.bf16.gmra.mxu0 %v1048
  %v5900 = vpop.f32.mrf.mxu0
  %v5901 = vadd.f32 %v5732, %v5900
  %v5902 = vpop.f32.mrf.mxu0
  %v5903 = vadd.f32 %v5734, %v5902
  %5904 = vmatmul.bf16.gmra.mxu0 %v1060
  %v5905 = vpop.f32.mrf.mxu0
  %v5906 = vadd.f32 %v5737, %v5905
  %v5907 = vpop.f32.mrf.mxu0
  %v5908 = vadd.f32 %v5739, %v5907
  %5909 = vmatmul.bf16.gmra.mxu0 %v1072
  %v5910 = vpop.f32.mrf.mxu0
  %v5911 = vadd.f32 %v5742, %v5910
  %v5912 = vpop.f32.mrf.mxu0
  %v5913 = vadd.f32 %v5744, %v5912
  %5914 = vdwg.mxu0
  %5915 = vmatpush.bf16.msra.mxu0 %v3815
  %5916 = vmatpush.bf16.msra.mxu0 %v3813
  %5917 = vmatpush.bf16.msra.mxu0 %v3811
  %5918 = vmatpush.bf16.msra.mxu0 %v3809
  %5919 = vmatpush.bf16.msra.mxu0 %v3807
  %5920 = vmatpush.bf16.msra.mxu0 %v3805
  %5921 = vmatpush.bf16.msra.mxu0 %v3803
  %5922 = vmatpush.bf16.msra.mxu0 %v3801
  %5923 = vmatmul.bf16.gmra.mxu0 %v1204
  %v5924 = vpop.f32.mrf.mxu0
  %v5925 = vadd.f32 %v5756, %v5924
  %v5926 = vpop.f32.mrf.mxu0
  %v5927 = vadd.f32 %v5758, %v5926
  %5928 = vmatmul.bf16.gmra.mxu0 %v1207
  %v5929 = vpop.f32.mrf.mxu0
  %v5930 = vadd.f32 %v5761, %v5929
  %v5931 = vpop.f32.mrf.mxu0
  %v5932 = vadd.f32 %v5763, %v5931
  %5933 = vmatmul.bf16.gmra.mxu0 %v1210
  %v5934 = vpop.f32.mrf.mxu0
  %v5935 = vadd.f32 %v5766, %v5934
  %v5936 = vpop.f32.mrf.mxu0
  %v5937 = vadd.f32 %v5768, %v5936
  %5938 = vmatmul.bf16.gmra.mxu0 %v1213
  %v5939 = vpop.f32.mrf.mxu0
  %v5940 = vadd.f32 %v5771, %v5939
  %v5941 = vpop.f32.mrf.mxu0
  %v5942 = vadd.f32 %v5773, %v5941
  %5943 = vmatmul.bf16.gmra.mxu0 %v1216
  %v5944 = vpop.f32.mrf.mxu0
  %v5945 = vadd.f32 %v5776, %v5944
  %v5946 = vpop.f32.mrf.mxu0
  %v5947 = vadd.f32 %v5778, %v5946
  %5948 = vmatmul.bf16.gmra.mxu0 %v1219
  %v5949 = vpop.f32.mrf.mxu0
  %v5950 = vadd.f32 %v5781, %v5949
  %v5951 = vpop.f32.mrf.mxu0
  %v5952 = vadd.f32 %v5783, %v5951
  %5953 = vmatmul.bf16.gmra.mxu0 %v1222
  %v5954 = vpop.f32.mrf.mxu0
  %v5955 = vadd.f32 %v5786, %v5954
  %v5956 = vpop.f32.mrf.mxu0
  %v5957 = vadd.f32 %v5788, %v5956
  %5958 = vmatmul.bf16.gmra.mxu0 %v1225
  %v5959 = vpop.f32.mrf.mxu0
  %v5960 = vadd.f32 %v5791, %v5959
  %v5961 = vpop.f32.mrf.mxu0
  %v5962 = vadd.f32 %v5793, %v5961
  %5963 = vmatmul.bf16.gmra.mxu0 %v1228
  %v5964 = vpop.f32.mrf.mxu0
  %v5965 = vadd.f32 %v5796, %v5964
  %v5966 = vpop.f32.mrf.mxu0
  %v5967 = vadd.f32 %v5798, %v5966
  %5968 = vmatmul.bf16.gmra.mxu0 %v1231
  %v5969 = vpop.f32.mrf.mxu0
  %v5970 = vadd.f32 %v5801, %v5969
  %v5971 = vpop.f32.mrf.mxu0
  %v5972 = vadd.f32 %v5803, %v5971
  %5973 = vmatmul.bf16.gmra.mxu0 %v1234
  %v5974 = vpop.f32.mrf.mxu0
  %v5975 = vadd.f32 %v5806, %v5974
  %v5976 = vpop.f32.mrf.mxu0
  %v5977 = vadd.f32 %v5808, %v5976
  %5978 = vmatmul.bf16.gmra.mxu0 %v1237
  %v5979 = vpop.f32.mrf.mxu0
  %v5980 = vadd.f32 %v5811, %v5979
  %v5981 = vpop.f32.mrf.mxu0
  %v5982 = vadd.f32 %v5813, %v5981
  %5983 = vmatmul.bf16.gmra.mxu0 %v1240
  %v5984 = vpop.f32.mrf.mxu0
  %v5985 = vadd.f32 %v5816, %v5984
  %v5986 = vpop.f32.mrf.mxu0
  %v5987 = vadd.f32 %v5818, %v5986
  %5988 = vmatmul.bf16.gmra.mxu0 %v1243
  %v5989 = vpop.f32.mrf.mxu0
  %v5990 = vadd.f32 %v5821, %v5989
  %v5991 = vpop.f32.mrf.mxu0
  %v5992 = vadd.f32 %v5823, %v5991
  %5993 = vmatmul.bf16.gmra.mxu0 %v1246
  %v5994 = vpop.f32.mrf.mxu0
  %v5995 = vadd.f32 %v5826, %v5994
  %v5996 = vpop.f32.mrf.mxu0
  %v5997 = vadd.f32 %v5828, %v5996
  %5998 = vmatmul.bf16.gmra.mxu0 %v1249
  %v5999 = vpop.f32.mrf.mxu0
  %v6000 = vadd.f32 %v5831, %v5999
  %v6001 = vpop.f32.mrf.mxu0
  %v6002 = vadd.f32 %v5833, %v6001
  %6003 = vmatmul.bf16.gmra.mxu0 %v1252
  %v6004 = vpop.f32.mrf.mxu0
  %v6005 = vadd.f32 %v5836, %v6004
  %v6006 = vpop.f32.mrf.mxu0
  %v6007 = vadd.f32 %v5838, %v6006
  %6008 = vmatmul.bf16.gmra.mxu0 %v1255
  %v6009 = vpop.f32.mrf.mxu0
  %v6010 = vadd.f32 %v5841, %v6009
  %v6011 = vpop.f32.mrf.mxu0
  %v6012 = vadd.f32 %v5843, %v6011
  %6013 = vmatmul.bf16.gmra.mxu0 %v1258
  %v6014 = vpop.f32.mrf.mxu0
  %v6015 = vadd.f32 %v5846, %v6014
  %v6016 = vpop.f32.mrf.mxu0
  %v6017 = vadd.f32 %v5848, %v6016
  %6018 = vmatmul.bf16.gmra.mxu0 %v1261
  %v6019 = vpop.f32.mrf.mxu0
  %v6020 = vadd.f32 %v5851, %v6019
  %v6021 = vpop.f32.mrf.mxu0
  %v6022 = vadd.f32 %v5853, %v6021
  %6023 = vmatmul.bf16.gmra.mxu0 %v1264
  %v6024 = vpop.f32.mrf.mxu0
  %v6025 = vadd.f32 %v5856, %v6024
  %v6026 = vpop.f32.mrf.mxu0
  %v6027 = vadd.f32 %v5858, %v6026
  %6028 = vmatmul.bf16.gmra.mxu0 %v1267
  %v6029 = vpop.f32.mrf.mxu0
  %v6030 = vadd.f32 %v5861, %v6029
  %v6031 = vpop.f32.mrf.mxu0
  %v6032 = vadd.f32 %v5863, %v6031
  %6033 = vmatmul.bf16.gmra.mxu0 %v1270
  %v6034 = vpop.f32.mrf.mxu0
  %v6035 = vadd.f32 %v5866, %v6034
  %v6036 = vpop.f32.mrf.mxu0
  %v6037 = vadd.f32 %v5868, %v6036
  %6038 = vmatmul.bf16.gmra.mxu0 %v1273
  %v6039 = vpop.f32.mrf.mxu0
  %v6040 = vadd.f32 %v5871, %v6039
  %v6041 = vpop.f32.mrf.mxu0
  %v6042 = vadd.f32 %v5873, %v6041
  %6043 = vmatmul.bf16.gmra.mxu0 %v1276
  %v6044 = vpop.f32.mrf.mxu0
  %v6045 = vadd.f32 %v5876, %v6044
  %v6046 = vpop.f32.mrf.mxu0
  %v6047 = vadd.f32 %v5878, %v6046
  %6048 = vmatmul.bf16.gmra.mxu0 %v1279
  %v6049 = vpop.f32.mrf.mxu0
  %v6050 = vadd.f32 %v5881, %v6049
  %v6051 = vpop.f32.mrf.mxu0
  %v6052 = vadd.f32 %v5883, %v6051
  %6053 = vmatmul.bf16.gmra.mxu0 %v1282
  %v6054 = vpop.f32.mrf.mxu0
  %v6055 = vadd.f32 %v5886, %v6054
  %v6056 = vpop.f32.mrf.mxu0
  %v6057 = vadd.f32 %v5888, %v6056
  %6058 = vmatmul.bf16.gmra.mxu0 %v1285
  %v6059 = vpop.f32.mrf.mxu0
  %v6060 = vadd.f32 %v5891, %v6059
  %v6061 = vpop.f32.mrf.mxu0
  %v6062 = vadd.f32 %v5893, %v6061
  %6063 = vmatmul.bf16.gmra.mxu0 %v1288
  %v6064 = vpop.f32.mrf.mxu0
  %v6065 = vadd.f32 %v5896, %v6064
  %v6066 = vpop.f32.mrf.mxu0
  %v6067 = vadd.f32 %v5898, %v6066
  %6068 = vmatmul.bf16.gmra.mxu0 %v1291
  %v6069 = vpop.f32.mrf.mxu0
  %v6070 = vadd.f32 %v5901, %v6069
  %v6071 = vpop.f32.mrf.mxu0
  %v6072 = vadd.f32 %v5903, %v6071
  %6073 = vmatmul.bf16.gmra.mxu0 %v1294
  %v6074 = vpop.f32.mrf.mxu0
  %v6075 = vadd.f32 %v5906, %v6074
  %v6076 = vpop.f32.mrf.mxu0
  %v6077 = vadd.f32 %v5908, %v6076
  %6078 = vmatmul.bf16.gmra.mxu0 %v1297
  %v6079 = vpop.f32.mrf.mxu0
  %v6080 = vadd.f32 %v5911, %v6079
  %v6081 = vpop.f32.mrf.mxu0
  %v6082 = vadd.f32 %v5913, %v6081
  %6083 = vdwg.mxu0
  %6084 = vmatpush.bf16.msra.mxu0 %v3831
  %6085 = vmatpush.bf16.msra.mxu0 %v3829
  %6086 = vmatpush.bf16.msra.mxu0 %v3827
  %6087 = vmatpush.bf16.msra.mxu0 %v3825
  %6088 = vmatpush.bf16.msra.mxu0 %v3823
  %6089 = vmatpush.bf16.msra.mxu0 %v3821
  %6090 = vmatpush.bf16.msra.mxu0 %v3819
  %6091 = vmatpush.bf16.msra.mxu0 %v3817
  %6092 = vmatmul.bf16.gmra.mxu0 %v1458
  %v6093 = vpop.f32.mrf.mxu0
  %v6094 = vadd.f32 %v5925, %v6093
  %v6095 = vpop.f32.mrf.mxu0
  %v6096 = vadd.f32 %v5927, %v6095
  %6097 = vmatmul.bf16.gmra.mxu0 %v1459
  %v6098 = vpop.f32.mrf.mxu0
  %v6099 = vadd.f32 %v5930, %v6098
  %v6100 = vpop.f32.mrf.mxu0
  %v6101 = vadd.f32 %v5932, %v6100
  %6102 = vmatmul.bf16.gmra.mxu0 %v1460
  %v6103 = vpop.f32.mrf.mxu0
  %v6104 = vadd.f32 %v5935, %v6103
  %v6105 = vpop.f32.mrf.mxu0
  %v6106 = vadd.f32 %v5937, %v6105
  %6107 = vmatmul.bf16.gmra.mxu0 %v1461
  %v6108 = vpop.f32.mrf.mxu0
  %v6109 = vadd.f32 %v5940, %v6108
  %v6110 = vpop.f32.mrf.mxu0
  %v6111 = vadd.f32 %v5942, %v6110
  %6112 = vmatmul.bf16.gmra.mxu0 %v1462
  %v6113 = vpop.f32.mrf.mxu0
  %v6114 = vadd.f32 %v5945, %v6113
  %v6115 = vpop.f32.mrf.mxu0
  %v6116 = vadd.f32 %v5947, %v6115
  %6117 = vmatmul.bf16.gmra.mxu0 %v1463
  %v6118 = vpop.f32.mrf.mxu0
  %v6119 = vadd.f32 %v5950, %v6118
  %v6120 = vpop.f32.mrf.mxu0
  %v6121 = vadd.f32 %v5952, %v6120
  %6122 = vmatmul.bf16.gmra.mxu0 %v1464
  %v6123 = vpop.f32.mrf.mxu0
  %v6124 = vadd.f32 %v5955, %v6123
  %v6125 = vpop.f32.mrf.mxu0
  %v6126 = vadd.f32 %v5957, %v6125
  %6127 = vmatmul.bf16.gmra.mxu0 %v1465
  %v6128 = vpop.f32.mrf.mxu0
  %v6129 = vadd.f32 %v5960, %v6128
  %v6130 = vpop.f32.mrf.mxu0
  %v6131 = vadd.f32 %v5962, %v6130
  %6132 = vmatmul.bf16.gmra.mxu0 %v1466
  %v6133 = vpop.f32.mrf.mxu0
  %v6134 = vadd.f32 %v5965, %v6133
  %v6135 = vpop.f32.mrf.mxu0
  %v6136 = vadd.f32 %v5967, %v6135
  %6137 = vmatmul.bf16.gmra.mxu0 %v1467
  %v6138 = vpop.f32.mrf.mxu0
  %v6139 = vadd.f32 %v5970, %v6138
  %v6140 = vpop.f32.mrf.mxu0
  %v6141 = vadd.f32 %v5972, %v6140
  %6142 = vmatmul.bf16.gmra.mxu0 %v1468
  %v6143 = vpop.f32.mrf.mxu0
  %v6144 = vadd.f32 %v5975, %v6143
  %v6145 = vpop.f32.mrf.mxu0
  %v6146 = vadd.f32 %v5977, %v6145
  %6147 = vmatmul.bf16.gmra.mxu0 %v1469
  %v6148 = vpop.f32.mrf.mxu0
  %v6149 = vadd.f32 %v5980, %v6148
  %v6150 = vpop.f32.mrf.mxu0
  %v6151 = vadd.f32 %v5982, %v6150
  %6152 = vmatmul.bf16.gmra.mxu0 %v1470
  %v6153 = vpop.f32.mrf.mxu0
  %v6154 = vadd.f32 %v5985, %v6153
  %v6155 = vpop.f32.mrf.mxu0
  %v6156 = vadd.f32 %v5987, %v6155
  %6157 = vmatmul.bf16.gmra.mxu0 %v1471
  %v6158 = vpop.f32.mrf.mxu0
  %v6159 = vadd.f32 %v5990, %v6158
  %v6160 = vpop.f32.mrf.mxu0
  %v6161 = vadd.f32 %v5992, %v6160
  %6162 = vmatmul.bf16.gmra.mxu0 %v1472
  %v6163 = vpop.f32.mrf.mxu0
  %v6164 = vadd.f32 %v5995, %v6163
  %v6165 = vpop.f32.mrf.mxu0
  %v6166 = vadd.f32 %v5997, %v6165
  %6167 = vmatmul.bf16.gmra.mxu0 %v1473
  %v6168 = vpop.f32.mrf.mxu0
  %v6169 = vadd.f32 %v6000, %v6168
  %v6170 = vpop.f32.mrf.mxu0
  %v6171 = vadd.f32 %v6002, %v6170
  %6172 = vmatmul.bf16.gmra.mxu0 %v1474
  %v6173 = vpop.f32.mrf.mxu0
  %v6174 = vadd.f32 %v6005, %v6173
  %v6175 = vpop.f32.mrf.mxu0
  %v6176 = vadd.f32 %v6007, %v6175
  %6177 = vmatmul.bf16.gmra.mxu0 %v1475
  %v6178 = vpop.f32.mrf.mxu0
  %v6179 = vadd.f32 %v6010, %v6178
  %v6180 = vpop.f32.mrf.mxu0
  %v6181 = vadd.f32 %v6012, %v6180
  %6182 = vmatmul.bf16.gmra.mxu0 %v1476
  %v6183 = vpop.f32.mrf.mxu0
  %v6184 = vadd.f32 %v6015, %v6183
  %v6185 = vpop.f32.mrf.mxu0
  %v6186 = vadd.f32 %v6017, %v6185
  %6187 = vmatmul.bf16.gmra.mxu0 %v1477
  %v6188 = vpop.f32.mrf.mxu0
  %v6189 = vadd.f32 %v6020, %v6188
  %v6190 = vpop.f32.mrf.mxu0
  %v6191 = vadd.f32 %v6022, %v6190
  %6192 = vmatmul.bf16.gmra.mxu0 %v1478
  %v6193 = vpop.f32.mrf.mxu0
  %v6194 = vadd.f32 %v6025, %v6193
  %v6195 = vpop.f32.mrf.mxu0
  %v6196 = vadd.f32 %v6027, %v6195
  %6197 = vmatmul.bf16.gmra.mxu0 %v1479
  %v6198 = vpop.f32.mrf.mxu0
  %v6199 = vadd.f32 %v6030, %v6198
  %v6200 = vpop.f32.mrf.mxu0
  %v6201 = vadd.f32 %v6032, %v6200
  %6202 = vmatmul.bf16.gmra.mxu0 %v1480
  %v6203 = vpop.f32.mrf.mxu0
  %v6204 = vadd.f32 %v6035, %v6203
  %v6205 = vpop.f32.mrf.mxu0
  %v6206 = vadd.f32 %v6037, %v6205
  %6207 = vmatmul.bf16.gmra.mxu0 %v1481
  %v6208 = vpop.f32.mrf.mxu0
  %v6209 = vadd.f32 %v6040, %v6208
  %v6210 = vpop.f32.mrf.mxu0
  %v6211 = vadd.f32 %v6042, %v6210
  %6212 = vmatmul.bf16.gmra.mxu0 %v1482
  %v6213 = vpop.f32.mrf.mxu0
  %v6214 = vadd.f32 %v6045, %v6213
  %v6215 = vpop.f32.mrf.mxu0
  %v6216 = vadd.f32 %v6047, %v6215
  %6217 = vmatmul.bf16.gmra.mxu0 %v1483
  %v6218 = vpop.f32.mrf.mxu0
  %v6219 = vadd.f32 %v6050, %v6218
  %v6220 = vpop.f32.mrf.mxu0
  %v6221 = vadd.f32 %v6052, %v6220
  %6222 = vmatmul.bf16.gmra.mxu0 %v1484
  %v6223 = vpop.f32.mrf.mxu0
  %v6224 = vadd.f32 %v6055, %v6223
  %v6225 = vpop.f32.mrf.mxu0
  %v6226 = vadd.f32 %v6057, %v6225
  %6227 = vmatmul.bf16.gmra.mxu0 %v1485
  %v6228 = vpop.f32.mrf.mxu0
  %v6229 = vadd.f32 %v6060, %v6228
  %v6230 = vpop.f32.mrf.mxu0
  %v6231 = vadd.f32 %v6062, %v6230
  %6232 = vmatmul.bf16.gmra.mxu0 %v1486
  %v6233 = vpop.f32.mrf.mxu0
  %v6234 = vadd.f32 %v6065, %v6233
  %v6235 = vpop.f32.mrf.mxu0
  %v6236 = vadd.f32 %v6067, %v6235
  %6237 = vmatmul.bf16.gmra.mxu0 %v1487
  %v6238 = vpop.f32.mrf.mxu0
  %v6239 = vadd.f32 %v6070, %v6238
  %v6240 = vpop.f32.mrf.mxu0
  %v6241 = vadd.f32 %v6072, %v6240
  %6242 = vmatmul.bf16.gmra.mxu0 %v1488
  %v6243 = vpop.f32.mrf.mxu0
  %v6244 = vadd.f32 %v6075, %v6243
  %v6245 = vpop.f32.mrf.mxu0
  %v6246 = vadd.f32 %v6077, %v6245
  %6247 = vmatmul.bf16.gmra.mxu0 %v1489
  %v6248 = vpop.f32.mrf.mxu0
  %v6249 = vadd.f32 %v6080, %v6248
  %v6250 = vpop.f32.mrf.mxu0
  %v6251 = vadd.f32 %v6082, %v6250
  %6252 = vdwg.mxu0
  %6253 = vmatpush.bf16.msra.mxu0 %v3847
  %6254 = vmatpush.bf16.msra.mxu0 %v3845
  %6255 = vmatpush.bf16.msra.mxu0 %v3843
  %6256 = vmatpush.bf16.msra.mxu0 %v3841
  %6257 = vmatpush.bf16.msra.mxu0 %v3839
  %6258 = vmatpush.bf16.msra.mxu0 %v3837
  %6259 = vmatpush.bf16.msra.mxu0 %v3835
  %6260 = vmatpush.bf16.msra.mxu0 %v3833
  %6261 = vmatmul.bf16.gmra.mxu0 %v1629
  %v6262 = vpop.f32.mrf.mxu0
  %v6263 = vadd.f32 %v6094, %v6262
  %v6264 = vpop.f32.mrf.mxu0
  %v6265 = vadd.f32 %v6096, %v6264
  %6266 = vmatmul.bf16.gmra.mxu0 %v1641
  %v6267 = vpop.f32.mrf.mxu0
  %v6268 = vadd.f32 %v6099, %v6267
  %v6269 = vpop.f32.mrf.mxu0
  %v6270 = vadd.f32 %v6101, %v6269
  %6271 = vmatmul.bf16.gmra.mxu0 %v1653
  %v6272 = vpop.f32.mrf.mxu0
  %v6273 = vadd.f32 %v6104, %v6272
  %v6274 = vpop.f32.mrf.mxu0
  %v6275 = vadd.f32 %v6106, %v6274
  %6276 = vmatmul.bf16.gmra.mxu0 %v1665
  %v6277 = vpop.f32.mrf.mxu0
  %v6278 = vadd.f32 %v6109, %v6277
  %v6279 = vpop.f32.mrf.mxu0
  %v6280 = vadd.f32 %v6111, %v6279
  %6281 = vmatmul.bf16.gmra.mxu0 %v1677
  %v6282 = vpop.f32.mrf.mxu0
  %v6283 = vadd.f32 %v6114, %v6282
  %v6284 = vpop.f32.mrf.mxu0
  %v6285 = vadd.f32 %v6116, %v6284
  %6286 = vmatmul.bf16.gmra.mxu0 %v1689
  %v6287 = vpop.f32.mrf.mxu0
  %v6288 = vadd.f32 %v6119, %v6287
  %v6289 = vpop.f32.mrf.mxu0
  %v6290 = vadd.f32 %v6121, %v6289
  %6291 = vmatmul.bf16.gmra.mxu0 %v1701
  %v6292 = vpop.f32.mrf.mxu0
  %v6293 = vadd.f32 %v6124, %v6292
  %v6294 = vpop.f32.mrf.mxu0
  %v6295 = vadd.f32 %v6126, %v6294
  %6296 = vmatmul.bf16.gmra.mxu0 %v1713
  %v6297 = vpop.f32.mrf.mxu0
  %v6298 = vadd.f32 %v6129, %v6297
  %v6299 = vpop.f32.mrf.mxu0
  %v6300 = vadd.f32 %v6131, %v6299
  %6301 = vmatmul.bf16.gmra.mxu0 %v1725
  %v6302 = vpop.f32.mrf.mxu0
  %v6303 = vadd.f32 %v6134, %v6302
  %v6304 = vpop.f32.mrf.mxu0
  %v6305 = vadd.f32 %v6136, %v6304
  %6306 = vmatmul.bf16.gmra.mxu0 %v1737
  %v6307 = vpop.f32.mrf.mxu0
  %v6308 = vadd.f32 %v6139, %v6307
  %v6309 = vpop.f32.mrf.mxu0
  %v6310 = vadd.f32 %v6141, %v6309
  %6311 = vmatmul.bf16.gmra.mxu0 %v1749
  %v6312 = vpop.f32.mrf.mxu0
  %v6313 = vadd.f32 %v6144, %v6312
  %v6314 = vpop.f32.mrf.mxu0
  %v6315 = vadd.f32 %v6146, %v6314
  %6316 = vmatmul.bf16.gmra.mxu0 %v1761
  %v6317 = vpop.f32.mrf.mxu0
  %v6318 = vadd.f32 %v6149, %v6317
  %v6319 = vpop.f32.mrf.mxu0
  %v6320 = vadd.f32 %v6151, %v6319
  %6321 = vmatmul.bf16.gmra.mxu0 %v1773
  %v6322 = vpop.f32.mrf.mxu0
  %v6323 = vadd.f32 %v6154, %v6322
  %v6324 = vpop.f32.mrf.mxu0
  %v6325 = vadd.f32 %v6156, %v6324
  %6326 = vmatmul.bf16.gmra.mxu0 %v1785
  %v6327 = vpop.f32.mrf.mxu0
  %v6328 = vadd.f32 %v6159, %v6327
  %v6329 = vpop.f32.mrf.mxu0
  %v6330 = vadd.f32 %v6161, %v6329
  %6331 = vmatmul.bf16.gmra.mxu0 %v1797
  %v6332 = vpop.f32.mrf.mxu0
  %v6333 = vadd.f32 %v6164, %v6332
  %v6334 = vpop.f32.mrf.mxu0
  %v6335 = vadd.f32 %v6166, %v6334
  %6336 = vmatmul.bf16.gmra.mxu0 %v1809
  %v6337 = vpop.f32.mrf.mxu0
  %v6338 = vadd.f32 %v6169, %v6337
  %v6339 = vpop.f32.mrf.mxu0
  %v6340 = vadd.f32 %v6171, %v6339
  %6341 = vmatmul.bf16.gmra.mxu0 %v1821
  %v6342 = vpop.f32.mrf.mxu0
  %v6343 = vadd.f32 %v6174, %v6342
  %v6344 = vpop.f32.mrf.mxu0
  %v6345 = vadd.f32 %v6176, %v6344
  %6346 = vmatmul.bf16.gmra.mxu0 %v1833
  %v6347 = vpop.f32.mrf.mxu0
  %v6348 = vadd.f32 %v6179, %v6347
  %v6349 = vpop.f32.mrf.mxu0
  %v6350 = vadd.f32 %v6181, %v6349
  %6351 = vmatmul.bf16.gmra.mxu0 %v1845
  %v6352 = vpop.f32.mrf.mxu0
  %v6353 = vadd.f32 %v6184, %v6352
  %v6354 = vpop.f32.mrf.mxu0
  %v6355 = vadd.f32 %v6186, %v6354
  %6356 = vmatmul.bf16.gmra.mxu0 %v1857
  %v6357 = vpop.f32.mrf.mxu0
  %v6358 = vadd.f32 %v6189, %v6357
  %v6359 = vpop.f32.mrf.mxu0
  %v6360 = vadd.f32 %v6191, %v6359
  %6361 = vmatmul.bf16.gmra.mxu0 %v1869
  %v6362 = vpop.f32.mrf.mxu0
  %v6363 = vadd.f32 %v6194, %v6362
  %v6364 = vpop.f32.mrf.mxu0
  %v6365 = vadd.f32 %v6196, %v6364
  %6366 = vmatmul.bf16.gmra.mxu0 %v1881
  %v6367 = vpop.f32.mrf.mxu0
  %v6368 = vadd.f32 %v6199, %v6367
  %v6369 = vpop.f32.mrf.mxu0
  %v6370 = vadd.f32 %v6201, %v6369
  %6371 = vmatmul.bf16.gmra.mxu0 %v1893
  %v6372 = vpop.f32.mrf.mxu0
  %v6373 = vadd.f32 %v6204, %v6372
  %v6374 = vpop.f32.mrf.mxu0
  %v6375 = vadd.f32 %v6206, %v6374
  %6376 = vmatmul.bf16.gmra.mxu0 %v1905
  %v6377 = vpop.f32.mrf.mxu0
  %v6378 = vadd.f32 %v6209, %v6377
  %v6379 = vpop.f32.mrf.mxu0
  %v6380 = vadd.f32 %v6211, %v6379
  %6381 = vmatmul.bf16.gmra.mxu0 %v1917
  %v6382 = vpop.f32.mrf.mxu0
  %v6383 = vadd.f32 %v6214, %v6382
  %v6384 = vpop.f32.mrf.mxu0
  %v6385 = vadd.f32 %v6216, %v6384
  %6386 = vmatmul.bf16.gmra.mxu0 %v1929
  %v6387 = vpop.f32.mrf.mxu0
  %v6388 = vadd.f32 %v6219, %v6387
  %v6389 = vpop.f32.mrf.mxu0
  %v6390 = vadd.f32 %v6221, %v6389
  %6391 = vmatmul.bf16.gmra.mxu0 %v1941
  %v6392 = vpop.f32.mrf.mxu0
  %v6393 = vadd.f32 %v6224, %v6392
  %v6394 = vpop.f32.mrf.mxu0
  %v6395 = vadd.f32 %v6226, %v6394
  %6396 = vmatmul.bf16.gmra.mxu0 %v1953
  %v6397 = vpop.f32.mrf.mxu0
  %v6398 = vadd.f32 %v6229, %v6397
  %v6399 = vpop.f32.mrf.mxu0
  %v6400 = vadd.f32 %v6231, %v6399
  %6401 = vmatmul.bf16.gmra.mxu0 %v1965
  %v6402 = vpop.f32.mrf.mxu0
  %v6403 = vadd.f32 %v6234, %v6402
  %v6404 = vpop.f32.mrf.mxu0
  %v6405 = vadd.f32 %v6236, %v6404
  %6406 = vmatmul.bf16.gmra.mxu0 %v1977
  %v6407 = vpop.f32.mrf.mxu0
  %v6408 = vadd.f32 %v6239, %v6407
  %v6409 = vpop.f32.mrf.mxu0
  %v6410 = vadd.f32 %v6241, %v6409
  %6411 = vmatmul.bf16.gmra.mxu0 %v1989
  %v6412 = vpop.f32.mrf.mxu0
  %v6413 = vadd.f32 %v6244, %v6412
  %v6414 = vpop.f32.mrf.mxu0
  %v6415 = vadd.f32 %v6246, %v6414
  %6416 = vmatmul.bf16.gmra.mxu0 %v2001
  %v6417 = vpop.f32.mrf.mxu0
  %v6418 = vadd.f32 %v6249, %v6417
  %v6419 = vpop.f32.mrf.mxu0
  %v6420 = vadd.f32 %v6251, %v6419
  %6421 = vdwg.mxu0
  %6422 = vmatpush.bf16.msra.mxu0 %v3863
  %6423 = vmatpush.bf16.msra.mxu0 %v3861
  %6424 = vmatpush.bf16.msra.mxu0 %v3859
  %6425 = vmatpush.bf16.msra.mxu0 %v3857
  %6426 = vmatpush.bf16.msra.mxu0 %v3855
  %6427 = vmatpush.bf16.msra.mxu0 %v3853
  %6428 = vmatpush.bf16.msra.mxu0 %v3851
  %6429 = vmatpush.bf16.msra.mxu0 %v3849
  %6430 = vmatmul.bf16.gmra.mxu0 %v2132
  %v6431 = vpop.f32.mrf.mxu0
  %v6432 = vadd.f32 %v6263, %v6431
  %v6433 = vpop.f32.mrf.mxu0
  %v6434 = vadd.f32 %v6265, %v6433
  %6435 = vmatmul.bf16.gmra.mxu0 %v2135
  %v6436 = vpop.f32.mrf.mxu0
  %v6437 = vadd.f32 %v6268, %v6436
  %v6438 = vpop.f32.mrf.mxu0
  %v6439 = vadd.f32 %v6270, %v6438
  %6440 = vmatmul.bf16.gmra.mxu0 %v2138
  %v6441 = vpop.f32.mrf.mxu0
  %v6442 = vadd.f32 %v6273, %v6441
  %v6443 = vpop.f32.mrf.mxu0
  %v6444 = vadd.f32 %v6275, %v6443
  %6445 = vmatmul.bf16.gmra.mxu0 %v2141
  %v6446 = vpop.f32.mrf.mxu0
  %v6447 = vadd.f32 %v6278, %v6446
  %v6448 = vpop.f32.mrf.mxu0
  %v6449 = vadd.f32 %v6280, %v6448
  %6450 = vmatmul.bf16.gmra.mxu0 %v2144
  %v6451 = vpop.f32.mrf.mxu0
  %v6452 = vadd.f32 %v6283, %v6451
  %v6453 = vpop.f32.mrf.mxu0
  %v6454 = vadd.f32 %v6285, %v6453
  %6455 = vmatmul.bf16.gmra.mxu0 %v2147
  %v6456 = vpop.f32.mrf.mxu0
  %v6457 = vadd.f32 %v6288, %v6456
  %v6458 = vpop.f32.mrf.mxu0
  %v6459 = vadd.f32 %v6290, %v6458
  %6460 = vmatmul.bf16.gmra.mxu0 %v2150
  %v6461 = vpop.f32.mrf.mxu0
  %v6462 = vadd.f32 %v6293, %v6461
  %v6463 = vpop.f32.mrf.mxu0
  %v6464 = vadd.f32 %v6295, %v6463
  %6465 = vmatmul.bf16.gmra.mxu0 %v2153
  %v6466 = vpop.f32.mrf.mxu0
  %v6467 = vadd.f32 %v6298, %v6466
  %v6468 = vpop.f32.mrf.mxu0
  %v6469 = vadd.f32 %v6300, %v6468
  %6470 = vmatmul.bf16.gmra.mxu0 %v2156
  %v6471 = vpop.f32.mrf.mxu0
  %v6472 = vadd.f32 %v6303, %v6471
  %v6473 = vpop.f32.mrf.mxu0
  %v6474 = vadd.f32 %v6305, %v6473
  %6475 = vmatmul.bf16.gmra.mxu0 %v2159
  %v6476 = vpop.f32.mrf.mxu0
  %v6477 = vadd.f32 %v6308, %v6476
  %v6478 = vpop.f32.mrf.mxu0
  %v6479 = vadd.f32 %v6310, %v6478
  %6480 = vmatmul.bf16.gmra.mxu0 %v2162
  %v6481 = vpop.f32.mrf.mxu0
  %v6482 = vadd.f32 %v6313, %v6481
  %v6483 = vpop.f32.mrf.mxu0
  %v6484 = vadd.f32 %v6315, %v6483
  %6485 = vmatmul.bf16.gmra.mxu0 %v2165
  %v6486 = vpop.f32.mrf.mxu0
  %v6487 = vadd.f32 %v6318, %v6486
  %v6488 = vpop.f32.mrf.mxu0
  %v6489 = vadd.f32 %v6320, %v6488
  %6490 = vmatmul.bf16.gmra.mxu0 %v2168
  %v6491 = vpop.f32.mrf.mxu0
  %v6492 = vadd.f32 %v6323, %v6491
  %v6493 = vpop.f32.mrf.mxu0
  %v6494 = vadd.f32 %v6325, %v6493
  %6495 = vmatmul.bf16.gmra.mxu0 %v2171
  %v6496 = vpop.f32.mrf.mxu0
  %v6497 = vadd.f32 %v6328, %v6496
  %v6498 = vpop.f32.mrf.mxu0
  %v6499 = vadd.f32 %v6330, %v6498
  %6500 = vmatmul.bf16.gmra.mxu0 %v2174
  %v6501 = vpop.f32.mrf.mxu0
  %v6502 = vadd.f32 %v6333, %v6501
  %v6503 = vpop.f32.mrf.mxu0
  %v6504 = vadd.f32 %v6335, %v6503
  %6505 = vmatmul.bf16.gmra.mxu0 %v2177
  %v6506 = vpop.f32.mrf.mxu0
  %v6507 = vadd.f32 %v6338, %v6506
  %v6508 = vpop.f32.mrf.mxu0
  %v6509 = vadd.f32 %v6340, %v6508
  %6510 = vmatmul.bf16.gmra.mxu0 %v2180
  %v6511 = vpop.f32.mrf.mxu0
  %v6512 = vadd.f32 %v6343, %v6511
  %v6513 = vpop.f32.mrf.mxu0
  %v6514 = vadd.f32 %v6345, %v6513
  %6515 = vmatmul.bf16.gmra.mxu0 %v2183
  %v6516 = vpop.f32.mrf.mxu0
  %v6517 = vadd.f32 %v6348, %v6516
  %v6518 = vpop.f32.mrf.mxu0
  %v6519 = vadd.f32 %v6350, %v6518
  %6520 = vmatmul.bf16.gmra.mxu0 %v2186
  %v6521 = vpop.f32.mrf.mxu0
  %v6522 = vadd.f32 %v6353, %v6521
  %v6523 = vpop.f32.mrf.mxu0
  %v6524 = vadd.f32 %v6355, %v6523
  %6525 = vmatmul.bf16.gmra.mxu0 %v2189
  %v6526 = vpop.f32.mrf.mxu0
  %v6527 = vadd.f32 %v6358, %v6526
  %v6528 = vpop.f32.mrf.mxu0
  %v6529 = vadd.f32 %v6360, %v6528
  %6530 = vmatmul.bf16.gmra.mxu0 %v2192
  %v6531 = vpop.f32.mrf.mxu0
  %v6532 = vadd.f32 %v6363, %v6531
  %v6533 = vpop.f32.mrf.mxu0
  %v6534 = vadd.f32 %v6365, %v6533
  %6535 = vmatmul.bf16.gmra.mxu0 %v2195
  %v6536 = vpop.f32.mrf.mxu0
  %v6537 = vadd.f32 %v6368, %v6536
  %v6538 = vpop.f32.mrf.mxu0
  %v6539 = vadd.f32 %v6370, %v6538
  %6540 = vmatmul.bf16.gmra.mxu0 %v2198
  %v6541 = vpop.f32.mrf.mxu0
  %v6542 = vadd.f32 %v6373, %v6541
  %v6543 = vpop.f32.mrf.mxu0
  %v6544 = vadd.f32 %v6375, %v6543
  %6545 = vmatmul.bf16.gmra.mxu0 %v2201
  %v6546 = vpop.f32.mrf.mxu0
  %v6547 = vadd.f32 %v6378, %v6546
  %v6548 = vpop.f32.mrf.mxu0
  %v6549 = vadd.f32 %v6380, %v6548
  %6550 = vmatmul.bf16.gmra.mxu0 %v2204
  %v6551 = vpop.f32.mrf.mxu0
  %v6552 = vadd.f32 %v6383, %v6551
  %v6553 = vpop.f32.mrf.mxu0
  %v6554 = vadd.f32 %v6385, %v6553
  %6555 = vmatmul.bf16.gmra.mxu0 %v2207
  %v6556 = vpop.f32.mrf.mxu0
  %v6557 = vadd.f32 %v6388, %v6556
  %v6558 = vpop.f32.mrf.mxu0
  %v6559 = vadd.f32 %v6390, %v6558
  %6560 = vmatmul.bf16.gmra.mxu0 %v2210
  %v6561 = vpop.f32.mrf.mxu0
  %v6562 = vadd.f32 %v6393, %v6561
  %v6563 = vpop.f32.mrf.mxu0
  %v6564 = vadd.f32 %v6395, %v6563
  %6565 = vmatmul.bf16.gmra.mxu0 %v2213
  %v6566 = vpop.f32.mrf.mxu0
  %v6567 = vadd.f32 %v6398, %v6566
  %v6568 = vpop.f32.mrf.mxu0
  %v6569 = vadd.f32 %v6400, %v6568
  %6570 = vmatmul.bf16.gmra.mxu0 %v2216
  %v6571 = vpop.f32.mrf.mxu0
  %v6572 = vadd.f32 %v6403, %v6571
  %v6573 = vpop.f32.mrf.mxu0
  %v6574 = vadd.f32 %v6405, %v6573
  %6575 = vmatmul.bf16.gmra.mxu0 %v2219
  %v6576 = vpop.f32.mrf.mxu0
  %v6577 = vadd.f32 %v6408, %v6576
  %v6578 = vpop.f32.mrf.mxu0
  %v6579 = vadd.f32 %v6410, %v6578
  %6580 = vmatmul.bf16.gmra.mxu0 %v2222
  %v6581 = vpop.f32.mrf.mxu0
  %v6582 = vadd.f32 %v6413, %v6581
  %v6583 = vpop.f32.mrf.mxu0
  %v6584 = vadd.f32 %v6415, %v6583
  %6585 = vmatmul.bf16.gmra.mxu0 %v2225
  %v6586 = vpop.f32.mrf.mxu0
  %v6587 = vadd.f32 %v6418, %v6586
  %v6588 = vpop.f32.mrf.mxu0
  %v6589 = vadd.f32 %v6420, %v6588
  %6590 = vdwg.mxu0
  %6591 = vmatpush.bf16.msra.mxu0 %v3879
  %6592 = vmatpush.bf16.msra.mxu0 %v3877
  %6593 = vmatpush.bf16.msra.mxu0 %v3875
  %6594 = vmatpush.bf16.msra.mxu0 %v3873
  %6595 = vmatpush.bf16.msra.mxu0 %v3871
  %6596 = vmatpush.bf16.msra.mxu0 %v3869
  %6597 = vmatpush.bf16.msra.mxu0 %v3867
  %6598 = vmatpush.bf16.msra.mxu0 %v3865
  %6599 = vmatmul.bf16.gmra.mxu0 %v2386
  %v6600 = vpop.f32.mrf.mxu0
  %v6601 = vadd.f32 %v6432, %v6600
  %v6602 = vpop.f32.mrf.mxu0
  %v6603 = vadd.f32 %v6434, %v6602
  %6604 = vmatmul.bf16.gmra.mxu0 %v2387
  %v6605 = vpop.f32.mrf.mxu0
  %v6606 = vadd.f32 %v6437, %v6605
  %v6607 = vpop.f32.mrf.mxu0
  %v6608 = vadd.f32 %v6439, %v6607
  %6609 = vmatmul.bf16.gmra.mxu0 %v2388
  %v6610 = vpop.f32.mrf.mxu0
  %v6611 = vadd.f32 %v6442, %v6610
  %v6612 = vpop.f32.mrf.mxu0
  %v6613 = vadd.f32 %v6444, %v6612
  %6614 = vmatmul.bf16.gmra.mxu0 %v2389
  %v6615 = vpop.f32.mrf.mxu0
  %v6616 = vadd.f32 %v6447, %v6615
  %v6617 = vpop.f32.mrf.mxu0
  %v6618 = vadd.f32 %v6449, %v6617
  %6619 = vmatmul.bf16.gmra.mxu0 %v2390
  %v6620 = vpop.f32.mrf.mxu0
  %v6621 = vadd.f32 %v6452, %v6620
  %v6622 = vpop.f32.mrf.mxu0
  %v6623 = vadd.f32 %v6454, %v6622
  %6624 = vmatmul.bf16.gmra.mxu0 %v2391
  %v6625 = vpop.f32.mrf.mxu0
  %v6626 = vadd.f32 %v6457, %v6625
  %v6627 = vpop.f32.mrf.mxu0
  %v6628 = vadd.f32 %v6459, %v6627
  %6629 = vmatmul.bf16.gmra.mxu0 %v2392
  %v6630 = vpop.f32.mrf.mxu0
  %v6631 = vadd.f32 %v6462, %v6630
  %v6632 = vpop.f32.mrf.mxu0
  %v6633 = vadd.f32 %v6464, %v6632
  %6634 = vmatmul.bf16.gmra.mxu0 %v2393
  %v6635 = vpop.f32.mrf.mxu0
  %v6636 = vadd.f32 %v6467, %v6635
  %v6637 = vpop.f32.mrf.mxu0
  %v6638 = vadd.f32 %v6469, %v6637
  %6639 = vmatmul.bf16.gmra.mxu0 %v2394
  %v6640 = vpop.f32.mrf.mxu0
  %v6641 = vadd.f32 %v6472, %v6640
  %v6642 = vpop.f32.mrf.mxu0
  %v6643 = vadd.f32 %v6474, %v6642
  %6644 = vmatmul.bf16.gmra.mxu0 %v2395
  %v6645 = vpop.f32.mrf.mxu0
  %v6646 = vadd.f32 %v6477, %v6645
  %v6647 = vpop.f32.mrf.mxu0
  %v6648 = vadd.f32 %v6479, %v6647
  %6649 = vmatmul.bf16.gmra.mxu0 %v2396
  %v6650 = vpop.f32.mrf.mxu0
  %v6651 = vadd.f32 %v6482, %v6650
  %v6652 = vpop.f32.mrf.mxu0
  %v6653 = vadd.f32 %v6484, %v6652
  %6654 = vmatmul.bf16.gmra.mxu0 %v2397
  %v6655 = vpop.f32.mrf.mxu0
  %v6656 = vadd.f32 %v6487, %v6655
  %v6657 = vpop.f32.mrf.mxu0
  %v6658 = vadd.f32 %v6489, %v6657
  %6659 = vmatmul.bf16.gmra.mxu0 %v2398
  %v6660 = vpop.f32.mrf.mxu0
  %v6661 = vadd.f32 %v6492, %v6660
  %v6662 = vpop.f32.mrf.mxu0
  %v6663 = vadd.f32 %v6494, %v6662
  %6664 = vmatmul.bf16.gmra.mxu0 %v2399
  %v6665 = vpop.f32.mrf.mxu0
  %v6666 = vadd.f32 %v6497, %v6665
  %v6667 = vpop.f32.mrf.mxu0
  %v6668 = vadd.f32 %v6499, %v6667
  %6669 = vmatmul.bf16.gmra.mxu0 %v2400
  %v6670 = vpop.f32.mrf.mxu0
  %v6671 = vadd.f32 %v6502, %v6670
  %v6672 = vpop.f32.mrf.mxu0
  %v6673 = vadd.f32 %v6504, %v6672
  %6674 = vmatmul.bf16.gmra.mxu0 %v2401
  %v6675 = vpop.f32.mrf.mxu0
  %v6676 = vadd.f32 %v6507, %v6675
  %v6677 = vpop.f32.mrf.mxu0
  %v6678 = vadd.f32 %v6509, %v6677
  %6679 = vmatmul.bf16.gmra.mxu0 %v2402
  %v6680 = vpop.f32.mrf.mxu0
  %v6681 = vadd.f32 %v6512, %v6680
  %v6682 = vpop.f32.mrf.mxu0
  %v6683 = vadd.f32 %v6514, %v6682
  %6684 = vmatmul.bf16.gmra.mxu0 %v2403
  %v6685 = vpop.f32.mrf.mxu0
  %v6686 = vadd.f32 %v6517, %v6685
  %v6687 = vpop.f32.mrf.mxu0
  %v6688 = vadd.f32 %v6519, %v6687
  %6689 = vmatmul.bf16.gmra.mxu0 %v2404
  %v6690 = vpop.f32.mrf.mxu0
  %v6691 = vadd.f32 %v6522, %v6690
  %v6692 = vpop.f32.mrf.mxu0
  %v6693 = vadd.f32 %v6524, %v6692
  %6694 = vmatmul.bf16.gmra.mxu0 %v2405
  %v6695 = vpop.f32.mrf.mxu0
  %v6696 = vadd.f32 %v6527, %v6695
  %v6697 = vpop.f32.mrf.mxu0
  %v6698 = vadd.f32 %v6529, %v6697
  %6699 = vmatmul.bf16.gmra.mxu0 %v2406
  %v6700 = vpop.f32.mrf.mxu0
  %v6701 = vadd.f32 %v6532, %v6700
  %v6702 = vpop.f32.mrf.mxu0
  %v6703 = vadd.f32 %v6534, %v6702
  %6704 = vmatmul.bf16.gmra.mxu0 %v2407
  %v6705 = vpop.f32.mrf.mxu0
  %v6706 = vadd.f32 %v6537, %v6705
  %v6707 = vpop.f32.mrf.mxu0
  %v6708 = vadd.f32 %v6539, %v6707
  %6709 = vmatmul.bf16.gmra.mxu0 %v2408
  %v6710 = vpop.f32.mrf.mxu0
  %v6711 = vadd.f32 %v6542, %v6710
  %v6712 = vpop.f32.mrf.mxu0
  %v6713 = vadd.f32 %v6544, %v6712
  %6714 = vmatmul.bf16.gmra.mxu0 %v2409
  %v6715 = vpop.f32.mrf.mxu0
  %v6716 = vadd.f32 %v6547, %v6715
  %v6717 = vpop.f32.mrf.mxu0
  %v6718 = vadd.f32 %v6549, %v6717
  %6719 = vmatmul.bf16.gmra.mxu0 %v2410
  %v6720 = vpop.f32.mrf.mxu0
  %v6721 = vadd.f32 %v6552, %v6720
  %v6722 = vpop.f32.mrf.mxu0
  %v6723 = vadd.f32 %v6554, %v6722
  %6724 = vmatmul.bf16.gmra.mxu0 %v2411
  %v6725 = vpop.f32.mrf.mxu0
  %v6726 = vadd.f32 %v6557, %v6725
  %v6727 = vpop.f32.mrf.mxu0
  %v6728 = vadd.f32 %v6559, %v6727
  %6729 = vmatmul.bf16.gmra.mxu0 %v2412
  %v6730 = vpop.f32.mrf.mxu0
  %v6731 = vadd.f32 %v6562, %v6730
  %v6732 = vpop.f32.mrf.mxu0
  %v6733 = vadd.f32 %v6564, %v6732
  %6734 = vmatmul.bf16.gmra.mxu0 %v2413
  %v6735 = vpop.f32.mrf.mxu0
  %v6736 = vadd.f32 %v6567, %v6735
  %v6737 = vpop.f32.mrf.mxu0
  %v6738 = vadd.f32 %v6569, %v6737
  %6739 = vmatmul.bf16.gmra.mxu0 %v2414
  %v6740 = vpop.f32.mrf.mxu0
  %v6741 = vadd.f32 %v6572, %v6740
  %v6742 = vpop.f32.mrf.mxu0
  %v6743 = vadd.f32 %v6574, %v6742
  %6744 = vmatmul.bf16.gmra.mxu0 %v2415
  %v6745 = vpop.f32.mrf.mxu0
  %v6746 = vadd.f32 %v6577, %v6745
  %v6747 = vpop.f32.mrf.mxu0
  %v6748 = vadd.f32 %v6579, %v6747
  %6749 = vmatmul.bf16.gmra.mxu0 %v2416
  %v6750 = vpop.f32.mrf.mxu0
  %v6751 = vadd.f32 %v6582, %v6750
  %v6752 = vpop.f32.mrf.mxu0
  %v6753 = vadd.f32 %v6584, %v6752
  %6754 = vmatmul.bf16.gmra.mxu0 %v2417
  %v6755 = vpop.f32.mrf.mxu0
  %v6756 = vadd.f32 %v6587, %v6755
  %v6757 = vpop.f32.mrf.mxu0
  %v6758 = vadd.f32 %v6589, %v6757
  %6759 = vdwg.mxu0
  %6760 = vmatpush.bf16.msra.mxu0 %v3895
  %6761 = vmatpush.bf16.msra.mxu0 %v3893
  %6762 = vmatpush.bf16.msra.mxu0 %v3891
  %6763 = vmatpush.bf16.msra.mxu0 %v3889
  %6764 = vmatpush.bf16.msra.mxu0 %v3887
  %6765 = vmatpush.bf16.msra.mxu0 %v3885
  %6766 = vmatpush.bf16.msra.mxu0 %v3883
  %6767 = vmatpush.bf16.msra.mxu0 %v3881
  %6768 = vmatmul.bf16.gmra.mxu0 %v2557
  %v6769 = vpop.f32.mrf.mxu0
  %v6770 = vadd.f32 %v6601, %v6769
  %v6771 = vpop.f32.mrf.mxu0
  %v6772 = vadd.f32 %v6603, %v6771
  %6773 = vmatmul.bf16.gmra.mxu0 %v2569
  %v6774 = vpop.f32.mrf.mxu0
  %v6775 = vadd.f32 %v6606, %v6774
  %v6776 = vpop.f32.mrf.mxu0
  %v6777 = vadd.f32 %v6608, %v6776
  %6778 = vmatmul.bf16.gmra.mxu0 %v2581
  %v6779 = vpop.f32.mrf.mxu0
  %v6780 = vadd.f32 %v6611, %v6779
  %v6781 = vpop.f32.mrf.mxu0
  %v6782 = vadd.f32 %v6613, %v6781
  %6783 = vmatmul.bf16.gmra.mxu0 %v2593
  %v6784 = vpop.f32.mrf.mxu0
  %v6785 = vadd.f32 %v6616, %v6784
  %v6786 = vpop.f32.mrf.mxu0
  %v6787 = vadd.f32 %v6618, %v6786
  %6788 = vmatmul.bf16.gmra.mxu0 %v2605
  %v6789 = vpop.f32.mrf.mxu0
  %v6790 = vadd.f32 %v6621, %v6789
  %v6791 = vpop.f32.mrf.mxu0
  %v6792 = vadd.f32 %v6623, %v6791
  %6793 = vmatmul.bf16.gmra.mxu0 %v2617
  %v6794 = vpop.f32.mrf.mxu0
  %v6795 = vadd.f32 %v6626, %v6794
  %v6796 = vpop.f32.mrf.mxu0
  %v6797 = vadd.f32 %v6628, %v6796
  %6798 = vmatmul.bf16.gmra.mxu0 %v2629
  %v6799 = vpop.f32.mrf.mxu0
  %v6800 = vadd.f32 %v6631, %v6799
  %v6801 = vpop.f32.mrf.mxu0
  %v6802 = vadd.f32 %v6633, %v6801
  %6803 = vmatmul.bf16.gmra.mxu0 %v2641
  %v6804 = vpop.f32.mrf.mxu0
  %v6805 = vadd.f32 %v6636, %v6804
  %v6806 = vpop.f32.mrf.mxu0
  %v6807 = vadd.f32 %v6638, %v6806
  %6808 = vmatmul.bf16.gmra.mxu0 %v2653
  %v6809 = vpop.f32.mrf.mxu0
  %v6810 = vadd.f32 %v6641, %v6809
  %v6811 = vpop.f32.mrf.mxu0
  %v6812 = vadd.f32 %v6643, %v6811
  %6813 = vmatmul.bf16.gmra.mxu0 %v2665
  %v6814 = vpop.f32.mrf.mxu0
  %v6815 = vadd.f32 %v6646, %v6814
  %v6816 = vpop.f32.mrf.mxu0
  %v6817 = vadd.f32 %v6648, %v6816
  %6818 = vmatmul.bf16.gmra.mxu0 %v2677
  %v6819 = vpop.f32.mrf.mxu0
  %v6820 = vadd.f32 %v6651, %v6819
  %v6821 = vpop.f32.mrf.mxu0
  %v6822 = vadd.f32 %v6653, %v6821
  %6823 = vmatmul.bf16.gmra.mxu0 %v2689
  %v6824 = vpop.f32.mrf.mxu0
  %v6825 = vadd.f32 %v6656, %v6824
  %v6826 = vpop.f32.mrf.mxu0
  %v6827 = vadd.f32 %v6658, %v6826
  %6828 = vmatmul.bf16.gmra.mxu0 %v2701
  %v6829 = vpop.f32.mrf.mxu0
  %v6830 = vadd.f32 %v6661, %v6829
  %v6831 = vpop.f32.mrf.mxu0
  %v6832 = vadd.f32 %v6663, %v6831
  %6833 = vmatmul.bf16.gmra.mxu0 %v2713
  %v6834 = vpop.f32.mrf.mxu0
  %v6835 = vadd.f32 %v6666, %v6834
  %v6836 = vpop.f32.mrf.mxu0
  %v6837 = vadd.f32 %v6668, %v6836
  %6838 = vmatmul.bf16.gmra.mxu0 %v2725
  %v6839 = vpop.f32.mrf.mxu0
  %v6840 = vadd.f32 %v6671, %v6839
  %v6841 = vpop.f32.mrf.mxu0
  %v6842 = vadd.f32 %v6673, %v6841
  %6843 = vmatmul.bf16.gmra.mxu0 %v2737
  %v6844 = vpop.f32.mrf.mxu0
  %v6845 = vadd.f32 %v6676, %v6844
  %v6846 = vpop.f32.mrf.mxu0
  %v6847 = vadd.f32 %v6678, %v6846
  %6848 = vmatmul.bf16.gmra.mxu0 %v2749
  %v6849 = vpop.f32.mrf.mxu0
  %v6850 = vadd.f32 %v6681, %v6849
  %v6851 = vpop.f32.mrf.mxu0
  %v6852 = vadd.f32 %v6683, %v6851
  %6853 = vmatmul.bf16.gmra.mxu0 %v2761
  %v6854 = vpop.f32.mrf.mxu0
  %v6855 = vadd.f32 %v6686, %v6854
  %v6856 = vpop.f32.mrf.mxu0
  %v6857 = vadd.f32 %v6688, %v6856
  %6858 = vmatmul.bf16.gmra.mxu0 %v2773
  %v6859 = vpop.f32.mrf.mxu0
  %v6860 = vadd.f32 %v6691, %v6859
  %v6861 = vpop.f32.mrf.mxu0
  %v6862 = vadd.f32 %v6693, %v6861
  %6863 = vmatmul.bf16.gmra.mxu0 %v2785
  %v6864 = vpop.f32.mrf.mxu0
  %v6865 = vadd.f32 %v6696, %v6864
  %v6866 = vpop.f32.mrf.mxu0
  %v6867 = vadd.f32 %v6698, %v6866
  %6868 = vmatmul.bf16.gmra.mxu0 %v2797
  %v6869 = vpop.f32.mrf.mxu0
  %v6870 = vadd.f32 %v6701, %v6869
  %v6871 = vpop.f32.mrf.mxu0
  %v6872 = vadd.f32 %v6703, %v6871
  %6873 = vmatmul.bf16.gmra.mxu0 %v2809
  %v6874 = vpop.f32.mrf.mxu0
  %v6875 = vadd.f32 %v6706, %v6874
  %v6876 = vpop.f32.mrf.mxu0
  %v6877 = vadd.f32 %v6708, %v6876
  %6878 = vmatmul.bf16.gmra.mxu0 %v2821
  %v6879 = vpop.f32.mrf.mxu0
  %v6880 = vadd.f32 %v6711, %v6879
  %v6881 = vpop.f32.mrf.mxu0
  %v6882 = vadd.f32 %v6713, %v6881
  %6883 = vmatmul.bf16.gmra.mxu0 %v2833
  %v6884 = vpop.f32.mrf.mxu0
  %v6885 = vadd.f32 %v6716, %v6884
  %v6886 = vpop.f32.mrf.mxu0
  %v6887 = vadd.f32 %v6718, %v6886
  %6888 = vmatmul.bf16.gmra.mxu0 %v2845
  %v6889 = vpop.f32.mrf.mxu0
  %v6890 = vadd.f32 %v6721, %v6889
  %v6891 = vpop.f32.mrf.mxu0
  %v6892 = vadd.f32 %v6723, %v6891
  %6893 = vmatmul.bf16.gmra.mxu0 %v2857
  %v6894 = vpop.f32.mrf.mxu0
  %v6895 = vadd.f32 %v6726, %v6894
  %v6896 = vpop.f32.mrf.mxu0
  %v6897 = vadd.f32 %v6728, %v6896
  %6898 = vmatmul.bf16.gmra.mxu0 %v2869
  %v6899 = vpop.f32.mrf.mxu0
  %v6900 = vadd.f32 %v6731, %v6899
  %v6901 = vpop.f32.mrf.mxu0
  %v6902 = vadd.f32 %v6733, %v6901
  %6903 = vmatmul.bf16.gmra.mxu0 %v2881
  %v6904 = vpop.f32.mrf.mxu0
  %v6905 = vadd.f32 %v6736, %v6904
  %v6906 = vpop.f32.mrf.mxu0
  %v6907 = vadd.f32 %v6738, %v6906
  %6908 = vmatmul.bf16.gmra.mxu0 %v2893
  %v6909 = vpop.f32.mrf.mxu0
  %v6910 = vadd.f32 %v6741, %v6909
  %v6911 = vpop.f32.mrf.mxu0
  %v6912 = vadd.f32 %v6743, %v6911
  %6913 = vmatmul.bf16.gmra.mxu0 %v2905
  %v6914 = vpop.f32.mrf.mxu0
  %v6915 = vadd.f32 %v6746, %v6914
  %v6916 = vpop.f32.mrf.mxu0
  %v6917 = vadd.f32 %v6748, %v6916
  %6918 = vmatmul.bf16.gmra.mxu0 %v2917
  %v6919 = vpop.f32.mrf.mxu0
  %v6920 = vadd.f32 %v6751, %v6919
  %v6921 = vpop.f32.mrf.mxu0
  %v6922 = vadd.f32 %v6753, %v6921
  %6923 = vmatmul.bf16.gmra.mxu0 %v2929
  %v6924 = vpop.f32.mrf.mxu0
  %v6925 = vadd.f32 %v6756, %v6924
  %v6926 = vpop.f32.mrf.mxu0
  %v6927 = vadd.f32 %v6758, %v6926
  %6928 = vdwg.mxu0
  %6929 = vmatpush.bf16.msra.mxu0 %v3911
  %6930 = vmatpush.bf16.msra.mxu0 %v3909
  %6931 = vmatpush.bf16.msra.mxu0 %v3907
  %6932 = vmatpush.bf16.msra.mxu0 %v3905
  %6933 = vmatpush.bf16.msra.mxu0 %v3903
  %6934 = vmatpush.bf16.msra.mxu0 %v3901
  %6935 = vmatpush.bf16.msra.mxu0 %v3899
  %6936 = vmatpush.bf16.msra.mxu0 %v3897
  %6937 = vmatmul.bf16.gmra.mxu0 %v3060
  %v6938 = vpop.f32.mrf.mxu0
  %v6939 = vadd.f32 %v6770, %v6938
  %v6940 = vpop.f32.mrf.mxu0
  %v6941 = vadd.f32 %v6772, %v6940
  %6942 = vmatmul.bf16.gmra.mxu0 %v3063
  %v6943 = vpop.f32.mrf.mxu0
  %v6944 = vadd.f32 %v6775, %v6943
  %v6945 = vpop.f32.mrf.mxu0
  %v6946 = vadd.f32 %v6777, %v6945
  %6947 = vmatmul.bf16.gmra.mxu0 %v3066
  %v6948 = vpop.f32.mrf.mxu0
  %v6949 = vadd.f32 %v6780, %v6948
  %v6950 = vpop.f32.mrf.mxu0
  %v6951 = vadd.f32 %v6782, %v6950
  %6952 = vmatmul.bf16.gmra.mxu0 %v3069
  %v6953 = vpop.f32.mrf.mxu0
  %v6954 = vadd.f32 %v6785, %v6953
  %v6955 = vpop.f32.mrf.mxu0
  %v6956 = vadd.f32 %v6787, %v6955
  %6957 = vmatmul.bf16.gmra.mxu0 %v3072
  %v6958 = vpop.f32.mrf.mxu0
  %v6959 = vadd.f32 %v6790, %v6958
  %v6960 = vpop.f32.mrf.mxu0
  %v6961 = vadd.f32 %v6792, %v6960
  %6962 = vmatmul.bf16.gmra.mxu0 %v3075
  %v6963 = vpop.f32.mrf.mxu0
  %v6964 = vadd.f32 %v6795, %v6963
  %v6965 = vpop.f32.mrf.mxu0
  %v6966 = vadd.f32 %v6797, %v6965
  %6967 = vmatmul.bf16.gmra.mxu0 %v3078
  %v6968 = vpop.f32.mrf.mxu0
  %v6969 = vadd.f32 %v6800, %v6968
  %v6970 = vpop.f32.mrf.mxu0
  %v6971 = vadd.f32 %v6802, %v6970
  %6972 = vmatmul.bf16.gmra.mxu0 %v3081
  %v6973 = vpop.f32.mrf.mxu0
  %v6974 = vadd.f32 %v6805, %v6973
  %v6975 = vpop.f32.mrf.mxu0
  %v6976 = vadd.f32 %v6807, %v6975
  %6977 = vmatmul.bf16.gmra.mxu0 %v3084
  %v6978 = vpop.f32.mrf.mxu0
  %v6979 = vadd.f32 %v6810, %v6978
  %v6980 = vpop.f32.mrf.mxu0
  %v6981 = vadd.f32 %v6812, %v6980
  %6982 = vmatmul.bf16.gmra.mxu0 %v3087
  %v6983 = vpop.f32.mrf.mxu0
  %v6984 = vadd.f32 %v6815, %v6983
  %v6985 = vpop.f32.mrf.mxu0
  %v6986 = vadd.f32 %v6817, %v6985
  %6987 = vmatmul.bf16.gmra.mxu0 %v3090
  %v6988 = vpop.f32.mrf.mxu0
  %v6989 = vadd.f32 %v6820, %v6988
  %v6990 = vpop.f32.mrf.mxu0
  %v6991 = vadd.f32 %v6822, %v6990
  %6992 = vmatmul.bf16.gmra.mxu0 %v3093
  %v6993 = vpop.f32.mrf.mxu0
  %v6994 = vadd.f32 %v6825, %v6993
  %v6995 = vpop.f32.mrf.mxu0
  %v6996 = vadd.f32 %v6827, %v6995
  %6997 = vmatmul.bf16.gmra.mxu0 %v3096
  %v6998 = vpop.f32.mrf.mxu0
  %v6999 = vadd.f32 %v6830, %v6998
  %v7000 = vpop.f32.mrf.mxu0
  %v7001 = vadd.f32 %v6832, %v7000
  %7002 = vmatmul.bf16.gmra.mxu0 %v3099
  %v7003 = vpop.f32.mrf.mxu0
  %v7004 = vadd.f32 %v6835, %v7003
  %v7005 = vpop.f32.mrf.mxu0
  %v7006 = vadd.f32 %v6837, %v7005
  %7007 = vmatmul.bf16.gmra.mxu0 %v3102
  %v7008 = vpop.f32.mrf.mxu0
  %v7009 = vadd.f32 %v6840, %v7008
  %v7010 = vpop.f32.mrf.mxu0
  %v7011 = vadd.f32 %v6842, %v7010
  %7012 = vmatmul.bf16.gmra.mxu0 %v3105
  %v7013 = vpop.f32.mrf.mxu0
  %v7014 = vadd.f32 %v6845, %v7013
  %v7015 = vpop.f32.mrf.mxu0
  %v7016 = vadd.f32 %v6847, %v7015
  %7017 = vmatmul.bf16.gmra.mxu0 %v3108
  %v7018 = vpop.f32.mrf.mxu0
  %v7019 = vadd.f32 %v6850, %v7018
  %v7020 = vpop.f32.mrf.mxu0
  %v7021 = vadd.f32 %v6852, %v7020
  %7022 = vmatmul.bf16.gmra.mxu0 %v3111
  %v7023 = vpop.f32.mrf.mxu0
  %v7024 = vadd.f32 %v6855, %v7023
  %v7025 = vpop.f32.mrf.mxu0
  %v7026 = vadd.f32 %v6857, %v7025
  %7027 = vmatmul.bf16.gmra.mxu0 %v3114
  %v7028 = vpop.f32.mrf.mxu0
  %v7029 = vadd.f32 %v6860, %v7028
  %v7030 = vpop.f32.mrf.mxu0
  %v7031 = vadd.f32 %v6862, %v7030
  %7032 = vmatmul.bf16.gmra.mxu0 %v3117
  %v7033 = vpop.f32.mrf.mxu0
  %v7034 = vadd.f32 %v6865, %v7033
  %v7035 = vpop.f32.mrf.mxu0
  %v7036 = vadd.f32 %v6867, %v7035
  %7037 = vmatmul.bf16.gmra.mxu0 %v3120
  %v7038 = vpop.f32.mrf.mxu0
  %v7039 = vadd.f32 %v6870, %v7038
  %v7040 = vpop.f32.mrf.mxu0
  %v7041 = vadd.f32 %v6872, %v7040
  %7042 = vmatmul.bf16.gmra.mxu0 %v3123
  %v7043 = vpop.f32.mrf.mxu0
  %v7044 = vadd.f32 %v6875, %v7043
  %v7045 = vpop.f32.mrf.mxu0
  %v7046 = vadd.f32 %v6877, %v7045
  %7047 = vmatmul.bf16.gmra.mxu0 %v3126
  %v7048 = vpop.f32.mrf.mxu0
  %v7049 = vadd.f32 %v6880, %v7048
  %v7050 = vpop.f32.mrf.mxu0
  %v7051 = vadd.f32 %v6882, %v7050
  %7052 = vmatmul.bf16.gmra.mxu0 %v3129
  %v7053 = vpop.f32.mrf.mxu0
  %v7054 = vadd.f32 %v6885, %v7053
  %v7055 = vpop.f32.mrf.mxu0
  %v7056 = vadd.f32 %v6887, %v7055
  %7057 = vmatmul.bf16.gmra.mxu0 %v3132
  %v7058 = vpop.f32.mrf.mxu0
  %v7059 = vadd.f32 %v6890, %v7058
  %v7060 = vpop.f32.mrf.mxu0
  %v7061 = vadd.f32 %v6892, %v7060
  %7062 = vmatmul.bf16.gmra.mxu0 %v3135
  %v7063 = vpop.f32.mrf.mxu0
  %v7064 = vadd.f32 %v6895, %v7063
  %v7065 = vpop.f32.mrf.mxu0
  %v7066 = vadd.f32 %v6897, %v7065
  %7067 = vmatmul.bf16.gmra.mxu0 %v3138
  %v7068 = vpop.f32.mrf.mxu0
  %v7069 = vadd.f32 %v6900, %v7068
  %v7070 = vpop.f32.mrf.mxu0
  %v7071 = vadd.f32 %v6902, %v7070
  %7072 = vmatmul.bf16.gmra.mxu0 %v3141
  %v7073 = vpop.f32.mrf.mxu0
  %v7074 = vadd.f32 %v6905, %v7073
  %v7075 = vpop.f32.mrf.mxu0
  %v7076 = vadd.f32 %v6907, %v7075
  %7077 = vmatmul.bf16.gmra.mxu0 %v3144
  %v7078 = vpop.f32.mrf.mxu0
  %v7079 = vadd.f32 %v6910, %v7078
  %v7080 = vpop.f32.mrf.mxu0
  %v7081 = vadd.f32 %v6912, %v7080
  %7082 = vmatmul.bf16.gmra.mxu0 %v3147
  %v7083 = vpop.f32.mrf.mxu0
  %v7084 = vadd.f32 %v6915, %v7083
  %v7085 = vpop.f32.mrf.mxu0
  %v7086 = vadd.f32 %v6917, %v7085
  %7087 = vmatmul.bf16.gmra.mxu0 %v3150
  %v7088 = vpop.f32.mrf.mxu0
  %v7089 = vadd.f32 %v6920, %v7088
  %v7090 = vpop.f32.mrf.mxu0
  %v7091 = vadd.f32 %v6922, %v7090
  %7092 = vmatmul.bf16.gmra.mxu0 %v3153
  %v7093 = vpop.f32.mrf.mxu0
  %v7094 = vadd.f32 %v6925, %v7093
  %v7095 = vpop.f32.mrf.mxu0
  %v7096 = vadd.f32 %v6927, %v7095
  %7097 = vdwg.mxu0
  %v7098 = vpack.c.bf16 %v6939, %v5418
  %v7099 = vpack.c.bf16 %v6941, %v5420
  %v7100 = vpack.c.bf16 %v6944, %v5423
  %v7101 = vpack.c.bf16 %v6946, %v5425
  %v7102 = vpack.c.bf16 %v6949, %v5428
  %v7103 = vpack.c.bf16 %v6951, %v5430
  %v7104 = vpack.c.bf16 %v6954, %v5433
  %v7105 = vpack.c.bf16 %v6956, %v5435
  %v7106 = vpack.c.bf16 %v6959, %v5438
  %v7107 = vpack.c.bf16 %v6961, %v5440
  %v7108 = vpack.c.bf16 %v6964, %v5443
  %v7109 = vpack.c.bf16 %v6966, %v5445
  %v7110 = vpack.c.bf16 %v6969, %v5448
  %v7111 = vpack.c.bf16 %v6971, %v5450
  %v7112 = vpack.c.bf16 %v6974, %v5453
  %v7113 = vpack.c.bf16 %v6976, %v5455
  %v7114 = vpack.c.bf16 %v6979, %v5458
  %v7115 = vpack.c.bf16 %v6981, %v5460
  %v7116 = vpack.c.bf16 %v6984, %v5463
  %v7117 = vpack.c.bf16 %v6986, %v5465
  %v7118 = vpack.c.bf16 %v6989, %v5468
  %v7119 = vpack.c.bf16 %v6991, %v5470
  %v7120 = vpack.c.bf16 %v6994, %v5473
  %v7121 = vpack.c.bf16 %v6996, %v5475
  %v7122 = vpack.c.bf16 %v6999, %v5478
  %v7123 = vpack.c.bf16 %v7001, %v5480
  %v7124 = vpack.c.bf16 %v7004, %v5483
  %v7125 = vpack.c.bf16 %v7006, %v5485
  %v7126 = vpack.c.bf16 %v7009, %v5488
  %v7127 = vpack.c.bf16 %v7011, %v5490
  %v7128 = vpack.c.bf16 %v7014, %v5493
  %v7129 = vpack.c.bf16 %v7016, %v5495
  %v7130 = vpack.c.bf16 %v7019, %v5498
  %v7131 = vpack.c.bf16 %v7021, %v5500
  %v7132 = vpack.c.bf16 %v7024, %v5503
  %v7133 = vpack.c.bf16 %v7026, %v5505
  %v7134 = vpack.c.bf16 %v7029, %v5508
  %v7135 = vpack.c.bf16 %v7031, %v5510
  %v7136 = vpack.c.bf16 %v7034, %v5513
  %v7137 = vpack.c.bf16 %v7036, %v5515
  %v7138 = vpack.c.bf16 %v7039, %v5518
  %v7139 = vpack.c.bf16 %v7041, %v5520
  %v7140 = vpack.c.bf16 %v7044, %v5523
  %v7141 = vpack.c.bf16 %v7046, %v5525
  %v7142 = vpack.c.bf16 %v7049, %v5528
  %v7143 = vpack.c.bf16 %v7051, %v5530
  %v7144 = vpack.c.bf16 %v7054, %v5533
  %v7145 = vpack.c.bf16 %v7056, %v5535
  %v7146 = vpack.c.bf16 %v7059, %v5538
  %v7147 = vpack.c.bf16 %v7061, %v5540
  %v7148 = vpack.c.bf16 %v7064, %v5543
  %v7149 = vpack.c.bf16 %v7066, %v5545
  %v7150 = vpack.c.bf16 %v7069, %v5548
  %v7151 = vpack.c.bf16 %v7071, %v5550
  %v7152 = vpack.c.bf16 %v7074, %v5553
  %v7153 = vpack.c.bf16 %v7076, %v5555
  %v7154 = vpack.c.bf16 %v7079, %v5558
  %v7155 = vpack.c.bf16 %v7081, %v5560
  %v7156 = vpack.c.bf16 %v7084, %v5563
  %v7157 = vpack.c.bf16 %v7086, %v5565
  %v7158 = vpack.c.bf16 %v7089, %v5568
  %v7159 = vpack.c.bf16 %v7091, %v5570
  %v7160 = vpack.c.bf16 %v7094, %v5573
  %v7161 = vpack.c.bf16 %v7096, %v5575
  %7162 = vst [vmem:[%s3] sm:$0xff] %v7098
  %7163 = vst [vmem:[%s3 + $0x8] sm:$0xff] %v7099
  %7164 = vst [vmem:[%s3 + $0x10] sm:$0xff] %v7100
  %7165 = vst [vmem:[%s3 + $0x18] sm:$0xff] %v7101
  %7166 = vst [vmem:[%s3 + $0x20] sm:$0xff] %v7102
  %7167 = vst [vmem:[%s3 + $0x28] sm:$0xff] %v7103
  %7168 = vst [vmem:[%s3 + $0x30] sm:$0xff] %v7104
  %7169 = vst [vmem:[%s3 + $0x38] sm:$0xff] %v7105
  %7170 = vst [vmem:[%s3 + $0x40] sm:$0xff] %v7106
  %7171 = vst [vmem:[%s3 + $0x48] sm:$0xff] %v7107
  %7172 = vst [vmem:[%s3 + $0x50] sm:$0xff] %v7108
  %7173 = vst [vmem:[%s3 + $0x58] sm:$0xff] %v7109
  %7174 = vst [vmem:[%s3 + $0x60] sm:$0xff] %v7110
  %7175 = vst [vmem:[%s3 + $0x68] sm:$0xff] %v7111
  %7176 = vst [vmem:[%s3 + $0x70] sm:$0xff] %v7112
  %7177 = vst [vmem:[%s3 + $0x78] sm:$0xff] %v7113
  %7178 = vst [vmem:[%s3 + $0x80] sm:$0xff] %v7114
  %7179 = vst [vmem:[%s3 + $0x88] sm:$0xff] %v7115
  %7180 = vst [vmem:[%s3 + $0x90] sm:$0xff] %v7116
  %7181 = vst [vmem:[%s3 + $0x98] sm:$0xff] %v7117
  %7182 = vst [vmem:[%s3 + $0xa0] sm:$0xff] %v7118
  %7183 = vst [vmem:[%s3 + $0xa8] sm:$0xff] %v7119
  %7184 = vst [vmem:[%s3 + $0xb0] sm:$0xff] %v7120
  %7185 = vst [vmem:[%s3 + $0xb8] sm:$0xff] %v7121
  %7186 = vst [vmem:[%s3 + $0xc0] sm:$0xff] %v7122
  %7187 = vst [vmem:[%s3 + $0xc8] sm:$0xff] %v7123
  %7188 = vst [vmem:[%s3 + $0xd0] sm:$0xff] %v7124
  %7189 = vst [vmem:[%s3 + $0xd8] sm:$0xff] %v7125
  %7190 = vst [vmem:[%s3 + $0xe0] sm:$0xff] %v7126
  %7191 = vst [vmem:[%s3 + $0xe8] sm:$0xff] %v7127
  %7192 = vst [vmem:[%s3 + $0xf0] sm:$0xff] %v7128
  %7193 = vst [vmem:[%s3 + $0xf8] sm:$0xff] %v7129
  %7194 = vst [vmem:[%s3 + $0x100] sm:$0xff] %v7130
  %7195 = vst [vmem:[%s3 + $0x108] sm:$0xff] %v7131
  %7196 = vst [vmem:[%s3 + $0x110] sm:$0xff] %v7132
  %7197 = vst [vmem:[%s3 + $0x118] sm:$0xff] %v7133
  %7198 = vst [vmem:[%s3 + $0x120] sm:$0xff] %v7134
  %7199 = vst [vmem:[%s3 + $0x128] sm:$0xff] %v7135
  %7200 = vst [vmem:[%s3 + $0x130] sm:$0xff] %v7136
  %7201 = vst [vmem:[%s3 + $0x138] sm:$0xff] %v7137
  %7202 = vst [vmem:[%s3 + $0x140] sm:$0xff] %v7138
  %7203 = vst [vmem:[%s3 + $0x148] sm:$0xff] %v7139
  %7204 = vst [vmem:[%s3 + $0x150] sm:$0xff] %v7140
  %7205 = vst [vmem:[%s3 + $0x158] sm:$0xff] %v7141
  %7206 = vst [vmem:[%s3 + $0x160] sm:$0xff] %v7142
  %7207 = vst [vmem:[%s3 + $0x168] sm:$0xff] %v7143
  %7208 = vst [vmem:[%s3 + $0x170] sm:$0xff] %v7144
  %7209 = vst [vmem:[%s3 + $0x178] sm:$0xff] %v7145
  %7210 = vst [vmem:[%s3 + $0x180] sm:$0xff] %v7146
  %7211 = vst [vmem:[%s3 + $0x188] sm:$0xff] %v7147
  %7212 = vst [vmem:[%s3 + $0x190] sm:$0xff] %v7148
  %7213 = vst [vmem:[%s3 + $0x198] sm:$0xff] %v7149
  %7214 = vst [vmem:[%s3 + $0x1a0] sm:$0xff] %v7150
  %7215 = vst [vmem:[%s3 + $0x1a8] sm:$0xff] %v7151
  %7216 = vst [vmem:[%s3 + $0x1b0] sm:$0xff] %v7152
  %7217 = vst [vmem:[%s3 + $0x1b8] sm:$0xff] %v7153
  %7218 = vst [vmem:[%s3 + $0x1c0] sm:$0xff] %v7154
  %7219 = vst [vmem:[%s3 + $0x1c8] sm:$0xff] %v7155
  %7220 = vst [vmem:[%s3 + $0x1d0] sm:$0xff] %v7156
  %7221 = vst [vmem:[%s3 + $0x1d8] sm:$0xff] %v7157
  %7222 = vst [vmem:[%s3 + $0x1e0] sm:$0xff] %v7158
  %7223 = vst [vmem:[%s3 + $0x1e8] sm:$0xff] %v7159
  %7224 = vst [vmem:[%s3 + $0x1f0] sm:$0xff] %v7160
  %7225 = vst [vmem:[%s3 + $0x1f8] sm:$0xff] %v7161
  // Predicated region
  $region14: #{resnet_forward_pallas.2} parent=0 // pred_check
    _
  $region15: #{resnet_forward_pallas.2} parent=0 // pred_check_branch
    %7227 = sbr.rel (0) target = $region17
  $region16: #{resnet_forward_pallas.2} parent=0 // pred_region
    _
  $region17: #{resnet_forward_pallas.2} parent=0 // pred_fallthru
    _
  // Predicated region
  $region18: #{resnet_forward_pallas.2} parent=0 // pred_check
    _
  $region19: #{resnet_forward_pallas.2} parent=0 // pred_check_branch
    %7229 = sbr.rel (0) target = $region21
  $region20: #{resnet_forward_pallas.2} parent=0 // pred_region
    _
  $region21: #{resnet_forward_pallas.2} parent=0 // pred_fallthru
    _

// kernel: resnet_forward_pallas.3
$region0: #{resnet_forward_pallas.3}
  #allocation0 [shape = 'u32[]', space=smem, size = 0x4, offset = 0x4, fixed_abs, tag = 'smem constant byte address 0x4 - core index']
  #allocation1 [shape = 'u32[72,128]{1,0:T(1,128)}', space=vmem, size = 0x9000, scoped, tag = 'internal scratch']
  #allocation2 [shape = 'bf16[2,18,18,128]{3,2,1,0:T(8,128)(2,1)}', space=vmem, size = 0x36000, scoped, tag = 'scratch operand']
  %s0 = inlined_call_operand.vmem [shape: bf16[512,128], index: 0, kind: input, shape index: {}]
  %s1 = inlined_call_operand.vmem [shape: bf16[512,128], index: 1, kind: input, shape index: {}]
  %s2 = inlined_call_operand.vmem [shape: bf16[1152,128], index: 2, kind: input, shape index: {}]
  %s3 = inlined_call_operand.vmem [shape: f32[1,128], index: 3, kind: input, shape index: {}]
  %s4 = inlined_call_operand.vmem [shape: f32[1,128], index: 4, kind: input, shape index: {}]
  %s5 = inlined_call_operand.vmem [shape: f32[1,128], index: 5, kind: input, shape index: {}]
  %s6 = inlined_call_operand.vmem [shape: f32[1,128], index: 6, kind: input, shape index: {}]
  %s7 = inlined_call_operand.vmem [shape: f32[512,128], index: 7, kind: output, shape index: {}]
  %s8 = sld [smem:[#allocation0]]
  $region38: #{resnet_forward_pallas.3} parent=0
    _
  %s10 = ssub.s32 1, %s8
  %s11 = scalar_select 0, %s10, %s8
  // Predicated region
  $region2: #{resnet_forward_pallas.3} parent=0 // pred_check
    _
  $region3: #{resnet_forward_pallas.3} parent=0 // pred_check_branch
    %13 = sbr.rel (0) target = $region5
  $region4: #{resnet_forward_pallas.3} parent=0 // pred_region
    _
  $region5: #{resnet_forward_pallas.3} parent=0 // pred_fallthru
    _
  // Predicated region
  $region6: #{resnet_forward_pallas.3} parent=0 // pred_check
    _
  $region7: #{resnet_forward_pallas.3} parent=0 // pred_check_branch
    %15 = sbr.rel (0) target = $region9
  $region8: #{resnet_forward_pallas.3} parent=0 // pred_region
    _
  $region9: #{resnet_forward_pallas.3} parent=0 // pred_fallthru
    _
  // Predicated region
  $region10: #{resnet_forward_pallas.3} parent=0 // pred_check
    _
  $region11: #{resnet_forward_pallas.3} parent=0 // pred_check_branch
    %17 = sbr.rel (0) target = $region13
  $region12: #{resnet_forward_pallas.3} parent=0 // pred_region
    _
  $region13: #{resnet_forward_pallas.3} parent=0 // pred_fallthru
    _
  // Predicated region
  $region14: #{resnet_forward_pallas.3} parent=0 // pred_check
    _
  $region15: #{resnet_forward_pallas.3} parent=0 // pred_check_branch
    %19 = sbr.rel (0) target = $region17
  $region16: #{resnet_forward_pallas.3} parent=0 // pred_region
    _
  $region17: #{resnet_forward_pallas.3} parent=0 // pred_fallthru
    _
  // Predicated region
  $region18: #{resnet_forward_pallas.3} parent=0 // pred_check
    _
  $region19: #{resnet_forward_pallas.3} parent=0 // pred_check_branch
    %21 = sbr.rel (0) target = $region21
  $region20: #{resnet_forward_pallas.3} parent=0 // pred_region
    _
  $region21: #{resnet_forward_pallas.3} parent=0 // pred_fallthru
    _
  // Predicated region
  $region22: #{resnet_forward_pallas.3} parent=0 // pred_check
    _
  $region23: #{resnet_forward_pallas.3} parent=0 // pred_check_branch
    %23 = sbr.rel (0) target = $region25
  $region24: #{resnet_forward_pallas.3} parent=0 // pred_region
    _
  $region25: #{resnet_forward_pallas.3} parent=0 // pred_fallthru
    _
  // Predicated region
  $region26: #{resnet_forward_pallas.3} parent=0 // pred_check
    _
  $region27: #{resnet_forward_pallas.3} parent=0 // pred_check_branch
    %25 = sbr.rel (0) target = $region29
  $region28: #{resnet_forward_pallas.3} parent=0 // pred_region
    _
  $region29: #{resnet_forward_pallas.3} parent=0 // pred_fallthru
    _
  %v27 = vld [vmem:[%s0] sm:$0xf]
  %v28 = vld [vmem:[%s0 + $0x4] sm:$0xf]
  %v29 = vld [vmem:[%s0 + $0x8] sm:$0xf]
  %v30 = vld [vmem:[%s0 + $0xc] sm:$0xf]
  %v31 = vld [vmem:[%s0 + $0x10] sm:$0xf]
  %v32 = vld [vmem:[%s0 + $0x14] sm:$0xf]
  %v33 = vld [vmem:[%s0 + $0x18] sm:$0xf]
  %v34 = vld [vmem:[%s0 + $0x1c] sm:$0xf]
  %v35 = vld [vmem:[%s0 + $0x20] sm:$0xf]
  %v36 = vld [vmem:[%s0 + $0x24] sm:$0xf]
  %v37 = vld [vmem:[%s0 + $0x28] sm:$0xf]
  %v38 = vld [vmem:[%s0 + $0x2c] sm:$0xf]
  %v39 = vld [vmem:[%s0 + $0x30] sm:$0xf]
  %v40 = vld [vmem:[%s0 + $0x34] sm:$0xf]
  %v41 = vld [vmem:[%s0 + $0x38] sm:$0xf]
  %v42 = vld [vmem:[%s0 + $0x3c] sm:$0xf]
  %v43 = vld [vmem:[%s0 + $0x40] sm:$0xf]
  %v44 = vld [vmem:[%s0 + $0x44] sm:$0xf]
  %v45 = vld [vmem:[%s0 + $0x48] sm:$0xf]
  %v46 = vld [vmem:[%s0 + $0x4c] sm:$0xf]
  %v47 = vld [vmem:[%s0 + $0x50] sm:$0xf]
  %v48 = vld [vmem:[%s0 + $0x54] sm:$0xf]
  %v49 = vld [vmem:[%s0 + $0x58] sm:$0xf]
  %v50 = vld [vmem:[%s0 + $0x5c] sm:$0xf]
  %v51 = vld [vmem:[%s0 + $0x60] sm:$0xf]
  %v52 = vld [vmem:[%s0 + $0x64] sm:$0xf]
  %v53 = vld [vmem:[%s0 + $0x68] sm:$0xf]
  %v54 = vld [vmem:[%s0 + $0x6c] sm:$0xf]
  %v55 = vld [vmem:[%s0 + $0x70] sm:$0xf]
  %v56 = vld [vmem:[%s0 + $0x74] sm:$0xf]
  %v57 = vld [vmem:[%s0 + $0x78] sm:$0xf]
  %v58 = vld [vmem:[%s0 + $0x7c] sm:$0xf]
  %v59 = vld [vmem:[%s0 + $0x80] sm:$0xf]
  %v60 = vld [vmem:[%s0 + $0x84] sm:$0xf]
  %v61 = vld [vmem:[%s0 + $0x88] sm:$0xf]
  %v62 = vld [vmem:[%s0 + $0x8c] sm:$0xf]
  %v63 = vld [vmem:[%s0 + $0x90] sm:$0xf]
  %v64 = vld [vmem:[%s0 + $0x94] sm:$0xf]
  %v65 = vld [vmem:[%s0 + $0x98] sm:$0xf]
  %v66 = vld [vmem:[%s0 + $0x9c] sm:$0xf]
  %v67 = vld [vmem:[%s0 + $0xa0] sm:$0xf]
  %v68 = vld [vmem:[%s0 + $0xa4] sm:$0xf]
  %v69 = vld [vmem:[%s0 + $0xa8] sm:$0xf]
  %v70 = vld [vmem:[%s0 + $0xac] sm:$0xf]
  %v71 = vld [vmem:[%s0 + $0xb0] sm:$0xf]
  %v72 = vld [vmem:[%s0 + $0xb4] sm:$0xf]
  %v73 = vld [vmem:[%s0 + $0xb8] sm:$0xf]
  %v74 = vld [vmem:[%s0 + $0xbc] sm:$0xf]
  %v75 = vld [vmem:[%s0 + $0xc0] sm:$0xf]
  %v76 = vld [vmem:[%s0 + $0xc4] sm:$0xf]
  %v77 = vld [vmem:[%s0 + $0xc8] sm:$0xf]
  %v78 = vld [vmem:[%s0 + $0xcc] sm:$0xf]
  %v79 = vld [vmem:[%s0 + $0xd0] sm:$0xf]
  %v80 = vld [vmem:[%s0 + $0xd4] sm:$0xf]
  %v81 = vld [vmem:[%s0 + $0xd8] sm:$0xf]
  %v82 = vld [vmem:[%s0 + $0xdc] sm:$0xf]
  %v83 = vld [vmem:[%s0 + $0xe0] sm:$0xf]
  %v84 = vld [vmem:[%s0 + $0xe4] sm:$0xf]
  %v85 = vld [vmem:[%s0 + $0xe8] sm:$0xf]
  %v86 = vld [vmem:[%s0 + $0xec] sm:$0xf]
  %v87 = vld [vmem:[%s0 + $0xf0] sm:$0xf]
  %v88 = vld [vmem:[%s0 + $0xf4] sm:$0xf]
  %v89 = vld [vmem:[%s0 + $0xf8] sm:$0xf]
  %v90 = vld [vmem:[%s0 + $0xfc] sm:$0xf]
  %v91 = vunpack.c.l.bf16 %v27
  %v92 = vunpack.c.l.bf16 %v28
  %v93 = vunpack.c.l.bf16 %v29
  %v94 = vunpack.c.l.bf16 %v30
  %v95 = vunpack.c.l.bf16 %v31
  %v96 = vunpack.c.l.bf16 %v32
  %v97 = vunpack.c.l.bf16 %v33
  %v98 = vunpack.c.l.bf16 %v34
  %v99 = vunpack.c.l.bf16 %v35
  %v100 = vunpack.c.l.bf16 %v36
  %v101 = vunpack.c.l.bf16 %v37
  %v102 = vunpack.c.l.bf16 %v38
  %v103 = vunpack.c.l.bf16 %v39
  %v104 = vunpack.c.l.bf16 %v40
  %v105 = vunpack.c.l.bf16 %v41
  %v106 = vunpack.c.l.bf16 %v42
  %v107 = vunpack.c.l.bf16 %v43
  %v108 = vunpack.c.l.bf16 %v44
  %v109 = vunpack.c.l.bf16 %v45
  %v110 = vunpack.c.l.bf16 %v46
  %v111 = vunpack.c.l.bf16 %v47
  %v112 = vunpack.c.l.bf16 %v48
  %v113 = vunpack.c.l.bf16 %v49
  %v114 = vunpack.c.l.bf16 %v50
  %v115 = vunpack.c.l.bf16 %v51
  %v116 = vunpack.c.l.bf16 %v52
  %v117 = vunpack.c.l.bf16 %v53
  %v118 = vunpack.c.l.bf16 %v54
  %v119 = vunpack.c.l.bf16 %v55
  %v120 = vunpack.c.l.bf16 %v56
  %v121 = vunpack.c.l.bf16 %v57
  %v122 = vunpack.c.l.bf16 %v58
  %v123 = vunpack.c.l.bf16 %v59
  %v124 = vunpack.c.l.bf16 %v60
  %v125 = vunpack.c.l.bf16 %v61
  %v126 = vunpack.c.l.bf16 %v62
  %v127 = vunpack.c.l.bf16 %v63
  %v128 = vunpack.c.l.bf16 %v64
  %v129 = vunpack.c.l.bf16 %v65
  %v130 = vunpack.c.l.bf16 %v66
  %v131 = vunpack.c.l.bf16 %v67
  %v132 = vunpack.c.l.bf16 %v68
  %v133 = vunpack.c.l.bf16 %v69
  %v134 = vunpack.c.l.bf16 %v70
  %v135 = vunpack.c.l.bf16 %v71
  %v136 = vunpack.c.l.bf16 %v72
  %v137 = vunpack.c.l.bf16 %v73
  %v138 = vunpack.c.l.bf16 %v74
  %v139 = vunpack.c.l.bf16 %v75
  %v140 = vunpack.c.l.bf16 %v76
  %v141 = vunpack.c.l.bf16 %v77
  %v142 = vunpack.c.l.bf16 %v78
  %v143 = vunpack.c.l.bf16 %v79
  %v144 = vunpack.c.l.bf16 %v80
  %v145 = vunpack.c.l.bf16 %v81
  %v146 = vunpack.c.l.bf16 %v82
  %v147 = vunpack.c.l.bf16 %v83
  %v148 = vunpack.c.l.bf16 %v84
  %v149 = vunpack.c.l.bf16 %v85
  %v150 = vunpack.c.l.bf16 %v86
  %v151 = vunpack.c.l.bf16 %v87
  %v152 = vunpack.c.l.bf16 %v88
  %v153 = vunpack.c.l.bf16 %v89
  %v154 = vunpack.c.l.bf16 %v90
  %v155 = vadd.f32 %v91, %v92
  %v156 = vadd.f32 %v155, %v93
  %v157 = vadd.f32 %v156, %v94
  %v158 = vadd.f32 %v157, %v95
  %v159 = vadd.f32 %v158, %v96
  %v160 = vadd.f32 %v159, %v97
  %v161 = vadd.f32 %v160, %v98
  %v162 = vadd.f32 %v161, %v99
  %v163 = vadd.f32 %v162, %v100
  %v164 = vadd.f32 %v163, %v101
  %v165 = vadd.f32 %v164, %v102
  %v166 = vadd.f32 %v165, %v103
  %v167 = vadd.f32 %v166, %v104
  %v168 = vadd.f32 %v167, %v105
  %v169 = vadd.f32 %v168, %v106
  %v170 = vadd.f32 %v169, %v107
  %v171 = vadd.f32 %v170, %v108
  %v172 = vadd.f32 %v171, %v109
  %v173 = vadd.f32 %v172, %v110
  %v174 = vadd.f32 %v173, %v111
  %v175 = vadd.f32 %v174, %v112
  %v176 = vadd.f32 %v175, %v113
  %v177 = vadd.f32 %v176, %v114
  %v178 = vadd.f32 %v177, %v115
  %v179 = vadd.f32 %v178, %v116
  %v180 = vadd.f32 %v179, %v117
  %v181 = vadd.f32 %v180, %v118
  %v182 = vadd.f32 %v181, %v119
  %v183 = vadd.f32 %v182, %v120
  %v184 = vadd.f32 %v183, %v121
  %v185 = vadd.f32 %v184, %v122
  %v186 = vadd.f32 %v185, %v123
  %v187 = vadd.f32 %v186, %v124
  %v188 = vadd.f32 %v187, %v125
  %v189 = vadd.f32 %v188, %v126
  %v190 = vadd.f32 %v189, %v127
  %v191 = vadd.f32 %v190, %v128
  %v192 = vadd.f32 %v191, %v129
  %v193 = vadd.f32 %v192, %v130
  %v194 = vadd.f32 %v193, %v131
  %v195 = vadd.f32 %v194, %v132
  %v196 = vadd.f32 %v195, %v133
  %v197 = vadd.f32 %v196, %v134
  %v198 = vadd.f32 %v197, %v135
  %v199 = vadd.f32 %v198, %v136
  %v200 = vadd.f32 %v199, %v137
  %v201 = vadd.f32 %v200, %v138
  %v202 = vadd.f32 %v201, %v139
  %v203 = vadd.f32 %v202, %v140
  %v204 = vadd.f32 %v203, %v141
  %v205 = vadd.f32 %v204, %v142
  %v206 = vadd.f32 %v205, %v143
  %v207 = vadd.f32 %v206, %v144
  %v208 = vadd.f32 %v207, %v145
  %v209 = vadd.f32 %v208, %v146
  %v210 = vadd.f32 %v209, %v147
  %v211 = vadd.f32 %v210, %v148
  %v212 = vadd.f32 %v211, %v149
  %v213 = vadd.f32 %v212, %v150
  %v214 = vadd.f32 %v213, %v151
  %v215 = vadd.f32 %v214, %v152
  %v216 = vadd.f32 %v215, %v153
  %v217 = vadd.f32 %v216, %v154
  %v218 = vrot.slane %v217, 4
  %v219 = vadd.f32 %v217, %v218
  %v220 = vrot.slane %v219, 2
  %v221 = vadd.f32 %v219, %v220
  %v222 = vrot.slane %v221, 1
  %v223 = vadd.f32 %v221, %v222
  %v224 = vmul.f32 %v223, 0.001953125
  %v225 = vsub.f32 %v91, %v224
  %v226 = vsub.f32 %v92, %v224
  %v227 = vsub.f32 %v93, %v224
  %v228 = vsub.f32 %v94, %v224
  %v229 = vsub.f32 %v95, %v224
  %v230 = vsub.f32 %v96, %v224
  %v231 = vsub.f32 %v97, %v224
  %v232 = vsub.f32 %v98, %v224
  %v233 = vsub.f32 %v99, %v224
  %v234 = vsub.f32 %v100, %v224
  %v235 = vsub.f32 %v101, %v224
  %v236 = vsub.f32 %v102, %v224
  %v237 = vsub.f32 %v103, %v224
  %v238 = vsub.f32 %v104, %v224
  %v239 = vsub.f32 %v105, %v224
  %v240 = vsub.f32 %v106, %v224
  %v241 = vsub.f32 %v107, %v224
  %v242 = vsub.f32 %v108, %v224
  %v243 = vsub.f32 %v109, %v224
  %v244 = vsub.f32 %v110, %v224
  %v245 = vsub.f32 %v111, %v224
  %v246 = vsub.f32 %v112, %v224
  %v247 = vsub.f32 %v113, %v224
  %v248 = vsub.f32 %v114, %v224
  %v249 = vsub.f32 %v115, %v224
  %v250 = vsub.f32 %v116, %v224
  %v251 = vsub.f32 %v117, %v224
  %v252 = vsub.f32 %v118, %v224
  %v253 = vsub.f32 %v119, %v224
  %v254 = vsub.f32 %v120, %v224
  %v255 = vsub.f32 %v121, %v224
  %v256 = vsub.f32 %v122, %v224
  %v257 = vsub.f32 %v123, %v224
  %v258 = vsub.f32 %v124, %v224
  %v259 = vsub.f32 %v125, %v224
  %v260 = vsub.f32 %v126, %v224
  %v261 = vsub.f32 %v127, %v224
  %v262 = vsub.f32 %v128, %v224
  %v263 = vsub.f32 %v129, %v224
  %v264 = vsub.f32 %v130, %v224
  %v265 = vsub.f32 %v131, %v224
  %v266 = vsub.f32 %v132, %v224
  %v267 = vsub.f32 %v133, %v224
  %v268 = vsub.f32 %v134, %v224
  %v269 = vsub.f32 %v135, %v224
  %v270 = vsub.f32 %v136, %v224
  %v271 = vsub.f32 %v137, %v224
  %v272 = vsub.f32 %v138, %v224
  %v273 = vsub.f32 %v139, %v224
  %v274 = vsub.f32 %v140, %v224
  %v275 = vsub.f32 %v141, %v224
  %v276 = vsub.f32 %v142, %v224
  %v277 = vsub.f32 %v143, %v224
  %v278 = vsub.f32 %v144, %v224
  %v279 = vsub.f32 %v145, %v224
  %v280 = vsub.f32 %v146, %v224
  %v281 = vsub.f32 %v147, %v224
  %v282 = vsub.f32 %v148, %v224
  %v283 = vsub.f32 %v149, %v224
  %v284 = vsub.f32 %v150, %v224
  %v285 = vsub.f32 %v151, %v224
  %v286 = vsub.f32 %v152, %v224
  %v287 = vsub.f32 %v153, %v224
  %v288 = vsub.f32 %v154, %v224
  %v289 = vmul.f32 %v225, %v225
  %v290 = vmul.f32 %v226, %v226
  %v291 = vmul.f32 %v227, %v227
  %v292 = vmul.f32 %v228, %v228
  %v293 = vmul.f32 %v229, %v229
  %v294 = vmul.f32 %v230, %v230
  %v295 = vmul.f32 %v231, %v231
  %v296 = vmul.f32 %v232, %v232
  %v297 = vmul.f32 %v233, %v233
  %v298 = vmul.f32 %v234, %v234
  %v299 = vmul.f32 %v235, %v235
  %v300 = vmul.f32 %v236, %v236
  %v301 = vmul.f32 %v237, %v237
  %v302 = vmul.f32 %v238, %v238
  %v303 = vmul.f32 %v239, %v239
  %v304 = vmul.f32 %v240, %v240
  %v305 = vmul.f32 %v241, %v241
  %v306 = vmul.f32 %v242, %v242
  %v307 = vmul.f32 %v243, %v243
  %v308 = vmul.f32 %v244, %v244
  %v309 = vmul.f32 %v245, %v245
  %v310 = vmul.f32 %v246, %v246
  %v311 = vmul.f32 %v247, %v247
  %v312 = vmul.f32 %v248, %v248
  %v313 = vmul.f32 %v249, %v249
  %v314 = vmul.f32 %v250, %v250
  %v315 = vmul.f32 %v251, %v251
  %v316 = vmul.f32 %v252, %v252
  %v317 = vmul.f32 %v253, %v253
  %v318 = vmul.f32 %v254, %v254
  %v319 = vmul.f32 %v255, %v255
  %v320 = vmul.f32 %v256, %v256
  %v321 = vmul.f32 %v257, %v257
  %v322 = vmul.f32 %v258, %v258
  %v323 = vmul.f32 %v259, %v259
  %v324 = vmul.f32 %v260, %v260
  %v325 = vmul.f32 %v261, %v261
  %v326 = vmul.f32 %v262, %v262
  %v327 = vmul.f32 %v263, %v263
  %v328 = vmul.f32 %v264, %v264
  %v329 = vmul.f32 %v265, %v265
  %v330 = vmul.f32 %v266, %v266
  %v331 = vmul.f32 %v267, %v267
  %v332 = vmul.f32 %v268, %v268
  %v333 = vmul.f32 %v269, %v269
  %v334 = vmul.f32 %v270, %v270
  %v335 = vmul.f32 %v271, %v271
  %v336 = vmul.f32 %v272, %v272
  %v337 = vmul.f32 %v273, %v273
  %v338 = vmul.f32 %v274, %v274
  %v339 = vmul.f32 %v275, %v275
  %v340 = vmul.f32 %v276, %v276
  %v341 = vmul.f32 %v277, %v277
  %v342 = vmul.f32 %v278, %v278
  %v343 = vmul.f32 %v279, %v279
  %v344 = vmul.f32 %v280, %v280
  %v345 = vmul.f32 %v281, %v281
  %v346 = vmul.f32 %v282, %v282
  %v347 = vmul.f32 %v283, %v283
  %v348 = vmul.f32 %v284, %v284
  %v349 = vmul.f32 %v285, %v285
  %v350 = vmul.f32 %v286, %v286
  %v351 = vmul.f32 %v287, %v287
  %v352 = vmul.f32 %v288, %v288
  %v353 = vadd.f32 %v289, %v290
  %v354 = vadd.f32 %v353, %v291
  %v355 = vadd.f32 %v354, %v292
  %v356 = vadd.f32 %v355, %v293
  %v357 = vadd.f32 %v356, %v294
  %v358 = vadd.f32 %v357, %v295
  %v359 = vadd.f32 %v358, %v296
  %v360 = vadd.f32 %v359, %v297
  %v361 = vadd.f32 %v360, %v298
  %v362 = vadd.f32 %v361, %v299
  %v363 = vadd.f32 %v362, %v300
  %v364 = vadd.f32 %v363, %v301
  %v365 = vadd.f32 %v364, %v302
  %v366 = vadd.f32 %v365, %v303
  %v367 = vadd.f32 %v366, %v304
  %v368 = vadd.f32 %v367, %v305
  %v369 = vadd.f32 %v368, %v306
  %v370 = vadd.f32 %v369, %v307
  %v371 = vadd.f32 %v370, %v308
  %v372 = vadd.f32 %v371, %v309
  %v373 = vadd.f32 %v372, %v310
  %v374 = vadd.f32 %v373, %v311
  %v375 = vadd.f32 %v374, %v312
  %v376 = vadd.f32 %v375, %v313
  %v377 = vadd.f32 %v376, %v314
  %v378 = vadd.f32 %v377, %v315
  %v379 = vadd.f32 %v378, %v316
  %v380 = vadd.f32 %v379, %v317
  %v381 = vadd.f32 %v380, %v318
  %v382 = vadd.f32 %v381, %v319
  %v383 = vadd.f32 %v382, %v320
  %v384 = vadd.f32 %v383, %v321
  %v385 = vadd.f32 %v384, %v322
  %v386 = vadd.f32 %v385, %v323
  %v387 = vadd.f32 %v386, %v324
  %v388 = vadd.f32 %v387, %v325
  %v389 = vadd.f32 %v388, %v326
  %v390 = vadd.f32 %v389, %v327
  %v391 = vadd.f32 %v390, %v328
  %v392 = vadd.f32 %v391, %v329
  %v393 = vadd.f32 %v392, %v330
  %v394 = vadd.f32 %v393, %v331
  %v395 = vadd.f32 %v394, %v332
  %v396 = vadd.f32 %v395, %v333
  %v397 = vadd.f32 %v396, %v334
  %v398 = vadd.f32 %v397, %v335
  %v399 = vadd.f32 %v398, %v336
  %v400 = vadd.f32 %v399, %v337
  %v401 = vadd.f32 %v400, %v338
  %v402 = vadd.f32 %v401, %v339
  %v403 = vadd.f32 %v402, %v340
  %v404 = vadd.f32 %v403, %v341
  %v405 = vadd.f32 %v404, %v342
  %v406 = vadd.f32 %v405, %v343
  %v407 = vadd.f32 %v406, %v344
  %v408 = vadd.f32 %v407, %v345
  %v409 = vadd.f32 %v408, %v346
  %v410 = vadd.f32 %v409, %v347
  %v411 = vadd.f32 %v410, %v348
  %v412 = vadd.f32 %v411, %v349
  %v413 = vadd.f32 %v412, %v350
  %v414 = vadd.f32 %v413, %v351
  %v415 = vadd.f32 %v414, %v352
  %v416 = vrot.slane %v415, 4
  %v417 = vadd.f32 %v415, %v416
  %v418 = vrot.slane %v417, 2
  %v419 = vadd.f32 %v417, %v418
  %v420 = vrot.slane %v419, 1
  %v421 = vadd.f32 %v419, %v420
  %v422 = vmul.f32 %v421, 0.001953125
  %v423 = vld [vmem:[%s3] sm:$0x1]
  %v424 = vadd.f32 %v422, 1e-05
  %v425 = vrsqrt.pop %v424
  %v426 = vmul.f32 %v425, %v424
  %v427 = vmul.f32 %v426, %v425
  %v428 = vmul.f32 0.5, %v427
  %v429 = vsub.f32 1.5, %v428
  %v430 = vmul.f32 %v425, %v429
  %vm431 = vweird.f32 %v424
  %vm432 = vweird.f32 %v425
  %vm433 = vmor %vm431, %vm432
  %v434 = vsel %vm433, %v425, %v430
  %v435 = vmul.f32 %v423, %v434
  %v437 = vperm.slane %v435, 0
  %v439 = vmul.f32 %v225, %v437
  %v440 = vmul.f32 %v226, %v437
  %v441 = vmul.f32 %v227, %v437
  %v442 = vmul.f32 %v228, %v437
  %v443 = vmul.f32 %v229, %v437
  %v444 = vmul.f32 %v230, %v437
  %v445 = vmul.f32 %v231, %v437
  %v446 = vmul.f32 %v232, %v437
  %v447 = vmul.f32 %v233, %v437
  %v448 = vmul.f32 %v234, %v437
  %v449 = vmul.f32 %v235, %v437
  %v450 = vmul.f32 %v236, %v437
  %v451 = vmul.f32 %v237, %v437
  %v452 = vmul.f32 %v238, %v437
  %v453 = vmul.f32 %v239, %v437
  %v454 = vmul.f32 %v240, %v437
  %v455 = vmul.f32 %v241, %v437
  %v456 = vmul.f32 %v242, %v437
  %v457 = vmul.f32 %v243, %v437
  %v458 = vmul.f32 %v244, %v437
  %v459 = vmul.f32 %v245, %v437
  %v460 = vmul.f32 %v246, %v437
  %v461 = vmul.f32 %v247, %v437
  %v462 = vmul.f32 %v248, %v437
  %v463 = vmul.f32 %v249, %v437
  %v464 = vmul.f32 %v250, %v437
  %v465 = vmul.f32 %v251, %v437
  %v466 = vmul.f32 %v252, %v437
  %v467 = vmul.f32 %v253, %v437
  %v468 = vmul.f32 %v254, %v437
  %v469 = vmul.f32 %v255, %v437
  %v470 = vmul.f32 %v256, %v437
  %v471 = vmul.f32 %v257, %v437
  %v472 = vmul.f32 %v258, %v437
  %v473 = vmul.f32 %v259, %v437
  %v474 = vmul.f32 %v260, %v437
  %v475 = vmul.f32 %v261, %v437
  %v476 = vmul.f32 %v262, %v437
  %v477 = vmul.f32 %v263, %v437
  %v478 = vmul.f32 %v264, %v437
  %v479 = vmul.f32 %v265, %v437
  %v480 = vmul.f32 %v266, %v437
  %v481 = vmul.f32 %v267, %v437
  %v482 = vmul.f32 %v268, %v437
  %v483 = vmul.f32 %v269, %v437
  %v484 = vmul.f32 %v270, %v437
  %v485 = vmul.f32 %v271, %v437
  %v486 = vmul.f32 %v272, %v437
  %v487 = vmul.f32 %v273, %v437
  %v488 = vmul.f32 %v274, %v437
  %v489 = vmul.f32 %v275, %v437
  %v490 = vmul.f32 %v276, %v437
  %v491 = vmul.f32 %v277, %v437
  %v492 = vmul.f32 %v278, %v437
  %v493 = vmul.f32 %v279, %v437
  %v494 = vmul.f32 %v280, %v437
  %v495 = vmul.f32 %v281, %v437
  %v496 = vmul.f32 %v282, %v437
  %v497 = vmul.f32 %v283, %v437
  %v498 = vmul.f32 %v284, %v437
  %v499 = vmul.f32 %v285, %v437
  %v500 = vmul.f32 %v286, %v437
  %v501 = vmul.f32 %v287, %v437
  %v502 = vmul.f32 %v288, %v437
  %v503 = vld [vmem:[%s4] sm:$0x1]
  %v505 = vperm.slane %v503, 0
  %v507 = vadd.f32 %v439, %v505
  %v508 = vadd.f32 %v440, %v505
  %v509 = vadd.f32 %v441, %v505
  %v510 = vadd.f32 %v442, %v505
  %v511 = vadd.f32 %v443, %v505
  %v512 = vadd.f32 %v444, %v505
  %v513 = vadd.f32 %v445, %v505
  %v514 = vadd.f32 %v446, %v505
  %v515 = vadd.f32 %v447, %v505
  %v516 = vadd.f32 %v448, %v505
  %v517 = vadd.f32 %v449, %v505
  %v518 = vadd.f32 %v450, %v505
  %v519 = vadd.f32 %v451, %v505
  %v520 = vadd.f32 %v452, %v505
  %v521 = vadd.f32 %v453, %v505
  %v522 = vadd.f32 %v454, %v505
  %v523 = vadd.f32 %v455, %v505
  %v524 = vadd.f32 %v456, %v505
  %v525 = vadd.f32 %v457, %v505
  %v526 = vadd.f32 %v458, %v505
  %v527 = vadd.f32 %v459, %v505
  %v528 = vadd.f32 %v460, %v505
  %v529 = vadd.f32 %v461, %v505
  %v530 = vadd.f32 %v462, %v505
  %v531 = vadd.f32 %v463, %v505
  %v532 = vadd.f32 %v464, %v505
  %v533 = vadd.f32 %v465, %v505
  %v534 = vadd.f32 %v466, %v505
  %v535 = vadd.f32 %v467, %v505
  %v536 = vadd.f32 %v468, %v505
  %v537 = vadd.f32 %v469, %v505
  %v538 = vadd.f32 %v470, %v505
  %v539 = vadd.f32 %v471, %v505
  %v540 = vadd.f32 %v472, %v505
  %v541 = vadd.f32 %v473, %v505
  %v542 = vadd.f32 %v474, %v505
  %v543 = vadd.f32 %v475, %v505
  %v544 = vadd.f32 %v476, %v505
  %v545 = vadd.f32 %v477, %v505
  %v546 = vadd.f32 %v478, %v505
  %v547 = vadd.f32 %v479, %v505
  %v548 = vadd.f32 %v480, %v505
  %v549 = vadd.f32 %v481, %v505
  %v550 = vadd.f32 %v482, %v505
  %v551 = vadd.f32 %v483, %v505
  %v552 = vadd.f32 %v484, %v505
  %v553 = vadd.f32 %v485, %v505
  %v554 = vadd.f32 %v486, %v505
  %v555 = vadd.f32 %v487, %v505
  %v556 = vadd.f32 %v488, %v505
  %v557 = vadd.f32 %v489, %v505
  %v558 = vadd.f32 %v490, %v505
  %v559 = vadd.f32 %v491, %v505
  %v560 = vadd.f32 %v492, %v505
  %v561 = vadd.f32 %v493, %v505
  %v562 = vadd.f32 %v494, %v505
  %v563 = vadd.f32 %v495, %v505
  %v564 = vadd.f32 %v496, %v505
  %v565 = vadd.f32 %v497, %v505
  %v566 = vadd.f32 %v498, %v505
  %v567 = vadd.f32 %v499, %v505
  %v568 = vadd.f32 %v500, %v505
  %v569 = vadd.f32 %v501, %v505
  %v570 = vadd.f32 %v502, %v505
  %v571 = vmax.f32 %v507, 0.0
  %v572 = vmax.f32 %v508, 0.0
  %v573 = vmax.f32 %v509, 0.0
  %v574 = vmax.f32 %v510, 0.0
  %v575 = vmax.f32 %v511, 0.0
  %v576 = vmax.f32 %v512, 0.0
  %v577 = vmax.f32 %v513, 0.0
  %v578 = vmax.f32 %v514, 0.0
  %v579 = vmax.f32 %v515, 0.0
  %v580 = vmax.f32 %v516, 0.0
  %v581 = vmax.f32 %v517, 0.0
  %v582 = vmax.f32 %v518, 0.0
  %v583 = vmax.f32 %v519, 0.0
  %v584 = vmax.f32 %v520, 0.0
  %v585 = vmax.f32 %v521, 0.0
  %v586 = vmax.f32 %v522, 0.0
  %v587 = vmax.f32 %v523, 0.0
  %v588 = vmax.f32 %v524, 0.0
  %v589 = vmax.f32 %v525, 0.0
  %v590 = vmax.f32 %v526, 0.0
  %v591 = vmax.f32 %v527, 0.0
  %v592 = vmax.f32 %v528, 0.0
  %v593 = vmax.f32 %v529, 0.0
  %v594 = vmax.f32 %v530, 0.0
  %v595 = vmax.f32 %v531, 0.0
  %v596 = vmax.f32 %v532, 0.0
  %v597 = vmax.f32 %v533, 0.0
  %v598 = vmax.f32 %v534, 0.0
  %v599 = vmax.f32 %v535, 0.0
  %v600 = vmax.f32 %v536, 0.0
  %v601 = vmax.f32 %v537, 0.0
  %v602 = vmax.f32 %v538, 0.0
  %v603 = vmax.f32 %v539, 0.0
  %v604 = vmax.f32 %v540, 0.0
  %v605 = vmax.f32 %v541, 0.0
  %v606 = vmax.f32 %v542, 0.0
  %v607 = vmax.f32 %v543, 0.0
  %v608 = vmax.f32 %v544, 0.0
  %v609 = vmax.f32 %v545, 0.0
  %v610 = vmax.f32 %v546, 0.0
  %v611 = vmax.f32 %v547, 0.0
  %v612 = vmax.f32 %v548, 0.0
  %v613 = vmax.f32 %v549, 0.0
  %v614 = vmax.f32 %v550, 0.0
  %v615 = vmax.f32 %v551, 0.0
  %v616 = vmax.f32 %v552, 0.0
  %v617 = vmax.f32 %v553, 0.0
  %v618 = vmax.f32 %v554, 0.0
  %v619 = vmax.f32 %v555, 0.0
  %v620 = vmax.f32 %v556, 0.0
  %v621 = vmax.f32 %v557, 0.0
  %v622 = vmax.f32 %v558, 0.0
  %v623 = vmax.f32 %v559, 0.0
  %v624 = vmax.f32 %v560, 0.0
  %v625 = vmax.f32 %v561, 0.0
  %v626 = vmax.f32 %v562, 0.0
  %v627 = vmax.f32 %v563, 0.0
  %v628 = vmax.f32 %v564, 0.0
  %v629 = vmax.f32 %v565, 0.0
  %v630 = vmax.f32 %v566, 0.0
  %v631 = vmax.f32 %v567, 0.0
  %v632 = vmax.f32 %v568, 0.0
  %v633 = vmax.f32 %v569, 0.0
  %v634 = vmax.f32 %v570, 0.0
  %635 = vst [vmem:[#allocation2] sm:$0xf] 0
  %636 = vst [vmem:[#allocation2 + $0x4] sm:$0xf] 0
  %637 = vst [vmem:[#allocation2 + $0x8] sm:$0x1] 0
  %638 = vst [vmem:[#allocation2 + $0xc] sm:$0xf] 0
  %639 = vst [vmem:[#allocation2 + $0x10] sm:$0xf] 0
  %640 = vst [vmem:[#allocation2 + $0x14] sm:$0x1] 0
  %641 = vst [vmem:[#allocation2 + $0x18] sm:$0xf] 0
  %642 = vst [vmem:[#allocation2 + $0x1c] sm:$0xf] 0
  %643 = vst [vmem:[#allocation2 + $0x20] sm:$0x1] 0
  %644 = vst [vmem:[#allocation2 + $0x24] sm:$0xf] 0
  %645 = vst [vmem:[#allocation2 + $0x28] sm:$0xf] 0
  %646 = vst [vmem:[#allocation2 + $0x2c] sm:$0x1] 0
  %647 = vst [vmem:[#allocation2 + $0x30] sm:$0xf] 0
  %648 = vst [vmem:[#allocation2 + $0x34] sm:$0xf] 0
  %649 = vst [vmem:[#allocation2 + $0x38] sm:$0x1] 0
  %650 = vst [vmem:[#allocation2 + $0x3c] sm:$0xf] 0
  %651 = vst [vmem:[#allocation2 + $0x40] sm:$0xf] 0
  %652 = vst [vmem:[#allocation2 + $0x44] sm:$0x1] 0
  %653 = vst [vmem:[#allocation2 + $0x48] sm:$0xf] 0
  %654 = vst [vmem:[#allocation2 + $0x4c] sm:$0xf] 0
  %655 = vst [vmem:[#allocation2 + $0x50] sm:$0x1] 0
  %656 = vst [vmem:[#allocation2 + $0x54] sm:$0xf] 0
  %657 = vst [vmem:[#allocation2 + $0x58] sm:$0xf] 0
  %658 = vst [vmem:[#allocation2 + $0x5c] sm:$0x1] 0
  %659 = vst [vmem:[#allocation2 + $0x60] sm:$0xf] 0
  %660 = vst [vmem:[#allocation2 + $0x64] sm:$0xf] 0
  %661 = vst [vmem:[#allocation2 + $0x68] sm:$0x1] 0
  %662 = vst [vmem:[#allocation2 + $0x6c] sm:$0xf] 0
  %663 = vst [vmem:[#allocation2 + $0x70] sm:$0xf] 0
  %664 = vst [vmem:[#allocation2 + $0x74] sm:$0x1] 0
  %665 = vst [vmem:[#allocation2 + $0x78] sm:$0xf] 0
  %666 = vst [vmem:[#allocation2 + $0x7c] sm:$0xf] 0
  %667 = vst [vmem:[#allocation2 + $0x80] sm:$0x1] 0
  %668 = vst [vmem:[#allocation2 + $0x84] sm:$0xf] 0
  %669 = vst [vmem:[#allocation2 + $0x88] sm:$0xf] 0
  %670 = vst [vmem:[#allocation2 + $0x8c] sm:$0x1] 0
  %671 = vst [vmem:[#allocation2 + $0x90] sm:$0xf] 0
  %672 = vst [vmem:[#allocation2 + $0x94] sm:$0xf] 0
  %673 = vst [vmem:[#allocation2 + $0x98] sm:$0x1] 0
  %674 = vst [vmem:[#allocation2 + $0x9c] sm:$0xf] 0
  %675 = vst [vmem:[#allocation2 + $0xa0] sm:$0xf] 0
  %676 = vst [vmem:[#allocation2 + $0xa4] sm:$0x1] 0
  %677 = vst [vmem:[#allocation2 + $0xa8] sm:$0xf] 0
  %678 = vst [vmem:[#allocation2 + $0xac] sm:$0xf] 0
  %679 = vst [vmem:[#allocation2 + $0xb0] sm:$0x1] 0
  %680 = vst [vmem:[#allocation2 + $0xb4] sm:$0xf] 0
  %681 = vst [vmem:[#allocation2 + $0xb8] sm:$0xf] 0
  %682 = vst [vmem:[#allocation2 + $0xbc] sm:$0x1] 0
  %683 = vst [vmem:[#allocation2 + $0xc0] sm:$0xf] 0
  %684 = vst [vmem:[#allocation2 + $0xc4] sm:$0xf] 0
  %685 = vst [vmem:[#allocation2 + $0xc8] sm:$0x1] 0
  %686 = vst [vmem:[#allocation2 + $0xcc] sm:$0xf] 0
  %687 = vst [vmem:[#allocation2 + $0xd0] sm:$0xf] 0
  %688 = vst [vmem:[#allocation2 + $0xd4] sm:$0x1] 0
  %689 = vst [vmem:[#allocation2 + $0xd8] sm:$0xf] 0
  %690 = vst [vmem:[#allocation2 + $0xdc] sm:$0xf] 0
  %691 = vst [vmem:[#allocation2 + $0xe0] sm:$0x1] 0
  %692 = vst [vmem:[#allocation2 + $0xe4] sm:$0xf] 0
  %693 = vst [vmem:[#allocation2 + $0xe8] sm:$0xf] 0
  %694 = vst [vmem:[#allocation2 + $0xec] sm:$0x1] 0
  %695 = vst [vmem:[#allocation2 + $0xf0] sm:$0xf] 0
  %696 = vst [vmem:[#allocation2 + $0xf4] sm:$0xf] 0
  %697 = vst [vmem:[#allocation2 + $0xf8] sm:$0x1] 0
  %698 = vst [vmem:[#allocation2 + $0xfc] sm:$0xf] 0
  %699 = vst [vmem:[#allocation2 + $0x100] sm:$0xf] 0
  %700 = vst [vmem:[#allocation2 + $0x104] sm:$0x1] 0
  %701 = vst [vmem:[#allocation2 + $0x108] sm:$0xf] 0
  %702 = vst [vmem:[#allocation2 + $0x10c] sm:$0xf] 0
  %703 = vst [vmem:[#allocation2 + $0x110] sm:$0x1] 0
  %704 = vst [vmem:[#allocation2 + $0x114] sm:$0xf] 0
  %705 = vst [vmem:[#allocation2 + $0x118] sm:$0xf] 0
  %706 = vst [vmem:[#allocation2 + $0x11c] sm:$0x1] 0
  %707 = vst [vmem:[#allocation2 + $0x120] sm:$0xf] 0
  %708 = vst [vmem:[#allocation2 + $0x124] sm:$0xf] 0
  %709 = vst [vmem:[#allocation2 + $0x128] sm:$0x1] 0
  %710 = vst [vmem:[#allocation2 + $0x12c] sm:$0xf] 0
  %711 = vst [vmem:[#allocation2 + $0x130] sm:$0xf] 0
  %712 = vst [vmem:[#allocation2 + $0x134] sm:$0x1] 0
  %713 = vst [vmem:[#allocation2 + $0x138] sm:$0xf] 0
  %714 = vst [vmem:[#allocation2 + $0x13c] sm:$0xf] 0
  %715 = vst [vmem:[#allocation2 + $0x140] sm:$0x1] 0
  %716 = vst [vmem:[#allocation2 + $0x144] sm:$0xf] 0
  %717 = vst [vmem:[#allocation2 + $0x148] sm:$0xf] 0
  %718 = vst [vmem:[#allocation2 + $0x14c] sm:$0x1] 0
  %719 = vst [vmem:[#allocation2 + $0x150] sm:$0xf] 0
  %720 = vst [vmem:[#allocation2 + $0x154] sm:$0xf] 0
  %721 = vst [vmem:[#allocation2 + $0x158] sm:$0x1] 0
  %722 = vst [vmem:[#allocation2 + $0x15c] sm:$0xf] 0
  %723 = vst [vmem:[#allocation2 + $0x160] sm:$0xf] 0
  %724 = vst [vmem:[#allocation2 + $0x164] sm:$0x1] 0
  %725 = vst [vmem:[#allocation2 + $0x168] sm:$0xf] 0
  %726 = vst [vmem:[#allocation2 + $0x16c] sm:$0xf] 0
  %727 = vst [vmem:[#allocation2 + $0x170] sm:$0x1] 0
  %728 = vst [vmem:[#allocation2 + $0x174] sm:$0xf] 0
  %729 = vst [vmem:[#allocation2 + $0x178] sm:$0xf] 0
  %730 = vst [vmem:[#allocation2 + $0x17c] sm:$0x1] 0
  %731 = vst [vmem:[#allocation2 + $0x180] sm:$0xf] 0
  %732 = vst [vmem:[#allocation2 + $0x184] sm:$0xf] 0
  %733 = vst [vmem:[#allocation2 + $0x188] sm:$0x1] 0
  %734 = vst [vmem:[#allocation2 + $0x18c] sm:$0xf] 0
  %735 = vst [vmem:[#allocation2 + $0x190] sm:$0xf] 0
  %736 = vst [vmem:[#allocation2 + $0x194] sm:$0x1] 0
  %737 = vst [vmem:[#allocation2 + $0x198] sm:$0xf] 0
  %738 = vst [vmem:[#allocation2 + $0x19c] sm:$0xf] 0
  %739 = vst [vmem:[#allocation2 + $0x1a0] sm:$0x1] 0
  %740 = vst [vmem:[#allocation2 + $0x1a4] sm:$0xf] 0
  %741 = vst [vmem:[#allocation2 + $0x1a8] sm:$0xf] 0
  %742 = vst [vmem:[#allocation2 + $0x1ac] sm:$0x1] 0
  %v743 = vpack.c.bf16 %v571, %v571
  %v744 = vpack.c.bf16 %v572, %v572
  %v745 = vpack.c.bf16 %v573, %v573
  %v746 = vpack.c.bf16 %v574, %v574
  %v747 = vpack.c.bf16 %v575, %v575
  %v748 = vpack.c.bf16 %v576, %v576
  %v749 = vpack.c.bf16 %v577, %v577
  %v750 = vpack.c.bf16 %v578, %v578
  %v751 = vpack.c.bf16 %v579, %v579
  %v752 = vpack.c.bf16 %v580, %v580
  %v753 = vpack.c.bf16 %v581, %v581
  %v754 = vpack.c.bf16 %v582, %v582
  %v755 = vpack.c.bf16 %v583, %v583
  %v756 = vpack.c.bf16 %v584, %v584
  %v757 = vpack.c.bf16 %v585, %v585
  %v758 = vpack.c.bf16 %v586, %v586
  %v759 = vpack.c.bf16 %v587, %v587
  %v760 = vpack.c.bf16 %v588, %v588
  %v761 = vpack.c.bf16 %v589, %v589
  %v762 = vpack.c.bf16 %v590, %v590
  %v763 = vpack.c.bf16 %v591, %v591
  %v764 = vpack.c.bf16 %v592, %v592
  %v765 = vpack.c.bf16 %v593, %v593
  %v766 = vpack.c.bf16 %v594, %v594
  %v767 = vpack.c.bf16 %v595, %v595
  %v768 = vpack.c.bf16 %v596, %v596
  %v769 = vpack.c.bf16 %v597, %v597
  %v770 = vpack.c.bf16 %v598, %v598
  %v771 = vpack.c.bf16 %v599, %v599
  %v772 = vpack.c.bf16 %v600, %v600
  %v773 = vpack.c.bf16 %v601, %v601
  %v774 = vpack.c.bf16 %v602, %v602
  %v775 = vpack.c.bf16 %v603, %v603
  %v776 = vpack.c.bf16 %v604, %v604
  %v777 = vpack.c.bf16 %v605, %v605
  %v778 = vpack.c.bf16 %v606, %v606
  %v779 = vpack.c.bf16 %v607, %v607
  %v780 = vpack.c.bf16 %v608, %v608
  %v781 = vpack.c.bf16 %v609, %v609
  %v782 = vpack.c.bf16 %v610, %v610
  %v783 = vpack.c.bf16 %v611, %v611
  %v784 = vpack.c.bf16 %v612, %v612
  %v785 = vpack.c.bf16 %v613, %v613
  %v786 = vpack.c.bf16 %v614, %v614
  %v787 = vpack.c.bf16 %v615, %v615
  %v788 = vpack.c.bf16 %v616, %v616
  %v789 = vpack.c.bf16 %v617, %v617
  %v790 = vpack.c.bf16 %v618, %v618
  %v791 = vpack.c.bf16 %v619, %v619
  %v792 = vpack.c.bf16 %v620, %v620
  %v793 = vpack.c.bf16 %v621, %v621
  %v794 = vpack.c.bf16 %v622, %v622
  %v795 = vpack.c.bf16 %v623, %v623
  %v796 = vpack.c.bf16 %v624, %v624
  %v797 = vpack.c.bf16 %v625, %v625
  %v798 = vpack.c.bf16 %v626, %v626
  %v799 = vpack.c.bf16 %v627, %v627
  %v800 = vpack.c.bf16 %v628, %v628
  %v801 = vpack.c.bf16 %v629, %v629
  %v802 = vpack.c.bf16 %v630, %v630
  %v803 = vpack.c.bf16 %v631, %v631
  %v804 = vpack.c.bf16 %v632, %v632
  %v805 = vpack.c.bf16 %v633, %v633
  %v806 = vpack.c.bf16 %v634, %v634
  %vm807 = vsmask.f32 256
  %vm808 = vsmask.f32 4368
  %vm809 = vmor %vm807, %vm808
  %v811 = vshrl.u32 %v743, 16
  %v813 = vrot.slane %v811, 7
  %v814 = vshll.u32 %v743, 16
  %v816 = vor.u32 %v813, %v814
  %v817 = vrot.slane %v813, 4
  %v819 = vshrl.u32 %v744, 16
  %v821 = vrot.slane %v819, 7
  %v822 = vshll.u32 %v744, 16
  %v824 = vor.u32 %v821, %v822
  %v825 = vsel %vm809, %v817, %v824
  %v826 = vrot.slane %v821, 4
  %v828 = vshrl.u32 %v745, 16
  %v830 = vrot.slane %v828, 7
  %v831 = vshll.u32 %v745, 16
  %v833 = vor.u32 %v830, %v831
  %v834 = vrot.slane %v830, 4
  %v836 = vshrl.u32 %v746, 16
  %v838 = vrot.slane %v836, 7
  %v839 = vshll.u32 %v746, 16
  %v841 = vor.u32 %v838, %v839
  %v842 = vsel %vm809, %v834, %v841
  %v843 = vrot.slane %v838, 4
  %v845 = vshrl.u32 %v747, 16
  %v847 = vrot.slane %v845, 7
  %v848 = vshll.u32 %v747, 16
  %v850 = vor.u32 %v847, %v848
  %v851 = vrot.slane %v847, 4
  %v853 = vshrl.u32 %v748, 16
  %v855 = vrot.slane %v853, 7
  %v856 = vshll.u32 %v748, 16
  %v858 = vor.u32 %v855, %v856
  %v859 = vsel %vm809, %v851, %v858
  %v860 = vrot.slane %v855, 4
  %v862 = vshrl.u32 %v749, 16
  %v864 = vrot.slane %v862, 7
  %v865 = vshll.u32 %v749, 16
  %v867 = vor.u32 %v864, %v865
  %v868 = vrot.slane %v864, 4
  %v870 = vshrl.u32 %v750, 16
  %v872 = vrot.slane %v870, 7
  %v873 = vshll.u32 %v750, 16
  %v875 = vor.u32 %v872, %v873
  %v876 = vsel %vm809, %v868, %v875
  %v877 = vrot.slane %v872, 4
  %v879 = vshrl.u32 %v751, 16
  %v881 = vrot.slane %v879, 7
  %v882 = vshll.u32 %v751, 16
  %v884 = vor.u32 %v881, %v882
  %v885 = vrot.slane %v881, 4
  %v887 = vshrl.u32 %v752, 16
  %v889 = vrot.slane %v887, 7
  %v890 = vshll.u32 %v752, 16
  %v892 = vor.u32 %v889, %v890
  %v893 = vsel %vm809, %v885, %v892
  %v894 = vrot.slane %v889, 4
  %v896 = vshrl.u32 %v753, 16
  %v898 = vrot.slane %v896, 7
  %v899 = vshll.u32 %v753, 16
  %v901 = vor.u32 %v898, %v899
  %v902 = vrot.slane %v898, 4
  %v904 = vshrl.u32 %v754, 16
  %v906 = vrot.slane %v904, 7
  %v907 = vshll.u32 %v754, 16
  %v909 = vor.u32 %v906, %v907
  %v910 = vsel %vm809, %v902, %v909
  %v911 = vrot.slane %v906, 4
  %v913 = vshrl.u32 %v755, 16
  %v915 = vrot.slane %v913, 7
  %v916 = vshll.u32 %v755, 16
  %v918 = vor.u32 %v915, %v916
  %v919 = vrot.slane %v915, 4
  %v921 = vshrl.u32 %v756, 16
  %v923 = vrot.slane %v921, 7
  %v924 = vshll.u32 %v756, 16
  %v926 = vor.u32 %v923, %v924
  %v927 = vsel %vm809, %v919, %v926
  %v928 = vrot.slane %v923, 4
  %v930 = vshrl.u32 %v757, 16
  %v932 = vrot.slane %v930, 7
  %v933 = vshll.u32 %v757, 16
  %v935 = vor.u32 %v932, %v933
  %v936 = vrot.slane %v932, 4
  %v938 = vshrl.u32 %v758, 16
  %v940 = vrot.slane %v938, 7
  %v941 = vshll.u32 %v758, 16
  %v943 = vor.u32 %v940, %v941
  %v944 = vsel %vm809, %v936, %v943
  %v945 = vrot.slane %v940, 4
  %v947 = vshrl.u32 %v759, 16
  %v949 = vrot.slane %v947, 7
  %v950 = vshll.u32 %v759, 16
  %v952 = vor.u32 %v949, %v950
  %v953 = vrot.slane %v949, 4
  %v955 = vshrl.u32 %v760, 16
  %v957 = vrot.slane %v955, 7
  %v958 = vshll.u32 %v760, 16
  %v960 = vor.u32 %v957, %v958
  %v961 = vsel %vm809, %v953, %v960
  %v962 = vrot.slane %v957, 4
  %v964 = vshrl.u32 %v761, 16
  %v966 = vrot.slane %v964, 7
  %v967 = vshll.u32 %v761, 16
  %v969 = vor.u32 %v966, %v967
  %v970 = vrot.slane %v966, 4
  %v972 = vshrl.u32 %v762, 16
  %v974 = vrot.slane %v972, 7
  %v975 = vshll.u32 %v762, 16
  %v977 = vor.u32 %v974, %v975
  %v978 = vsel %vm809, %v970, %v977
  %v979 = vrot.slane %v974, 4
  %v981 = vshrl.u32 %v763, 16
  %v983 = vrot.slane %v981, 7
  %v984 = vshll.u32 %v763, 16
  %v986 = vor.u32 %v983, %v984
  %v987 = vrot.slane %v983, 4
  %v989 = vshrl.u32 %v764, 16
  %v991 = vrot.slane %v989, 7
  %v992 = vshll.u32 %v764, 16
  %v994 = vor.u32 %v991, %v992
  %v995 = vsel %vm809, %v987, %v994
  %v996 = vrot.slane %v991, 4
  %v998 = vshrl.u32 %v765, 16
  %v1000 = vrot.slane %v998, 7
  %v1001 = vshll.u32 %v765, 16
  %v1003 = vor.u32 %v1000, %v1001
  %v1004 = vrot.slane %v1000, 4
  %v1006 = vshrl.u32 %v766, 16
  %v1008 = vrot.slane %v1006, 7
  %v1009 = vshll.u32 %v766, 16
  %v1011 = vor.u32 %v1008, %v1009
  %v1012 = vsel %vm809, %v1004, %v1011
  %v1013 = vrot.slane %v1008, 4
  %v1015 = vshrl.u32 %v767, 16
  %v1017 = vrot.slane %v1015, 7
  %v1018 = vshll.u32 %v767, 16
  %v1020 = vor.u32 %v1017, %v1018
  %v1021 = vrot.slane %v1017, 4
  %v1023 = vshrl.u32 %v768, 16
  %v1025 = vrot.slane %v1023, 7
  %v1026 = vshll.u32 %v768, 16
  %v1028 = vor.u32 %v1025, %v1026
  %v1029 = vsel %vm809, %v1021, %v1028
  %v1030 = vrot.slane %v1025, 4
  %v1032 = vshrl.u32 %v769, 16
  %v1034 = vrot.slane %v1032, 7
  %v1035 = vshll.u32 %v769, 16
  %v1037 = vor.u32 %v1034, %v1035
  %v1038 = vrot.slane %v1034, 4
  %v1040 = vshrl.u32 %v770, 16
  %v1042 = vrot.slane %v1040, 7
  %v1043 = vshll.u32 %v770, 16
  %v1045 = vor.u32 %v1042, %v1043
  %v1046 = vsel %vm809, %v1038, %v1045
  %v1047 = vrot.slane %v1042, 4
  %v1049 = vshrl.u32 %v771, 16
  %v1051 = vrot.slane %v1049, 7
  %v1052 = vshll.u32 %v771, 16
  %v1054 = vor.u32 %v1051, %v1052
  %v1055 = vrot.slane %v1051, 4
  %v1057 = vshrl.u32 %v772, 16
  %v1059 = vrot.slane %v1057, 7
  %v1060 = vshll.u32 %v772, 16
  %v1062 = vor.u32 %v1059, %v1060
  %v1063 = vsel %vm809, %v1055, %v1062
  %v1064 = vrot.slane %v1059, 4
  %v1066 = vshrl.u32 %v773, 16
  %v1068 = vrot.slane %v1066, 7
  %v1069 = vshll.u32 %v773, 16
  %v1071 = vor.u32 %v1068, %v1069
  %v1072 = vrot.slane %v1068, 4
  %v1074 = vshrl.u32 %v774, 16
  %v1076 = vrot.slane %v1074, 7
  %v1077 = vshll.u32 %v774, 16
  %v1079 = vor.u32 %v1076, %v1077
  %v1080 = vsel %vm809, %v1072, %v1079
  %v1081 = vrot.slane %v1076, 4
  %v1083 = vshrl.u32 %v775, 16
  %v1085 = vrot.slane %v1083, 7
  %v1086 = vshll.u32 %v775, 16
  %v1088 = vor.u32 %v1085, %v1086
  %v1089 = vrot.slane %v1085, 4
  %v1091 = vshrl.u32 %v776, 16
  %v1093 = vrot.slane %v1091, 7
  %v1094 = vshll.u32 %v776, 16
  %v1096 = vor.u32 %v1093, %v1094
  %v1097 = vsel %vm809, %v1089, %v1096
  %v1098 = vrot.slane %v1093, 4
  %v1100 = vshrl.u32 %v777, 16
  %v1102 = vrot.slane %v1100, 7
  %v1103 = vshll.u32 %v777, 16
  %v1105 = vor.u32 %v1102, %v1103
  %v1106 = vrot.slane %v1102, 4
  %v1108 = vshrl.u32 %v778, 16
  %v1110 = vrot.slane %v1108, 7
  %v1111 = vshll.u32 %v778, 16
  %v1113 = vor.u32 %v1110, %v1111
  %v1114 = vsel %vm809, %v1106, %v1113
  %v1115 = vrot.slane %v1110, 4
  %v1117 = vshrl.u32 %v779, 16
  %v1119 = vrot.slane %v1117, 7
  %v1120 = vshll.u32 %v779, 16
  %v1122 = vor.u32 %v1119, %v1120
  %v1123 = vrot.slane %v1119, 4
  %v1125 = vshrl.u32 %v780, 16
  %v1127 = vrot.slane %v1125, 7
  %v1128 = vshll.u32 %v780, 16
  %v1130 = vor.u32 %v1127, %v1128
  %v1131 = vsel %vm809, %v1123, %v1130
  %v1132 = vrot.slane %v1127, 4
  %v1134 = vshrl.u32 %v781, 16
  %v1136 = vrot.slane %v1134, 7
  %v1137 = vshll.u32 %v781, 16
  %v1139 = vor.u32 %v1136, %v1137
  %v1140 = vrot.slane %v1136, 4
  %v1142 = vshrl.u32 %v782, 16
  %v1144 = vrot.slane %v1142, 7
  %v1145 = vshll.u32 %v782, 16
  %v1147 = vor.u32 %v1144, %v1145
  %v1148 = vsel %vm809, %v1140, %v1147
  %v1149 = vrot.slane %v1144, 4
  %v1151 = vshrl.u32 %v783, 16
  %v1153 = vrot.slane %v1151, 7
  %v1154 = vshll.u32 %v783, 16
  %v1156 = vor.u32 %v1153, %v1154
  %v1157 = vrot.slane %v1153, 4
  %v1159 = vshrl.u32 %v784, 16
  %v1161 = vrot.slane %v1159, 7
  %v1162 = vshll.u32 %v784, 16
  %v1164 = vor.u32 %v1161, %v1162
  %v1165 = vsel %vm809, %v1157, %v1164
  %v1166 = vrot.slane %v1161, 4
  %v1168 = vshrl.u32 %v785, 16
  %v1170 = vrot.slane %v1168, 7
  %v1171 = vshll.u32 %v785, 16
  %v1173 = vor.u32 %v1170, %v1171
  %v1174 = vrot.slane %v1170, 4
  %v1176 = vshrl.u32 %v786, 16
  %v1178 = vrot.slane %v1176, 7
  %v1179 = vshll.u32 %v786, 16
  %v1181 = vor.u32 %v1178, %v1179
  %v1182 = vsel %vm809, %v1174, %v1181
  %v1183 = vrot.slane %v1178, 4
  %v1185 = vshrl.u32 %v787, 16
  %v1187 = vrot.slane %v1185, 7
  %v1188 = vshll.u32 %v787, 16
  %v1190 = vor.u32 %v1187, %v1188
  %v1191 = vrot.slane %v1187, 4
  %v1193 = vshrl.u32 %v788, 16
  %v1195 = vrot.slane %v1193, 7
  %v1196 = vshll.u32 %v788, 16
  %v1198 = vor.u32 %v1195, %v1196
  %v1199 = vsel %vm809, %v1191, %v1198
  %v1200 = vrot.slane %v1195, 4
  %v1202 = vshrl.u32 %v789, 16
  %v1204 = vrot.slane %v1202, 7
  %v1205 = vshll.u32 %v789, 16
  %v1207 = vor.u32 %v1204, %v1205
  %v1208 = vrot.slane %v1204, 4
  %v1210 = vshrl.u32 %v790, 16
  %v1212 = vrot.slane %v1210, 7
  %v1213 = vshll.u32 %v790, 16
  %v1215 = vor.u32 %v1212, %v1213
  %v1216 = vsel %vm809, %v1208, %v1215
  %v1217 = vrot.slane %v1212, 4
  %v1219 = vshrl.u32 %v791, 16
  %v1221 = vrot.slane %v1219, 7
  %v1222 = vshll.u32 %v791, 16
  %v1224 = vor.u32 %v1221, %v1222
  %v1225 = vrot.slane %v1221, 4
  %v1227 = vshrl.u32 %v792, 16
  %v1229 = vrot.slane %v1227, 7
  %v1230 = vshll.u32 %v792, 16
  %v1232 = vor.u32 %v1229, %v1230
  %v1233 = vsel %vm809, %v1225, %v1232
  %v1234 = vrot.slane %v1229, 4
  %v1236 = vshrl.u32 %v793, 16
  %v1238 = vrot.slane %v1236, 7
  %v1239 = vshll.u32 %v793, 16
  %v1241 = vor.u32 %v1238, %v1239
  %v1242 = vrot.slane %v1238, 4
  %v1244 = vshrl.u32 %v794, 16
  %v1246 = vrot.slane %v1244, 7
  %v1247 = vshll.u32 %v794, 16
  %v1249 = vor.u32 %v1246, %v1247
  %v1250 = vsel %vm809, %v1242, %v1249
  %v1251 = vrot.slane %v1246, 4
  %v1253 = vshrl.u32 %v795, 16
  %v1255 = vrot.slane %v1253, 7
  %v1256 = vshll.u32 %v795, 16
  %v1258 = vor.u32 %v1255, %v1256
  %v1259 = vrot.slane %v1255, 4
  %v1261 = vshrl.u32 %v796, 16
  %v1263 = vrot.slane %v1261, 7
  %v1264 = vshll.u32 %v796, 16
  %v1266 = vor.u32 %v1263, %v1264
  %v1267 = vsel %vm809, %v1259, %v1266
  %v1268 = vrot.slane %v1263, 4
  %v1270 = vshrl.u32 %v797, 16
  %v1272 = vrot.slane %v1270, 7
  %v1273 = vshll.u32 %v797, 16
  %v1275 = vor.u32 %v1272, %v1273
  %v1276 = vrot.slane %v1272, 4
  %v1278 = vshrl.u32 %v798, 16
  %v1280 = vrot.slane %v1278, 7
  %v1281 = vshll.u32 %v798, 16
  %v1283 = vor.u32 %v1280, %v1281
  %v1284 = vsel %vm809, %v1276, %v1283
  %v1285 = vrot.slane %v1280, 4
  %v1287 = vshrl.u32 %v799, 16
  %v1289 = vrot.slane %v1287, 7
  %v1290 = vshll.u32 %v799, 16
  %v1292 = vor.u32 %v1289, %v1290
  %v1293 = vrot.slane %v1289, 4
  %v1295 = vshrl.u32 %v800, 16
  %v1297 = vrot.slane %v1295, 7
  %v1298 = vshll.u32 %v800, 16
  %v1300 = vor.u32 %v1297, %v1298
  %v1301 = vsel %vm809, %v1293, %v1300
  %v1302 = vrot.slane %v1297, 4
  %v1304 = vshrl.u32 %v801, 16
  %v1306 = vrot.slane %v1304, 7
  %v1307 = vshll.u32 %v801, 16
  %v1309 = vor.u32 %v1306, %v1307
  %v1310 = vrot.slane %v1306, 4
  %v1312 = vshrl.u32 %v802, 16
  %v1314 = vrot.slane %v1312, 7
  %v1315 = vshll.u32 %v802, 16
  %v1317 = vor.u32 %v1314, %v1315
  %v1318 = vsel %vm809, %v1310, %v1317
  %v1319 = vrot.slane %v1314, 4
  %v1321 = vshrl.u32 %v803, 16
  %v1323 = vrot.slane %v1321, 7
  %v1324 = vshll.u32 %v803, 16
  %v1326 = vor.u32 %v1323, %v1324
  %v1327 = vrot.slane %v1323, 4
  %v1329 = vshrl.u32 %v804, 16
  %v1331 = vrot.slane %v1329, 7
  %v1332 = vshll.u32 %v804, 16
  %v1334 = vor.u32 %v1331, %v1332
  %v1335 = vsel %vm809, %v1327, %v1334
  %v1336 = vrot.slane %v1331, 4
  %v1338 = vshrl.u32 %v805, 16
  %v1340 = vrot.slane %v1338, 7
  %v1341 = vshll.u32 %v805, 16
  %v1343 = vor.u32 %v1340, %v1341
  %v1344 = vrot.slane %v1340, 4
  %v1346 = vshrl.u32 %v806, 16
  %v1348 = vrot.slane %v1346, 7
  %v1349 = vshll.u32 %v806, 16
  %v1351 = vor.u32 %v1348, %v1349
  %v1352 = vsel %vm809, %v1344, %v1351
  %v1353 = vrot.slane %v1348, 4
  %s1450 = scalar_lea.vmem [#allocation2], 12
  %vm1451 = vcmask 1043456
  %vm1452 = vsmask.f32 7938
  %vm1453 = vmand %vm1451, %vm1452
  %v1454 = vld [vmem:[%s1450] sm:$0xf]
  %v1455 = vsel %vm1453, %v816, %v1454
  %1456 = vst [vmem:[%s1450] sm:$0xf] %v1455
  %1457 = vst [vmem:[%s1450 + $0x4] sm:$0xf] %v825
  %vm1458 = vcmask 1040384
  %vm1459 = vmand %vm1458, %vm807
  %v1460 = vld [vmem:[%s1450 + $0x8] sm:$0x1]
  %v1461 = vsel %vm1459, %v826, %v1460
  %1462 = vst [vmem:[%s1450 + $0x8] sm:$0x1] %v1461
  %v1463 = vld [vmem:[%s1450 + $0xc] sm:$0xf]
  %v1464 = vsel %vm1453, %v833, %v1463
  %1465 = vst [vmem:[%s1450 + $0xc] sm:$0xf] %v1464
  %1466 = vst [vmem:[%s1450 + $0x10] sm:$0xf] %v842
  %v1467 = vld [vmem:[%s1450 + $0x14] sm:$0x1]
  %v1468 = vsel %vm1459, %v843, %v1467
  %1469 = vst [vmem:[%s1450 + $0x14] sm:$0x1] %v1468
  %v1470 = vld [vmem:[%s1450 + $0x18] sm:$0xf]
  %v1471 = vsel %vm1453, %v850, %v1470
  %1472 = vst [vmem:[%s1450 + $0x18] sm:$0xf] %v1471
  %1473 = vst [vmem:[%s1450 + $0x1c] sm:$0xf] %v859
  %v1474 = vld [vmem:[%s1450 + $0x20] sm:$0x1]
  %v1475 = vsel %vm1459, %v860, %v1474
  %1476 = vst [vmem:[%s1450 + $0x20] sm:$0x1] %v1475
  %v1477 = vld [vmem:[%s1450 + $0x24] sm:$0xf]
  %v1478 = vsel %vm1453, %v867, %v1477
  %1479 = vst [vmem:[%s1450 + $0x24] sm:$0xf] %v1478
  %1480 = vst [vmem:[%s1450 + $0x28] sm:$0xf] %v876
  %v1481 = vld [vmem:[%s1450 + $0x2c] sm:$0x1]
  %v1482 = vsel %vm1459, %v877, %v1481
  %1483 = vst [vmem:[%s1450 + $0x2c] sm:$0x1] %v1482
  %v1484 = vld [vmem:[%s1450 + $0x30] sm:$0xf]
  %v1485 = vsel %vm1453, %v884, %v1484
  %1486 = vst [vmem:[%s1450 + $0x30] sm:$0xf] %v1485
  %1487 = vst [vmem:[%s1450 + $0x34] sm:$0xf] %v893
  %v1488 = vld [vmem:[%s1450 + $0x38] sm:$0x1]
  %v1489 = vsel %vm1459, %v894, %v1488
  %1490 = vst [vmem:[%s1450 + $0x38] sm:$0x1] %v1489
  %v1491 = vld [vmem:[%s1450 + $0x3c] sm:$0xf]
  %v1492 = vsel %vm1453, %v901, %v1491
  %1493 = vst [vmem:[%s1450 + $0x3c] sm:$0xf] %v1492
  %1494 = vst [vmem:[%s1450 + $0x40] sm:$0xf] %v910
  %v1495 = vld [vmem:[%s1450 + $0x44] sm:$0x1]
  %v1496 = vsel %vm1459, %v911, %v1495
  %1497 = vst [vmem:[%s1450 + $0x44] sm:$0x1] %v1496
  %v1498 = vld [vmem:[%s1450 + $0x48] sm:$0xf]
  %v1499 = vsel %vm1453, %v918, %v1498
  %1500 = vst [vmem:[%s1450 + $0x48] sm:$0xf] %v1499
  %1501 = vst [vmem:[%s1450 + $0x4c] sm:$0xf] %v927
  %v1502 = vld [vmem:[%s1450 + $0x50] sm:$0x1]
  %v1503 = vsel %vm1459, %v928, %v1502
  %1504 = vst [vmem:[%s1450 + $0x50] sm:$0x1] %v1503
  %v1505 = vld [vmem:[%s1450 + $0x54] sm:$0xf]
  %v1506 = vsel %vm1453, %v935, %v1505
  %1507 = vst [vmem:[%s1450 + $0x54] sm:$0xf] %v1506
  %1508 = vst [vmem:[%s1450 + $0x58] sm:$0xf] %v944
  %v1509 = vld [vmem:[%s1450 + $0x5c] sm:$0x1]
  %v1510 = vsel %vm1459, %v945, %v1509
  %1511 = vst [vmem:[%s1450 + $0x5c] sm:$0x1] %v1510
  %v1512 = vld [vmem:[%s1450 + $0x60] sm:$0xf]
  %v1513 = vsel %vm1453, %v952, %v1512
  %1514 = vst [vmem:[%s1450 + $0x60] sm:$0xf] %v1513
  %1515 = vst [vmem:[%s1450 + $0x64] sm:$0xf] %v961
  %v1516 = vld [vmem:[%s1450 + $0x68] sm:$0x1]
  %v1517 = vsel %vm1459, %v962, %v1516
  %1518 = vst [vmem:[%s1450 + $0x68] sm:$0x1] %v1517
  %v1519 = vld [vmem:[%s1450 + $0x6c] sm:$0xf]
  %v1520 = vsel %vm1453, %v969, %v1519
  %1521 = vst [vmem:[%s1450 + $0x6c] sm:$0xf] %v1520
  %1522 = vst [vmem:[%s1450 + $0x70] sm:$0xf] %v978
  %v1523 = vld [vmem:[%s1450 + $0x74] sm:$0x1]
  %v1524 = vsel %vm1459, %v979, %v1523
  %1525 = vst [vmem:[%s1450 + $0x74] sm:$0x1] %v1524
  %v1526 = vld [vmem:[%s1450 + $0x78] sm:$0xf]
  %v1527 = vsel %vm1453, %v986, %v1526
  %1528 = vst [vmem:[%s1450 + $0x78] sm:$0xf] %v1527
  %1529 = vst [vmem:[%s1450 + $0x7c] sm:$0xf] %v995
  %v1530 = vld [vmem:[%s1450 + $0x80] sm:$0x1]
  %v1531 = vsel %vm1459, %v996, %v1530
  %1532 = vst [vmem:[%s1450 + $0x80] sm:$0x1] %v1531
  %v1533 = vld [vmem:[%s1450 + $0x84] sm:$0xf]
  %v1534 = vsel %vm1453, %v1003, %v1533
  %1535 = vst [vmem:[%s1450 + $0x84] sm:$0xf] %v1534
  %1536 = vst [vmem:[%s1450 + $0x88] sm:$0xf] %v1012
  %v1537 = vld [vmem:[%s1450 + $0x8c] sm:$0x1]
  %v1538 = vsel %vm1459, %v1013, %v1537
  %1539 = vst [vmem:[%s1450 + $0x8c] sm:$0x1] %v1538
  %v1540 = vld [vmem:[%s1450 + $0x90] sm:$0xf]
  %v1541 = vsel %vm1453, %v1020, %v1540
  %1542 = vst [vmem:[%s1450 + $0x90] sm:$0xf] %v1541
  %1543 = vst [vmem:[%s1450 + $0x94] sm:$0xf] %v1029
  %v1544 = vld [vmem:[%s1450 + $0x98] sm:$0x1]
  %v1545 = vsel %vm1459, %v1030, %v1544
  %1546 = vst [vmem:[%s1450 + $0x98] sm:$0x1] %v1545
  %v1547 = vld [vmem:[%s1450 + $0x9c] sm:$0xf]
  %v1548 = vsel %vm1453, %v1037, %v1547
  %1549 = vst [vmem:[%s1450 + $0x9c] sm:$0xf] %v1548
  %1550 = vst [vmem:[%s1450 + $0xa0] sm:$0xf] %v1046
  %v1551 = vld [vmem:[%s1450 + $0xa4] sm:$0x1]
  %v1552 = vsel %vm1459, %v1047, %v1551
  %1553 = vst [vmem:[%s1450 + $0xa4] sm:$0x1] %v1552
  %v1554 = vld [vmem:[%s1450 + $0xa8] sm:$0xf]
  %v1555 = vsel %vm1453, %v1054, %v1554
  %1556 = vst [vmem:[%s1450 + $0xa8] sm:$0xf] %v1555
  %1557 = vst [vmem:[%s1450 + $0xac] sm:$0xf] %v1063
  %v1558 = vld [vmem:[%s1450 + $0xb0] sm:$0x1]
  %v1559 = vsel %vm1459, %v1064, %v1558
  %1560 = vst [vmem:[%s1450 + $0xb0] sm:$0x1] %v1559
  %v1561 = vld [vmem:[%s1450 + $0xb4] sm:$0xf]
  %v1562 = vsel %vm1453, %v1071, %v1561
  %1563 = vst [vmem:[%s1450 + $0xb4] sm:$0xf] %v1562
  %1564 = vst [vmem:[%s1450 + $0xb8] sm:$0xf] %v1080
  %v1565 = vld [vmem:[%s1450 + $0xbc] sm:$0x1]
  %v1566 = vsel %vm1459, %v1081, %v1565
  %1567 = vst [vmem:[%s1450 + $0xbc] sm:$0x1] %v1566
  %v1568 = vld [vmem:[%s1450 + $0xd8] sm:$0xf]
  %v1569 = vsel %vm1453, %v1088, %v1568
  %1570 = vst [vmem:[%s1450 + $0xd8] sm:$0xf] %v1569
  %1571 = vst [vmem:[%s1450 + $0xdc] sm:$0xf] %v1097
  %v1572 = vld [vmem:[%s1450 + $0xe0] sm:$0x1]
  %v1573 = vsel %vm1459, %v1098, %v1572
  %1574 = vst [vmem:[%s1450 + $0xe0] sm:$0x1] %v1573
  %v1575 = vld [vmem:[%s1450 + $0xe4] sm:$0xf]
  %v1576 = vsel %vm1453, %v1105, %v1575
  %1577 = vst [vmem:[%s1450 + $0xe4] sm:$0xf] %v1576
  %1578 = vst [vmem:[%s1450 + $0xe8] sm:$0xf] %v1114
  %v1579 = vld [vmem:[%s1450 + $0xec] sm:$0x1]
  %v1580 = vsel %vm1459, %v1115, %v1579
  %1581 = vst [vmem:[%s1450 + $0xec] sm:$0x1] %v1580
  %v1582 = vld [vmem:[%s1450 + $0xf0] sm:$0xf]
  %v1583 = vsel %vm1453, %v1122, %v1582
  %1584 = vst [vmem:[%s1450 + $0xf0] sm:$0xf] %v1583
  %1585 = vst [vmem:[%s1450 + $0xf4] sm:$0xf] %v1131
  %v1586 = vld [vmem:[%s1450 + $0xf8] sm:$0x1]
  %v1587 = vsel %vm1459, %v1132, %v1586
  %1588 = vst [vmem:[%s1450 + $0xf8] sm:$0x1] %v1587
  %v1589 = vld [vmem:[%s1450 + $0xfc] sm:$0xf]
  %v1590 = vsel %vm1453, %v1139, %v1589
  %1591 = vst [vmem:[%s1450 + $0xfc] sm:$0xf] %v1590
  %1592 = vst [vmem:[%s1450 + $0x100] sm:$0xf] %v1148
  %v1593 = vld [vmem:[%s1450 + $0x104] sm:$0x1]
  %v1594 = vsel %vm1459, %v1149, %v1593
  %1595 = vst [vmem:[%s1450 + $0x104] sm:$0x1] %v1594
  %v1596 = vld [vmem:[%s1450 + $0x108] sm:$0xf]
  %v1597 = vsel %vm1453, %v1156, %v1596
  %1598 = vst [vmem:[%s1450 + $0x108] sm:$0xf] %v1597
  %1599 = vst [vmem:[%s1450 + $0x10c] sm:$0xf] %v1165
  %v1600 = vld [vmem:[%s1450 + $0x110] sm:$0x1]
  %v1601 = vsel %vm1459, %v1166, %v1600
  %1602 = vst [vmem:[%s1450 + $0x110] sm:$0x1] %v1601
  %v1603 = vld [vmem:[%s1450 + $0x114] sm:$0xf]
  %v1604 = vsel %vm1453, %v1173, %v1603
  %1605 = vst [vmem:[%s1450 + $0x114] sm:$0xf] %v1604
  %1606 = vst [vmem:[%s1450 + $0x118] sm:$0xf] %v1182
  %v1607 = vld [vmem:[%s1450 + $0x11c] sm:$0x1]
  %v1608 = vsel %vm1459, %v1183, %v1607
  %1609 = vst [vmem:[%s1450 + $0x11c] sm:$0x1] %v1608
  %v1610 = vld [vmem:[%s1450 + $0x120] sm:$0xf]
  %v1611 = vsel %vm1453, %v1190, %v1610
  %1612 = vst [vmem:[%s1450 + $0x120] sm:$0xf] %v1611
  %1613 = vst [vmem:[%s1450 + $0x124] sm:$0xf] %v1199
  %v1614 = vld [vmem:[%s1450 + $0x128] sm:$0x1]
  %v1615 = vsel %vm1459, %v1200, %v1614
  %1616 = vst [vmem:[%s1450 + $0x128] sm:$0x1] %v1615
  %v1617 = vld [vmem:[%s1450 + $0x12c] sm:$0xf]
  %v1618 = vsel %vm1453, %v1207, %v1617
  %1619 = vst [vmem:[%s1450 + $0x12c] sm:$0xf] %v1618
  %1620 = vst [vmem:[%s1450 + $0x130] sm:$0xf] %v1216
  %v1621 = vld [vmem:[%s1450 + $0x134] sm:$0x1]
  %v1622 = vsel %vm1459, %v1217, %v1621
  %1623 = vst [vmem:[%s1450 + $0x134] sm:$0x1] %v1622
  %v1624 = vld [vmem:[%s1450 + $0x138] sm:$0xf]
  %v1625 = vsel %vm1453, %v1224, %v1624
  %1626 = vst [vmem:[%s1450 + $0x138] sm:$0xf] %v1625
  %1627 = vst [vmem:[%s1450 + $0x13c] sm:$0xf] %v1233
  %v1628 = vld [vmem:[%s1450 + $0x140] sm:$0x1]
  %v1629 = vsel %vm1459, %v1234, %v1628
  %1630 = vst [vmem:[%s1450 + $0x140] sm:$0x1] %v1629
  %v1631 = vld [vmem:[%s1450 + $0x144] sm:$0xf]
  %v1632 = vsel %vm1453, %v1241, %v1631
  %1633 = vst [vmem:[%s1450 + $0x144] sm:$0xf] %v1632
  %1634 = vst [vmem:[%s1450 + $0x148] sm:$0xf] %v1250
  %v1635 = vld [vmem:[%s1450 + $0x14c] sm:$0x1]
  %v1636 = vsel %vm1459, %v1251, %v1635
  %1637 = vst [vmem:[%s1450 + $0x14c] sm:$0x1] %v1636
  %v1638 = vld [vmem:[%s1450 + $0x150] sm:$0xf]
  %v1639 = vsel %vm1453, %v1258, %v1638
  %1640 = vst [vmem:[%s1450 + $0x150] sm:$0xf] %v1639
  %1641 = vst [vmem:[%s1450 + $0x154] sm:$0xf] %v1267
  %v1642 = vld [vmem:[%s1450 + $0x158] sm:$0x1]
  %v1643 = vsel %vm1459, %v1268, %v1642
  %1644 = vst [vmem:[%s1450 + $0x158] sm:$0x1] %v1643
  %v1645 = vld [vmem:[%s1450 + $0x15c] sm:$0xf]
  %v1646 = vsel %vm1453, %v1275, %v1645
  %1647 = vst [vmem:[%s1450 + $0x15c] sm:$0xf] %v1646
  %1648 = vst [vmem:[%s1450 + $0x160] sm:$0xf] %v1284
  %v1649 = vld [vmem:[%s1450 + $0x164] sm:$0x1]
  %v1650 = vsel %vm1459, %v1285, %v1649
  %1651 = vst [vmem:[%s1450 + $0x164] sm:$0x1] %v1650
  %v1652 = vld [vmem:[%s1450 + $0x168] sm:$0xf]
  %v1653 = vsel %vm1453, %v1292, %v1652
  %1654 = vst [vmem:[%s1450 + $0x168] sm:$0xf] %v1653
  %1655 = vst [vmem:[%s1450 + $0x16c] sm:$0xf] %v1301
  %v1656 = vld [vmem:[%s1450 + $0x170] sm:$0x1]
  %v1657 = vsel %vm1459, %v1302, %v1656
  %1658 = vst [vmem:[%s1450 + $0x170] sm:$0x1] %v1657
  %v1659 = vld [vmem:[%s1450 + $0x174] sm:$0xf]
  %v1660 = vsel %vm1453, %v1309, %v1659
  %1661 = vst [vmem:[%s1450 + $0x174] sm:$0xf] %v1660
  %1662 = vst [vmem:[%s1450 + $0x178] sm:$0xf] %v1318
  %v1663 = vld [vmem:[%s1450 + $0x17c] sm:$0x1]
  %v1664 = vsel %vm1459, %v1319, %v1663
  %1665 = vst [vmem:[%s1450 + $0x17c] sm:$0x1] %v1664
  %v1666 = vld [vmem:[%s1450 + $0x180] sm:$0xf]
  %v1667 = vsel %vm1453, %v1326, %v1666
  %1668 = vst [vmem:[%s1450 + $0x180] sm:$0xf] %v1667
  %1669 = vst [vmem:[%s1450 + $0x184] sm:$0xf] %v1335
  %v1670 = vld [vmem:[%s1450 + $0x188] sm:$0x1]
  %v1671 = vsel %vm1459, %v1336, %v1670
  %1672 = vst [vmem:[%s1450 + $0x188] sm:$0x1] %v1671
  %v1673 = vld [vmem:[%s1450 + $0x18c] sm:$0xf]
  %v1674 = vsel %vm1453, %v1343, %v1673
  %1675 = vst [vmem:[%s1450 + $0x18c] sm:$0xf] %v1674
  %1676 = vst [vmem:[%s1450 + $0x190] sm:$0xf] %v1352
  %v1677 = vld [vmem:[%s1450 + $0x194] sm:$0x1]
  %v1678 = vsel %vm1459, %v1353, %v1677
  %1679 = vst [vmem:[%s1450 + $0x194] sm:$0x1] %v1678
  %v1680 = vld [vmem:[#allocation2] sm:$0xf]
  %v1681 = vld [vmem:[#allocation2 + $0x4] sm:$0xf]
  %v1682 = vld [vmem:[#allocation2 + $0xc] sm:$0xf]
  %v1683 = vld [vmem:[#allocation2 + $0x10] sm:$0xf]
  %v1684 = vld [vmem:[#allocation2 + $0x18] sm:$0xf]
  %v1685 = vld [vmem:[#allocation2 + $0x1c] sm:$0xf]
  %v1686 = vld [vmem:[#allocation2 + $0x24] sm:$0xf]
  %v1687 = vld [vmem:[#allocation2 + $0x28] sm:$0xf]
  %v1688 = vld [vmem:[#allocation2 + $0x30] sm:$0xf]
  %v1689 = vld [vmem:[#allocation2 + $0x34] sm:$0xf]
  %v1690 = vld [vmem:[#allocation2 + $0x3c] sm:$0xf]
  %v1691 = vld [vmem:[#allocation2 + $0x40] sm:$0xf]
  %v1692 = vld [vmem:[#allocation2 + $0x48] sm:$0xf]
  %v1693 = vld [vmem:[#allocation2 + $0x4c] sm:$0xf]
  %v1694 = vld [vmem:[#allocation2 + $0x54] sm:$0xf]
  %v1695 = vld [vmem:[#allocation2 + $0x58] sm:$0xf]
  %v1696 = vld [vmem:[#allocation2 + $0x60] sm:$0xf]
  %v1697 = vld [vmem:[#allocation2 + $0x64] sm:$0xf]
  %v1698 = vld [vmem:[#allocation2 + $0x6c] sm:$0xf]
  %v1699 = vld [vmem:[#allocation2 + $0x70] sm:$0xf]
  %v1700 = vld [vmem:[#allocation2 + $0x78] sm:$0xf]
  %v1701 = vld [vmem:[#allocation2 + $0x7c] sm:$0xf]
  %v1702 = vld [vmem:[#allocation2 + $0x84] sm:$0xf]
  %v1703 = vld [vmem:[#allocation2 + $0x88] sm:$0xf]
  %v1704 = vld [vmem:[#allocation2 + $0x90] sm:$0xf]
  %v1705 = vld [vmem:[#allocation2 + $0x94] sm:$0xf]
  %v1706 = vld [vmem:[#allocation2 + $0x9c] sm:$0xf]
  %v1707 = vld [vmem:[#allocation2 + $0xa0] sm:$0xf]
  %v1708 = vld [vmem:[#allocation2 + $0xa8] sm:$0xf]
  %v1709 = vld [vmem:[#allocation2 + $0xac] sm:$0xf]
  %v1710 = vld [vmem:[#allocation2 + $0xb4] sm:$0xf]
  %v1711 = vld [vmem:[#allocation2 + $0xb8] sm:$0xf]
  %v1712 = vld [vmem:[#allocation2 + $0xd8] sm:$0xf]
  %v1713 = vld [vmem:[#allocation2 + $0xdc] sm:$0xf]
  %v1714 = vld [vmem:[#allocation2 + $0xe4] sm:$0xf]
  %v1715 = vld [vmem:[#allocation2 + $0xe8] sm:$0xf]
  %v1716 = vld [vmem:[#allocation2 + $0xf0] sm:$0xf]
  %v1717 = vld [vmem:[#allocation2 + $0xf4] sm:$0xf]
  %v1718 = vld [vmem:[#allocation2 + $0xfc] sm:$0xf]
  %v1719 = vld [vmem:[#allocation2 + $0x100] sm:$0xf]
  %v1720 = vld [vmem:[#allocation2 + $0x108] sm:$0xf]
  %v1721 = vld [vmem:[#allocation2 + $0x10c] sm:$0xf]
  %v1722 = vld [vmem:[#allocation2 + $0x114] sm:$0xf]
  %v1723 = vld [vmem:[#allocation2 + $0x118] sm:$0xf]
  %v1724 = vld [vmem:[#allocation2 + $0x120] sm:$0xf]
  %v1725 = vld [vmem:[#allocation2 + $0x124] sm:$0xf]
  %v1726 = vld [vmem:[#allocation2 + $0x12c] sm:$0xf]
  %v1727 = vld [vmem:[#allocation2 + $0x130] sm:$0xf]
  %v1728 = vld [vmem:[#allocation2 + $0x138] sm:$0xf]
  %v1729 = vld [vmem:[#allocation2 + $0x13c] sm:$0xf]
  %v1730 = vld [vmem:[#allocation2 + $0x144] sm:$0xf]
  %v1731 = vld [vmem:[#allocation2 + $0x148] sm:$0xf]
  %v1732 = vld [vmem:[#allocation2 + $0x150] sm:$0xf]
  %v1733 = vld [vmem:[#allocation2 + $0x154] sm:$0xf]
  %v1734 = vld [vmem:[#allocation2 + $0x15c] sm:$0xf]
  %v1735 = vld [vmem:[#allocation2 + $0x160] sm:$0xf]
  %v1736 = vld [vmem:[#allocation2 + $0x168] sm:$0xf]
  %v1737 = vld [vmem:[#allocation2 + $0x16c] sm:$0xf]
  %v1738 = vld [vmem:[#allocation2 + $0x174] sm:$0xf]
  %v1739 = vld [vmem:[#allocation2 + $0x178] sm:$0xf]
  %v1740 = vld [vmem:[#allocation2 + $0x180] sm:$0xf]
  %v1741 = vld [vmem:[#allocation2 + $0x184] sm:$0xf]
  %v1742 = vld [vmem:[#allocation2 + $0x18c] sm:$0xf]
  %v1743 = vld [vmem:[#allocation2 + $0x190] sm:$0xf]
  %v1744 = vld [vmem:[#allocation2 + $0x8] sm:$0x1]
  %v1745 = vld [vmem:[#allocation2 + $0x14] sm:$0x1]
  %v1746 = vld [vmem:[#allocation2 + $0x20] sm:$0x1]
  %v1747 = vld [vmem:[#allocation2 + $0x2c] sm:$0x1]
  %v1748 = vld [vmem:[#allocation2 + $0x38] sm:$0x1]
  %v1749 = vld [vmem:[#allocation2 + $0x44] sm:$0x1]
  %v1750 = vld [vmem:[#allocation2 + $0x50] sm:$0x1]
  %v1751 = vld [vmem:[#allocation2 + $0x5c] sm:$0x1]
  %v1752 = vld [vmem:[#allocation2 + $0x68] sm:$0x1]
  %v1753 = vld [vmem:[#allocation2 + $0x74] sm:$0x1]
  %v1754 = vld [vmem:[#allocation2 + $0x80] sm:$0x1]
  %v1755 = vld [vmem:[#allocation2 + $0x8c] sm:$0x1]
  %v1756 = vld [vmem:[#allocation2 + $0x98] sm:$0x1]
  %v1757 = vld [vmem:[#allocation2 + $0xa4] sm:$0x1]
  %v1758 = vld [vmem:[#allocation2 + $0xb0] sm:$0x1]
  %v1759 = vld [vmem:[#allocation2 + $0xbc] sm:$0x1]
  %v1760 = vld [vmem:[#allocation2 + $0xe0] sm:$0x1]
  %v1761 = vld [vmem:[#allocation2 + $0xec] sm:$0x1]
  %v1762 = vld [vmem:[#allocation2 + $0xf8] sm:$0x1]
  %v1763 = vld [vmem:[#allocation2 + $0x104] sm:$0x1]
  %v1764 = vld [vmem:[#allocation2 + $0x110] sm:$0x1]
  %v1765 = vld [vmem:[#allocation2 + $0x11c] sm:$0x1]
  %v1766 = vld [vmem:[#allocation2 + $0x128] sm:$0x1]
  %v1767 = vld [vmem:[#allocation2 + $0x134] sm:$0x1]
  %v1768 = vld [vmem:[#allocation2 + $0x140] sm:$0x1]
  %v1769 = vld [vmem:[#allocation2 + $0x14c] sm:$0x1]
  %v1770 = vld [vmem:[#allocation2 + $0x158] sm:$0x1]
  %v1771 = vld [vmem:[#allocation2 + $0x164] sm:$0x1]
  %v1772 = vld [vmem:[#allocation2 + $0x170] sm:$0x1]
  %v1773 = vld [vmem:[#allocation2 + $0x17c] sm:$0x1]
  %v1774 = vld [vmem:[#allocation2 + $0x188] sm:$0x1]
  %v1775 = vld [vmem:[#allocation2 + $0x194] sm:$0x1]
  %v1776 = vld [vmem:[#allocation2] sm:$0xe]
  %v1777 = vld [vmem:[#allocation2 + $0xc] sm:$0xe]
  %v1778 = vld [vmem:[#allocation2 + $0x18] sm:$0xe]
  %v1779 = vld [vmem:[#allocation2 + $0x24] sm:$0xe]
  %v1780 = vld [vmem:[#allocation2 + $0x30] sm:$0xe]
  %v1781 = vld [vmem:[#allocation2 + $0x3c] sm:$0xe]
  %v1782 = vld [vmem:[#allocation2 + $0x48] sm:$0xe]
  %v1783 = vld [vmem:[#allocation2 + $0x54] sm:$0xe]
  %v1784 = vld [vmem:[#allocation2 + $0x60] sm:$0xe]
  %v1785 = vld [vmem:[#allocation2 + $0x6c] sm:$0xe]
  %v1786 = vld [vmem:[#allocation2 + $0x78] sm:$0xe]
  %v1787 = vld [vmem:[#allocation2 + $0x84] sm:$0xe]
  %v1788 = vld [vmem:[#allocation2 + $0x90] sm:$0xe]
  %v1789 = vld [vmem:[#allocation2 + $0x9c] sm:$0xe]
  %v1790 = vld [vmem:[#allocation2 + $0xa8] sm:$0xe]
  %v1791 = vld [vmem:[#allocation2 + $0xb4] sm:$0xe]
  %v1792 = vld [vmem:[#allocation2 + $0xd8] sm:$0xe]
  %v1793 = vld [vmem:[#allocation2 + $0xe4] sm:$0xe]
  %v1794 = vld [vmem:[#allocation2 + $0xf0] sm:$0xe]
  %v1795 = vld [vmem:[#allocation2 + $0xfc] sm:$0xe]
  %v1796 = vld [vmem:[#allocation2 + $0x108] sm:$0xe]
  %v1797 = vld [vmem:[#allocation2 + $0x114] sm:$0xe]
  %v1798 = vld [vmem:[#allocation2 + $0x120] sm:$0xe]
  %v1799 = vld [vmem:[#allocation2 + $0x12c] sm:$0xe]
  %v1800 = vld [vmem:[#allocation2 + $0x138] sm:$0xe]
  %v1801 = vld [vmem:[#allocation2 + $0x144] sm:$0xe]
  %v1802 = vld [vmem:[#allocation2 + $0x150] sm:$0xe]
  %v1803 = vld [vmem:[#allocation2 + $0x15c] sm:$0xe]
  %v1804 = vld [vmem:[#allocation2 + $0x168] sm:$0xe]
  %v1805 = vld [vmem:[#allocation2 + $0x174] sm:$0xe]
  %v1806 = vld [vmem:[#allocation2 + $0x180] sm:$0xe]
  %v1807 = vld [vmem:[#allocation2 + $0x18c] sm:$0xe]
  %v1808 = vld [vmem:[%s1450] sm:$0xf]
  %v1809 = vld [vmem:[%s1450 + $0x4] sm:$0xf]
  %v1810 = vld [vmem:[%s1450 + $0xc] sm:$0xf]
  %v1811 = vld [vmem:[%s1450 + $0x10] sm:$0xf]
  %v1812 = vld [vmem:[%s1450 + $0x18] sm:$0xf]
  %v1813 = vld [vmem:[%s1450 + $0x1c] sm:$0xf]
  %v1814 = vld [vmem:[%s1450 + $0x24] sm:$0xf]
  %v1815 = vld [vmem:[%s1450 + $0x28] sm:$0xf]
  %v1816 = vld [vmem:[%s1450 + $0x30] sm:$0xf]
  %v1817 = vld [vmem:[%s1450 + $0x34] sm:$0xf]
  %v1818 = vld [vmem:[%s1450 + $0x3c] sm:$0xf]
  %v1819 = vld [vmem:[%s1450 + $0x40] sm:$0xf]
  %v1820 = vld [vmem:[%s1450 + $0x48] sm:$0xf]
  %v1821 = vld [vmem:[%s1450 + $0x4c] sm:$0xf]
  %v1822 = vld [vmem:[%s1450 + $0x54] sm:$0xf]
  %v1823 = vld [vmem:[%s1450 + $0x58] sm:$0xf]
  %v1824 = vld [vmem:[%s1450 + $0x60] sm:$0xf]
  %v1825 = vld [vmem:[%s1450 + $0x64] sm:$0xf]
  %v1826 = vld [vmem:[%s1450 + $0x6c] sm:$0xf]
  %v1827 = vld [vmem:[%s1450 + $0x70] sm:$0xf]
  %v1828 = vld [vmem:[%s1450 + $0x78] sm:$0xf]
  %v1829 = vld [vmem:[%s1450 + $0x7c] sm:$0xf]
  %v1830 = vld [vmem:[%s1450 + $0x84] sm:$0xf]
  %v1831 = vld [vmem:[%s1450 + $0x88] sm:$0xf]
  %v1832 = vld [vmem:[%s1450 + $0x90] sm:$0xf]
  %v1833 = vld [vmem:[%s1450 + $0x94] sm:$0xf]
  %v1834 = vld [vmem:[%s1450 + $0x9c] sm:$0xf]
  %v1835 = vld [vmem:[%s1450 + $0xa0] sm:$0xf]
  %v1836 = vld [vmem:[%s1450 + $0xa8] sm:$0xf]
  %v1837 = vld [vmem:[%s1450 + $0xac] sm:$0xf]
  %v1838 = vld [vmem:[%s1450 + $0xb4] sm:$0xf]
  %v1839 = vld [vmem:[%s1450 + $0xb8] sm:$0xf]
  %v1840 = vld [vmem:[%s1450 + $0xd8] sm:$0xf]
  %v1841 = vld [vmem:[%s1450 + $0xdc] sm:$0xf]
  %v1842 = vld [vmem:[%s1450 + $0xe4] sm:$0xf]
  %v1843 = vld [vmem:[%s1450 + $0xe8] sm:$0xf]
  %v1844 = vld [vmem:[%s1450 + $0xf0] sm:$0xf]
  %v1845 = vld [vmem:[%s1450 + $0xf4] sm:$0xf]
  %v1846 = vld [vmem:[%s1450 + $0xfc] sm:$0xf]
  %v1847 = vld [vmem:[%s1450 + $0x100] sm:$0xf]
  %v1848 = vld [vmem:[%s1450 + $0x108] sm:$0xf]
  %v1849 = vld [vmem:[%s1450 + $0x10c] sm:$0xf]
  %v1850 = vld [vmem:[%s1450 + $0x114] sm:$0xf]
  %v1851 = vld [vmem:[%s1450 + $0x118] sm:$0xf]
  %v1852 = vld [vmem:[%s1450 + $0x120] sm:$0xf]
  %v1853 = vld [vmem:[%s1450 + $0x124] sm:$0xf]
  %v1854 = vld [vmem:[%s1450 + $0x12c] sm:$0xf]
  %v1855 = vld [vmem:[%s1450 + $0x130] sm:$0xf]
  %v1856 = vld [vmem:[%s1450 + $0x138] sm:$0xf]
  %v1857 = vld [vmem:[%s1450 + $0x13c] sm:$0xf]
  %v1858 = vld [vmem:[%s1450 + $0x144] sm:$0xf]
  %v1859 = vld [vmem:[%s1450 + $0x148] sm:$0xf]
  %v1860 = vld [vmem:[%s1450 + $0x150] sm:$0xf]
  %v1861 = vld [vmem:[%s1450 + $0x154] sm:$0xf]
  %v1862 = vld [vmem:[%s1450 + $0x15c] sm:$0xf]
  %v1863 = vld [vmem:[%s1450 + $0x160] sm:$0xf]
  %v1864 = vld [vmem:[%s1450 + $0x168] sm:$0xf]
  %v1865 = vld [vmem:[%s1450 + $0x16c] sm:$0xf]
  %v1866 = vld [vmem:[%s1450 + $0x174] sm:$0xf]
  %v1867 = vld [vmem:[%s1450 + $0x178] sm:$0xf]
  %v1868 = vld [vmem:[%s1450 + $0x180] sm:$0xf]
  %v1869 = vld [vmem:[%s1450 + $0x184] sm:$0xf]
  %v1870 = vld [vmem:[%s1450 + $0x18c] sm:$0xf]
  %v1871 = vld [vmem:[%s1450 + $0x190] sm:$0xf]
  %v1872 = vld [vmem:[%s1450 + $0x8] sm:$0x1]
  %v1873 = vld [vmem:[%s1450 + $0x14] sm:$0x1]
  %v1874 = vld [vmem:[%s1450 + $0x20] sm:$0x1]
  %v1875 = vld [vmem:[%s1450 + $0x2c] sm:$0x1]
  %v1876 = vld [vmem:[%s1450 + $0x38] sm:$0x1]
  %v1877 = vld [vmem:[%s1450 + $0x44] sm:$0x1]
  %v1878 = vld [vmem:[%s1450 + $0x50] sm:$0x1]
  %v1879 = vld [vmem:[%s1450 + $0x5c] sm:$0x1]
  %v1880 = vld [vmem:[%s1450 + $0x68] sm:$0x1]
  %v1881 = vld [vmem:[%s1450 + $0x74] sm:$0x1]
  %v1882 = vld [vmem:[%s1450 + $0x80] sm:$0x1]
  %v1883 = vld [vmem:[%s1450 + $0x8c] sm:$0x1]
  %v1884 = vld [vmem:[%s1450 + $0x98] sm:$0x1]
  %v1885 = vld [vmem:[%s1450 + $0xa4] sm:$0x1]
  %v1886 = vld [vmem:[%s1450 + $0xb0] sm:$0x1]
  %v1887 = vld [vmem:[%s1450 + $0xbc] sm:$0x1]
  %v1888 = vld [vmem:[%s1450 + $0xe0] sm:$0x1]
  %v1889 = vld [vmem:[%s1450 + $0xec] sm:$0x1]
  %v1890 = vld [vmem:[%s1450 + $0xf8] sm:$0x1]
  %v1891 = vld [vmem:[%s1450 + $0x104] sm:$0x1]
  %v1892 = vld [vmem:[%s1450 + $0x110] sm:$0x1]
  %v1893 = vld [vmem:[%s1450 + $0x11c] sm:$0x1]
  %v1894 = vld [vmem:[%s1450 + $0x128] sm:$0x1]
  %v1895 = vld [vmem:[%s1450 + $0x134] sm:$0x1]
  %v1896 = vld [vmem:[%s1450 + $0x140] sm:$0x1]
  %v1897 = vld [vmem:[%s1450 + $0x14c] sm:$0x1]
  %v1898 = vld [vmem:[%s1450 + $0x158] sm:$0x1]
  %v1899 = vld [vmem:[%s1450 + $0x164] sm:$0x1]
  %v1900 = vld [vmem:[%s1450 + $0x170] sm:$0x1]
  %v1901 = vld [vmem:[%s1450 + $0x17c] sm:$0x1]
  %v1902 = vld [vmem:[%s1450 + $0x188] sm:$0x1]
  %v1903 = vld [vmem:[%s1450 + $0x194] sm:$0x1]
  %v1904 = vld [vmem:[%s1450] sm:$0xe]
  %v1905 = vld [vmem:[%s1450 + $0xc] sm:$0xe]
  %v1906 = vld [vmem:[%s1450 + $0x18] sm:$0xe]
  %v1907 = vld [vmem:[%s1450 + $0x24] sm:$0xe]
  %v1908 = vld [vmem:[%s1450 + $0x30] sm:$0xe]
  %v1909 = vld [vmem:[%s1450 + $0x3c] sm:$0xe]
  %v1910 = vld [vmem:[%s1450 + $0x48] sm:$0xe]
  %v1911 = vld [vmem:[%s1450 + $0x54] sm:$0xe]
  %v1912 = vld [vmem:[%s1450 + $0x60] sm:$0xe]
  %v1913 = vld [vmem:[%s1450 + $0x6c] sm:$0xe]
  %v1914 = vld [vmem:[%s1450 + $0x78] sm:$0xe]
  %v1915 = vld [vmem:[%s1450 + $0x84] sm:$0xe]
  %v1916 = vld [vmem:[%s1450 + $0x90] sm:$0xe]
  %v1917 = vld [vmem:[%s1450 + $0x9c] sm:$0xe]
  %v1918 = vld [vmem:[%s1450 + $0xa8] sm:$0xe]
  %v1919 = vld [vmem:[%s1450 + $0xb4] sm:$0xe]
  %v1920 = vld [vmem:[%s1450 + $0xd8] sm:$0xe]
  %v1921 = vld [vmem:[%s1450 + $0xe4] sm:$0xe]
  %v1922 = vld [vmem:[%s1450 + $0xf0] sm:$0xe]
  %v1923 = vld [vmem:[%s1450 + $0xfc] sm:$0xe]
  %v1924 = vld [vmem:[%s1450 + $0x108] sm:$0xe]
  %v1925 = vld [vmem:[%s1450 + $0x114] sm:$0xe]
  %v1926 = vld [vmem:[%s1450 + $0x120] sm:$0xe]
  %v1927 = vld [vmem:[%s1450 + $0x12c] sm:$0xe]
  %v1928 = vld [vmem:[%s1450 + $0x138] sm:$0xe]
  %v1929 = vld [vmem:[%s1450 + $0x144] sm:$0xe]
  %v1930 = vld [vmem:[%s1450 + $0x150] sm:$0xe]
  %v1931 = vld [vmem:[%s1450 + $0x15c] sm:$0xe]
  %v1932 = vld [vmem:[%s1450 + $0x168] sm:$0xe]
  %v1933 = vld [vmem:[%s1450 + $0x174] sm:$0xe]
  %v1934 = vld [vmem:[%s1450 + $0x180] sm:$0xe]
  %v1935 = vld [vmem:[%s1450 + $0x18c] sm:$0xe]
  %s1936 = scalar_lea.vmem [#allocation2], 24
  %v1937 = vld [vmem:[%s1936] sm:$0xf]
  %v1938 = vld [vmem:[%s1936 + $0x4] sm:$0xf]
  %v1939 = vld [vmem:[%s1936 + $0xc] sm:$0xf]
  %v1940 = vld [vmem:[%s1936 + $0x10] sm:$0xf]
  %v1941 = vld [vmem:[%s1936 + $0x18] sm:$0xf]
  %v1942 = vld [vmem:[%s1936 + $0x1c] sm:$0xf]
  %v1943 = vld [vmem:[%s1936 + $0x24] sm:$0xf]
  %v1944 = vld [vmem:[%s1936 + $0x28] sm:$0xf]
  %v1945 = vld [vmem:[%s1936 + $0x30] sm:$0xf]
  %v1946 = vld [vmem:[%s1936 + $0x34] sm:$0xf]
  %v1947 = vld [vmem:[%s1936 + $0x3c] sm:$0xf]
  %v1948 = vld [vmem:[%s1936 + $0x40] sm:$0xf]
  %v1949 = vld [vmem:[%s1936 + $0x48] sm:$0xf]
  %v1950 = vld [vmem:[%s1936 + $0x4c] sm:$0xf]
  %v1951 = vld [vmem:[%s1936 + $0x54] sm:$0xf]
  %v1952 = vld [vmem:[%s1936 + $0x58] sm:$0xf]
  %v1953 = vld [vmem:[%s1936 + $0x60] sm:$0xf]
  %v1954 = vld [vmem:[%s1936 + $0x64] sm:$0xf]
  %v1955 = vld [vmem:[%s1936 + $0x6c] sm:$0xf]
  %v1956 = vld [vmem:[%s1936 + $0x70] sm:$0xf]
  %v1957 = vld [vmem:[%s1936 + $0x78] sm:$0xf]
  %v1958 = vld [vmem:[%s1936 + $0x7c] sm:$0xf]
  %v1959 = vld [vmem:[%s1936 + $0x84] sm:$0xf]
  %v1960 = vld [vmem:[%s1936 + $0x88] sm:$0xf]
  %v1961 = vld [vmem:[%s1936 + $0x90] sm:$0xf]
  %v1962 = vld [vmem:[%s1936 + $0x94] sm:$0xf]
  %v1963 = vld [vmem:[%s1936 + $0x9c] sm:$0xf]
  %v1964 = vld [vmem:[%s1936 + $0xa0] sm:$0xf]
  %v1965 = vld [vmem:[%s1936 + $0xa8] sm:$0xf]
  %v1966 = vld [vmem:[%s1936 + $0xac] sm:$0xf]
  %v1967 = vld [vmem:[%s1936 + $0xb4] sm:$0xf]
  %v1968 = vld [vmem:[%s1936 + $0xb8] sm:$0xf]
  %v1969 = vld [vmem:[%s1936 + $0xd8] sm:$0xf]
  %v1970 = vld [vmem:[%s1936 + $0xdc] sm:$0xf]
  %v1971 = vld [vmem:[%s1936 + $0xe4] sm:$0xf]
  %v1972 = vld [vmem:[%s1936 + $0xe8] sm:$0xf]
  %v1973 = vld [vmem:[%s1936 + $0xf0] sm:$0xf]
  %v1974 = vld [vmem:[%s1936 + $0xf4] sm:$0xf]
  %v1975 = vld [vmem:[%s1936 + $0xfc] sm:$0xf]
  %v1976 = vld [vmem:[%s1936 + $0x100] sm:$0xf]
  %v1977 = vld [vmem:[%s1936 + $0x108] sm:$0xf]
  %v1978 = vld [vmem:[%s1936 + $0x10c] sm:$0xf]
  %v1979 = vld [vmem:[%s1936 + $0x114] sm:$0xf]
  %v1980 = vld [vmem:[%s1936 + $0x118] sm:$0xf]
  %v1981 = vld [vmem:[%s1936 + $0x120] sm:$0xf]
  %v1982 = vld [vmem:[%s1936 + $0x124] sm:$0xf]
  %v1983 = vld [vmem:[%s1936 + $0x12c] sm:$0xf]
  %v1984 = vld [vmem:[%s1936 + $0x130] sm:$0xf]
  %v1985 = vld [vmem:[%s1936 + $0x138] sm:$0xf]
  %v1986 = vld [vmem:[%s1936 + $0x13c] sm:$0xf]
  %v1987 = vld [vmem:[%s1936 + $0x144] sm:$0xf]
  %v1988 = vld [vmem:[%s1936 + $0x148] sm:$0xf]
  %v1989 = vld [vmem:[%s1936 + $0x150] sm:$0xf]
  %v1990 = vld [vmem:[%s1936 + $0x154] sm:$0xf]
  %v1991 = vld [vmem:[%s1936 + $0x15c] sm:$0xf]
  %v1992 = vld [vmem:[%s1936 + $0x160] sm:$0xf]
  %v1993 = vld [vmem:[%s1936 + $0x168] sm:$0xf]
  %v1994 = vld [vmem:[%s1936 + $0x16c] sm:$0xf]
  %v1995 = vld [vmem:[%s1936 + $0x174] sm:$0xf]
  %v1996 = vld [vmem:[%s1936 + $0x178] sm:$0xf]
  %v1997 = vld [vmem:[%s1936 + $0x180] sm:$0xf]
  %v1998 = vld [vmem:[%s1936 + $0x184] sm:$0xf]
  %v1999 = vld [vmem:[%s1936 + $0x18c] sm:$0xf]
  %v2000 = vld [vmem:[%s1936 + $0x190] sm:$0xf]
  %v2001 = vld [vmem:[%s1936 + $0x8] sm:$0x1]
  %v2002 = vld [vmem:[%s1936 + $0x14] sm:$0x1]
  %v2003 = vld [vmem:[%s1936 + $0x20] sm:$0x1]
  %v2004 = vld [vmem:[%s1936 + $0x2c] sm:$0x1]
  %v2005 = vld [vmem:[%s1936 + $0x38] sm:$0x1]
  %v2006 = vld [vmem:[%s1936 + $0x44] sm:$0x1]
  %v2007 = vld [vmem:[%s1936 + $0x50] sm:$0x1]
  %v2008 = vld [vmem:[%s1936 + $0x5c] sm:$0x1]
  %v2009 = vld [vmem:[%s1936 + $0x68] sm:$0x1]
  %v2010 = vld [vmem:[%s1936 + $0x74] sm:$0x1]
  %v2011 = vld [vmem:[%s1936 + $0x80] sm:$0x1]
  %v2012 = vld [vmem:[%s1936 + $0x8c] sm:$0x1]
  %v2013 = vld [vmem:[%s1936 + $0x98] sm:$0x1]
  %v2014 = vld [vmem:[%s1936 + $0xa4] sm:$0x1]
  %v2015 = vld [vmem:[%s1936 + $0xb0] sm:$0x1]
  %v2016 = vld [vmem:[%s1936 + $0xbc] sm:$0x1]
  %v2017 = vld [vmem:[%s1936 + $0xe0] sm:$0x1]
  %v2018 = vld [vmem:[%s1936 + $0xec] sm:$0x1]
  %v2019 = vld [vmem:[%s1936 + $0xf8] sm:$0x1]
  %v2020 = vld [vmem:[%s1936 + $0x104] sm:$0x1]
  %v2021 = vld [vmem:[%s1936 + $0x110] sm:$0x1]
  %v2022 = vld [vmem:[%s1936 + $0x11c] sm:$0x1]
  %v2023 = vld [vmem:[%s1936 + $0x128] sm:$0x1]
  %v2024 = vld [vmem:[%s1936 + $0x134] sm:$0x1]
  %v2025 = vld [vmem:[%s1936 + $0x140] sm:$0x1]
  %v2026 = vld [vmem:[%s1936 + $0x14c] sm:$0x1]
  %v2027 = vld [vmem:[%s1936 + $0x158] sm:$0x1]
  %v2028 = vld [vmem:[%s1936 + $0x164] sm:$0x1]
  %v2029 = vld [vmem:[%s1936 + $0x170] sm:$0x1]
  %v2030 = vld [vmem:[%s1936 + $0x17c] sm:$0x1]
  %v2031 = vld [vmem:[%s1936 + $0x188] sm:$0x1]
  %v2032 = vld [vmem:[%s1936 + $0x194] sm:$0x1]
  %v2033 = vld [vmem:[%s1936] sm:$0xe]
  %v2034 = vld [vmem:[%s1936 + $0xc] sm:$0xe]
  %v2035 = vld [vmem:[%s1936 + $0x18] sm:$0xe]
  %v2036 = vld [vmem:[%s1936 + $0x24] sm:$0xe]
  %v2037 = vld [vmem:[%s1936 + $0x30] sm:$0xe]
  %v2038 = vld [vmem:[%s1936 + $0x3c] sm:$0xe]
  %v2039 = vld [vmem:[%s1936 + $0x48] sm:$0xe]
  %v2040 = vld [vmem:[%s1936 + $0x54] sm:$0xe]
  %v2041 = vld [vmem:[%s1936 + $0x60] sm:$0xe]
  %v2042 = vld [vmem:[%s1936 + $0x6c] sm:$0xe]
  %v2043 = vld [vmem:[%s1936 + $0x78] sm:$0xe]
  %v2044 = vld [vmem:[%s1936 + $0x84] sm:$0xe]
  %v2045 = vld [vmem:[%s1936 + $0x90] sm:$0xe]
  %v2046 = vld [vmem:[%s1936 + $0x9c] sm:$0xe]
  %v2047 = vld [vmem:[%s1936 + $0xa8] sm:$0xe]
  %v2048 = vld [vmem:[%s1936 + $0xb4] sm:$0xe]
  %v2049 = vld [vmem:[%s1936 + $0xd8] sm:$0xe]
  %v2050 = vld [vmem:[%s1936 + $0xe4] sm:$0xe]
  %v2051 = vld [vmem:[%s1936 + $0xf0] sm:$0xe]
  %v2052 = vld [vmem:[%s1936 + $0xfc] sm:$0xe]
  %v2053 = vld [vmem:[%s1936 + $0x108] sm:$0xe]
  %v2054 = vld [vmem:[%s1936 + $0x114] sm:$0xe]
  %v2055 = vld [vmem:[%s1936 + $0x120] sm:$0xe]
  %v2056 = vld [vmem:[%s1936 + $0x12c] sm:$0xe]
  %v2057 = vld [vmem:[%s1936 + $0x138] sm:$0xe]
  %v2058 = vld [vmem:[%s1936 + $0x144] sm:$0xe]
  %v2059 = vld [vmem:[%s1936 + $0x150] sm:$0xe]
  %v2060 = vld [vmem:[%s1936 + $0x15c] sm:$0xe]
  %v2061 = vld [vmem:[%s1936 + $0x168] sm:$0xe]
  %v2062 = vld [vmem:[%s1936 + $0x174] sm:$0xe]
  %v2063 = vld [vmem:[%s1936 + $0x180] sm:$0xe]
  %v2064 = vld [vmem:[%s1936 + $0x18c] sm:$0xe]
  %v2129 = vunpack.c.l.b16 %v1680
  %v2130 = vunpack.c.l.b16 %v1681
  %v2131 = vunpack.c.l.b16 %v1682
  %v2132 = vunpack.c.l.b16 %v1683
  %v2133 = vunpack.c.l.b16 %v1684
  %v2134 = vunpack.c.l.b16 %v1685
  %v2135 = vunpack.c.l.b16 %v1686
  %v2136 = vunpack.c.l.b16 %v1687
  %v2137 = vunpack.c.l.b16 %v1688
  %v2138 = vunpack.c.l.b16 %v1689
  %v2139 = vunpack.c.l.b16 %v1690
  %v2140 = vunpack.c.l.b16 %v1691
  %v2141 = vunpack.c.l.b16 %v1692
  %v2142 = vunpack.c.l.b16 %v1693
  %v2143 = vunpack.c.l.b16 %v1694
  %v2144 = vunpack.c.l.b16 %v1695
  %v2145 = vunpack.c.l.b16 %v1696
  %v2146 = vunpack.c.l.b16 %v1697
  %v2147 = vunpack.c.l.b16 %v1698
  %v2148 = vunpack.c.l.b16 %v1699
  %v2149 = vunpack.c.l.b16 %v1700
  %v2150 = vunpack.c.l.b16 %v1701
  %v2151 = vunpack.c.l.b16 %v1702
  %v2152 = vunpack.c.l.b16 %v1703
  %v2153 = vunpack.c.l.b16 %v1704
  %v2154 = vunpack.c.l.b16 %v1705
  %v2155 = vunpack.c.l.b16 %v1706
  %v2156 = vunpack.c.l.b16 %v1707
  %v2157 = vunpack.c.l.b16 %v1708
  %v2158 = vunpack.c.l.b16 %v1709
  %v2159 = vunpack.c.l.b16 %v1710
  %v2160 = vunpack.c.l.b16 %v1711
  %v2161 = vunpack.c.l.b16 %v1712
  %v2162 = vunpack.c.l.b16 %v1713
  %v2163 = vunpack.c.l.b16 %v1714
  %v2164 = vunpack.c.l.b16 %v1715
  %v2165 = vunpack.c.l.b16 %v1716
  %v2166 = vunpack.c.l.b16 %v1717
  %v2167 = vunpack.c.l.b16 %v1718
  %v2168 = vunpack.c.l.b16 %v1719
  %v2169 = vunpack.c.l.b16 %v1720
  %v2170 = vunpack.c.l.b16 %v1721
  %v2171 = vunpack.c.l.b16 %v1722
  %v2172 = vunpack.c.l.b16 %v1723
  %v2173 = vunpack.c.l.b16 %v1724
  %v2174 = vunpack.c.l.b16 %v1725
  %v2175 = vunpack.c.l.b16 %v1726
  %v2176 = vunpack.c.l.b16 %v1727
  %v2177 = vunpack.c.l.b16 %v1728
  %v2178 = vunpack.c.l.b16 %v1729
  %v2179 = vunpack.c.l.b16 %v1730
  %v2180 = vunpack.c.l.b16 %v1731
  %v2181 = vunpack.c.l.b16 %v1732
  %v2182 = vunpack.c.l.b16 %v1733
  %v2183 = vunpack.c.l.b16 %v1734
  %v2184 = vunpack.c.l.b16 %v1735
  %v2185 = vunpack.c.l.b16 %v1736
  %v2186 = vunpack.c.l.b16 %v1737
  %v2187 = vunpack.c.l.b16 %v1738
  %v2188 = vunpack.c.l.b16 %v1739
  %v2189 = vunpack.c.l.b16 %v1740
  %v2190 = vunpack.c.l.b16 %v1741
  %v2191 = vunpack.c.l.b16 %v1742
  %v2192 = vunpack.c.l.b16 %v1743
  %v2193 = vpack.c.b16 %v2130, %v2129
  %v2194 = vpack.c.b16 %v2132, %v2131
  %v2195 = vpack.c.b16 %v2134, %v2133
  %v2196 = vpack.c.b16 %v2136, %v2135
  %v2197 = vpack.c.b16 %v2138, %v2137
  %v2198 = vpack.c.b16 %v2140, %v2139
  %v2199 = vpack.c.b16 %v2142, %v2141
  %v2200 = vpack.c.b16 %v2144, %v2143
  %v2201 = vpack.c.b16 %v2146, %v2145
  %v2202 = vpack.c.b16 %v2148, %v2147
  %v2203 = vpack.c.b16 %v2150, %v2149
  %v2204 = vpack.c.b16 %v2152, %v2151
  %v2205 = vpack.c.b16 %v2154, %v2153
  %v2206 = vpack.c.b16 %v2156, %v2155
  %v2207 = vpack.c.b16 %v2158, %v2157
  %v2208 = vpack.c.b16 %v2160, %v2159
  %v2209 = vpack.c.b16 %v2162, %v2161
  %v2210 = vpack.c.b16 %v2164, %v2163
  %v2211 = vpack.c.b16 %v2166, %v2165
  %v2212 = vpack.c.b16 %v2168, %v2167
  %v2213 = vpack.c.b16 %v2170, %v2169
  %v2214 = vpack.c.b16 %v2172, %v2171
  %v2215 = vpack.c.b16 %v2174, %v2173
  %v2216 = vpack.c.b16 %v2176, %v2175
  %v2217 = vpack.c.b16 %v2178, %v2177
  %v2218 = vpack.c.b16 %v2180, %v2179
  %v2219 = vpack.c.b16 %v2182, %v2181
  %v2220 = vpack.c.b16 %v2184, %v2183
  %v2221 = vpack.c.b16 %v2186, %v2185
  %v2222 = vpack.c.b16 %v2188, %v2187
  %v2223 = vpack.c.b16 %v2190, %v2189
  %v2224 = vpack.c.b16 %v2192, %v2191
  %v2289 = vunpack.c.l.b16 %v1744
  %v2290 = vunpack.c.l.b16 %v1745
  %v2291 = vunpack.c.l.b16 %v1746
  %v2292 = vunpack.c.l.b16 %v1747
  %v2293 = vunpack.c.l.b16 %v1748
  %v2294 = vunpack.c.l.b16 %v1749
  %v2295 = vunpack.c.l.b16 %v1750
  %v2296 = vunpack.c.l.b16 %v1751
  %v2297 = vunpack.c.l.b16 %v1752
  %v2298 = vunpack.c.l.b16 %v1753
  %v2299 = vunpack.c.l.b16 %v1754
  %v2300 = vunpack.c.l.b16 %v1755
  %v2301 = vunpack.c.l.b16 %v1756
  %v2302 = vunpack.c.l.b16 %v1757
  %v2303 = vunpack.c.l.b16 %v1758
  %v2304 = vunpack.c.l.b16 %v1759
  %v2305 = vunpack.c.l.b16 %v1760
  %v2306 = vunpack.c.l.b16 %v1761
  %v2307 = vunpack.c.l.b16 %v1762
  %v2308 = vunpack.c.l.b16 %v1763
  %v2309 = vunpack.c.l.b16 %v1764
  %v2310 = vunpack.c.l.b16 %v1765
  %v2311 = vunpack.c.l.b16 %v1766
  %v2312 = vunpack.c.l.b16 %v1767
  %v2313 = vunpack.c.l.b16 %v1768
  %v2314 = vunpack.c.l.b16 %v1769
  %v2315 = vunpack.c.l.b16 %v1770
  %v2316 = vunpack.c.l.b16 %v1771
  %v2317 = vunpack.c.l.b16 %v1772
  %v2318 = vunpack.c.l.b16 %v1773
  %v2319 = vunpack.c.l.b16 %v1774
  %v2320 = vunpack.c.l.b16 %v1775
  %v2321 = vpack.c.b16 %v2289, %v2289
  %v2322 = vpack.c.b16 %v2290, %v2290
  %v2323 = vpack.c.b16 %v2291, %v2291
  %v2324 = vpack.c.b16 %v2292, %v2292
  %v2325 = vpack.c.b16 %v2293, %v2293
  %v2326 = vpack.c.b16 %v2294, %v2294
  %v2327 = vpack.c.b16 %v2295, %v2295
  %v2328 = vpack.c.b16 %v2296, %v2296
  %v2329 = vpack.c.b16 %v2297, %v2297
  %v2330 = vpack.c.b16 %v2298, %v2298
  %v2331 = vpack.c.b16 %v2299, %v2299
  %v2332 = vpack.c.b16 %v2300, %v2300
  %v2333 = vpack.c.b16 %v2301, %v2301
  %v2334 = vpack.c.b16 %v2302, %v2302
  %v2335 = vpack.c.b16 %v2303, %v2303
  %v2336 = vpack.c.b16 %v2304, %v2304
  %v2337 = vpack.c.b16 %v2305, %v2305
  %v2338 = vpack.c.b16 %v2306, %v2306
  %v2339 = vpack.c.b16 %v2307, %v2307
  %v2340 = vpack.c.b16 %v2308, %v2308
  %v2341 = vpack.c.b16 %v2309, %v2309
  %v2342 = vpack.c.b16 %v2310, %v2310
  %v2343 = vpack.c.b16 %v2311, %v2311
  %v2344 = vpack.c.b16 %v2312, %v2312
  %v2345 = vpack.c.b16 %v2313, %v2313
  %v2346 = vpack.c.b16 %v2314, %v2314
  %v2347 = vpack.c.b16 %v2315, %v2315
  %v2348 = vpack.c.b16 %v2316, %v2316
  %v2349 = vpack.c.b16 %v2317, %v2317
  %v2350 = vpack.c.b16 %v2318, %v2318
  %v2351 = vpack.c.b16 %v2319, %v2319
  %v2352 = vpack.c.b16 %v2320, %v2320
  %vm2353 = vsmask.f32 7424
  %v2355 = vshrl.u32 %v2193, 16
  %v2357 = vshll.u32 %v2193, 16
  %v2359 = vrot.slane %v2357, 1
  %v2360 = vor.u32 %v2355, %v2359
  %v2362 = vshll.u32 %v2321, 16
  %v2364 = vrot.slane %v2362, 1
  %v2365 = vsel %vm2353, %v2360, %v2364
  %v2367 = vshrl.u32 %v2194, 16
  %v2369 = vshll.u32 %v2194, 16
  %v2371 = vrot.slane %v2369, 1
  %v2372 = vor.u32 %v2367, %v2371
  %v2374 = vshll.u32 %v2322, 16
  %v2376 = vrot.slane %v2374, 1
  %v2377 = vsel %vm2353, %v2372, %v2376
  %v2379 = vshrl.u32 %v2195, 16
  %v2381 = vshll.u32 %v2195, 16
  %v2383 = vrot.slane %v2381, 1
  %v2384 = vor.u32 %v2379, %v2383
  %v2386 = vshll.u32 %v2323, 16
  %v2388 = vrot.slane %v2386, 1
  %v2389 = vsel %vm2353, %v2384, %v2388
  %v2391 = vshrl.u32 %v2196, 16
  %v2393 = vshll.u32 %v2196, 16
  %v2395 = vrot.slane %v2393, 1
  %v2396 = vor.u32 %v2391, %v2395
  %v2398 = vshll.u32 %v2324, 16
  %v2400 = vrot.slane %v2398, 1
  %v2401 = vsel %vm2353, %v2396, %v2400
  %v2403 = vshrl.u32 %v2197, 16
  %v2405 = vshll.u32 %v2197, 16
  %v2407 = vrot.slane %v2405, 1
  %v2408 = vor.u32 %v2403, %v2407
  %v2410 = vshll.u32 %v2325, 16
  %v2412 = vrot.slane %v2410, 1
  %v2413 = vsel %vm2353, %v2408, %v2412
  %v2415 = vshrl.u32 %v2198, 16
  %v2417 = vshll.u32 %v2198, 16
  %v2419 = vrot.slane %v2417, 1
  %v2420 = vor.u32 %v2415, %v2419
  %v2422 = vshll.u32 %v2326, 16
  %v2424 = vrot.slane %v2422, 1
  %v2425 = vsel %vm2353, %v2420, %v2424
  %v2427 = vshrl.u32 %v2199, 16
  %v2429 = vshll.u32 %v2199, 16
  %v2431 = vrot.slane %v2429, 1
  %v2432 = vor.u32 %v2427, %v2431
  %v2434 = vshll.u32 %v2327, 16
  %v2436 = vrot.slane %v2434, 1
  %v2437 = vsel %vm2353, %v2432, %v2436
  %v2439 = vshrl.u32 %v2200, 16
  %v2441 = vshll.u32 %v2200, 16
  %v2443 = vrot.slane %v2441, 1
  %v2444 = vor.u32 %v2439, %v2443
  %v2446 = vshll.u32 %v2328, 16
  %v2448 = vrot.slane %v2446, 1
  %v2449 = vsel %vm2353, %v2444, %v2448
  %v2451 = vshrl.u32 %v2201, 16
  %v2453 = vshll.u32 %v2201, 16
  %v2455 = vrot.slane %v2453, 1
  %v2456 = vor.u32 %v2451, %v2455
  %v2458 = vshll.u32 %v2329, 16
  %v2460 = vrot.slane %v2458, 1
  %v2461 = vsel %vm2353, %v2456, %v2460
  %v2463 = vshrl.u32 %v2202, 16
  %v2465 = vshll.u32 %v2202, 16
  %v2467 = vrot.slane %v2465, 1
  %v2468 = vor.u32 %v2463, %v2467
  %v2470 = vshll.u32 %v2330, 16
  %v2472 = vrot.slane %v2470, 1
  %v2473 = vsel %vm2353, %v2468, %v2472
  %v2475 = vshrl.u32 %v2203, 16
  %v2477 = vshll.u32 %v2203, 16
  %v2479 = vrot.slane %v2477, 1
  %v2480 = vor.u32 %v2475, %v2479
  %v2482 = vshll.u32 %v2331, 16
  %v2484 = vrot.slane %v2482, 1
  %v2485 = vsel %vm2353, %v2480, %v2484
  %v2487 = vshrl.u32 %v2204, 16
  %v2489 = vshll.u32 %v2204, 16
  %v2491 = vrot.slane %v2489, 1
  %v2492 = vor.u32 %v2487, %v2491
  %v2494 = vshll.u32 %v2332, 16
  %v2496 = vrot.slane %v2494, 1
  %v2497 = vsel %vm2353, %v2492, %v2496
  %v2499 = vshrl.u32 %v2205, 16
  %v2501 = vshll.u32 %v2205, 16
  %v2503 = vrot.slane %v2501, 1
  %v2504 = vor.u32 %v2499, %v2503
  %v2506 = vshll.u32 %v2333, 16
  %v2508 = vrot.slane %v2506, 1
  %v2509 = vsel %vm2353, %v2504, %v2508
  %v2511 = vshrl.u32 %v2206, 16
  %v2513 = vshll.u32 %v2206, 16
  %v2515 = vrot.slane %v2513, 1
  %v2516 = vor.u32 %v2511, %v2515
  %v2518 = vshll.u32 %v2334, 16
  %v2520 = vrot.slane %v2518, 1
  %v2521 = vsel %vm2353, %v2516, %v2520
  %v2523 = vshrl.u32 %v2207, 16
  %v2525 = vshll.u32 %v2207, 16
  %v2527 = vrot.slane %v2525, 1
  %v2528 = vor.u32 %v2523, %v2527
  %v2530 = vshll.u32 %v2335, 16
  %v2532 = vrot.slane %v2530, 1
  %v2533 = vsel %vm2353, %v2528, %v2532
  %v2535 = vshrl.u32 %v2208, 16
  %v2537 = vshll.u32 %v2208, 16
  %v2539 = vrot.slane %v2537, 1
  %v2540 = vor.u32 %v2535, %v2539
  %v2542 = vshll.u32 %v2336, 16
  %v2544 = vrot.slane %v2542, 1
  %v2545 = vsel %vm2353, %v2540, %v2544
  %v2547 = vshrl.u32 %v2209, 16
  %v2549 = vshll.u32 %v2209, 16
  %v2551 = vrot.slane %v2549, 1
  %v2552 = vor.u32 %v2547, %v2551
  %v2554 = vshll.u32 %v2337, 16
  %v2556 = vrot.slane %v2554, 1
  %v2557 = vsel %vm2353, %v2552, %v2556
  %v2559 = vshrl.u32 %v2210, 16
  %v2561 = vshll.u32 %v2210, 16
  %v2563 = vrot.slane %v2561, 1
  %v2564 = vor.u32 %v2559, %v2563
  %v2566 = vshll.u32 %v2338, 16
  %v2568 = vrot.slane %v2566, 1
  %v2569 = vsel %vm2353, %v2564, %v2568
  %v2571 = vshrl.u32 %v2211, 16
  %v2573 = vshll.u32 %v2211, 16
  %v2575 = vrot.slane %v2573, 1
  %v2576 = vor.u32 %v2571, %v2575
  %v2578 = vshll.u32 %v2339, 16
  %v2580 = vrot.slane %v2578, 1
  %v2581 = vsel %vm2353, %v2576, %v2580
  %v2583 = vshrl.u32 %v2212, 16
  %v2585 = vshll.u32 %v2212, 16
  %v2587 = vrot.slane %v2585, 1
  %v2588 = vor.u32 %v2583, %v2587
  %v2590 = vshll.u32 %v2340, 16
  %v2592 = vrot.slane %v2590, 1
  %v2593 = vsel %vm2353, %v2588, %v2592
  %v2595 = vshrl.u32 %v2213, 16
  %v2597 = vshll.u32 %v2213, 16
  %v2599 = vrot.slane %v2597, 1
  %v2600 = vor.u32 %v2595, %v2599
  %v2602 = vshll.u32 %v2341, 16
  %v2604 = vrot.slane %v2602, 1
  %v2605 = vsel %vm2353, %v2600, %v2604
  %v2607 = vshrl.u32 %v2214, 16
  %v2609 = vshll.u32 %v2214, 16
  %v2611 = vrot.slane %v2609, 1
  %v2612 = vor.u32 %v2607, %v2611
  %v2614 = vshll.u32 %v2342, 16
  %v2616 = vrot.slane %v2614, 1
  %v2617 = vsel %vm2353, %v2612, %v2616
  %v2619 = vshrl.u32 %v2215, 16
  %v2621 = vshll.u32 %v2215, 16
  %v2623 = vrot.slane %v2621, 1
  %v2624 = vor.u32 %v2619, %v2623
  %v2626 = vshll.u32 %v2343, 16
  %v2628 = vrot.slane %v2626, 1
  %v2629 = vsel %vm2353, %v2624, %v2628
  %v2631 = vshrl.u32 %v2216, 16
  %v2633 = vshll.u32 %v2216, 16
  %v2635 = vrot.slane %v2633, 1
  %v2636 = vor.u32 %v2631, %v2635
  %v2638 = vshll.u32 %v2344, 16
  %v2640 = vrot.slane %v2638, 1
  %v2641 = vsel %vm2353, %v2636, %v2640
  %v2643 = vshrl.u32 %v2217, 16
  %v2645 = vshll.u32 %v2217, 16
  %v2647 = vrot.slane %v2645, 1
  %v2648 = vor.u32 %v2643, %v2647
  %v2650 = vshll.u32 %v2345, 16
  %v2652 = vrot.slane %v2650, 1
  %v2653 = vsel %vm2353, %v2648, %v2652
  %v2655 = vshrl.u32 %v2218, 16
  %v2657 = vshll.u32 %v2218, 16
  %v2659 = vrot.slane %v2657, 1
  %v2660 = vor.u32 %v2655, %v2659
  %v2662 = vshll.u32 %v2346, 16
  %v2664 = vrot.slane %v2662, 1
  %v2665 = vsel %vm2353, %v2660, %v2664
  %v2667 = vshrl.u32 %v2219, 16
  %v2669 = vshll.u32 %v2219, 16
  %v2671 = vrot.slane %v2669, 1
  %v2672 = vor.u32 %v2667, %v2671
  %v2674 = vshll.u32 %v2347, 16
  %v2676 = vrot.slane %v2674, 1
  %v2677 = vsel %vm2353, %v2672, %v2676
  %v2679 = vshrl.u32 %v2220, 16
  %v2681 = vshll.u32 %v2220, 16
  %v2683 = vrot.slane %v2681, 1
  %v2684 = vor.u32 %v2679, %v2683
  %v2686 = vshll.u32 %v2348, 16
  %v2688 = vrot.slane %v2686, 1
  %v2689 = vsel %vm2353, %v2684, %v2688
  %v2691 = vshrl.u32 %v2221, 16
  %v2693 = vshll.u32 %v2221, 16
  %v2695 = vrot.slane %v2693, 1
  %v2696 = vor.u32 %v2691, %v2695
  %v2698 = vshll.u32 %v2349, 16
  %v2700 = vrot.slane %v2698, 1
  %v2701 = vsel %vm2353, %v2696, %v2700
  %v2703 = vshrl.u32 %v2222, 16
  %v2705 = vshll.u32 %v2222, 16
  %v2707 = vrot.slane %v2705, 1
  %v2708 = vor.u32 %v2703, %v2707
  %v2710 = vshll.u32 %v2350, 16
  %v2712 = vrot.slane %v2710, 1
  %v2713 = vsel %vm2353, %v2708, %v2712
  %v2715 = vshrl.u32 %v2223, 16
  %v2717 = vshll.u32 %v2223, 16
  %v2719 = vrot.slane %v2717, 1
  %v2720 = vor.u32 %v2715, %v2719
  %v2722 = vshll.u32 %v2351, 16
  %v2724 = vrot.slane %v2722, 1
  %v2725 = vsel %vm2353, %v2720, %v2724
  %v2727 = vshrl.u32 %v2224, 16
  %v2729 = vshll.u32 %v2224, 16
  %v2731 = vrot.slane %v2729, 1
  %v2732 = vor.u32 %v2727, %v2731
  %v2734 = vshll.u32 %v2352, 16
  %v2736 = vrot.slane %v2734, 1
  %v2737 = vsel %vm2353, %v2732, %v2736
  %v2802 = vunpack.c.l.b16 %v1776
  %v2803 = vunpack.c.l.b16 %v1777
  %v2804 = vunpack.c.l.b16 %v1778
  %v2805 = vunpack.c.l.b16 %v1779
  %v2806 = vunpack.c.l.b16 %v1780
  %v2807 = vunpack.c.l.b16 %v1781
  %v2808 = vunpack.c.l.b16 %v1782
  %v2809 = vunpack.c.l.b16 %v1783
  %v2810 = vunpack.c.l.b16 %v1784
  %v2811 = vunpack.c.l.b16 %v1785
  %v2812 = vunpack.c.l.b16 %v1786
  %v2813 = vunpack.c.l.b16 %v1787
  %v2814 = vunpack.c.l.b16 %v1788
  %v2815 = vunpack.c.l.b16 %v1789
  %v2816 = vunpack.c.l.b16 %v1790
  %v2817 = vunpack.c.l.b16 %v1791
  %v2818 = vunpack.c.l.b16 %v1792
  %v2819 = vunpack.c.l.b16 %v1793
  %v2820 = vunpack.c.l.b16 %v1794
  %v2821 = vunpack.c.l.b16 %v1795
  %v2822 = vunpack.c.l.b16 %v1796
  %v2823 = vunpack.c.l.b16 %v1797
  %v2824 = vunpack.c.l.b16 %v1798
  %v2825 = vunpack.c.l.b16 %v1799
  %v2826 = vunpack.c.l.b16 %v1800
  %v2827 = vunpack.c.l.b16 %v1801
  %v2828 = vunpack.c.l.b16 %v1802
  %v2829 = vunpack.c.l.b16 %v1803
  %v2830 = vunpack.c.l.b16 %v1804
  %v2831 = vunpack.c.l.b16 %v1805
  %v2832 = vunpack.c.l.b16 %v1806
  %v2833 = vunpack.c.l.b16 %v1807
  %v2834 = vpack.c.b16 %v2130, %v2802
  %v2835 = vpack.c.b16 %v2132, %v2803
  %v2836 = vpack.c.b16 %v2134, %v2804
  %v2837 = vpack.c.b16 %v2136, %v2805
  %v2838 = vpack.c.b16 %v2138, %v2806
  %v2839 = vpack.c.b16 %v2140, %v2807
  %v2840 = vpack.c.b16 %v2142, %v2808
  %v2841 = vpack.c.b16 %v2144, %v2809
  %v2842 = vpack.c.b16 %v2146, %v2810
  %v2843 = vpack.c.b16 %v2148, %v2811
  %v2844 = vpack.c.b16 %v2150, %v2812
  %v2845 = vpack.c.b16 %v2152, %v2813
  %v2846 = vpack.c.b16 %v2154, %v2814
  %v2847 = vpack.c.b16 %v2156, %v2815
  %v2848 = vpack.c.b16 %v2158, %v2816
  %v2849 = vpack.c.b16 %v2160, %v2817
  %v2850 = vpack.c.b16 %v2162, %v2818
  %v2851 = vpack.c.b16 %v2164, %v2819
  %v2852 = vpack.c.b16 %v2166, %v2820
  %v2853 = vpack.c.b16 %v2168, %v2821
  %v2854 = vpack.c.b16 %v2170, %v2822
  %v2855 = vpack.c.b16 %v2172, %v2823
  %v2856 = vpack.c.b16 %v2174, %v2824
  %v2857 = vpack.c.b16 %v2176, %v2825
  %v2858 = vpack.c.b16 %v2178, %v2826
  %v2859 = vpack.c.b16 %v2180, %v2827
  %v2860 = vpack.c.b16 %v2182, %v2828
  %v2861 = vpack.c.b16 %v2184, %v2829
  %v2862 = vpack.c.b16 %v2186, %v2830
  %v2863 = vpack.c.b16 %v2188, %v2831
  %v2864 = vpack.c.b16 %v2190, %v2832
  %v2865 = vpack.c.b16 %v2192, %v2833
  %vm2866 = vcmask 1046528
  %v2867 = vrot.slane %v2834, 1
  %v2868 = vrot.slane %v2321, 1
  %v2869 = vsel %vm2866, %v2867, %v2868
  %v2870 = vrot.slane %v2835, 1
  %v2871 = vrot.slane %v2322, 1
  %v2872 = vsel %vm2866, %v2870, %v2871
  %v2873 = vrot.slane %v2836, 1
  %v2874 = vrot.slane %v2323, 1
  %v2875 = vsel %vm2866, %v2873, %v2874
  %v2876 = vrot.slane %v2837, 1
  %v2877 = vrot.slane %v2324, 1
  %v2878 = vsel %vm2866, %v2876, %v2877
  %v2879 = vrot.slane %v2838, 1
  %v2880 = vrot.slane %v2325, 1
  %v2881 = vsel %vm2866, %v2879, %v2880
  %v2882 = vrot.slane %v2839, 1
  %v2883 = vrot.slane %v2326, 1
  %v2884 = vsel %vm2866, %v2882, %v2883
  %v2885 = vrot.slane %v2840, 1
  %v2886 = vrot.slane %v2327, 1
  %v2887 = vsel %vm2866, %v2885, %v2886
  %v2888 = vrot.slane %v2841, 1
  %v2889 = vrot.slane %v2328, 1
  %v2890 = vsel %vm2866, %v2888, %v2889
  %v2891 = vrot.slane %v2842, 1
  %v2892 = vrot.slane %v2329, 1
  %v2893 = vsel %vm2866, %v2891, %v2892
  %v2894 = vrot.slane %v2843, 1
  %v2895 = vrot.slane %v2330, 1
  %v2896 = vsel %vm2866, %v2894, %v2895
  %v2897 = vrot.slane %v2844, 1
  %v2898 = vrot.slane %v2331, 1
  %v2899 = vsel %vm2866, %v2897, %v2898
  %v2900 = vrot.slane %v2845, 1
  %v2901 = vrot.slane %v2332, 1
  %v2902 = vsel %vm2866, %v2900, %v2901
  %v2903 = vrot.slane %v2846, 1
  %v2904 = vrot.slane %v2333, 1
  %v2905 = vsel %vm2866, %v2903, %v2904
  %v2906 = vrot.slane %v2847, 1
  %v2907 = vrot.slane %v2334, 1
  %v2908 = vsel %vm2866, %v2906, %v2907
  %v2909 = vrot.slane %v2848, 1
  %v2910 = vrot.slane %v2335, 1
  %v2911 = vsel %vm2866, %v2909, %v2910
  %v2912 = vrot.slane %v2849, 1
  %v2913 = vrot.slane %v2336, 1
  %v2914 = vsel %vm2866, %v2912, %v2913
  %v2915 = vrot.slane %v2850, 1
  %v2916 = vrot.slane %v2337, 1
  %v2917 = vsel %vm2866, %v2915, %v2916
  %v2918 = vrot.slane %v2851, 1
  %v2919 = vrot.slane %v2338, 1
  %v2920 = vsel %vm2866, %v2918, %v2919
  %v2921 = vrot.slane %v2852, 1
  %v2922 = vrot.slane %v2339, 1
  %v2923 = vsel %vm2866, %v2921, %v2922
  %v2924 = vrot.slane %v2853, 1
  %v2925 = vrot.slane %v2340, 1
  %v2926 = vsel %vm2866, %v2924, %v2925
  %v2927 = vrot.slane %v2854, 1
  %v2928 = vrot.slane %v2341, 1
  %v2929 = vsel %vm2866, %v2927, %v2928
  %v2930 = vrot.slane %v2855, 1
  %v2931 = vrot.slane %v2342, 1
  %v2932 = vsel %vm2866, %v2930, %v2931
  %v2933 = vrot.slane %v2856, 1
  %v2934 = vrot.slane %v2343, 1
  %v2935 = vsel %vm2866, %v2933, %v2934
  %v2936 = vrot.slane %v2857, 1
  %v2937 = vrot.slane %v2344, 1
  %v2938 = vsel %vm2866, %v2936, %v2937
  %v2939 = vrot.slane %v2858, 1
  %v2940 = vrot.slane %v2345, 1
  %v2941 = vsel %vm2866, %v2939, %v2940
  %v2942 = vrot.slane %v2859, 1
  %v2943 = vrot.slane %v2346, 1
  %v2944 = vsel %vm2866, %v2942, %v2943
  %v2945 = vrot.slane %v2860, 1
  %v2946 = vrot.slane %v2347, 1
  %v2947 = vsel %vm2866, %v2945, %v2946
  %v2948 = vrot.slane %v2861, 1
  %v2949 = vrot.slane %v2348, 1
  %v2950 = vsel %vm2866, %v2948, %v2949
  %v2951 = vrot.slane %v2862, 1
  %v2952 = vrot.slane %v2349, 1
  %v2953 = vsel %vm2866, %v2951, %v2952
  %v2954 = vrot.slane %v2863, 1
  %v2955 = vrot.slane %v2350, 1
  %v2956 = vsel %vm2866, %v2954, %v2955
  %v2957 = vrot.slane %v2864, 1
  %v2958 = vrot.slane %v2351, 1
  %v2959 = vsel %vm2866, %v2957, %v2958
  %v2960 = vrot.slane %v2865, 1
  %v2961 = vrot.slane %v2352, 1
  %v2962 = vsel %vm2866, %v2960, %v2961
  %v3059 = vunpack.c.l.b16 %v1808
  %v3060 = vunpack.c.l.b16 %v1809
  %v3061 = vunpack.c.l.b16 %v1810
  %v3062 = vunpack.c.l.b16 %v1811
  %v3063 = vunpack.c.l.b16 %v1812
  %v3064 = vunpack.c.l.b16 %v1813
  %v3065 = vunpack.c.l.b16 %v1814
  %v3066 = vunpack.c.l.b16 %v1815
  %v3067 = vunpack.c.l.b16 %v1816
  %v3068 = vunpack.c.l.b16 %v1817
  %v3069 = vunpack.c.l.b16 %v1818
  %v3070 = vunpack.c.l.b16 %v1819
  %v3071 = vunpack.c.l.b16 %v1820
  %v3072 = vunpack.c.l.b16 %v1821
  %v3073 = vunpack.c.l.b16 %v1822
  %v3074 = vunpack.c.l.b16 %v1823
  %v3075 = vunpack.c.l.b16 %v1824
  %v3076 = vunpack.c.l.b16 %v1825
  %v3077 = vunpack.c.l.b16 %v1826
  %v3078 = vunpack.c.l.b16 %v1827
  %v3079 = vunpack.c.l.b16 %v1828
  %v3080 = vunpack.c.l.b16 %v1829
  %v3081 = vunpack.c.l.b16 %v1830
  %v3082 = vunpack.c.l.b16 %v1831
  %v3083 = vunpack.c.l.b16 %v1832
  %v3084 = vunpack.c.l.b16 %v1833
  %v3085 = vunpack.c.l.b16 %v1834
  %v3086 = vunpack.c.l.b16 %v1835
  %v3087 = vunpack.c.l.b16 %v1836
  %v3088 = vunpack.c.l.b16 %v1837
  %v3089 = vunpack.c.l.b16 %v1838
  %v3090 = vunpack.c.l.b16 %v1839
  %v3091 = vunpack.c.l.b16 %v1840
  %v3092 = vunpack.c.l.b16 %v1841
  %v3093 = vunpack.c.l.b16 %v1842
  %v3094 = vunpack.c.l.b16 %v1843
  %v3095 = vunpack.c.l.b16 %v1844
  %v3096 = vunpack.c.l.b16 %v1845
  %v3097 = vunpack.c.l.b16 %v1846
  %v3098 = vunpack.c.l.b16 %v1847
  %v3099 = vunpack.c.l.b16 %v1848
  %v3100 = vunpack.c.l.b16 %v1849
  %v3101 = vunpack.c.l.b16 %v1850
  %v3102 = vunpack.c.l.b16 %v1851
  %v3103 = vunpack.c.l.b16 %v1852
  %v3104 = vunpack.c.l.b16 %v1853
  %v3105 = vunpack.c.l.b16 %v1854
  %v3106 = vunpack.c.l.b16 %v1855
  %v3107 = vunpack.c.l.b16 %v1856
  %v3108 = vunpack.c.l.b16 %v1857
  %v3109 = vunpack.c.l.b16 %v1858
  %v3110 = vunpack.c.l.b16 %v1859
  %v3111 = vunpack.c.l.b16 %v1860
  %v3112 = vunpack.c.l.b16 %v1861
  %v3113 = vunpack.c.l.b16 %v1862
  %v3114 = vunpack.c.l.b16 %v1863
  %v3115 = vunpack.c.l.b16 %v1864
  %v3116 = vunpack.c.l.b16 %v1865
  %v3117 = vunpack.c.l.b16 %v1866
  %v3118 = vunpack.c.l.b16 %v1867
  %v3119 = vunpack.c.l.b16 %v1868
  %v3120 = vunpack.c.l.b16 %v1869
  %v3121 = vunpack.c.l.b16 %v1870
  %v3122 = vunpack.c.l.b16 %v1871
  %v3123 = vpack.c.b16 %v3060, %v3059
  %v3124 = vpack.c.b16 %v3062, %v3061
  %v3125 = vpack.c.b16 %v3064, %v3063
  %v3126 = vpack.c.b16 %v3066, %v3065
  %v3127 = vpack.c.b16 %v3068, %v3067
  %v3128 = vpack.c.b16 %v3070, %v3069
  %v3129 = vpack.c.b16 %v3072, %v3071
  %v3130 = vpack.c.b16 %v3074, %v3073
  %v3131 = vpack.c.b16 %v3076, %v3075
  %v3132 = vpack.c.b16 %v3078, %v3077
  %v3133 = vpack.c.b16 %v3080, %v3079
  %v3134 = vpack.c.b16 %v3082, %v3081
  %v3135 = vpack.c.b16 %v3084, %v3083
  %v3136 = vpack.c.b16 %v3086, %v3085
  %v3137 = vpack.c.b16 %v3088, %v3087
  %v3138 = vpack.c.b16 %v3090, %v3089
  %v3139 = vpack.c.b16 %v3092, %v3091
  %v3140 = vpack.c.b16 %v3094, %v3093
  %v3141 = vpack.c.b16 %v3096, %v3095
  %v3142 = vpack.c.b16 %v3098, %v3097
  %v3143 = vpack.c.b16 %v3100, %v3099
  %v3144 = vpack.c.b16 %v3102, %v3101
  %v3145 = vpack.c.b16 %v3104, %v3103
  %v3146 = vpack.c.b16 %v3106, %v3105
  %v3147 = vpack.c.b16 %v3108, %v3107
  %v3148 = vpack.c.b16 %v3110, %v3109
  %v3149 = vpack.c.b16 %v3112, %v3111
  %v3150 = vpack.c.b16 %v3114, %v3113
  %v3151 = vpack.c.b16 %v3116, %v3115
  %v3152 = vpack.c.b16 %v3118, %v3117
  %v3153 = vpack.c.b16 %v3120, %v3119
  %v3154 = vpack.c.b16 %v3122, %v3121
  %v3219 = vunpack.c.l.b16 %v1872
  %v3220 = vunpack.c.l.b16 %v1873
  %v3221 = vunpack.c.l.b16 %v1874
  %v3222 = vunpack.c.l.b16 %v1875
  %v3223 = vunpack.c.l.b16 %v1876
  %v3224 = vunpack.c.l.b16 %v1877
  %v3225 = vunpack.c.l.b16 %v1878
  %v3226 = vunpack.c.l.b16 %v1879
  %v3227 = vunpack.c.l.b16 %v1880
  %v3228 = vunpack.c.l.b16 %v1881
  %v3229 = vunpack.c.l.b16 %v1882
  %v3230 = vunpack.c.l.b16 %v1883
  %v3231 = vunpack.c.l.b16 %v1884
  %v3232 = vunpack.c.l.b16 %v1885
  %v3233 = vunpack.c.l.b16 %v1886
  %v3234 = vunpack.c.l.b16 %v1887
  %v3235 = vunpack.c.l.b16 %v1888
  %v3236 = vunpack.c.l.b16 %v1889
  %v3237 = vunpack.c.l.b16 %v1890
  %v3238 = vunpack.c.l.b16 %v1891
  %v3239 = vunpack.c.l.b16 %v1892
  %v3240 = vunpack.c.l.b16 %v1893
  %v3241 = vunpack.c.l.b16 %v1894
  %v3242 = vunpack.c.l.b16 %v1895
  %v3243 = vunpack.c.l.b16 %v1896
  %v3244 = vunpack.c.l.b16 %v1897
  %v3245 = vunpack.c.l.b16 %v1898
  %v3246 = vunpack.c.l.b16 %v1899
  %v3247 = vunpack.c.l.b16 %v1900
  %v3248 = vunpack.c.l.b16 %v1901
  %v3249 = vunpack.c.l.b16 %v1902
  %v3250 = vunpack.c.l.b16 %v1903
  %v3251 = vpack.c.b16 %v3219, %v3219
  %v3252 = vpack.c.b16 %v3220, %v3220
  %v3253 = vpack.c.b16 %v3221, %v3221
  %v3254 = vpack.c.b16 %v3222, %v3222
  %v3255 = vpack.c.b16 %v3223, %v3223
  %v3256 = vpack.c.b16 %v3224, %v3224
  %v3257 = vpack.c.b16 %v3225, %v3225
  %v3258 = vpack.c.b16 %v3226, %v3226
  %v3259 = vpack.c.b16 %v3227, %v3227
  %v3260 = vpack.c.b16 %v3228, %v3228
  %v3261 = vpack.c.b16 %v3229, %v3229
  %v3262 = vpack.c.b16 %v3230, %v3230
  %v3263 = vpack.c.b16 %v3231, %v3231
  %v3264 = vpack.c.b16 %v3232, %v3232
  %v3265 = vpack.c.b16 %v3233, %v3233
  %v3266 = vpack.c.b16 %v3234, %v3234
  %v3267 = vpack.c.b16 %v3235, %v3235
  %v3268 = vpack.c.b16 %v3236, %v3236
  %v3269 = vpack.c.b16 %v3237, %v3237
  %v3270 = vpack.c.b16 %v3238, %v3238
  %v3271 = vpack.c.b16 %v3239, %v3239
  %v3272 = vpack.c.b16 %v3240, %v3240
  %v3273 = vpack.c.b16 %v3241, %v3241
  %v3274 = vpack.c.b16 %v3242, %v3242
  %v3275 = vpack.c.b16 %v3243, %v3243
  %v3276 = vpack.c.b16 %v3244, %v3244
  %v3277 = vpack.c.b16 %v3245, %v3245
  %v3278 = vpack.c.b16 %v3246, %v3246
  %v3279 = vpack.c.b16 %v3247, %v3247
  %v3280 = vpack.c.b16 %v3248, %v3248
  %v3281 = vpack.c.b16 %v3249, %v3249
  %v3282 = vpack.c.b16 %v3250, %v3250
  %v3284 = vshrl.u32 %v3123, 16
  %v3286 = vshll.u32 %v3123, 16
  %v3288 = vrot.slane %v3286, 1
  %v3289 = vor.u32 %v3284, %v3288
  %v3291 = vshll.u32 %v3251, 16
  %v3293 = vrot.slane %v3291, 1
  %v3294 = vsel %vm2353, %v3289, %v3293
  %v3296 = vshrl.u32 %v3124, 16
  %v3298 = vshll.u32 %v3124, 16
  %v3300 = vrot.slane %v3298, 1
  %v3301 = vor.u32 %v3296, %v3300
  %v3303 = vshll.u32 %v3252, 16
  %v3305 = vrot.slane %v3303, 1
  %v3306 = vsel %vm2353, %v3301, %v3305
  %v3308 = vshrl.u32 %v3125, 16
  %v3310 = vshll.u32 %v3125, 16
  %v3312 = vrot.slane %v3310, 1
  %v3313 = vor.u32 %v3308, %v3312
  %v3315 = vshll.u32 %v3253, 16
  %v3317 = vrot.slane %v3315, 1
  %v3318 = vsel %vm2353, %v3313, %v3317
  %v3320 = vshrl.u32 %v3126, 16
  %v3322 = vshll.u32 %v3126, 16
  %v3324 = vrot.slane %v3322, 1
  %v3325 = vor.u32 %v3320, %v3324
  %v3327 = vshll.u32 %v3254, 16
  %v3329 = vrot.slane %v3327, 1
  %v3330 = vsel %vm2353, %v3325, %v3329
  %v3332 = vshrl.u32 %v3127, 16
  %v3334 = vshll.u32 %v3127, 16
  %v3336 = vrot.slane %v3334, 1
  %v3337 = vor.u32 %v3332, %v3336
  %v3339 = vshll.u32 %v3255, 16
  %v3341 = vrot.slane %v3339, 1
  %v3342 = vsel %vm2353, %v3337, %v3341
  %v3344 = vshrl.u32 %v3128, 16
  %v3346 = vshll.u32 %v3128, 16
  %v3348 = vrot.slane %v3346, 1
  %v3349 = vor.u32 %v3344, %v3348
  %v3351 = vshll.u32 %v3256, 16
  %v3353 = vrot.slane %v3351, 1
  %v3354 = vsel %vm2353, %v3349, %v3353
  %v3356 = vshrl.u32 %v3129, 16
  %v3358 = vshll.u32 %v3129, 16
  %v3360 = vrot.slane %v3358, 1
  %v3361 = vor.u32 %v3356, %v3360
  %v3363 = vshll.u32 %v3257, 16
  %v3365 = vrot.slane %v3363, 1
  %v3366 = vsel %vm2353, %v3361, %v3365
  %v3368 = vshrl.u32 %v3130, 16
  %v3370 = vshll.u32 %v3130, 16
  %v3372 = vrot.slane %v3370, 1
  %v3373 = vor.u32 %v3368, %v3372
  %v3375 = vshll.u32 %v3258, 16
  %v3377 = vrot.slane %v3375, 1
  %v3378 = vsel %vm2353, %v3373, %v3377
  %v3380 = vshrl.u32 %v3131, 16
  %v3382 = vshll.u32 %v3131, 16
  %v3384 = vrot.slane %v3382, 1
  %v3385 = vor.u32 %v3380, %v3384
  %v3387 = vshll.u32 %v3259, 16
  %v3389 = vrot.slane %v3387, 1
  %v3390 = vsel %vm2353, %v3385, %v3389
  %v3392 = vshrl.u32 %v3132, 16
  %v3394 = vshll.u32 %v3132, 16
  %v3396 = vrot.slane %v3394, 1
  %v3397 = vor.u32 %v3392, %v3396
  %v3399 = vshll.u32 %v3260, 16
  %v3401 = vrot.slane %v3399, 1
  %v3402 = vsel %vm2353, %v3397, %v3401
  %v3404 = vshrl.u32 %v3133, 16
  %v3406 = vshll.u32 %v3133, 16
  %v3408 = vrot.slane %v3406, 1
  %v3409 = vor.u32 %v3404, %v3408
  %v3411 = vshll.u32 %v3261, 16
  %v3413 = vrot.slane %v3411, 1
  %v3414 = vsel %vm2353, %v3409, %v3413
  %v3416 = vshrl.u32 %v3134, 16
  %v3418 = vshll.u32 %v3134, 16
  %v3420 = vrot.slane %v3418, 1
  %v3421 = vor.u32 %v3416, %v3420
  %v3423 = vshll.u32 %v3262, 16
  %v3425 = vrot.slane %v3423, 1
  %v3426 = vsel %vm2353, %v3421, %v3425
  %v3428 = vshrl.u32 %v3135, 16
  %v3430 = vshll.u32 %v3135, 16
  %v3432 = vrot.slane %v3430, 1
  %v3433 = vor.u32 %v3428, %v3432
  %v3435 = vshll.u32 %v3263, 16
  %v3437 = vrot.slane %v3435, 1
  %v3438 = vsel %vm2353, %v3433, %v3437
  %v3440 = vshrl.u32 %v3136, 16
  %v3442 = vshll.u32 %v3136, 16
  %v3444 = vrot.slane %v3442, 1
  %v3445 = vor.u32 %v3440, %v3444
  %v3447 = vshll.u32 %v3264, 16
  %v3449 = vrot.slane %v3447, 1
  %v3450 = vsel %vm2353, %v3445, %v3449
  %v3452 = vshrl.u32 %v3137, 16
  %v3454 = vshll.u32 %v3137, 16
  %v3456 = vrot.slane %v3454, 1
  %v3457 = vor.u32 %v3452, %v3456
  %v3459 = vshll.u32 %v3265, 16
  %v3461 = vrot.slane %v3459, 1
  %v3462 = vsel %vm2353, %v3457, %v3461
  %v3464 = vshrl.u32 %v3138, 16
  %v3466 = vshll.u32 %v3138, 16
  %v3468 = vrot.slane %v3466, 1
  %v3469 = vor.u32 %v3464, %v3468
  %v3471 = vshll.u32 %v3266, 16
  %v3473 = vrot.slane %v3471, 1
  %v3474 = vsel %vm2353, %v3469, %v3473
  %v3476 = vshrl.u32 %v3139, 16
  %v3478 = vshll.u32 %v3139, 16
  %v3480 = vrot.slane %v3478, 1
  %v3481 = vor.u32 %v3476, %v3480
  %v3483 = vshll.u32 %v3267, 16
  %v3485 = vrot.slane %v3483, 1
  %v3486 = vsel %vm2353, %v3481, %v3485
  %v3488 = vshrl.u32 %v3140, 16
  %v3490 = vshll.u32 %v3140, 16
  %v3492 = vrot.slane %v3490, 1
  %v3493 = vor.u32 %v3488, %v3492
  %v3495 = vshll.u32 %v3268, 16
  %v3497 = vrot.slane %v3495, 1
  %v3498 = vsel %vm2353, %v3493, %v3497
  %v3500 = vshrl.u32 %v3141, 16
  %v3502 = vshll.u32 %v3141, 16
  %v3504 = vrot.slane %v3502, 1
  %v3505 = vor.u32 %v3500, %v3504
  %v3507 = vshll.u32 %v3269, 16
  %v3509 = vrot.slane %v3507, 1
  %v3510 = vsel %vm2353, %v3505, %v3509
  %v3512 = vshrl.u32 %v3142, 16
  %v3514 = vshll.u32 %v3142, 16
  %v3516 = vrot.slane %v3514, 1
  %v3517 = vor.u32 %v3512, %v3516
  %v3519 = vshll.u32 %v3270, 16
  %v3521 = vrot.slane %v3519, 1
  %v3522 = vsel %vm2353, %v3517, %v3521
  %v3524 = vshrl.u32 %v3143, 16
  %v3526 = vshll.u32 %v3143, 16
  %v3528 = vrot.slane %v3526, 1
  %v3529 = vor.u32 %v3524, %v3528
  %v3531 = vshll.u32 %v3271, 16
  %v3533 = vrot.slane %v3531, 1
  %v3534 = vsel %vm2353, %v3529, %v3533
  %v3536 = vshrl.u32 %v3144, 16
  %v3538 = vshll.u32 %v3144, 16
  %v3540 = vrot.slane %v3538, 1
  %v3541 = vor.u32 %v3536, %v3540
  %v3543 = vshll.u32 %v3272, 16
  %v3545 = vrot.slane %v3543, 1
  %v3546 = vsel %vm2353, %v3541, %v3545
  %v3548 = vshrl.u32 %v3145, 16
  %v3550 = vshll.u32 %v3145, 16
  %v3552 = vrot.slane %v3550, 1
  %v3553 = vor.u32 %v3548, %v3552
  %v3555 = vshll.u32 %v3273, 16
  %v3557 = vrot.slane %v3555, 1
  %v3558 = vsel %vm2353, %v3553, %v3557
  %v3560 = vshrl.u32 %v3146, 16
  %v3562 = vshll.u32 %v3146, 16
  %v3564 = vrot.slane %v3562, 1
  %v3565 = vor.u32 %v3560, %v3564
  %v3567 = vshll.u32 %v3274, 16
  %v3569 = vrot.slane %v3567, 1
  %v3570 = vsel %vm2353, %v3565, %v3569
  %v3572 = vshrl.u32 %v3147, 16
  %v3574 = vshll.u32 %v3147, 16
  %v3576 = vrot.slane %v3574, 1
  %v3577 = vor.u32 %v3572, %v3576
  %v3579 = vshll.u32 %v3275, 16
  %v3581 = vrot.slane %v3579, 1
  %v3582 = vsel %vm2353, %v3577, %v3581
  %v3584 = vshrl.u32 %v3148, 16
  %v3586 = vshll.u32 %v3148, 16
  %v3588 = vrot.slane %v3586, 1
  %v3589 = vor.u32 %v3584, %v3588
  %v3591 = vshll.u32 %v3276, 16
  %v3593 = vrot.slane %v3591, 1
  %v3594 = vsel %vm2353, %v3589, %v3593
  %v3596 = vshrl.u32 %v3149, 16
  %v3598 = vshll.u32 %v3149, 16
  %v3600 = vrot.slane %v3598, 1
  %v3601 = vor.u32 %v3596, %v3600
  %v3603 = vshll.u32 %v3277, 16
  %v3605 = vrot.slane %v3603, 1
  %v3606 = vsel %vm2353, %v3601, %v3605
  %v3608 = vshrl.u32 %v3150, 16
  %v3610 = vshll.u32 %v3150, 16
  %v3612 = vrot.slane %v3610, 1
  %v3613 = vor.u32 %v3608, %v3612
  %v3615 = vshll.u32 %v3278, 16
  %v3617 = vrot.slane %v3615, 1
  %v3618 = vsel %vm2353, %v3613, %v3617
  %v3620 = vshrl.u32 %v3151, 16
  %v3622 = vshll.u32 %v3151, 16
  %v3624 = vrot.slane %v3622, 1
  %v3625 = vor.u32 %v3620, %v3624
  %v3627 = vshll.u32 %v3279, 16
  %v3629 = vrot.slane %v3627, 1
  %v3630 = vsel %vm2353, %v3625, %v3629
  %v3632 = vshrl.u32 %v3152, 16
  %v3634 = vshll.u32 %v3152, 16
  %v3636 = vrot.slane %v3634, 1
  %v3637 = vor.u32 %v3632, %v3636
  %v3639 = vshll.u32 %v3280, 16
  %v3641 = vrot.slane %v3639, 1
  %v3642 = vsel %vm2353, %v3637, %v3641
  %v3644 = vshrl.u32 %v3153, 16
  %v3646 = vshll.u32 %v3153, 16
  %v3648 = vrot.slane %v3646, 1
  %v3649 = vor.u32 %v3644, %v3648
  %v3651 = vshll.u32 %v3281, 16
  %v3653 = vrot.slane %v3651, 1
  %v3654 = vsel %vm2353, %v3649, %v3653
  %v3656 = vshrl.u32 %v3154, 16
  %v3658 = vshll.u32 %v3154, 16
  %v3660 = vrot.slane %v3658, 1
  %v3661 = vor.u32 %v3656, %v3660
  %v3663 = vshll.u32 %v3282, 16
  %v3665 = vrot.slane %v3663, 1
  %v3666 = vsel %vm2353, %v3661, %v3665
  %v3731 = vunpack.c.l.b16 %v1904
  %v3732 = vunpack.c.l.b16 %v1905
  %v3733 = vunpack.c.l.b16 %v1906
  %v3734 = vunpack.c.l.b16 %v1907
  %v3735 = vunpack.c.l.b16 %v1908
  %v3736 = vunpack.c.l.b16 %v1909
  %v3737 = vunpack.c.l.b16 %v1910
  %v3738 = vunpack.c.l.b16 %v1911
  %v3739 = vunpack.c.l.b16 %v1912
  %v3740 = vunpack.c.l.b16 %v1913
  %v3741 = vunpack.c.l.b16 %v1914
  %v3742 = vunpack.c.l.b16 %v1915
  %v3743 = vunpack.c.l.b16 %v1916
  %v3744 = vunpack.c.l.b16 %v1917
  %v3745 = vunpack.c.l.b16 %v1918
  %v3746 = vunpack.c.l.b16 %v1919
  %v3747 = vunpack.c.l.b16 %v1920
  %v3748 = vunpack.c.l.b16 %v1921
  %v3749 = vunpack.c.l.b16 %v1922
  %v3750 = vunpack.c.l.b16 %v1923
  %v3751 = vunpack.c.l.b16 %v1924
  %v3752 = vunpack.c.l.b16 %v1925
  %v3753 = vunpack.c.l.b16 %v1926
  %v3754 = vunpack.c.l.b16 %v1927
  %v3755 = vunpack.c.l.b16 %v1928
  %v3756 = vunpack.c.l.b16 %v1929
  %v3757 = vunpack.c.l.b16 %v1930
  %v3758 = vunpack.c.l.b16 %v1931
  %v3759 = vunpack.c.l.b16 %v1932
  %v3760 = vunpack.c.l.b16 %v1933
  %v3761 = vunpack.c.l.b16 %v1934
  %v3762 = vunpack.c.l.b16 %v1935
  %v3763 = vpack.c.b16 %v3060, %v3731
  %v3764 = vpack.c.b16 %v3062, %v3732
  %v3765 = vpack.c.b16 %v3064, %v3733
  %v3766 = vpack.c.b16 %v3066, %v3734
  %v3767 = vpack.c.b16 %v3068, %v3735
  %v3768 = vpack.c.b16 %v3070, %v3736
  %v3769 = vpack.c.b16 %v3072, %v3737
  %v3770 = vpack.c.b16 %v3074, %v3738
  %v3771 = vpack.c.b16 %v3076, %v3739
  %v3772 = vpack.c.b16 %v3078, %v3740
  %v3773 = vpack.c.b16 %v3080, %v3741
  %v3774 = vpack.c.b16 %v3082, %v3742
  %v3775 = vpack.c.b16 %v3084, %v3743
  %v3776 = vpack.c.b16 %v3086, %v3744
  %v3777 = vpack.c.b16 %v3088, %v3745
  %v3778 = vpack.c.b16 %v3090, %v3746
  %v3779 = vpack.c.b16 %v3092, %v3747
  %v3780 = vpack.c.b16 %v3094, %v3748
  %v3781 = vpack.c.b16 %v3096, %v3749
  %v3782 = vpack.c.b16 %v3098, %v3750
  %v3783 = vpack.c.b16 %v3100, %v3751
  %v3784 = vpack.c.b16 %v3102, %v3752
  %v3785 = vpack.c.b16 %v3104, %v3753
  %v3786 = vpack.c.b16 %v3106, %v3754
  %v3787 = vpack.c.b16 %v3108, %v3755
  %v3788 = vpack.c.b16 %v3110, %v3756
  %v3789 = vpack.c.b16 %v3112, %v3757
  %v3790 = vpack.c.b16 %v3114, %v3758
  %v3791 = vpack.c.b16 %v3116, %v3759
  %v3792 = vpack.c.b16 %v3118, %v3760
  %v3793 = vpack.c.b16 %v3120, %v3761
  %v3794 = vpack.c.b16 %v3122, %v3762
  %v3795 = vrot.slane %v3763, 1
  %v3796 = vrot.slane %v3251, 1
  %v3797 = vsel %vm2866, %v3795, %v3796
  %v3798 = vrot.slane %v3764, 1
  %v3799 = vrot.slane %v3252, 1
  %v3800 = vsel %vm2866, %v3798, %v3799
  %v3801 = vrot.slane %v3765, 1
  %v3802 = vrot.slane %v3253, 1
  %v3803 = vsel %vm2866, %v3801, %v3802
  %v3804 = vrot.slane %v3766, 1
  %v3805 = vrot.slane %v3254, 1
  %v3806 = vsel %vm2866, %v3804, %v3805
  %v3807 = vrot.slane %v3767, 1
  %v3808 = vrot.slane %v3255, 1
  %v3809 = vsel %vm2866, %v3807, %v3808
  %v3810 = vrot.slane %v3768, 1
  %v3811 = vrot.slane %v3256, 1
  %v3812 = vsel %vm2866, %v3810, %v3811
  %v3813 = vrot.slane %v3769, 1
  %v3814 = vrot.slane %v3257, 1
  %v3815 = vsel %vm2866, %v3813, %v3814
  %v3816 = vrot.slane %v3770, 1
  %v3817 = vrot.slane %v3258, 1
  %v3818 = vsel %vm2866, %v3816, %v3817
  %v3819 = vrot.slane %v3771, 1
  %v3820 = vrot.slane %v3259, 1
  %v3821 = vsel %vm2866, %v3819, %v3820
  %v3822 = vrot.slane %v3772, 1
  %v3823 = vrot.slane %v3260, 1
  %v3824 = vsel %vm2866, %v3822, %v3823
  %v3825 = vrot.slane %v3773, 1
  %v3826 = vrot.slane %v3261, 1
  %v3827 = vsel %vm2866, %v3825, %v3826
  %v3828 = vrot.slane %v3774, 1
  %v3829 = vrot.slane %v3262, 1
  %v3830 = vsel %vm2866, %v3828, %v3829
  %v3831 = vrot.slane %v3775, 1
  %v3832 = vrot.slane %v3263, 1
  %v3833 = vsel %vm2866, %v3831, %v3832
  %v3834 = vrot.slane %v3776, 1
  %v3835 = vrot.slane %v3264, 1
  %v3836 = vsel %vm2866, %v3834, %v3835
  %v3837 = vrot.slane %v3777, 1
  %v3838 = vrot.slane %v3265, 1
  %v3839 = vsel %vm2866, %v3837, %v3838
  %v3840 = vrot.slane %v3778, 1
  %v3841 = vrot.slane %v3266, 1
  %v3842 = vsel %vm2866, %v3840, %v3841
  %v3843 = vrot.slane %v3779, 1
  %v3844 = vrot.slane %v3267, 1
  %v3845 = vsel %vm2866, %v3843, %v3844
  %v3846 = vrot.slane %v3780, 1
  %v3847 = vrot.slane %v3268, 1
  %v3848 = vsel %vm2866, %v3846, %v3847
  %v3849 = vrot.slane %v3781, 1
  %v3850 = vrot.slane %v3269, 1
  %v3851 = vsel %vm2866, %v3849, %v3850
  %v3852 = vrot.slane %v3782, 1
  %v3853 = vrot.slane %v3270, 1
  %v3854 = vsel %vm2866, %v3852, %v3853
  %v3855 = vrot.slane %v3783, 1
  %v3856 = vrot.slane %v3271, 1
  %v3857 = vsel %vm2866, %v3855, %v3856
  %v3858 = vrot.slane %v3784, 1
  %v3859 = vrot.slane %v3272, 1
  %v3860 = vsel %vm2866, %v3858, %v3859
  %v3861 = vrot.slane %v3785, 1
  %v3862 = vrot.slane %v3273, 1
  %v3863 = vsel %vm2866, %v3861, %v3862
  %v3864 = vrot.slane %v3786, 1
  %v3865 = vrot.slane %v3274, 1
  %v3866 = vsel %vm2866, %v3864, %v3865
  %v3867 = vrot.slane %v3787, 1
  %v3868 = vrot.slane %v3275, 1
  %v3869 = vsel %vm2866, %v3867, %v3868
  %v3870 = vrot.slane %v3788, 1
  %v3871 = vrot.slane %v3276, 1
  %v3872 = vsel %vm2866, %v3870, %v3871
  %v3873 = vrot.slane %v3789, 1
  %v3874 = vrot.slane %v3277, 1
  %v3875 = vsel %vm2866, %v3873, %v3874
  %v3876 = vrot.slane %v3790, 1
  %v3877 = vrot.slane %v3278, 1
  %v3878 = vsel %vm2866, %v3876, %v3877
  %v3879 = vrot.slane %v3791, 1
  %v3880 = vrot.slane %v3279, 1
  %v3881 = vsel %vm2866, %v3879, %v3880
  %v3882 = vrot.slane %v3792, 1
  %v3883 = vrot.slane %v3280, 1
  %v3884 = vsel %vm2866, %v3882, %v3883
  %v3885 = vrot.slane %v3793, 1
  %v3886 = vrot.slane %v3281, 1
  %v3887 = vsel %vm2866, %v3885, %v3886
  %v3888 = vrot.slane %v3794, 1
  %v3889 = vrot.slane %v3282, 1
  %v3890 = vsel %vm2866, %v3888, %v3889
  %v3987 = vunpack.c.l.b16 %v1937
  %v3988 = vunpack.c.l.b16 %v1938
  %v3989 = vunpack.c.l.b16 %v1939
  %v3990 = vunpack.c.l.b16 %v1940
  %v3991 = vunpack.c.l.b16 %v1941
  %v3992 = vunpack.c.l.b16 %v1942
  %v3993 = vunpack.c.l.b16 %v1943
  %v3994 = vunpack.c.l.b16 %v1944
  %v3995 = vunpack.c.l.b16 %v1945
  %v3996 = vunpack.c.l.b16 %v1946
  %v3997 = vunpack.c.l.b16 %v1947
  %v3998 = vunpack.c.l.b16 %v1948
  %v3999 = vunpack.c.l.b16 %v1949
  %v4000 = vunpack.c.l.b16 %v1950
  %v4001 = vunpack.c.l.b16 %v1951
  %v4002 = vunpack.c.l.b16 %v1952
  %v4003 = vunpack.c.l.b16 %v1953
  %v4004 = vunpack.c.l.b16 %v1954
  %v4005 = vunpack.c.l.b16 %v1955
  %v4006 = vunpack.c.l.b16 %v1956
  %v4007 = vunpack.c.l.b16 %v1957
  %v4008 = vunpack.c.l.b16 %v1958
  %v4009 = vunpack.c.l.b16 %v1959
  %v4010 = vunpack.c.l.b16 %v1960
  %v4011 = vunpack.c.l.b16 %v1961
  %v4012 = vunpack.c.l.b16 %v1962
  %v4013 = vunpack.c.l.b16 %v1963
  %v4014 = vunpack.c.l.b16 %v1964
  %v4015 = vunpack.c.l.b16 %v1965
  %v4016 = vunpack.c.l.b16 %v1966
  %v4017 = vunpack.c.l.b16 %v1967
  %v4018 = vunpack.c.l.b16 %v1968
  %v4019 = vunpack.c.l.b16 %v1969
  %v4020 = vunpack.c.l.b16 %v1970
  %v4021 = vunpack.c.l.b16 %v1971
  %v4022 = vunpack.c.l.b16 %v1972
  %v4023 = vunpack.c.l.b16 %v1973
  %v4024 = vunpack.c.l.b16 %v1974
  %v4025 = vunpack.c.l.b16 %v1975
  %v4026 = vunpack.c.l.b16 %v1976
  %v4027 = vunpack.c.l.b16 %v1977
  %v4028 = vunpack.c.l.b16 %v1978
  %v4029 = vunpack.c.l.b16 %v1979
  %v4030 = vunpack.c.l.b16 %v1980
  %v4031 = vunpack.c.l.b16 %v1981
  %v4032 = vunpack.c.l.b16 %v1982
  %v4033 = vunpack.c.l.b16 %v1983
  %v4034 = vunpack.c.l.b16 %v1984
  %v4035 = vunpack.c.l.b16 %v1985
  %v4036 = vunpack.c.l.b16 %v1986
  %v4037 = vunpack.c.l.b16 %v1987
  %v4038 = vunpack.c.l.b16 %v1988
  %v4039 = vunpack.c.l.b16 %v1989
  %v4040 = vunpack.c.l.b16 %v1990
  %v4041 = vunpack.c.l.b16 %v1991
  %v4042 = vunpack.c.l.b16 %v1992
  %v4043 = vunpack.c.l.b16 %v1993
  %v4044 = vunpack.c.l.b16 %v1994
  %v4045 = vunpack.c.l.b16 %v1995
  %v4046 = vunpack.c.l.b16 %v1996
  %v4047 = vunpack.c.l.b16 %v1997
  %v4048 = vunpack.c.l.b16 %v1998
  %v4049 = vunpack.c.l.b16 %v1999
  %v4050 = vunpack.c.l.b16 %v2000
  %v4051 = vpack.c.b16 %v3988, %v3987
  %v4052 = vpack.c.b16 %v3990, %v3989
  %v4053 = vpack.c.b16 %v3992, %v3991
  %v4054 = vpack.c.b16 %v3994, %v3993
  %v4055 = vpack.c.b16 %v3996, %v3995
  %v4056 = vpack.c.b16 %v3998, %v3997
  %v4057 = vpack.c.b16 %v4000, %v3999
  %v4058 = vpack.c.b16 %v4002, %v4001
  %v4059 = vpack.c.b16 %v4004, %v4003
  %v4060 = vpack.c.b16 %v4006, %v4005
  %v4061 = vpack.c.b16 %v4008, %v4007
  %v4062 = vpack.c.b16 %v4010, %v4009
  %v4063 = vpack.c.b16 %v4012, %v4011
  %v4064 = vpack.c.b16 %v4014, %v4013
  %v4065 = vpack.c.b16 %v4016, %v4015
  %v4066 = vpack.c.b16 %v4018, %v4017
  %v4067 = vpack.c.b16 %v4020, %v4019
  %v4068 = vpack.c.b16 %v4022, %v4021
  %v4069 = vpack.c.b16 %v4024, %v4023
  %v4070 = vpack.c.b16 %v4026, %v4025
  %v4071 = vpack.c.b16 %v4028, %v4027
  %v4072 = vpack.c.b16 %v4030, %v4029
  %v4073 = vpack.c.b16 %v4032, %v4031
  %v4074 = vpack.c.b16 %v4034, %v4033
  %v4075 = vpack.c.b16 %v4036, %v4035
  %v4076 = vpack.c.b16 %v4038, %v4037
  %v4077 = vpack.c.b16 %v4040, %v4039
  %v4078 = vpack.c.b16 %v4042, %v4041
  %v4079 = vpack.c.b16 %v4044, %v4043
  %v4080 = vpack.c.b16 %v4046, %v4045
  %v4081 = vpack.c.b16 %v4048, %v4047
  %v4082 = vpack.c.b16 %v4050, %v4049
  %v4147 = vunpack.c.l.b16 %v2001
  %v4148 = vunpack.c.l.b16 %v2002
  %v4149 = vunpack.c.l.b16 %v2003
  %v4150 = vunpack.c.l.b16 %v2004
  %v4151 = vunpack.c.l.b16 %v2005
  %v4152 = vunpack.c.l.b16 %v2006
  %v4153 = vunpack.c.l.b16 %v2007
  %v4154 = vunpack.c.l.b16 %v2008
  %v4155 = vunpack.c.l.b16 %v2009
  %v4156 = vunpack.c.l.b16 %v2010
  %v4157 = vunpack.c.l.b16 %v2011
  %v4158 = vunpack.c.l.b16 %v2012
  %v4159 = vunpack.c.l.b16 %v2013
  %v4160 = vunpack.c.l.b16 %v2014
  %v4161 = vunpack.c.l.b16 %v2015
  %v4162 = vunpack.c.l.b16 %v2016
  %v4163 = vunpack.c.l.b16 %v2017
  %v4164 = vunpack.c.l.b16 %v2018
  %v4165 = vunpack.c.l.b16 %v2019
  %v4166 = vunpack.c.l.b16 %v2020
  %v4167 = vunpack.c.l.b16 %v2021
  %v4168 = vunpack.c.l.b16 %v2022
  %v4169 = vunpack.c.l.b16 %v2023
  %v4170 = vunpack.c.l.b16 %v2024
  %v4171 = vunpack.c.l.b16 %v2025
  %v4172 = vunpack.c.l.b16 %v2026
  %v4173 = vunpack.c.l.b16 %v2027
  %v4174 = vunpack.c.l.b16 %v2028
  %v4175 = vunpack.c.l.b16 %v2029
  %v4176 = vunpack.c.l.b16 %v2030
  %v4177 = vunpack.c.l.b16 %v2031
  %v4178 = vunpack.c.l.b16 %v2032
  %v4179 = vpack.c.b16 %v4147, %v4147
  %v4180 = vpack.c.b16 %v4148, %v4148
  %v4181 = vpack.c.b16 %v4149, %v4149
  %v4182 = vpack.c.b16 %v4150, %v4150
  %v4183 = vpack.c.b16 %v4151, %v4151
  %v4184 = vpack.c.b16 %v4152, %v4152
  %v4185 = vpack.c.b16 %v4153, %v4153
  %v4186 = vpack.c.b16 %v4154, %v4154
  %v4187 = vpack.c.b16 %v4155, %v4155
  %v4188 = vpack.c.b16 %v4156, %v4156
  %v4189 = vpack.c.b16 %v4157, %v4157
  %v4190 = vpack.c.b16 %v4158, %v4158
  %v4191 = vpack.c.b16 %v4159, %v4159
  %v4192 = vpack.c.b16 %v4160, %v4160
  %v4193 = vpack.c.b16 %v4161, %v4161
  %v4194 = vpack.c.b16 %v4162, %v4162
  %v4195 = vpack.c.b16 %v4163, %v4163
  %v4196 = vpack.c.b16 %v4164, %v4164
  %v4197 = vpack.c.b16 %v4165, %v4165
  %v4198 = vpack.c.b16 %v4166, %v4166
  %v4199 = vpack.c.b16 %v4167, %v4167
  %v4200 = vpack.c.b16 %v4168, %v4168
  %v4201 = vpack.c.b16 %v4169, %v4169
  %v4202 = vpack.c.b16 %v4170, %v4170
  %v4203 = vpack.c.b16 %v4171, %v4171
  %v4204 = vpack.c.b16 %v4172, %v4172
  %v4205 = vpack.c.b16 %v4173, %v4173
  %v4206 = vpack.c.b16 %v4174, %v4174
  %v4207 = vpack.c.b16 %v4175, %v4175
  %v4208 = vpack.c.b16 %v4176, %v4176
  %v4209 = vpack.c.b16 %v4177, %v4177
  %v4210 = vpack.c.b16 %v4178, %v4178
  %v4212 = vshrl.u32 %v4051, 16
  %v4214 = vshll.u32 %v4051, 16
  %v4216 = vrot.slane %v4214, 1
  %v4217 = vor.u32 %v4212, %v4216
  %v4219 = vshll.u32 %v4179, 16
  %v4221 = vrot.slane %v4219, 1
  %v4222 = vsel %vm2353, %v4217, %v4221
  %v4224 = vshrl.u32 %v4052, 16
  %v4226 = vshll.u32 %v4052, 16
  %v4228 = vrot.slane %v4226, 1
  %v4229 = vor.u32 %v4224, %v4228
  %v4231 = vshll.u32 %v4180, 16
  %v4233 = vrot.slane %v4231, 1
  %v4234 = vsel %vm2353, %v4229, %v4233
  %v4236 = vshrl.u32 %v4053, 16
  %v4238 = vshll.u32 %v4053, 16
  %v4240 = vrot.slane %v4238, 1
  %v4241 = vor.u32 %v4236, %v4240
  %v4243 = vshll.u32 %v4181, 16
  %v4245 = vrot.slane %v4243, 1
  %v4246 = vsel %vm2353, %v4241, %v4245
  %v4248 = vshrl.u32 %v4054, 16
  %v4250 = vshll.u32 %v4054, 16
  %v4252 = vrot.slane %v4250, 1
  %v4253 = vor.u32 %v4248, %v4252
  %v4255 = vshll.u32 %v4182, 16
  %v4257 = vrot.slane %v4255, 1
  %v4258 = vsel %vm2353, %v4253, %v4257
  %v4260 = vshrl.u32 %v4055, 16
  %v4262 = vshll.u32 %v4055, 16
  %v4264 = vrot.slane %v4262, 1
  %v4265 = vor.u32 %v4260, %v4264
  %v4267 = vshll.u32 %v4183, 16
  %v4269 = vrot.slane %v4267, 1
  %v4270 = vsel %vm2353, %v4265, %v4269
  %v4272 = vshrl.u32 %v4056, 16
  %v4274 = vshll.u32 %v4056, 16
  %v4276 = vrot.slane %v4274, 1
  %v4277 = vor.u32 %v4272, %v4276
  %v4279 = vshll.u32 %v4184, 16
  %v4281 = vrot.slane %v4279, 1
  %v4282 = vsel %vm2353, %v4277, %v4281
  %v4284 = vshrl.u32 %v4057, 16
  %v4286 = vshll.u32 %v4057, 16
  %v4288 = vrot.slane %v4286, 1
  %v4289 = vor.u32 %v4284, %v4288
  %v4291 = vshll.u32 %v4185, 16
  %v4293 = vrot.slane %v4291, 1
  %v4294 = vsel %vm2353, %v4289, %v4293
  %v4296 = vshrl.u32 %v4058, 16
  %v4298 = vshll.u32 %v4058, 16
  %v4300 = vrot.slane %v4298, 1
  %v4301 = vor.u32 %v4296, %v4300
  %v4303 = vshll.u32 %v4186, 16
  %v4305 = vrot.slane %v4303, 1
  %v4306 = vsel %vm2353, %v4301, %v4305
  %v4308 = vshrl.u32 %v4059, 16
  %v4310 = vshll.u32 %v4059, 16
  %v4312 = vrot.slane %v4310, 1
  %v4313 = vor.u32 %v4308, %v4312
  %v4315 = vshll.u32 %v4187, 16
  %v4317 = vrot.slane %v4315, 1
  %v4318 = vsel %vm2353, %v4313, %v4317
  %v4320 = vshrl.u32 %v4060, 16
  %v4322 = vshll.u32 %v4060, 16
  %v4324 = vrot.slane %v4322, 1
  %v4325 = vor.u32 %v4320, %v4324
  %v4327 = vshll.u32 %v4188, 16
  %v4329 = vrot.slane %v4327, 1
  %v4330 = vsel %vm2353, %v4325, %v4329
  %v4332 = vshrl.u32 %v4061, 16
  %v4334 = vshll.u32 %v4061, 16
  %v4336 = vrot.slane %v4334, 1
  %v4337 = vor.u32 %v4332, %v4336
  %v4339 = vshll.u32 %v4189, 16
  %v4341 = vrot.slane %v4339, 1
  %v4342 = vsel %vm2353, %v4337, %v4341
  %v4344 = vshrl.u32 %v4062, 16
  %v4346 = vshll.u32 %v4062, 16
  %v4348 = vrot.slane %v4346, 1
  %v4349 = vor.u32 %v4344, %v4348
  %v4351 = vshll.u32 %v4190, 16
  %v4353 = vrot.slane %v4351, 1
  %v4354 = vsel %vm2353, %v4349, %v4353
  %v4356 = vshrl.u32 %v4063, 16
  %v4358 = vshll.u32 %v4063, 16
  %v4360 = vrot.slane %v4358, 1
  %v4361 = vor.u32 %v4356, %v4360
  %v4363 = vshll.u32 %v4191, 16
  %v4365 = vrot.slane %v4363, 1
  %v4366 = vsel %vm2353, %v4361, %v4365
  %v4368 = vshrl.u32 %v4064, 16
  %v4370 = vshll.u32 %v4064, 16
  %v4372 = vrot.slane %v4370, 1
  %v4373 = vor.u32 %v4368, %v4372
  %v4375 = vshll.u32 %v4192, 16
  %v4377 = vrot.slane %v4375, 1
  %v4378 = vsel %vm2353, %v4373, %v4377
  %v4380 = vshrl.u32 %v4065, 16
  %v4382 = vshll.u32 %v4065, 16
  %v4384 = vrot.slane %v4382, 1
  %v4385 = vor.u32 %v4380, %v4384
  %v4387 = vshll.u32 %v4193, 16
  %v4389 = vrot.slane %v4387, 1
  %v4390 = vsel %vm2353, %v4385, %v4389
  %v4392 = vshrl.u32 %v4066, 16
  %v4394 = vshll.u32 %v4066, 16
  %v4396 = vrot.slane %v4394, 1
  %v4397 = vor.u32 %v4392, %v4396
  %v4399 = vshll.u32 %v4194, 16
  %v4401 = vrot.slane %v4399, 1
  %v4402 = vsel %vm2353, %v4397, %v4401
  %v4404 = vshrl.u32 %v4067, 16
  %v4406 = vshll.u32 %v4067, 16
  %v4408 = vrot.slane %v4406, 1
  %v4409 = vor.u32 %v4404, %v4408
  %v4411 = vshll.u32 %v4195, 16
  %v4413 = vrot.slane %v4411, 1
  %v4414 = vsel %vm2353, %v4409, %v4413
  %v4416 = vshrl.u32 %v4068, 16
  %v4418 = vshll.u32 %v4068, 16
  %v4420 = vrot.slane %v4418, 1
  %v4421 = vor.u32 %v4416, %v4420
  %v4423 = vshll.u32 %v4196, 16
  %v4425 = vrot.slane %v4423, 1
  %v4426 = vsel %vm2353, %v4421, %v4425
  %v4428 = vshrl.u32 %v4069, 16
  %v4430 = vshll.u32 %v4069, 16
  %v4432 = vrot.slane %v4430, 1
  %v4433 = vor.u32 %v4428, %v4432
  %v4435 = vshll.u32 %v4197, 16
  %v4437 = vrot.slane %v4435, 1
  %v4438 = vsel %vm2353, %v4433, %v4437
  %v4440 = vshrl.u32 %v4070, 16
  %v4442 = vshll.u32 %v4070, 16
  %v4444 = vrot.slane %v4442, 1
  %v4445 = vor.u32 %v4440, %v4444
  %v4447 = vshll.u32 %v4198, 16
  %v4449 = vrot.slane %v4447, 1
  %v4450 = vsel %vm2353, %v4445, %v4449
  %v4452 = vshrl.u32 %v4071, 16
  %v4454 = vshll.u32 %v4071, 16
  %v4456 = vrot.slane %v4454, 1
  %v4457 = vor.u32 %v4452, %v4456
  %v4459 = vshll.u32 %v4199, 16
  %v4461 = vrot.slane %v4459, 1
  %v4462 = vsel %vm2353, %v4457, %v4461
  %v4464 = vshrl.u32 %v4072, 16
  %v4466 = vshll.u32 %v4072, 16
  %v4468 = vrot.slane %v4466, 1
  %v4469 = vor.u32 %v4464, %v4468
  %v4471 = vshll.u32 %v4200, 16
  %v4473 = vrot.slane %v4471, 1
  %v4474 = vsel %vm2353, %v4469, %v4473
  %v4476 = vshrl.u32 %v4073, 16
  %v4478 = vshll.u32 %v4073, 16
  %v4480 = vrot.slane %v4478, 1
  %v4481 = vor.u32 %v4476, %v4480
  %v4483 = vshll.u32 %v4201, 16
  %v4485 = vrot.slane %v4483, 1
  %v4486 = vsel %vm2353, %v4481, %v4485
  %v4488 = vshrl.u32 %v4074, 16
  %v4490 = vshll.u32 %v4074, 16
  %v4492 = vrot.slane %v4490, 1
  %v4493 = vor.u32 %v4488, %v4492
  %v4495 = vshll.u32 %v4202, 16
  %v4497 = vrot.slane %v4495, 1
  %v4498 = vsel %vm2353, %v4493, %v4497
  %v4500 = vshrl.u32 %v4075, 16
  %v4502 = vshll.u32 %v4075, 16
  %v4504 = vrot.slane %v4502, 1
  %v4505 = vor.u32 %v4500, %v4504
  %v4507 = vshll.u32 %v4203, 16
  %v4509 = vrot.slane %v4507, 1
  %v4510 = vsel %vm2353, %v4505, %v4509
  %v4512 = vshrl.u32 %v4076, 16
  %v4514 = vshll.u32 %v4076, 16
  %v4516 = vrot.slane %v4514, 1
  %v4517 = vor.u32 %v4512, %v4516
  %v4519 = vshll.u32 %v4204, 16
  %v4521 = vrot.slane %v4519, 1
  %v4522 = vsel %vm2353, %v4517, %v4521
  %v4524 = vshrl.u32 %v4077, 16
  %v4526 = vshll.u32 %v4077, 16
  %v4528 = vrot.slane %v4526, 1
  %v4529 = vor.u32 %v4524, %v4528
  %v4531 = vshll.u32 %v4205, 16
  %v4533 = vrot.slane %v4531, 1
  %v4534 = vsel %vm2353, %v4529, %v4533
  %v4536 = vshrl.u32 %v4078, 16
  %v4538 = vshll.u32 %v4078, 16
  %v4540 = vrot.slane %v4538, 1
  %v4541 = vor.u32 %v4536, %v4540
  %v4543 = vshll.u32 %v4206, 16
  %v4545 = vrot.slane %v4543, 1
  %v4546 = vsel %vm2353, %v4541, %v4545
  %v4548 = vshrl.u32 %v4079, 16
  %v4550 = vshll.u32 %v4079, 16
  %v4552 = vrot.slane %v4550, 1
  %v4553 = vor.u32 %v4548, %v4552
  %v4555 = vshll.u32 %v4207, 16
  %v4557 = vrot.slane %v4555, 1
  %v4558 = vsel %vm2353, %v4553, %v4557
  %v4560 = vshrl.u32 %v4080, 16
  %v4562 = vshll.u32 %v4080, 16
  %v4564 = vrot.slane %v4562, 1
  %v4565 = vor.u32 %v4560, %v4564
  %v4567 = vshll.u32 %v4208, 16
  %v4569 = vrot.slane %v4567, 1
  %v4570 = vsel %vm2353, %v4565, %v4569
  %v4572 = vshrl.u32 %v4081, 16
  %v4574 = vshll.u32 %v4081, 16
  %v4576 = vrot.slane %v4574, 1
  %v4577 = vor.u32 %v4572, %v4576
  %v4579 = vshll.u32 %v4209, 16
  %v4581 = vrot.slane %v4579, 1
  %v4582 = vsel %vm2353, %v4577, %v4581
  %v4584 = vshrl.u32 %v4082, 16
  %v4586 = vshll.u32 %v4082, 16
  %v4588 = vrot.slane %v4586, 1
  %v4589 = vor.u32 %v4584, %v4588
  %v4591 = vshll.u32 %v4210, 16
  %v4593 = vrot.slane %v4591, 1
  %v4594 = vsel %vm2353, %v4589, %v4593
  %v4659 = vunpack.c.l.b16 %v2033
  %v4660 = vunpack.c.l.b16 %v2034
  %v4661 = vunpack.c.l.b16 %v2035
  %v4662 = vunpack.c.l.b16 %v2036
  %v4663 = vunpack.c.l.b16 %v2037
  %v4664 = vunpack.c.l.b16 %v2038
  %v4665 = vunpack.c.l.b16 %v2039
  %v4666 = vunpack.c.l.b16 %v2040
  %v4667 = vunpack.c.l.b16 %v2041
  %v4668 = vunpack.c.l.b16 %v2042
  %v4669 = vunpack.c.l.b16 %v2043
  %v4670 = vunpack.c.l.b16 %v2044
  %v4671 = vunpack.c.l.b16 %v2045
  %v4672 = vunpack.c.l.b16 %v2046
  %v4673 = vunpack.c.l.b16 %v2047
  %v4674 = vunpack.c.l.b16 %v2048
  %v4675 = vunpack.c.l.b16 %v2049
  %v4676 = vunpack.c.l.b16 %v2050
  %v4677 = vunpack.c.l.b16 %v2051
  %v4678 = vunpack.c.l.b16 %v2052
  %v4679 = vunpack.c.l.b16 %v2053
  %v4680 = vunpack.c.l.b16 %v2054
  %v4681 = vunpack.c.l.b16 %v2055
  %v4682 = vunpack.c.l.b16 %v2056
  %v4683 = vunpack.c.l.b16 %v2057
  %v4684 = vunpack.c.l.b16 %v2058
  %v4685 = vunpack.c.l.b16 %v2059
  %v4686 = vunpack.c.l.b16 %v2060
  %v4687 = vunpack.c.l.b16 %v2061
  %v4688 = vunpack.c.l.b16 %v2062
  %v4689 = vunpack.c.l.b16 %v2063
  %v4690 = vunpack.c.l.b16 %v2064
  %v4691 = vpack.c.b16 %v3988, %v4659
  %v4692 = vpack.c.b16 %v3990, %v4660
  %v4693 = vpack.c.b16 %v3992, %v4661
  %v4694 = vpack.c.b16 %v3994, %v4662
  %v4695 = vpack.c.b16 %v3996, %v4663
  %v4696 = vpack.c.b16 %v3998, %v4664
  %v4697 = vpack.c.b16 %v4000, %v4665
  %v4698 = vpack.c.b16 %v4002, %v4666
  %v4699 = vpack.c.b16 %v4004, %v4667
  %v4700 = vpack.c.b16 %v4006, %v4668
  %v4701 = vpack.c.b16 %v4008, %v4669
  %v4702 = vpack.c.b16 %v4010, %v4670
  %v4703 = vpack.c.b16 %v4012, %v4671
  %v4704 = vpack.c.b16 %v4014, %v4672
  %v4705 = vpack.c.b16 %v4016, %v4673
  %v4706 = vpack.c.b16 %v4018, %v4674
  %v4707 = vpack.c.b16 %v4020, %v4675
  %v4708 = vpack.c.b16 %v4022, %v4676
  %v4709 = vpack.c.b16 %v4024, %v4677
  %v4710 = vpack.c.b16 %v4026, %v4678
  %v4711 = vpack.c.b16 %v4028, %v4679
  %v4712 = vpack.c.b16 %v4030, %v4680
  %v4713 = vpack.c.b16 %v4032, %v4681
  %v4714 = vpack.c.b16 %v4034, %v4682
  %v4715 = vpack.c.b16 %v4036, %v4683
  %v4716 = vpack.c.b16 %v4038, %v4684
  %v4717 = vpack.c.b16 %v4040, %v4685
  %v4718 = vpack.c.b16 %v4042, %v4686
  %v4719 = vpack.c.b16 %v4044, %v4687
  %v4720 = vpack.c.b16 %v4046, %v4688
  %v4721 = vpack.c.b16 %v4048, %v4689
  %v4722 = vpack.c.b16 %v4050, %v4690
  %v4723 = vrot.slane %v4691, 1
  %v4724 = vrot.slane %v4179, 1
  %v4725 = vsel %vm2866, %v4723, %v4724
  %v4726 = vrot.slane %v4692, 1
  %v4727 = vrot.slane %v4180, 1
  %v4728 = vsel %vm2866, %v4726, %v4727
  %v4729 = vrot.slane %v4693, 1
  %v4730 = vrot.slane %v4181, 1
  %v4731 = vsel %vm2866, %v4729, %v4730
  %v4732 = vrot.slane %v4694, 1
  %v4733 = vrot.slane %v4182, 1
  %v4734 = vsel %vm2866, %v4732, %v4733
  %v4735 = vrot.slane %v4695, 1
  %v4736 = vrot.slane %v4183, 1
  %v4737 = vsel %vm2866, %v4735, %v4736
  %v4738 = vrot.slane %v4696, 1
  %v4739 = vrot.slane %v4184, 1
  %v4740 = vsel %vm2866, %v4738, %v4739
  %v4741 = vrot.slane %v4697, 1
  %v4742 = vrot.slane %v4185, 1
  %v4743 = vsel %vm2866, %v4741, %v4742
  %v4744 = vrot.slane %v4698, 1
  %v4745 = vrot.slane %v4186, 1
  %v4746 = vsel %vm2866, %v4744, %v4745
  %v4747 = vrot.slane %v4699, 1
  %v4748 = vrot.slane %v4187, 1
  %v4749 = vsel %vm2866, %v4747, %v4748
  %v4750 = vrot.slane %v4700, 1
  %v4751 = vrot.slane %v4188, 1
  %v4752 = vsel %vm2866, %v4750, %v4751
  %v4753 = vrot.slane %v4701, 1
  %v4754 = vrot.slane %v4189, 1
  %v4755 = vsel %vm2866, %v4753, %v4754
  %v4756 = vrot.slane %v4702, 1
  %v4757 = vrot.slane %v4190, 1
  %v4758 = vsel %vm2866, %v4756, %v4757
  %v4759 = vrot.slane %v4703, 1
  %v4760 = vrot.slane %v4191, 1
  %v4761 = vsel %vm2866, %v4759, %v4760
  %v4762 = vrot.slane %v4704, 1
  %v4763 = vrot.slane %v4192, 1
  %v4764 = vsel %vm2866, %v4762, %v4763
  %v4765 = vrot.slane %v4705, 1
  %v4766 = vrot.slane %v4193, 1
  %v4767 = vsel %vm2866, %v4765, %v4766
  %v4768 = vrot.slane %v4706, 1
  %v4769 = vrot.slane %v4194, 1
  %v4770 = vsel %vm2866, %v4768, %v4769
  %v4771 = vrot.slane %v4707, 1
  %v4772 = vrot.slane %v4195, 1
  %v4773 = vsel %vm2866, %v4771, %v4772
  %v4774 = vrot.slane %v4708, 1
  %v4775 = vrot.slane %v4196, 1
  %v4776 = vsel %vm2866, %v4774, %v4775
  %v4777 = vrot.slane %v4709, 1
  %v4778 = vrot.slane %v4197, 1
  %v4779 = vsel %vm2866, %v4777, %v4778
  %v4780 = vrot.slane %v4710, 1
  %v4781 = vrot.slane %v4198, 1
  %v4782 = vsel %vm2866, %v4780, %v4781
  %v4783 = vrot.slane %v4711, 1
  %v4784 = vrot.slane %v4199, 1
  %v4785 = vsel %vm2866, %v4783, %v4784
  %v4786 = vrot.slane %v4712, 1
  %v4787 = vrot.slane %v4200, 1
  %v4788 = vsel %vm2866, %v4786, %v4787
  %v4789 = vrot.slane %v4713, 1
  %v4790 = vrot.slane %v4201, 1
  %v4791 = vsel %vm2866, %v4789, %v4790
  %v4792 = vrot.slane %v4714, 1
  %v4793 = vrot.slane %v4202, 1
  %v4794 = vsel %vm2866, %v4792, %v4793
  %v4795 = vrot.slane %v4715, 1
  %v4796 = vrot.slane %v4203, 1
  %v4797 = vsel %vm2866, %v4795, %v4796
  %v4798 = vrot.slane %v4716, 1
  %v4799 = vrot.slane %v4204, 1
  %v4800 = vsel %vm2866, %v4798, %v4799
  %v4801 = vrot.slane %v4717, 1
  %v4802 = vrot.slane %v4205, 1
  %v4803 = vsel %vm2866, %v4801, %v4802
  %v4804 = vrot.slane %v4718, 1
  %v4805 = vrot.slane %v4206, 1
  %v4806 = vsel %vm2866, %v4804, %v4805
  %v4807 = vrot.slane %v4719, 1
  %v4808 = vrot.slane %v4207, 1
  %v4809 = vsel %vm2866, %v4807, %v4808
  %v4810 = vrot.slane %v4720, 1
  %v4811 = vrot.slane %v4208, 1
  %v4812 = vsel %vm2866, %v4810, %v4811
  %v4813 = vrot.slane %v4721, 1
  %v4814 = vrot.slane %v4209, 1
  %v4815 = vsel %vm2866, %v4813, %v4814
  %v4816 = vrot.slane %v4722, 1
  %v4817 = vrot.slane %v4210, 1
  %v4818 = vsel %vm2866, %v4816, %v4817
  %v4851 = vld [vmem:[%s2] sm:$0xf]
  %v4852 = vld [vmem:[%s2 + $0x4] sm:$0xf]
  %v4853 = vld [vmem:[%s2 + $0x8] sm:$0xf]
  %v4854 = vld [vmem:[%s2 + $0xc] sm:$0xf]
  %v4855 = vld [vmem:[%s2 + $0x10] sm:$0xf]
  %v4856 = vld [vmem:[%s2 + $0x14] sm:$0xf]
  %v4857 = vld [vmem:[%s2 + $0x18] sm:$0xf]
  %v4858 = vld [vmem:[%s2 + $0x1c] sm:$0xf]
  %v4859 = vld [vmem:[%s2 + $0x20] sm:$0xf]
  %v4860 = vld [vmem:[%s2 + $0x24] sm:$0xf]
  %v4861 = vld [vmem:[%s2 + $0x28] sm:$0xf]
  %v4862 = vld [vmem:[%s2 + $0x2c] sm:$0xf]
  %v4863 = vld [vmem:[%s2 + $0x30] sm:$0xf]
  %v4864 = vld [vmem:[%s2 + $0x34] sm:$0xf]
  %v4865 = vld [vmem:[%s2 + $0x38] sm:$0xf]
  %v4866 = vld [vmem:[%s2 + $0x3c] sm:$0xf]
  %v4867 = vld [vmem:[%s2 + $0x40] sm:$0xf]
  %v4868 = vld [vmem:[%s2 + $0x44] sm:$0xf]
  %v4869 = vld [vmem:[%s2 + $0x48] sm:$0xf]
  %v4870 = vld [vmem:[%s2 + $0x4c] sm:$0xf]
  %v4871 = vld [vmem:[%s2 + $0x50] sm:$0xf]
  %v4872 = vld [vmem:[%s2 + $0x54] sm:$0xf]
  %v4873 = vld [vmem:[%s2 + $0x58] sm:$0xf]
  %v4874 = vld [vmem:[%s2 + $0x5c] sm:$0xf]
  %v4875 = vld [vmem:[%s2 + $0x60] sm:$0xf]
  %v4876 = vld [vmem:[%s2 + $0x64] sm:$0xf]
  %v4877 = vld [vmem:[%s2 + $0x68] sm:$0xf]
  %v4878 = vld [vmem:[%s2 + $0x6c] sm:$0xf]
  %v4879 = vld [vmem:[%s2 + $0x70] sm:$0xf]
  %v4880 = vld [vmem:[%s2 + $0x74] sm:$0xf]
  %v4881 = vld [vmem:[%s2 + $0x78] sm:$0xf]
  %v4882 = vld [vmem:[%s2 + $0x7c] sm:$0xf]
  %v4883 = vld [vmem:[%s2 + $0x80] sm:$0xf]
  %v4884 = vld [vmem:[%s2 + $0x84] sm:$0xf]
  %v4885 = vld [vmem:[%s2 + $0x88] sm:$0xf]
  %v4886 = vld [vmem:[%s2 + $0x8c] sm:$0xf]
  %v4887 = vld [vmem:[%s2 + $0x90] sm:$0xf]
  %v4888 = vld [vmem:[%s2 + $0x94] sm:$0xf]
  %v4889 = vld [vmem:[%s2 + $0x98] sm:$0xf]
  %v4890 = vld [vmem:[%s2 + $0x9c] sm:$0xf]
  %v4891 = vld [vmem:[%s2 + $0xa0] sm:$0xf]
  %v4892 = vld [vmem:[%s2 + $0xa4] sm:$0xf]
  %v4893 = vld [vmem:[%s2 + $0xa8] sm:$0xf]
  %v4894 = vld [vmem:[%s2 + $0xac] sm:$0xf]
  %v4895 = vld [vmem:[%s2 + $0xb0] sm:$0xf]
  %v4896 = vld [vmem:[%s2 + $0xb4] sm:$0xf]
  %v4897 = vld [vmem:[%s2 + $0xb8] sm:$0xf]
  %v4898 = vld [vmem:[%s2 + $0xbc] sm:$0xf]
  %v4899 = vld [vmem:[%s2 + $0xc0] sm:$0xf]
  %v4900 = vld [vmem:[%s2 + $0xc4] sm:$0xf]
  %v4901 = vld [vmem:[%s2 + $0xc8] sm:$0xf]
  %v4902 = vld [vmem:[%s2 + $0xcc] sm:$0xf]
  %v4903 = vld [vmem:[%s2 + $0xd0] sm:$0xf]
  %v4904 = vld [vmem:[%s2 + $0xd4] sm:$0xf]
  %v4905 = vld [vmem:[%s2 + $0xd8] sm:$0xf]
  %v4906 = vld [vmem:[%s2 + $0xdc] sm:$0xf]
  %v4907 = vld [vmem:[%s2 + $0xe0] sm:$0xf]
  %v4908 = vld [vmem:[%s2 + $0xe4] sm:$0xf]
  %v4909 = vld [vmem:[%s2 + $0xe8] sm:$0xf]
  %v4910 = vld [vmem:[%s2 + $0xec] sm:$0xf]
  %v4911 = vld [vmem:[%s2 + $0xf0] sm:$0xf]
  %v4912 = vld [vmem:[%s2 + $0xf4] sm:$0xf]
  %v4913 = vld [vmem:[%s2 + $0xf8] sm:$0xf]
  %v4914 = vld [vmem:[%s2 + $0xfc] sm:$0xf]
  %v4915 = vld [vmem:[%s2 + $0x100] sm:$0xf]
  %v4916 = vld [vmem:[%s2 + $0x104] sm:$0xf]
  %v4917 = vld [vmem:[%s2 + $0x108] sm:$0xf]
  %v4918 = vld [vmem:[%s2 + $0x10c] sm:$0xf]
  %v4919 = vld [vmem:[%s2 + $0x110] sm:$0xf]
  %v4920 = vld [vmem:[%s2 + $0x114] sm:$0xf]
  %v4921 = vld [vmem:[%s2 + $0x118] sm:$0xf]
  %v4922 = vld [vmem:[%s2 + $0x11c] sm:$0xf]
  %v4923 = vld [vmem:[%s2 + $0x120] sm:$0xf]
  %v4924 = vld [vmem:[%s2 + $0x124] sm:$0xf]
  %v4925 = vld [vmem:[%s2 + $0x128] sm:$0xf]
  %v4926 = vld [vmem:[%s2 + $0x12c] sm:$0xf]
  %v4927 = vld [vmem:[%s2 + $0x130] sm:$0xf]
  %v4928 = vld [vmem:[%s2 + $0x134] sm:$0xf]
  %v4929 = vld [vmem:[%s2 + $0x138] sm:$0xf]
  %v4930 = vld [vmem:[%s2 + $0x13c] sm:$0xf]
  %v4931 = vld [vmem:[%s2 + $0x140] sm:$0xf]
  %v4932 = vld [vmem:[%s2 + $0x144] sm:$0xf]
  %v4933 = vld [vmem:[%s2 + $0x148] sm:$0xf]
  %v4934 = vld [vmem:[%s2 + $0x14c] sm:$0xf]
  %v4935 = vld [vmem:[%s2 + $0x150] sm:$0xf]
  %v4936 = vld [vmem:[%s2 + $0x154] sm:$0xf]
  %v4937 = vld [vmem:[%s2 + $0x158] sm:$0xf]
  %v4938 = vld [vmem:[%s2 + $0x15c] sm:$0xf]
  %v4939 = vld [vmem:[%s2 + $0x160] sm:$0xf]
  %v4940 = vld [vmem:[%s2 + $0x164] sm:$0xf]
  %v4941 = vld [vmem:[%s2 + $0x168] sm:$0xf]
  %v4942 = vld [vmem:[%s2 + $0x16c] sm:$0xf]
  %v4943 = vld [vmem:[%s2 + $0x170] sm:$0xf]
  %v4944 = vld [vmem:[%s2 + $0x174] sm:$0xf]
  %v4945 = vld [vmem:[%s2 + $0x178] sm:$0xf]
  %v4946 = vld [vmem:[%s2 + $0x17c] sm:$0xf]
  %v4947 = vld [vmem:[%s2 + $0x180] sm:$0xf]
  %v4948 = vld [vmem:[%s2 + $0x184] sm:$0xf]
  %v4949 = vld [vmem:[%s2 + $0x188] sm:$0xf]
  %v4950 = vld [vmem:[%s2 + $0x18c] sm:$0xf]
  %v4951 = vld [vmem:[%s2 + $0x190] sm:$0xf]
  %v4952 = vld [vmem:[%s2 + $0x194] sm:$0xf]
  %v4953 = vld [vmem:[%s2 + $0x198] sm:$0xf]
  %v4954 = vld [vmem:[%s2 + $0x19c] sm:$0xf]
  %v4955 = vld [vmem:[%s2 + $0x1a0] sm:$0xf]
  %v4956 = vld [vmem:[%s2 + $0x1a4] sm:$0xf]
  %v4957 = vld [vmem:[%s2 + $0x1a8] sm:$0xf]
  %v4958 = vld [vmem:[%s2 + $0x1ac] sm:$0xf]
  %v4959 = vld [vmem:[%s2 + $0x1b0] sm:$0xf]
  %v4960 = vld [vmem:[%s2 + $0x1b4] sm:$0xf]
  %v4961 = vld [vmem:[%s2 + $0x1b8] sm:$0xf]
  %v4962 = vld [vmem:[%s2 + $0x1bc] sm:$0xf]
  %v4963 = vld [vmem:[%s2 + $0x1c0] sm:$0xf]
  %v4964 = vld [vmem:[%s2 + $0x1c4] sm:$0xf]
  %v4965 = vld [vmem:[%s2 + $0x1c8] sm:$0xf]
  %v4966 = vld [vmem:[%s2 + $0x1cc] sm:$0xf]
  %v4967 = vld [vmem:[%s2 + $0x1d0] sm:$0xf]
  %v4968 = vld [vmem:[%s2 + $0x1d4] sm:$0xf]
  %v4969 = vld [vmem:[%s2 + $0x1d8] sm:$0xf]
  %v4970 = vld [vmem:[%s2 + $0x1dc] sm:$0xf]
  %v4971 = vld [vmem:[%s2 + $0x1e0] sm:$0xf]
  %v4972 = vld [vmem:[%s2 + $0x1e4] sm:$0xf]
  %v4973 = vld [vmem:[%s2 + $0x1e8] sm:$0xf]
  %v4974 = vld [vmem:[%s2 + $0x1ec] sm:$0xf]
  %v4975 = vld [vmem:[%s2 + $0x1f0] sm:$0xf]
  %v4976 = vld [vmem:[%s2 + $0x1f4] sm:$0xf]
  %v4977 = vld [vmem:[%s2 + $0x1f8] sm:$0xf]
  %v4978 = vld [vmem:[%s2 + $0x1fc] sm:$0xf]
  %v4979 = vld [vmem:[%s2 + $0x200] sm:$0xf]
  %v4980 = vld [vmem:[%s2 + $0x204] sm:$0xf]
  %v4981 = vld [vmem:[%s2 + $0x208] sm:$0xf]
  %v4982 = vld [vmem:[%s2 + $0x20c] sm:$0xf]
  %v4983 = vld [vmem:[%s2 + $0x210] sm:$0xf]
  %v4984 = vld [vmem:[%s2 + $0x214] sm:$0xf]
  %v4985 = vld [vmem:[%s2 + $0x218] sm:$0xf]
  %v4986 = vld [vmem:[%s2 + $0x21c] sm:$0xf]
  %v4987 = vld [vmem:[%s2 + $0x220] sm:$0xf]
  %v4988 = vld [vmem:[%s2 + $0x224] sm:$0xf]
  %v4989 = vld [vmem:[%s2 + $0x228] sm:$0xf]
  %v4990 = vld [vmem:[%s2 + $0x22c] sm:$0xf]
  %v4991 = vld [vmem:[%s2 + $0x230] sm:$0xf]
  %v4992 = vld [vmem:[%s2 + $0x234] sm:$0xf]
  %v4993 = vld [vmem:[%s2 + $0x238] sm:$0xf]
  %v4994 = vld [vmem:[%s2 + $0x23c] sm:$0xf]
  %v5139 = vunpack.c.l.b16 %v4851
  %v5140 = vunpack.c.l.b16 %v4852
  %v5141 = vunpack.c.l.b16 %v4853
  %v5142 = vunpack.c.l.b16 %v4854
  %v5143 = vunpack.c.l.b16 %v4855
  %v5144 = vunpack.c.l.b16 %v4856
  %v5145 = vunpack.c.l.b16 %v4857
  %v5146 = vunpack.c.l.b16 %v4858
  %v5147 = vunpack.c.l.b16 %v4859
  %v5148 = vunpack.c.l.b16 %v4860
  %v5149 = vunpack.c.l.b16 %v4861
  %v5150 = vunpack.c.l.b16 %v4862
  %v5151 = vunpack.c.l.b16 %v4863
  %v5152 = vunpack.c.l.b16 %v4864
  %v5153 = vunpack.c.l.b16 %v4865
  %v5154 = vunpack.c.l.b16 %v4866
  %v5155 = vunpack.c.l.b16 %v4867
  %v5156 = vunpack.c.l.b16 %v4868
  %v5157 = vunpack.c.l.b16 %v4869
  %v5158 = vunpack.c.l.b16 %v4870
  %v5159 = vunpack.c.l.b16 %v4871
  %v5160 = vunpack.c.l.b16 %v4872
  %v5161 = vunpack.c.l.b16 %v4873
  %v5162 = vunpack.c.l.b16 %v4874
  %v5163 = vunpack.c.l.b16 %v4875
  %v5164 = vunpack.c.l.b16 %v4876
  %v5165 = vunpack.c.l.b16 %v4877
  %v5166 = vunpack.c.l.b16 %v4878
  %v5167 = vunpack.c.l.b16 %v4879
  %v5168 = vunpack.c.l.b16 %v4880
  %v5169 = vunpack.c.l.b16 %v4881
  %v5170 = vunpack.c.l.b16 %v4882
  %v5171 = vunpack.c.l.b16 %v4883
  %v5172 = vunpack.c.l.b16 %v4884
  %v5173 = vunpack.c.l.b16 %v4885
  %v5174 = vunpack.c.l.b16 %v4886
  %v5175 = vunpack.c.l.b16 %v4887
  %v5176 = vunpack.c.l.b16 %v4888
  %v5177 = vunpack.c.l.b16 %v4889
  %v5178 = vunpack.c.l.b16 %v4890
  %v5179 = vunpack.c.l.b16 %v4891
  %v5180 = vunpack.c.l.b16 %v4892
  %v5181 = vunpack.c.l.b16 %v4893
  %v5182 = vunpack.c.l.b16 %v4894
  %v5183 = vunpack.c.l.b16 %v4895
  %v5184 = vunpack.c.l.b16 %v4896
  %v5185 = vunpack.c.l.b16 %v4897
  %v5186 = vunpack.c.l.b16 %v4898
  %v5187 = vunpack.c.l.b16 %v4899
  %v5188 = vunpack.c.l.b16 %v4900
  %v5189 = vunpack.c.l.b16 %v4901
  %v5190 = vunpack.c.l.b16 %v4902
  %v5191 = vunpack.c.l.b16 %v4903
  %v5192 = vunpack.c.l.b16 %v4904
  %v5193 = vunpack.c.l.b16 %v4905
  %v5194 = vunpack.c.l.b16 %v4906
  %v5195 = vunpack.c.l.b16 %v4907
  %v5196 = vunpack.c.l.b16 %v4908
  %v5197 = vunpack.c.l.b16 %v4909
  %v5198 = vunpack.c.l.b16 %v4910
  %v5199 = vunpack.c.l.b16 %v4911
  %v5200 = vunpack.c.l.b16 %v4912
  %v5201 = vunpack.c.l.b16 %v4913
  %v5202 = vunpack.c.l.b16 %v4914
  %v5203 = vunpack.c.l.b16 %v4915
  %v5204 = vunpack.c.l.b16 %v4916
  %v5205 = vunpack.c.l.b16 %v4917
  %v5206 = vunpack.c.l.b16 %v4918
  %v5207 = vunpack.c.l.b16 %v4919
  %v5208 = vunpack.c.l.b16 %v4920
  %v5209 = vunpack.c.l.b16 %v4921
  %v5210 = vunpack.c.l.b16 %v4922
  %v5211 = vunpack.c.l.b16 %v4923
  %v5212 = vunpack.c.l.b16 %v4924
  %v5213 = vunpack.c.l.b16 %v4925
  %v5214 = vunpack.c.l.b16 %v4926
  %v5215 = vunpack.c.l.b16 %v4927
  %v5216 = vunpack.c.l.b16 %v4928
  %v5217 = vunpack.c.l.b16 %v4929
  %v5218 = vunpack.c.l.b16 %v4930
  %v5219 = vunpack.c.l.b16 %v4931
  %v5220 = vunpack.c.l.b16 %v4932
  %v5221 = vunpack.c.l.b16 %v4933
  %v5222 = vunpack.c.l.b16 %v4934
  %v5223 = vunpack.c.l.b16 %v4935
  %v5224 = vunpack.c.l.b16 %v4936
  %v5225 = vunpack.c.l.b16 %v4937
  %v5226 = vunpack.c.l.b16 %v4938
  %v5227 = vunpack.c.l.b16 %v4939
  %v5228 = vunpack.c.l.b16 %v4940
  %v5229 = vunpack.c.l.b16 %v4941
  %v5230 = vunpack.c.l.b16 %v4942
  %v5231 = vunpack.c.l.b16 %v4943
  %v5232 = vunpack.c.l.b16 %v4944
  %v5233 = vunpack.c.l.b16 %v4945
  %v5234 = vunpack.c.l.b16 %v4946
  %v5235 = vunpack.c.l.b16 %v4947
  %v5236 = vunpack.c.l.b16 %v4948
  %v5237 = vunpack.c.l.b16 %v4949
  %v5238 = vunpack.c.l.b16 %v4950
  %v5239 = vunpack.c.l.b16 %v4951
  %v5240 = vunpack.c.l.b16 %v4952
  %v5241 = vunpack.c.l.b16 %v4953
  %v5242 = vunpack.c.l.b16 %v4954
  %v5243 = vunpack.c.l.b16 %v4955
  %v5244 = vunpack.c.l.b16 %v4956
  %v5245 = vunpack.c.l.b16 %v4957
  %v5246 = vunpack.c.l.b16 %v4958
  %v5247 = vunpack.c.l.b16 %v4959
  %v5248 = vunpack.c.l.b16 %v4960
  %v5249 = vunpack.c.l.b16 %v4961
  %v5250 = vunpack.c.l.b16 %v4962
  %v5251 = vunpack.c.l.b16 %v4963
  %v5252 = vunpack.c.l.b16 %v4964
  %v5253 = vunpack.c.l.b16 %v4965
  %v5254 = vunpack.c.l.b16 %v4966
  %v5255 = vunpack.c.l.b16 %v4967
  %v5256 = vunpack.c.l.b16 %v4968
  %v5257 = vunpack.c.l.b16 %v4969
  %v5258 = vunpack.c.l.b16 %v4970
  %v5259 = vunpack.c.l.b16 %v4971
  %v5260 = vunpack.c.l.b16 %v4972
  %v5261 = vunpack.c.l.b16 %v4973
  %v5262 = vunpack.c.l.b16 %v4974
  %v5263 = vunpack.c.l.b16 %v4975
  %v5264 = vunpack.c.l.b16 %v4976
  %v5265 = vunpack.c.l.b16 %v4977
  %v5266 = vunpack.c.l.b16 %v4978
  %v5267 = vunpack.c.l.b16 %v4979
  %v5268 = vunpack.c.l.b16 %v4980
  %v5269 = vunpack.c.l.b16 %v4981
  %v5270 = vunpack.c.l.b16 %v4982
  %v5271 = vunpack.c.l.b16 %v4983
  %v5272 = vunpack.c.l.b16 %v4984
  %v5273 = vunpack.c.l.b16 %v4985
  %v5274 = vunpack.c.l.b16 %v4986
  %v5275 = vunpack.c.l.b16 %v4987
  %v5276 = vunpack.c.l.b16 %v4988
  %v5277 = vunpack.c.l.b16 %v4989
  %v5278 = vunpack.c.l.b16 %v4990
  %v5279 = vunpack.c.l.b16 %v4991
  %v5280 = vunpack.c.l.b16 %v4992
  %v5281 = vunpack.c.l.b16 %v4993
  %v5282 = vunpack.c.l.b16 %v4994
  %v5283 = vpack.c.b16 %v5140, %v5139
  %v5284 = vpack.c.b16 %v5142, %v5141
  %v5285 = vpack.c.b16 %v5144, %v5143
  %v5286 = vpack.c.b16 %v5146, %v5145
  %v5287 = vpack.c.b16 %v5148, %v5147
  %v5288 = vpack.c.b16 %v5150, %v5149
  %v5289 = vpack.c.b16 %v5152, %v5151
  %v5290 = vpack.c.b16 %v5154, %v5153
  %v5291 = vpack.c.b16 %v5156, %v5155
  %v5292 = vpack.c.b16 %v5158, %v5157
  %v5293 = vpack.c.b16 %v5160, %v5159
  %v5294 = vpack.c.b16 %v5162, %v5161
  %v5295 = vpack.c.b16 %v5164, %v5163
  %v5296 = vpack.c.b16 %v5166, %v5165
  %v5297 = vpack.c.b16 %v5168, %v5167
  %v5298 = vpack.c.b16 %v5170, %v5169
  %v5299 = vpack.c.b16 %v5172, %v5171
  %v5300 = vpack.c.b16 %v5174, %v5173
  %v5301 = vpack.c.b16 %v5176, %v5175
  %v5302 = vpack.c.b16 %v5178, %v5177
  %v5303 = vpack.c.b16 %v5180, %v5179
  %v5304 = vpack.c.b16 %v5182, %v5181
  %v5305 = vpack.c.b16 %v5184, %v5183
  %v5306 = vpack.c.b16 %v5186, %v5185
  %v5307 = vpack.c.b16 %v5188, %v5187
  %v5308 = vpack.c.b16 %v5190, %v5189
  %v5309 = vpack.c.b16 %v5192, %v5191
  %v5310 = vpack.c.b16 %v5194, %v5193
  %v5311 = vpack.c.b16 %v5196, %v5195
  %v5312 = vpack.c.b16 %v5198, %v5197
  %v5313 = vpack.c.b16 %v5200, %v5199
  %v5314 = vpack.c.b16 %v5202, %v5201
  %v5315 = vpack.c.b16 %v5204, %v5203
  %v5316 = vpack.c.b16 %v5206, %v5205
  %v5317 = vpack.c.b16 %v5208, %v5207
  %v5318 = vpack.c.b16 %v5210, %v5209
  %v5319 = vpack.c.b16 %v5212, %v5211
  %v5320 = vpack.c.b16 %v5214, %v5213
  %v5321 = vpack.c.b16 %v5216, %v5215
  %v5322 = vpack.c.b16 %v5218, %v5217
  %v5323 = vpack.c.b16 %v5220, %v5219
  %v5324 = vpack.c.b16 %v5222, %v5221
  %v5325 = vpack.c.b16 %v5224, %v5223
  %v5326 = vpack.c.b16 %v5226, %v5225
  %v5327 = vpack.c.b16 %v5228, %v5227
  %v5328 = vpack.c.b16 %v5230, %v5229
  %v5329 = vpack.c.b16 %v5232, %v5231
  %v5330 = vpack.c.b16 %v5234, %v5233
  %v5331 = vpack.c.b16 %v5236, %v5235
  %v5332 = vpack.c.b16 %v5238, %v5237
  %v5333 = vpack.c.b16 %v5240, %v5239
  %v5334 = vpack.c.b16 %v5242, %v5241
  %v5335 = vpack.c.b16 %v5244, %v5243
  %v5336 = vpack.c.b16 %v5246, %v5245
  %v5337 = vpack.c.b16 %v5248, %v5247
  %v5338 = vpack.c.b16 %v5250, %v5249
  %v5339 = vpack.c.b16 %v5252, %v5251
  %v5340 = vpack.c.b16 %v5254, %v5253
  %v5341 = vpack.c.b16 %v5256, %v5255
  %v5342 = vpack.c.b16 %v5258, %v5257
  %v5343 = vpack.c.b16 %v5260, %v5259
  %v5344 = vpack.c.b16 %v5262, %v5261
  %v5345 = vpack.c.b16 %v5264, %v5263
  %v5346 = vpack.c.b16 %v5266, %v5265
  %v5347 = vpack.c.b16 %v5268, %v5267
  %v5348 = vpack.c.b16 %v5270, %v5269
  %v5349 = vpack.c.b16 %v5272, %v5271
  %v5350 = vpack.c.b16 %v5274, %v5273
  %v5351 = vpack.c.b16 %v5276, %v5275
  %v5352 = vpack.c.b16 %v5278, %v5277
  %v5353 = vpack.c.b16 %v5280, %v5279
  %v5354 = vpack.c.b16 %v5282, %v5281
  %5427 = vmatpush.bf16.msra.mxu0 %v5290
  %5428 = vmatpush.bf16.msra.mxu0 %v5289
  %5429 = vmatpush.bf16.msra.mxu0 %v5288
  %5430 = vmatpush.bf16.msra.mxu0 %v5287
  %5431 = vmatpush.bf16.msra.mxu0 %v5286
  %5432 = vmatpush.bf16.msra.mxu0 %v5285
  %5433 = vmatpush.bf16.msra.mxu0 %v5284
  %5434 = vmatpush.bf16.msra.mxu0 %v5283
  %5435 = vmatmul.bf16.gmra.mxu0 %v2193
  %v5436 = vpop.f32.mrf.mxu0
  %v5437 = vadd.f32 0.0, %v5436
  %v5438 = vpop.f32.mrf.mxu0
  %v5439 = vadd.f32 0.0, %v5438
  %5440 = vmatmul.bf16.gmra.mxu0 %v2194
  %v5441 = vpop.f32.mrf.mxu0
  %v5442 = vadd.f32 0.0, %v5441
  %v5443 = vpop.f32.mrf.mxu0
  %v5444 = vadd.f32 0.0, %v5443
  %5445 = vmatmul.bf16.gmra.mxu0 %v2195
  %v5446 = vpop.f32.mrf.mxu0
  %v5447 = vadd.f32 0.0, %v5446
  %v5448 = vpop.f32.mrf.mxu0
  %v5449 = vadd.f32 0.0, %v5448
  %5450 = vmatmul.bf16.gmra.mxu0 %v2196
  %v5451 = vpop.f32.mrf.mxu0
  %v5452 = vadd.f32 0.0, %v5451
  %v5453 = vpop.f32.mrf.mxu0
  %v5454 = vadd.f32 0.0, %v5453
  %5455 = vmatmul.bf16.gmra.mxu0 %v2197
  %v5456 = vpop.f32.mrf.mxu0
  %v5457 = vadd.f32 0.0, %v5456
  %v5458 = vpop.f32.mrf.mxu0
  %v5459 = vadd.f32 0.0, %v5458
  %5460 = vmatmul.bf16.gmra.mxu0 %v2198
  %v5461 = vpop.f32.mrf.mxu0
  %v5462 = vadd.f32 0.0, %v5461
  %v5463 = vpop.f32.mrf.mxu0
  %v5464 = vadd.f32 0.0, %v5463
  %5465 = vmatmul.bf16.gmra.mxu0 %v2199
  %v5466 = vpop.f32.mrf.mxu0
  %v5467 = vadd.f32 0.0, %v5466
  %v5468 = vpop.f32.mrf.mxu0
  %v5469 = vadd.f32 0.0, %v5468
  %5470 = vmatmul.bf16.gmra.mxu0 %v2200
  %v5471 = vpop.f32.mrf.mxu0
  %v5472 = vadd.f32 0.0, %v5471
  %v5473 = vpop.f32.mrf.mxu0
  %v5474 = vadd.f32 0.0, %v5473
  %5475 = vmatmul.bf16.gmra.mxu0 %v2201
  %v5476 = vpop.f32.mrf.mxu0
  %v5477 = vadd.f32 0.0, %v5476
  %v5478 = vpop.f32.mrf.mxu0
  %v5479 = vadd.f32 0.0, %v5478
  %5480 = vmatmul.bf16.gmra.mxu0 %v2202
  %v5481 = vpop.f32.mrf.mxu0
  %v5482 = vadd.f32 0.0, %v5481
  %v5483 = vpop.f32.mrf.mxu0
  %v5484 = vadd.f32 0.0, %v5483
  %5485 = vmatmul.bf16.gmra.mxu0 %v2203
  %v5486 = vpop.f32.mrf.mxu0
  %v5487 = vadd.f32 0.0, %v5486
  %v5488 = vpop.f32.mrf.mxu0
  %v5489 = vadd.f32 0.0, %v5488
  %5490 = vmatmul.bf16.gmra.mxu0 %v2204
  %v5491 = vpop.f32.mrf.mxu0
  %v5492 = vadd.f32 0.0, %v5491
  %v5493 = vpop.f32.mrf.mxu0
  %v5494 = vadd.f32 0.0, %v5493
  %5495 = vmatmul.bf16.gmra.mxu0 %v2205
  %v5496 = vpop.f32.mrf.mxu0
  %v5497 = vadd.f32 0.0, %v5496
  %v5498 = vpop.f32.mrf.mxu0
  %v5499 = vadd.f32 0.0, %v5498
  %5500 = vmatmul.bf16.gmra.mxu0 %v2206
  %v5501 = vpop.f32.mrf.mxu0
  %v5502 = vadd.f32 0.0, %v5501
  %v5503 = vpop.f32.mrf.mxu0
  %v5504 = vadd.f32 0.0, %v5503
  %5505 = vmatmul.bf16.gmra.mxu0 %v2207
  %v5506 = vpop.f32.mrf.mxu0
  %v5507 = vadd.f32 0.0, %v5506
  %v5508 = vpop.f32.mrf.mxu0
  %v5509 = vadd.f32 0.0, %v5508
  %5510 = vmatmul.bf16.gmra.mxu0 %v2208
  %v5511 = vpop.f32.mrf.mxu0
  %v5512 = vadd.f32 0.0, %v5511
  %v5513 = vpop.f32.mrf.mxu0
  %v5514 = vadd.f32 0.0, %v5513
  %5515 = vmatmul.bf16.gmra.mxu0 %v2209
  %v5516 = vpop.f32.mrf.mxu0
  %v5517 = vadd.f32 0.0, %v5516
  %v5518 = vpop.f32.mrf.mxu0
  %v5519 = vadd.f32 0.0, %v5518
  %5520 = vmatmul.bf16.gmra.mxu0 %v2210
  %v5521 = vpop.f32.mrf.mxu0
  %v5522 = vadd.f32 0.0, %v5521
  %v5523 = vpop.f32.mrf.mxu0
  %v5524 = vadd.f32 0.0, %v5523
  %5525 = vmatmul.bf16.gmra.mxu0 %v2211
  %v5526 = vpop.f32.mrf.mxu0
  %v5527 = vadd.f32 0.0, %v5526
  %v5528 = vpop.f32.mrf.mxu0
  %v5529 = vadd.f32 0.0, %v5528
  %5530 = vmatmul.bf16.gmra.mxu0 %v2212
  %v5531 = vpop.f32.mrf.mxu0
  %v5532 = vadd.f32 0.0, %v5531
  %v5533 = vpop.f32.mrf.mxu0
  %v5534 = vadd.f32 0.0, %v5533
  %5535 = vmatmul.bf16.gmra.mxu0 %v2213
  %v5536 = vpop.f32.mrf.mxu0
  %v5537 = vadd.f32 0.0, %v5536
  %v5538 = vpop.f32.mrf.mxu0
  %v5539 = vadd.f32 0.0, %v5538
  %5540 = vmatmul.bf16.gmra.mxu0 %v2214
  %v5541 = vpop.f32.mrf.mxu0
  %v5542 = vadd.f32 0.0, %v5541
  %v5543 = vpop.f32.mrf.mxu0
  %v5544 = vadd.f32 0.0, %v5543
  %5545 = vmatmul.bf16.gmra.mxu0 %v2215
  %v5546 = vpop.f32.mrf.mxu0
  %v5547 = vadd.f32 0.0, %v5546
  %v5548 = vpop.f32.mrf.mxu0
  %v5549 = vadd.f32 0.0, %v5548
  %5550 = vmatmul.bf16.gmra.mxu0 %v2216
  %v5551 = vpop.f32.mrf.mxu0
  %v5552 = vadd.f32 0.0, %v5551
  %v5553 = vpop.f32.mrf.mxu0
  %v5554 = vadd.f32 0.0, %v5553
  %5555 = vmatmul.bf16.gmra.mxu0 %v2217
  %v5556 = vpop.f32.mrf.mxu0
  %v5557 = vadd.f32 0.0, %v5556
  %v5558 = vpop.f32.mrf.mxu0
  %v5559 = vadd.f32 0.0, %v5558
  %5560 = vmatmul.bf16.gmra.mxu0 %v2218
  %v5561 = vpop.f32.mrf.mxu0
  %v5562 = vadd.f32 0.0, %v5561
  %v5563 = vpop.f32.mrf.mxu0
  %v5564 = vadd.f32 0.0, %v5563
  %5565 = vmatmul.bf16.gmra.mxu0 %v2219
  %v5566 = vpop.f32.mrf.mxu0
  %v5567 = vadd.f32 0.0, %v5566
  %v5568 = vpop.f32.mrf.mxu0
  %v5569 = vadd.f32 0.0, %v5568
  %5570 = vmatmul.bf16.gmra.mxu0 %v2220
  %v5571 = vpop.f32.mrf.mxu0
  %v5572 = vadd.f32 0.0, %v5571
  %v5573 = vpop.f32.mrf.mxu0
  %v5574 = vadd.f32 0.0, %v5573
  %5575 = vmatmul.bf16.gmra.mxu0 %v2221
  %v5576 = vpop.f32.mrf.mxu0
  %v5577 = vadd.f32 0.0, %v5576
  %v5578 = vpop.f32.mrf.mxu0
  %v5579 = vadd.f32 0.0, %v5578
  %5580 = vmatmul.bf16.gmra.mxu0 %v2222
  %v5581 = vpop.f32.mrf.mxu0
  %v5582 = vadd.f32 0.0, %v5581
  %v5583 = vpop.f32.mrf.mxu0
  %v5584 = vadd.f32 0.0, %v5583
  %5585 = vmatmul.bf16.gmra.mxu0 %v2223
  %v5586 = vpop.f32.mrf.mxu0
  %v5587 = vadd.f32 0.0, %v5586
  %v5588 = vpop.f32.mrf.mxu0
  %v5589 = vadd.f32 0.0, %v5588
  %5590 = vmatmul.bf16.gmra.mxu0 %v2224
  %v5591 = vpop.f32.mrf.mxu0
  %v5592 = vadd.f32 0.0, %v5591
  %v5593 = vpop.f32.mrf.mxu0
  %v5594 = vadd.f32 0.0, %v5593
  %5595 = vdwg.mxu0
  %5596 = vmatpush.bf16.msra.mxu0 %v5298
  %5597 = vmatpush.bf16.msra.mxu0 %v5297
  %5598 = vmatpush.bf16.msra.mxu0 %v5296
  %5599 = vmatpush.bf16.msra.mxu0 %v5295
  %5600 = vmatpush.bf16.msra.mxu0 %v5294
  %5601 = vmatpush.bf16.msra.mxu0 %v5293
  %5602 = vmatpush.bf16.msra.mxu0 %v5292
  %5603 = vmatpush.bf16.msra.mxu0 %v5291
  %5604 = vmatmul.bf16.gmra.mxu0 %v2365
  %v5605 = vpop.f32.mrf.mxu0
  %v5606 = vadd.f32 %v5437, %v5605
  %v5607 = vpop.f32.mrf.mxu0
  %v5608 = vadd.f32 %v5439, %v5607
  %5609 = vmatmul.bf16.gmra.mxu0 %v2377
  %v5610 = vpop.f32.mrf.mxu0
  %v5611 = vadd.f32 %v5442, %v5610
  %v5612 = vpop.f32.mrf.mxu0
  %v5613 = vadd.f32 %v5444, %v5612
  %5614 = vmatmul.bf16.gmra.mxu0 %v2389
  %v5615 = vpop.f32.mrf.mxu0
  %v5616 = vadd.f32 %v5447, %v5615
  %v5617 = vpop.f32.mrf.mxu0
  %v5618 = vadd.f32 %v5449, %v5617
  %5619 = vmatmul.bf16.gmra.mxu0 %v2401
  %v5620 = vpop.f32.mrf.mxu0
  %v5621 = vadd.f32 %v5452, %v5620
  %v5622 = vpop.f32.mrf.mxu0
  %v5623 = vadd.f32 %v5454, %v5622
  %5624 = vmatmul.bf16.gmra.mxu0 %v2413
  %v5625 = vpop.f32.mrf.mxu0
  %v5626 = vadd.f32 %v5457, %v5625
  %v5627 = vpop.f32.mrf.mxu0
  %v5628 = vadd.f32 %v5459, %v5627
  %5629 = vmatmul.bf16.gmra.mxu0 %v2425
  %v5630 = vpop.f32.mrf.mxu0
  %v5631 = vadd.f32 %v5462, %v5630
  %v5632 = vpop.f32.mrf.mxu0
  %v5633 = vadd.f32 %v5464, %v5632
  %5634 = vmatmul.bf16.gmra.mxu0 %v2437
  %v5635 = vpop.f32.mrf.mxu0
  %v5636 = vadd.f32 %v5467, %v5635
  %v5637 = vpop.f32.mrf.mxu0
  %v5638 = vadd.f32 %v5469, %v5637
  %5639 = vmatmul.bf16.gmra.mxu0 %v2449
  %v5640 = vpop.f32.mrf.mxu0
  %v5641 = vadd.f32 %v5472, %v5640
  %v5642 = vpop.f32.mrf.mxu0
  %v5643 = vadd.f32 %v5474, %v5642
  %5644 = vmatmul.bf16.gmra.mxu0 %v2461
  %v5645 = vpop.f32.mrf.mxu0
  %v5646 = vadd.f32 %v5477, %v5645
  %v5647 = vpop.f32.mrf.mxu0
  %v5648 = vadd.f32 %v5479, %v5647
  %5649 = vmatmul.bf16.gmra.mxu0 %v2473
  %v5650 = vpop.f32.mrf.mxu0
  %v5651 = vadd.f32 %v5482, %v5650
  %v5652 = vpop.f32.mrf.mxu0
  %v5653 = vadd.f32 %v5484, %v5652
  %5654 = vmatmul.bf16.gmra.mxu0 %v2485
  %v5655 = vpop.f32.mrf.mxu0
  %v5656 = vadd.f32 %v5487, %v5655
  %v5657 = vpop.f32.mrf.mxu0
  %v5658 = vadd.f32 %v5489, %v5657
  %5659 = vmatmul.bf16.gmra.mxu0 %v2497
  %v5660 = vpop.f32.mrf.mxu0
  %v5661 = vadd.f32 %v5492, %v5660
  %v5662 = vpop.f32.mrf.mxu0
  %v5663 = vadd.f32 %v5494, %v5662
  %5664 = vmatmul.bf16.gmra.mxu0 %v2509
  %v5665 = vpop.f32.mrf.mxu0
  %v5666 = vadd.f32 %v5497, %v5665
  %v5667 = vpop.f32.mrf.mxu0
  %v5668 = vadd.f32 %v5499, %v5667
  %5669 = vmatmul.bf16.gmra.mxu0 %v2521
  %v5670 = vpop.f32.mrf.mxu0
  %v5671 = vadd.f32 %v5502, %v5670
  %v5672 = vpop.f32.mrf.mxu0
  %v5673 = vadd.f32 %v5504, %v5672
  %5674 = vmatmul.bf16.gmra.mxu0 %v2533
  %v5675 = vpop.f32.mrf.mxu0
  %v5676 = vadd.f32 %v5507, %v5675
  %v5677 = vpop.f32.mrf.mxu0
  %v5678 = vadd.f32 %v5509, %v5677
  %5679 = vmatmul.bf16.gmra.mxu0 %v2545
  %v5680 = vpop.f32.mrf.mxu0
  %v5681 = vadd.f32 %v5512, %v5680
  %v5682 = vpop.f32.mrf.mxu0
  %v5683 = vadd.f32 %v5514, %v5682
  %5684 = vmatmul.bf16.gmra.mxu0 %v2557
  %v5685 = vpop.f32.mrf.mxu0
  %v5686 = vadd.f32 %v5517, %v5685
  %v5687 = vpop.f32.mrf.mxu0
  %v5688 = vadd.f32 %v5519, %v5687
  %5689 = vmatmul.bf16.gmra.mxu0 %v2569
  %v5690 = vpop.f32.mrf.mxu0
  %v5691 = vadd.f32 %v5522, %v5690
  %v5692 = vpop.f32.mrf.mxu0
  %v5693 = vadd.f32 %v5524, %v5692
  %5694 = vmatmul.bf16.gmra.mxu0 %v2581
  %v5695 = vpop.f32.mrf.mxu0
  %v5696 = vadd.f32 %v5527, %v5695
  %v5697 = vpop.f32.mrf.mxu0
  %v5698 = vadd.f32 %v5529, %v5697
  %5699 = vmatmul.bf16.gmra.mxu0 %v2593
  %v5700 = vpop.f32.mrf.mxu0
  %v5701 = vadd.f32 %v5532, %v5700
  %v5702 = vpop.f32.mrf.mxu0
  %v5703 = vadd.f32 %v5534, %v5702
  %5704 = vmatmul.bf16.gmra.mxu0 %v2605
  %v5705 = vpop.f32.mrf.mxu0
  %v5706 = vadd.f32 %v5537, %v5705
  %v5707 = vpop.f32.mrf.mxu0
  %v5708 = vadd.f32 %v5539, %v5707
  %5709 = vmatmul.bf16.gmra.mxu0 %v2617
  %v5710 = vpop.f32.mrf.mxu0
  %v5711 = vadd.f32 %v5542, %v5710
  %v5712 = vpop.f32.mrf.mxu0
  %v5713 = vadd.f32 %v5544, %v5712
  %5714 = vmatmul.bf16.gmra.mxu0 %v2629
  %v5715 = vpop.f32.mrf.mxu0
  %v5716 = vadd.f32 %v5547, %v5715
  %v5717 = vpop.f32.mrf.mxu0
  %v5718 = vadd.f32 %v5549, %v5717
  %5719 = vmatmul.bf16.gmra.mxu0 %v2641
  %v5720 = vpop.f32.mrf.mxu0
  %v5721 = vadd.f32 %v5552, %v5720
  %v5722 = vpop.f32.mrf.mxu0
  %v5723 = vadd.f32 %v5554, %v5722
  %5724 = vmatmul.bf16.gmra.mxu0 %v2653
  %v5725 = vpop.f32.mrf.mxu0
  %v5726 = vadd.f32 %v5557, %v5725
  %v5727 = vpop.f32.mrf.mxu0
  %v5728 = vadd.f32 %v5559, %v5727
  %5729 = vmatmul.bf16.gmra.mxu0 %v2665
  %v5730 = vpop.f32.mrf.mxu0
  %v5731 = vadd.f32 %v5562, %v5730
  %v5732 = vpop.f32.mrf.mxu0
  %v5733 = vadd.f32 %v5564, %v5732
  %5734 = vmatmul.bf16.gmra.mxu0 %v2677
  %v5735 = vpop.f32.mrf.mxu0
  %v5736 = vadd.f32 %v5567, %v5735
  %v5737 = vpop.f32.mrf.mxu0
  %v5738 = vadd.f32 %v5569, %v5737
  %5739 = vmatmul.bf16.gmra.mxu0 %v2689
  %v5740 = vpop.f32.mrf.mxu0
  %v5741 = vadd.f32 %v5572, %v5740
  %v5742 = vpop.f32.mrf.mxu0
  %v5743 = vadd.f32 %v5574, %v5742
  %5744 = vmatmul.bf16.gmra.mxu0 %v2701
  %v5745 = vpop.f32.mrf.mxu0
  %v5746 = vadd.f32 %v5577, %v5745
  %v5747 = vpop.f32.mrf.mxu0
  %v5748 = vadd.f32 %v5579, %v5747
  %5749 = vmatmul.bf16.gmra.mxu0 %v2713
  %v5750 = vpop.f32.mrf.mxu0
  %v5751 = vadd.f32 %v5582, %v5750
  %v5752 = vpop.f32.mrf.mxu0
  %v5753 = vadd.f32 %v5584, %v5752
  %5754 = vmatmul.bf16.gmra.mxu0 %v2725
  %v5755 = vpop.f32.mrf.mxu0
  %v5756 = vadd.f32 %v5587, %v5755
  %v5757 = vpop.f32.mrf.mxu0
  %v5758 = vadd.f32 %v5589, %v5757
  %5759 = vmatmul.bf16.gmra.mxu0 %v2737
  %v5760 = vpop.f32.mrf.mxu0
  %v5761 = vadd.f32 %v5592, %v5760
  %v5762 = vpop.f32.mrf.mxu0
  %v5763 = vadd.f32 %v5594, %v5762
  %5764 = vdwg.mxu0
  %5765 = vmatpush.bf16.msra.mxu0 %v5306
  %5766 = vmatpush.bf16.msra.mxu0 %v5305
  %5767 = vmatpush.bf16.msra.mxu0 %v5304
  %5768 = vmatpush.bf16.msra.mxu0 %v5303
  %5769 = vmatpush.bf16.msra.mxu0 %v5302
  %5770 = vmatpush.bf16.msra.mxu0 %v5301
  %5771 = vmatpush.bf16.msra.mxu0 %v5300
  %5772 = vmatpush.bf16.msra.mxu0 %v5299
  %5773 = vmatmul.bf16.gmra.mxu0 %v2869
  %v5774 = vpop.f32.mrf.mxu0
  %v5775 = vadd.f32 %v5606, %v5774
  %v5776 = vpop.f32.mrf.mxu0
  %v5777 = vadd.f32 %v5608, %v5776
  %5778 = vmatmul.bf16.gmra.mxu0 %v2872
  %v5779 = vpop.f32.mrf.mxu0
  %v5780 = vadd.f32 %v5611, %v5779
  %v5781 = vpop.f32.mrf.mxu0
  %v5782 = vadd.f32 %v5613, %v5781
  %5783 = vmatmul.bf16.gmra.mxu0 %v2875
  %v5784 = vpop.f32.mrf.mxu0
  %v5785 = vadd.f32 %v5616, %v5784
  %v5786 = vpop.f32.mrf.mxu0
  %v5787 = vadd.f32 %v5618, %v5786
  %5788 = vmatmul.bf16.gmra.mxu0 %v2878
  %v5789 = vpop.f32.mrf.mxu0
  %v5790 = vadd.f32 %v5621, %v5789
  %v5791 = vpop.f32.mrf.mxu0
  %v5792 = vadd.f32 %v5623, %v5791
  %5793 = vmatmul.bf16.gmra.mxu0 %v2881
  %v5794 = vpop.f32.mrf.mxu0
  %v5795 = vadd.f32 %v5626, %v5794
  %v5796 = vpop.f32.mrf.mxu0
  %v5797 = vadd.f32 %v5628, %v5796
  %5798 = vmatmul.bf16.gmra.mxu0 %v2884
  %v5799 = vpop.f32.mrf.mxu0
  %v5800 = vadd.f32 %v5631, %v5799
  %v5801 = vpop.f32.mrf.mxu0
  %v5802 = vadd.f32 %v5633, %v5801
  %5803 = vmatmul.bf16.gmra.mxu0 %v2887
  %v5804 = vpop.f32.mrf.mxu0
  %v5805 = vadd.f32 %v5636, %v5804
  %v5806 = vpop.f32.mrf.mxu0
  %v5807 = vadd.f32 %v5638, %v5806
  %5808 = vmatmul.bf16.gmra.mxu0 %v2890
  %v5809 = vpop.f32.mrf.mxu0
  %v5810 = vadd.f32 %v5641, %v5809
  %v5811 = vpop.f32.mrf.mxu0
  %v5812 = vadd.f32 %v5643, %v5811
  %5813 = vmatmul.bf16.gmra.mxu0 %v2893
  %v5814 = vpop.f32.mrf.mxu0
  %v5815 = vadd.f32 %v5646, %v5814
  %v5816 = vpop.f32.mrf.mxu0
  %v5817 = vadd.f32 %v5648, %v5816
  %5818 = vmatmul.bf16.gmra.mxu0 %v2896
  %v5819 = vpop.f32.mrf.mxu0
  %v5820 = vadd.f32 %v5651, %v5819
  %v5821 = vpop.f32.mrf.mxu0
  %v5822 = vadd.f32 %v5653, %v5821
  %5823 = vmatmul.bf16.gmra.mxu0 %v2899
  %v5824 = vpop.f32.mrf.mxu0
  %v5825 = vadd.f32 %v5656, %v5824
  %v5826 = vpop.f32.mrf.mxu0
  %v5827 = vadd.f32 %v5658, %v5826
  %5828 = vmatmul.bf16.gmra.mxu0 %v2902
  %v5829 = vpop.f32.mrf.mxu0
  %v5830 = vadd.f32 %v5661, %v5829
  %v5831 = vpop.f32.mrf.mxu0
  %v5832 = vadd.f32 %v5663, %v5831
  %5833 = vmatmul.bf16.gmra.mxu0 %v2905
  %v5834 = vpop.f32.mrf.mxu0
  %v5835 = vadd.f32 %v5666, %v5834
  %v5836 = vpop.f32.mrf.mxu0
  %v5837 = vadd.f32 %v5668, %v5836
  %5838 = vmatmul.bf16.gmra.mxu0 %v2908
  %v5839 = vpop.f32.mrf.mxu0
  %v5840 = vadd.f32 %v5671, %v5839
  %v5841 = vpop.f32.mrf.mxu0
  %v5842 = vadd.f32 %v5673, %v5841
  %5843 = vmatmul.bf16.gmra.mxu0 %v2911
  %v5844 = vpop.f32.mrf.mxu0
  %v5845 = vadd.f32 %v5676, %v5844
  %v5846 = vpop.f32.mrf.mxu0
  %v5847 = vadd.f32 %v5678, %v5846
  %5848 = vmatmul.bf16.gmra.mxu0 %v2914
  %v5849 = vpop.f32.mrf.mxu0
  %v5850 = vadd.f32 %v5681, %v5849
  %v5851 = vpop.f32.mrf.mxu0
  %v5852 = vadd.f32 %v5683, %v5851
  %5853 = vmatmul.bf16.gmra.mxu0 %v2917
  %v5854 = vpop.f32.mrf.mxu0
  %v5855 = vadd.f32 %v5686, %v5854
  %v5856 = vpop.f32.mrf.mxu0
  %v5857 = vadd.f32 %v5688, %v5856
  %5858 = vmatmul.bf16.gmra.mxu0 %v2920
  %v5859 = vpop.f32.mrf.mxu0
  %v5860 = vadd.f32 %v5691, %v5859
  %v5861 = vpop.f32.mrf.mxu0
  %v5862 = vadd.f32 %v5693, %v5861
  %5863 = vmatmul.bf16.gmra.mxu0 %v2923
  %v5864 = vpop.f32.mrf.mxu0
  %v5865 = vadd.f32 %v5696, %v5864
  %v5866 = vpop.f32.mrf.mxu0
  %v5867 = vadd.f32 %v5698, %v5866
  %5868 = vmatmul.bf16.gmra.mxu0 %v2926
  %v5869 = vpop.f32.mrf.mxu0
  %v5870 = vadd.f32 %v5701, %v5869
  %v5871 = vpop.f32.mrf.mxu0
  %v5872 = vadd.f32 %v5703, %v5871
  %5873 = vmatmul.bf16.gmra.mxu0 %v2929
  %v5874 = vpop.f32.mrf.mxu0
  %v5875 = vadd.f32 %v5706, %v5874
  %v5876 = vpop.f32.mrf.mxu0
  %v5877 = vadd.f32 %v5708, %v5876
  %5878 = vmatmul.bf16.gmra.mxu0 %v2932
  %v5879 = vpop.f32.mrf.mxu0
  %v5880 = vadd.f32 %v5711, %v5879
  %v5881 = vpop.f32.mrf.mxu0
  %v5882 = vadd.f32 %v5713, %v5881
  %5883 = vmatmul.bf16.gmra.mxu0 %v2935
  %v5884 = vpop.f32.mrf.mxu0
  %v5885 = vadd.f32 %v5716, %v5884
  %v5886 = vpop.f32.mrf.mxu0
  %v5887 = vadd.f32 %v5718, %v5886
  %5888 = vmatmul.bf16.gmra.mxu0 %v2938
  %v5889 = vpop.f32.mrf.mxu0
  %v5890 = vadd.f32 %v5721, %v5889
  %v5891 = vpop.f32.mrf.mxu0
  %v5892 = vadd.f32 %v5723, %v5891
  %5893 = vmatmul.bf16.gmra.mxu0 %v2941
  %v5894 = vpop.f32.mrf.mxu0
  %v5895 = vadd.f32 %v5726, %v5894
  %v5896 = vpop.f32.mrf.mxu0
  %v5897 = vadd.f32 %v5728, %v5896
  %5898 = vmatmul.bf16.gmra.mxu0 %v2944
  %v5899 = vpop.f32.mrf.mxu0
  %v5900 = vadd.f32 %v5731, %v5899
  %v5901 = vpop.f32.mrf.mxu0
  %v5902 = vadd.f32 %v5733, %v5901
  %5903 = vmatmul.bf16.gmra.mxu0 %v2947
  %v5904 = vpop.f32.mrf.mxu0
  %v5905 = vadd.f32 %v5736, %v5904
  %v5906 = vpop.f32.mrf.mxu0
  %v5907 = vadd.f32 %v5738, %v5906
  %5908 = vmatmul.bf16.gmra.mxu0 %v2950
  %v5909 = vpop.f32.mrf.mxu0
  %v5910 = vadd.f32 %v5741, %v5909
  %v5911 = vpop.f32.mrf.mxu0
  %v5912 = vadd.f32 %v5743, %v5911
  %5913 = vmatmul.bf16.gmra.mxu0 %v2953
  %v5914 = vpop.f32.mrf.mxu0
  %v5915 = vadd.f32 %v5746, %v5914
  %v5916 = vpop.f32.mrf.mxu0
  %v5917 = vadd.f32 %v5748, %v5916
  %5918 = vmatmul.bf16.gmra.mxu0 %v2956
  %v5919 = vpop.f32.mrf.mxu0
  %v5920 = vadd.f32 %v5751, %v5919
  %v5921 = vpop.f32.mrf.mxu0
  %v5922 = vadd.f32 %v5753, %v5921
  %5923 = vmatmul.bf16.gmra.mxu0 %v2959
  %v5924 = vpop.f32.mrf.mxu0
  %v5925 = vadd.f32 %v5756, %v5924
  %v5926 = vpop.f32.mrf.mxu0
  %v5927 = vadd.f32 %v5758, %v5926
  %5928 = vmatmul.bf16.gmra.mxu0 %v2962
  %v5929 = vpop.f32.mrf.mxu0
  %v5930 = vadd.f32 %v5761, %v5929
  %v5931 = vpop.f32.mrf.mxu0
  %v5932 = vadd.f32 %v5763, %v5931
  %5933 = vdwg.mxu0
  %5934 = vmatpush.bf16.msra.mxu0 %v5314
  %5935 = vmatpush.bf16.msra.mxu0 %v5313
  %5936 = vmatpush.bf16.msra.mxu0 %v5312
  %5937 = vmatpush.bf16.msra.mxu0 %v5311
  %5938 = vmatpush.bf16.msra.mxu0 %v5310
  %5939 = vmatpush.bf16.msra.mxu0 %v5309
  %5940 = vmatpush.bf16.msra.mxu0 %v5308
  %5941 = vmatpush.bf16.msra.mxu0 %v5307
  %5942 = vmatmul.bf16.gmra.mxu0 %v3123
  %v5943 = vpop.f32.mrf.mxu0
  %v5944 = vadd.f32 %v5775, %v5943
  %v5945 = vpop.f32.mrf.mxu0
  %v5946 = vadd.f32 %v5777, %v5945
  %5947 = vmatmul.bf16.gmra.mxu0 %v3124
  %v5948 = vpop.f32.mrf.mxu0
  %v5949 = vadd.f32 %v5780, %v5948
  %v5950 = vpop.f32.mrf.mxu0
  %v5951 = vadd.f32 %v5782, %v5950
  %5952 = vmatmul.bf16.gmra.mxu0 %v3125
  %v5953 = vpop.f32.mrf.mxu0
  %v5954 = vadd.f32 %v5785, %v5953
  %v5955 = vpop.f32.mrf.mxu0
  %v5956 = vadd.f32 %v5787, %v5955
  %5957 = vmatmul.bf16.gmra.mxu0 %v3126
  %v5958 = vpop.f32.mrf.mxu0
  %v5959 = vadd.f32 %v5790, %v5958
  %v5960 = vpop.f32.mrf.mxu0
  %v5961 = vadd.f32 %v5792, %v5960
  %5962 = vmatmul.bf16.gmra.mxu0 %v3127
  %v5963 = vpop.f32.mrf.mxu0
  %v5964 = vadd.f32 %v5795, %v5963
  %v5965 = vpop.f32.mrf.mxu0
  %v5966 = vadd.f32 %v5797, %v5965
  %5967 = vmatmul.bf16.gmra.mxu0 %v3128
  %v5968 = vpop.f32.mrf.mxu0
  %v5969 = vadd.f32 %v5800, %v5968
  %v5970 = vpop.f32.mrf.mxu0
  %v5971 = vadd.f32 %v5802, %v5970
  %5972 = vmatmul.bf16.gmra.mxu0 %v3129
  %v5973 = vpop.f32.mrf.mxu0
  %v5974 = vadd.f32 %v5805, %v5973
  %v5975 = vpop.f32.mrf.mxu0
  %v5976 = vadd.f32 %v5807, %v5975
  %5977 = vmatmul.bf16.gmra.mxu0 %v3130
  %v5978 = vpop.f32.mrf.mxu0
  %v5979 = vadd.f32 %v5810, %v5978
  %v5980 = vpop.f32.mrf.mxu0
  %v5981 = vadd.f32 %v5812, %v5980
  %5982 = vmatmul.bf16.gmra.mxu0 %v3131
  %v5983 = vpop.f32.mrf.mxu0
  %v5984 = vadd.f32 %v5815, %v5983
  %v5985 = vpop.f32.mrf.mxu0
  %v5986 = vadd.f32 %v5817, %v5985
  %5987 = vmatmul.bf16.gmra.mxu0 %v3132
  %v5988 = vpop.f32.mrf.mxu0
  %v5989 = vadd.f32 %v5820, %v5988
  %v5990 = vpop.f32.mrf.mxu0
  %v5991 = vadd.f32 %v5822, %v5990
  %5992 = vmatmul.bf16.gmra.mxu0 %v3133
  %v5993 = vpop.f32.mrf.mxu0
  %v5994 = vadd.f32 %v5825, %v5993
  %v5995 = vpop.f32.mrf.mxu0
  %v5996 = vadd.f32 %v5827, %v5995
  %5997 = vmatmul.bf16.gmra.mxu0 %v3134
  %v5998 = vpop.f32.mrf.mxu0
  %v5999 = vadd.f32 %v5830, %v5998
  %v6000 = vpop.f32.mrf.mxu0
  %v6001 = vadd.f32 %v5832, %v6000
  %6002 = vmatmul.bf16.gmra.mxu0 %v3135
  %v6003 = vpop.f32.mrf.mxu0
  %v6004 = vadd.f32 %v5835, %v6003
  %v6005 = vpop.f32.mrf.mxu0
  %v6006 = vadd.f32 %v5837, %v6005
  %6007 = vmatmul.bf16.gmra.mxu0 %v3136
  %v6008 = vpop.f32.mrf.mxu0
  %v6009 = vadd.f32 %v5840, %v6008
  %v6010 = vpop.f32.mrf.mxu0
  %v6011 = vadd.f32 %v5842, %v6010
  %6012 = vmatmul.bf16.gmra.mxu0 %v3137
  %v6013 = vpop.f32.mrf.mxu0
  %v6014 = vadd.f32 %v5845, %v6013
  %v6015 = vpop.f32.mrf.mxu0
  %v6016 = vadd.f32 %v5847, %v6015
  %6017 = vmatmul.bf16.gmra.mxu0 %v3138
  %v6018 = vpop.f32.mrf.mxu0
  %v6019 = vadd.f32 %v5850, %v6018
  %v6020 = vpop.f32.mrf.mxu0
  %v6021 = vadd.f32 %v5852, %v6020
  %6022 = vmatmul.bf16.gmra.mxu0 %v3139
  %v6023 = vpop.f32.mrf.mxu0
  %v6024 = vadd.f32 %v5855, %v6023
  %v6025 = vpop.f32.mrf.mxu0
  %v6026 = vadd.f32 %v5857, %v6025
  %6027 = vmatmul.bf16.gmra.mxu0 %v3140
  %v6028 = vpop.f32.mrf.mxu0
  %v6029 = vadd.f32 %v5860, %v6028
  %v6030 = vpop.f32.mrf.mxu0
  %v6031 = vadd.f32 %v5862, %v6030
  %6032 = vmatmul.bf16.gmra.mxu0 %v3141
  %v6033 = vpop.f32.mrf.mxu0
  %v6034 = vadd.f32 %v5865, %v6033
  %v6035 = vpop.f32.mrf.mxu0
  %v6036 = vadd.f32 %v5867, %v6035
  %6037 = vmatmul.bf16.gmra.mxu0 %v3142
  %v6038 = vpop.f32.mrf.mxu0
  %v6039 = vadd.f32 %v5870, %v6038
  %v6040 = vpop.f32.mrf.mxu0
  %v6041 = vadd.f32 %v5872, %v6040
  %6042 = vmatmul.bf16.gmra.mxu0 %v3143
  %v6043 = vpop.f32.mrf.mxu0
  %v6044 = vadd.f32 %v5875, %v6043
  %v6045 = vpop.f32.mrf.mxu0
  %v6046 = vadd.f32 %v5877, %v6045
  %6047 = vmatmul.bf16.gmra.mxu0 %v3144
  %v6048 = vpop.f32.mrf.mxu0
  %v6049 = vadd.f32 %v5880, %v6048
  %v6050 = vpop.f32.mrf.mxu0
  %v6051 = vadd.f32 %v5882, %v6050
  %6052 = vmatmul.bf16.gmra.mxu0 %v3145
  %v6053 = vpop.f32.mrf.mxu0
  %v6054 = vadd.f32 %v5885, %v6053
  %v6055 = vpop.f32.mrf.mxu0
  %v6056 = vadd.f32 %v5887, %v6055
  %6057 = vmatmul.bf16.gmra.mxu0 %v3146
  %v6058 = vpop.f32.mrf.mxu0
  %v6059 = vadd.f32 %v5890, %v6058
  %v6060 = vpop.f32.mrf.mxu0
  %v6061 = vadd.f32 %v5892, %v6060
  %6062 = vmatmul.bf16.gmra.mxu0 %v3147
  %v6063 = vpop.f32.mrf.mxu0
  %v6064 = vadd.f32 %v5895, %v6063
  %v6065 = vpop.f32.mrf.mxu0
  %v6066 = vadd.f32 %v5897, %v6065
  %6067 = vmatmul.bf16.gmra.mxu0 %v3148
  %v6068 = vpop.f32.mrf.mxu0
  %v6069 = vadd.f32 %v5900, %v6068
  %v6070 = vpop.f32.mrf.mxu0
  %v6071 = vadd.f32 %v5902, %v6070
  %6072 = vmatmul.bf16.gmra.mxu0 %v3149
  %v6073 = vpop.f32.mrf.mxu0
  %v6074 = vadd.f32 %v5905, %v6073
  %v6075 = vpop.f32.mrf.mxu0
  %v6076 = vadd.f32 %v5907, %v6075
  %6077 = vmatmul.bf16.gmra.mxu0 %v3150
  %v6078 = vpop.f32.mrf.mxu0
  %v6079 = vadd.f32 %v5910, %v6078
  %v6080 = vpop.f32.mrf.mxu0
  %v6081 = vadd.f32 %v5912, %v6080
  %6082 = vmatmul.bf16.gmra.mxu0 %v3151
  %v6083 = vpop.f32.mrf.mxu0
  %v6084 = vadd.f32 %v5915, %v6083
  %v6085 = vpop.f32.mrf.mxu0
  %v6086 = vadd.f32 %v5917, %v6085
  %6087 = vmatmul.bf16.gmra.mxu0 %v3152
  %v6088 = vpop.f32.mrf.mxu0
  %v6089 = vadd.f32 %v5920, %v6088
  %v6090 = vpop.f32.mrf.mxu0
  %v6091 = vadd.f32 %v5922, %v6090
  %6092 = vmatmul.bf16.gmra.mxu0 %v3153
  %v6093 = vpop.f32.mrf.mxu0
  %v6094 = vadd.f32 %v5925, %v6093
  %v6095 = vpop.f32.mrf.mxu0
  %v6096 = vadd.f32 %v5927, %v6095
  %6097 = vmatmul.bf16.gmra.mxu0 %v3154
  %v6098 = vpop.f32.mrf.mxu0
  %v6099 = vadd.f32 %v5930, %v6098
  %v6100 = vpop.f32.mrf.mxu0
  %v6101 = vadd.f32 %v5932, %v6100
  %6102 = vdwg.mxu0
  %6103 = vmatpush.bf16.msra.mxu0 %v5322
  %6104 = vmatpush.bf16.msra.mxu0 %v5321
  %6105 = vmatpush.bf16.msra.mxu0 %v5320
  %6106 = vmatpush.bf16.msra.mxu0 %v5319
  %6107 = vmatpush.bf16.msra.mxu0 %v5318
  %6108 = vmatpush.bf16.msra.mxu0 %v5317
  %6109 = vmatpush.bf16.msra.mxu0 %v5316
  %6110 = vmatpush.bf16.msra.mxu0 %v5315
  %6111 = vmatmul.bf16.gmra.mxu0 %v3294
  %v6112 = vpop.f32.mrf.mxu0
  %v6113 = vadd.f32 %v5944, %v6112
  %v6114 = vpop.f32.mrf.mxu0
  %v6115 = vadd.f32 %v5946, %v6114
  %6116 = vmatmul.bf16.gmra.mxu0 %v3306
  %v6117 = vpop.f32.mrf.mxu0
  %v6118 = vadd.f32 %v5949, %v6117
  %v6119 = vpop.f32.mrf.mxu0
  %v6120 = vadd.f32 %v5951, %v6119
  %6121 = vmatmul.bf16.gmra.mxu0 %v3318
  %v6122 = vpop.f32.mrf.mxu0
  %v6123 = vadd.f32 %v5954, %v6122
  %v6124 = vpop.f32.mrf.mxu0
  %v6125 = vadd.f32 %v5956, %v6124
  %6126 = vmatmul.bf16.gmra.mxu0 %v3330
  %v6127 = vpop.f32.mrf.mxu0
  %v6128 = vadd.f32 %v5959, %v6127
  %v6129 = vpop.f32.mrf.mxu0
  %v6130 = vadd.f32 %v5961, %v6129
  %6131 = vmatmul.bf16.gmra.mxu0 %v3342
  %v6132 = vpop.f32.mrf.mxu0
  %v6133 = vadd.f32 %v5964, %v6132
  %v6134 = vpop.f32.mrf.mxu0
  %v6135 = vadd.f32 %v5966, %v6134
  %6136 = vmatmul.bf16.gmra.mxu0 %v3354
  %v6137 = vpop.f32.mrf.mxu0
  %v6138 = vadd.f32 %v5969, %v6137
  %v6139 = vpop.f32.mrf.mxu0
  %v6140 = vadd.f32 %v5971, %v6139
  %6141 = vmatmul.bf16.gmra.mxu0 %v3366
  %v6142 = vpop.f32.mrf.mxu0
  %v6143 = vadd.f32 %v5974, %v6142
  %v6144 = vpop.f32.mrf.mxu0
  %v6145 = vadd.f32 %v5976, %v6144
  %6146 = vmatmul.bf16.gmra.mxu0 %v3378
  %v6147 = vpop.f32.mrf.mxu0
  %v6148 = vadd.f32 %v5979, %v6147
  %v6149 = vpop.f32.mrf.mxu0
  %v6150 = vadd.f32 %v5981, %v6149
  %6151 = vmatmul.bf16.gmra.mxu0 %v3390
  %v6152 = vpop.f32.mrf.mxu0
  %v6153 = vadd.f32 %v5984, %v6152
  %v6154 = vpop.f32.mrf.mxu0
  %v6155 = vadd.f32 %v5986, %v6154
  %6156 = vmatmul.bf16.gmra.mxu0 %v3402
  %v6157 = vpop.f32.mrf.mxu0
  %v6158 = vadd.f32 %v5989, %v6157
  %v6159 = vpop.f32.mrf.mxu0
  %v6160 = vadd.f32 %v5991, %v6159
  %6161 = vmatmul.bf16.gmra.mxu0 %v3414
  %v6162 = vpop.f32.mrf.mxu0
  %v6163 = vadd.f32 %v5994, %v6162
  %v6164 = vpop.f32.mrf.mxu0
  %v6165 = vadd.f32 %v5996, %v6164
  %6166 = vmatmul.bf16.gmra.mxu0 %v3426
  %v6167 = vpop.f32.mrf.mxu0
  %v6168 = vadd.f32 %v5999, %v6167
  %v6169 = vpop.f32.mrf.mxu0
  %v6170 = vadd.f32 %v6001, %v6169
  %6171 = vmatmul.bf16.gmra.mxu0 %v3438
  %v6172 = vpop.f32.mrf.mxu0
  %v6173 = vadd.f32 %v6004, %v6172
  %v6174 = vpop.f32.mrf.mxu0
  %v6175 = vadd.f32 %v6006, %v6174
  %6176 = vmatmul.bf16.gmra.mxu0 %v3450
  %v6177 = vpop.f32.mrf.mxu0
  %v6178 = vadd.f32 %v6009, %v6177
  %v6179 = vpop.f32.mrf.mxu0
  %v6180 = vadd.f32 %v6011, %v6179
  %6181 = vmatmul.bf16.gmra.mxu0 %v3462
  %v6182 = vpop.f32.mrf.mxu0
  %v6183 = vadd.f32 %v6014, %v6182
  %v6184 = vpop.f32.mrf.mxu0
  %v6185 = vadd.f32 %v6016, %v6184
  %6186 = vmatmul.bf16.gmra.mxu0 %v3474
  %v6187 = vpop.f32.mrf.mxu0
  %v6188 = vadd.f32 %v6019, %v6187
  %v6189 = vpop.f32.mrf.mxu0
  %v6190 = vadd.f32 %v6021, %v6189
  %6191 = vmatmul.bf16.gmra.mxu0 %v3486
  %v6192 = vpop.f32.mrf.mxu0
  %v6193 = vadd.f32 %v6024, %v6192
  %v6194 = vpop.f32.mrf.mxu0
  %v6195 = vadd.f32 %v6026, %v6194
  %6196 = vmatmul.bf16.gmra.mxu0 %v3498
  %v6197 = vpop.f32.mrf.mxu0
  %v6198 = vadd.f32 %v6029, %v6197
  %v6199 = vpop.f32.mrf.mxu0
  %v6200 = vadd.f32 %v6031, %v6199
  %6201 = vmatmul.bf16.gmra.mxu0 %v3510
  %v6202 = vpop.f32.mrf.mxu0
  %v6203 = vadd.f32 %v6034, %v6202
  %v6204 = vpop.f32.mrf.mxu0
  %v6205 = vadd.f32 %v6036, %v6204
  %6206 = vmatmul.bf16.gmra.mxu0 %v3522
  %v6207 = vpop.f32.mrf.mxu0
  %v6208 = vadd.f32 %v6039, %v6207
  %v6209 = vpop.f32.mrf.mxu0
  %v6210 = vadd.f32 %v6041, %v6209
  %6211 = vmatmul.bf16.gmra.mxu0 %v3534
  %v6212 = vpop.f32.mrf.mxu0
  %v6213 = vadd.f32 %v6044, %v6212
  %v6214 = vpop.f32.mrf.mxu0
  %v6215 = vadd.f32 %v6046, %v6214
  %6216 = vmatmul.bf16.gmra.mxu0 %v3546
  %v6217 = vpop.f32.mrf.mxu0
  %v6218 = vadd.f32 %v6049, %v6217
  %v6219 = vpop.f32.mrf.mxu0
  %v6220 = vadd.f32 %v6051, %v6219
  %6221 = vmatmul.bf16.gmra.mxu0 %v3558
  %v6222 = vpop.f32.mrf.mxu0
  %v6223 = vadd.f32 %v6054, %v6222
  %v6224 = vpop.f32.mrf.mxu0
  %v6225 = vadd.f32 %v6056, %v6224
  %6226 = vmatmul.bf16.gmra.mxu0 %v3570
  %v6227 = vpop.f32.mrf.mxu0
  %v6228 = vadd.f32 %v6059, %v6227
  %v6229 = vpop.f32.mrf.mxu0
  %v6230 = vadd.f32 %v6061, %v6229
  %6231 = vmatmul.bf16.gmra.mxu0 %v3582
  %v6232 = vpop.f32.mrf.mxu0
  %v6233 = vadd.f32 %v6064, %v6232
  %v6234 = vpop.f32.mrf.mxu0
  %v6235 = vadd.f32 %v6066, %v6234
  %6236 = vmatmul.bf16.gmra.mxu0 %v3594
  %v6237 = vpop.f32.mrf.mxu0
  %v6238 = vadd.f32 %v6069, %v6237
  %v6239 = vpop.f32.mrf.mxu0
  %v6240 = vadd.f32 %v6071, %v6239
  %6241 = vmatmul.bf16.gmra.mxu0 %v3606
  %v6242 = vpop.f32.mrf.mxu0
  %v6243 = vadd.f32 %v6074, %v6242
  %v6244 = vpop.f32.mrf.mxu0
  %v6245 = vadd.f32 %v6076, %v6244
  %6246 = vmatmul.bf16.gmra.mxu0 %v3618
  %v6247 = vpop.f32.mrf.mxu0
  %v6248 = vadd.f32 %v6079, %v6247
  %v6249 = vpop.f32.mrf.mxu0
  %v6250 = vadd.f32 %v6081, %v6249
  %6251 = vmatmul.bf16.gmra.mxu0 %v3630
  %v6252 = vpop.f32.mrf.mxu0
  %v6253 = vadd.f32 %v6084, %v6252
  %v6254 = vpop.f32.mrf.mxu0
  %v6255 = vadd.f32 %v6086, %v6254
  %6256 = vmatmul.bf16.gmra.mxu0 %v3642
  %v6257 = vpop.f32.mrf.mxu0
  %v6258 = vadd.f32 %v6089, %v6257
  %v6259 = vpop.f32.mrf.mxu0
  %v6260 = vadd.f32 %v6091, %v6259
  %6261 = vmatmul.bf16.gmra.mxu0 %v3654
  %v6262 = vpop.f32.mrf.mxu0
  %v6263 = vadd.f32 %v6094, %v6262
  %v6264 = vpop.f32.mrf.mxu0
  %v6265 = vadd.f32 %v6096, %v6264
  %6266 = vmatmul.bf16.gmra.mxu0 %v3666
  %v6267 = vpop.f32.mrf.mxu0
  %v6268 = vadd.f32 %v6099, %v6267
  %v6269 = vpop.f32.mrf.mxu0
  %v6270 = vadd.f32 %v6101, %v6269
  %6271 = vdwg.mxu0
  %6272 = vmatpush.bf16.msra.mxu0 %v5330
  %6273 = vmatpush.bf16.msra.mxu0 %v5329
  %6274 = vmatpush.bf16.msra.mxu0 %v5328
  %6275 = vmatpush.bf16.msra.mxu0 %v5327
  %6276 = vmatpush.bf16.msra.mxu0 %v5326
  %6277 = vmatpush.bf16.msra.mxu0 %v5325
  %6278 = vmatpush.bf16.msra.mxu0 %v5324
  %6279 = vmatpush.bf16.msra.mxu0 %v5323
  %6280 = vmatmul.bf16.gmra.mxu0 %v3797
  %v6281 = vpop.f32.mrf.mxu0
  %v6282 = vadd.f32 %v6113, %v6281
  %v6283 = vpop.f32.mrf.mxu0
  %v6284 = vadd.f32 %v6115, %v6283
  %6285 = vmatmul.bf16.gmra.mxu0 %v3800
  %v6286 = vpop.f32.mrf.mxu0
  %v6287 = vadd.f32 %v6118, %v6286
  %v6288 = vpop.f32.mrf.mxu0
  %v6289 = vadd.f32 %v6120, %v6288
  %6290 = vmatmul.bf16.gmra.mxu0 %v3803
  %v6291 = vpop.f32.mrf.mxu0
  %v6292 = vadd.f32 %v6123, %v6291
  %v6293 = vpop.f32.mrf.mxu0
  %v6294 = vadd.f32 %v6125, %v6293
  %6295 = vmatmul.bf16.gmra.mxu0 %v3806
  %v6296 = vpop.f32.mrf.mxu0
  %v6297 = vadd.f32 %v6128, %v6296
  %v6298 = vpop.f32.mrf.mxu0
  %v6299 = vadd.f32 %v6130, %v6298
  %6300 = vmatmul.bf16.gmra.mxu0 %v3809
  %v6301 = vpop.f32.mrf.mxu0
  %v6302 = vadd.f32 %v6133, %v6301
  %v6303 = vpop.f32.mrf.mxu0
  %v6304 = vadd.f32 %v6135, %v6303
  %6305 = vmatmul.bf16.gmra.mxu0 %v3812
  %v6306 = vpop.f32.mrf.mxu0
  %v6307 = vadd.f32 %v6138, %v6306
  %v6308 = vpop.f32.mrf.mxu0
  %v6309 = vadd.f32 %v6140, %v6308
  %6310 = vmatmul.bf16.gmra.mxu0 %v3815
  %v6311 = vpop.f32.mrf.mxu0
  %v6312 = vadd.f32 %v6143, %v6311
  %v6313 = vpop.f32.mrf.mxu0
  %v6314 = vadd.f32 %v6145, %v6313
  %6315 = vmatmul.bf16.gmra.mxu0 %v3818
  %v6316 = vpop.f32.mrf.mxu0
  %v6317 = vadd.f32 %v6148, %v6316
  %v6318 = vpop.f32.mrf.mxu0
  %v6319 = vadd.f32 %v6150, %v6318
  %6320 = vmatmul.bf16.gmra.mxu0 %v3821
  %v6321 = vpop.f32.mrf.mxu0
  %v6322 = vadd.f32 %v6153, %v6321
  %v6323 = vpop.f32.mrf.mxu0
  %v6324 = vadd.f32 %v6155, %v6323
  %6325 = vmatmul.bf16.gmra.mxu0 %v3824
  %v6326 = vpop.f32.mrf.mxu0
  %v6327 = vadd.f32 %v6158, %v6326
  %v6328 = vpop.f32.mrf.mxu0
  %v6329 = vadd.f32 %v6160, %v6328
  %6330 = vmatmul.bf16.gmra.mxu0 %v3827
  %v6331 = vpop.f32.mrf.mxu0
  %v6332 = vadd.f32 %v6163, %v6331
  %v6333 = vpop.f32.mrf.mxu0
  %v6334 = vadd.f32 %v6165, %v6333
  %6335 = vmatmul.bf16.gmra.mxu0 %v3830
  %v6336 = vpop.f32.mrf.mxu0
  %v6337 = vadd.f32 %v6168, %v6336
  %v6338 = vpop.f32.mrf.mxu0
  %v6339 = vadd.f32 %v6170, %v6338
  %6340 = vmatmul.bf16.gmra.mxu0 %v3833
  %v6341 = vpop.f32.mrf.mxu0
  %v6342 = vadd.f32 %v6173, %v6341
  %v6343 = vpop.f32.mrf.mxu0
  %v6344 = vadd.f32 %v6175, %v6343
  %6345 = vmatmul.bf16.gmra.mxu0 %v3836
  %v6346 = vpop.f32.mrf.mxu0
  %v6347 = vadd.f32 %v6178, %v6346
  %v6348 = vpop.f32.mrf.mxu0
  %v6349 = vadd.f32 %v6180, %v6348
  %6350 = vmatmul.bf16.gmra.mxu0 %v3839
  %v6351 = vpop.f32.mrf.mxu0
  %v6352 = vadd.f32 %v6183, %v6351
  %v6353 = vpop.f32.mrf.mxu0
  %v6354 = vadd.f32 %v6185, %v6353
  %6355 = vmatmul.bf16.gmra.mxu0 %v3842
  %v6356 = vpop.f32.mrf.mxu0
  %v6357 = vadd.f32 %v6188, %v6356
  %v6358 = vpop.f32.mrf.mxu0
  %v6359 = vadd.f32 %v6190, %v6358
  %6360 = vmatmul.bf16.gmra.mxu0 %v3845
  %v6361 = vpop.f32.mrf.mxu0
  %v6362 = vadd.f32 %v6193, %v6361
  %v6363 = vpop.f32.mrf.mxu0
  %v6364 = vadd.f32 %v6195, %v6363
  %6365 = vmatmul.bf16.gmra.mxu0 %v3848
  %v6366 = vpop.f32.mrf.mxu0
  %v6367 = vadd.f32 %v6198, %v6366
  %v6368 = vpop.f32.mrf.mxu0
  %v6369 = vadd.f32 %v6200, %v6368
  %6370 = vmatmul.bf16.gmra.mxu0 %v3851
  %v6371 = vpop.f32.mrf.mxu0
  %v6372 = vadd.f32 %v6203, %v6371
  %v6373 = vpop.f32.mrf.mxu0
  %v6374 = vadd.f32 %v6205, %v6373
  %6375 = vmatmul.bf16.gmra.mxu0 %v3854
  %v6376 = vpop.f32.mrf.mxu0
  %v6377 = vadd.f32 %v6208, %v6376
  %v6378 = vpop.f32.mrf.mxu0
  %v6379 = vadd.f32 %v6210, %v6378
  %6380 = vmatmul.bf16.gmra.mxu0 %v3857
  %v6381 = vpop.f32.mrf.mxu0
  %v6382 = vadd.f32 %v6213, %v6381
  %v6383 = vpop.f32.mrf.mxu0
  %v6384 = vadd.f32 %v6215, %v6383
  %6385 = vmatmul.bf16.gmra.mxu0 %v3860
  %v6386 = vpop.f32.mrf.mxu0
  %v6387 = vadd.f32 %v6218, %v6386
  %v6388 = vpop.f32.mrf.mxu0
  %v6389 = vadd.f32 %v6220, %v6388
  %6390 = vmatmul.bf16.gmra.mxu0 %v3863
  %v6391 = vpop.f32.mrf.mxu0
  %v6392 = vadd.f32 %v6223, %v6391
  %v6393 = vpop.f32.mrf.mxu0
  %v6394 = vadd.f32 %v6225, %v6393
  %6395 = vmatmul.bf16.gmra.mxu0 %v3866
  %v6396 = vpop.f32.mrf.mxu0
  %v6397 = vadd.f32 %v6228, %v6396
  %v6398 = vpop.f32.mrf.mxu0
  %v6399 = vadd.f32 %v6230, %v6398
  %6400 = vmatmul.bf16.gmra.mxu0 %v3869
  %v6401 = vpop.f32.mrf.mxu0
  %v6402 = vadd.f32 %v6233, %v6401
  %v6403 = vpop.f32.mrf.mxu0
  %v6404 = vadd.f32 %v6235, %v6403
  %6405 = vmatmul.bf16.gmra.mxu0 %v3872
  %v6406 = vpop.f32.mrf.mxu0
  %v6407 = vadd.f32 %v6238, %v6406
  %v6408 = vpop.f32.mrf.mxu0
  %v6409 = vadd.f32 %v6240, %v6408
  %6410 = vmatmul.bf16.gmra.mxu0 %v3875
  %v6411 = vpop.f32.mrf.mxu0
  %v6412 = vadd.f32 %v6243, %v6411
  %v6413 = vpop.f32.mrf.mxu0
  %v6414 = vadd.f32 %v6245, %v6413
  %6415 = vmatmul.bf16.gmra.mxu0 %v3878
  %v6416 = vpop.f32.mrf.mxu0
  %v6417 = vadd.f32 %v6248, %v6416
  %v6418 = vpop.f32.mrf.mxu0
  %v6419 = vadd.f32 %v6250, %v6418
  %6420 = vmatmul.bf16.gmra.mxu0 %v3881
  %v6421 = vpop.f32.mrf.mxu0
  %v6422 = vadd.f32 %v6253, %v6421
  %v6423 = vpop.f32.mrf.mxu0
  %v6424 = vadd.f32 %v6255, %v6423
  %6425 = vmatmul.bf16.gmra.mxu0 %v3884
  %v6426 = vpop.f32.mrf.mxu0
  %v6427 = vadd.f32 %v6258, %v6426
  %v6428 = vpop.f32.mrf.mxu0
  %v6429 = vadd.f32 %v6260, %v6428
  %6430 = vmatmul.bf16.gmra.mxu0 %v3887
  %v6431 = vpop.f32.mrf.mxu0
  %v6432 = vadd.f32 %v6263, %v6431
  %v6433 = vpop.f32.mrf.mxu0
  %v6434 = vadd.f32 %v6265, %v6433
  %6435 = vmatmul.bf16.gmra.mxu0 %v3890
  %v6436 = vpop.f32.mrf.mxu0
  %v6437 = vadd.f32 %v6268, %v6436
  %v6438 = vpop.f32.mrf.mxu0
  %v6439 = vadd.f32 %v6270, %v6438
  %6440 = vdwg.mxu0
  %6441 = vmatpush.bf16.msra.mxu0 %v5338
  %6442 = vmatpush.bf16.msra.mxu0 %v5337
  %6443 = vmatpush.bf16.msra.mxu0 %v5336
  %6444 = vmatpush.bf16.msra.mxu0 %v5335
  %6445 = vmatpush.bf16.msra.mxu0 %v5334
  %6446 = vmatpush.bf16.msra.mxu0 %v5333
  %6447 = vmatpush.bf16.msra.mxu0 %v5332
  %6448 = vmatpush.bf16.msra.mxu0 %v5331
  %6449 = vmatmul.bf16.gmra.mxu0 %v4051
  %v6450 = vpop.f32.mrf.mxu0
  %v6451 = vadd.f32 %v6282, %v6450
  %v6452 = vpop.f32.mrf.mxu0
  %v6453 = vadd.f32 %v6284, %v6452
  %6454 = vmatmul.bf16.gmra.mxu0 %v4052
  %v6455 = vpop.f32.mrf.mxu0
  %v6456 = vadd.f32 %v6287, %v6455
  %v6457 = vpop.f32.mrf.mxu0
  %v6458 = vadd.f32 %v6289, %v6457
  %6459 = vmatmul.bf16.gmra.mxu0 %v4053
  %v6460 = vpop.f32.mrf.mxu0
  %v6461 = vadd.f32 %v6292, %v6460
  %v6462 = vpop.f32.mrf.mxu0
  %v6463 = vadd.f32 %v6294, %v6462
  %6464 = vmatmul.bf16.gmra.mxu0 %v4054
  %v6465 = vpop.f32.mrf.mxu0
  %v6466 = vadd.f32 %v6297, %v6465
  %v6467 = vpop.f32.mrf.mxu0
  %v6468 = vadd.f32 %v6299, %v6467
  %6469 = vmatmul.bf16.gmra.mxu0 %v4055
  %v6470 = vpop.f32.mrf.mxu0
  %v6471 = vadd.f32 %v6302, %v6470
  %v6472 = vpop.f32.mrf.mxu0
  %v6473 = vadd.f32 %v6304, %v6472
  %6474 = vmatmul.bf16.gmra.mxu0 %v4056
  %v6475 = vpop.f32.mrf.mxu0
  %v6476 = vadd.f32 %v6307, %v6475
  %v6477 = vpop.f32.mrf.mxu0
  %v6478 = vadd.f32 %v6309, %v6477
  %6479 = vmatmul.bf16.gmra.mxu0 %v4057
  %v6480 = vpop.f32.mrf.mxu0
  %v6481 = vadd.f32 %v6312, %v6480
  %v6482 = vpop.f32.mrf.mxu0
  %v6483 = vadd.f32 %v6314, %v6482
  %6484 = vmatmul.bf16.gmra.mxu0 %v4058
  %v6485 = vpop.f32.mrf.mxu0
  %v6486 = vadd.f32 %v6317, %v6485
  %v6487 = vpop.f32.mrf.mxu0
  %v6488 = vadd.f32 %v6319, %v6487
  %6489 = vmatmul.bf16.gmra.mxu0 %v4059
  %v6490 = vpop.f32.mrf.mxu0
  %v6491 = vadd.f32 %v6322, %v6490
  %v6492 = vpop.f32.mrf.mxu0
  %v6493 = vadd.f32 %v6324, %v6492
  %6494 = vmatmul.bf16.gmra.mxu0 %v4060
  %v6495 = vpop.f32.mrf.mxu0
  %v6496 = vadd.f32 %v6327, %v6495
  %v6497 = vpop.f32.mrf.mxu0
  %v6498 = vadd.f32 %v6329, %v6497
  %6499 = vmatmul.bf16.gmra.mxu0 %v4061
  %v6500 = vpop.f32.mrf.mxu0
  %v6501 = vadd.f32 %v6332, %v6500
  %v6502 = vpop.f32.mrf.mxu0
  %v6503 = vadd.f32 %v6334, %v6502
  %6504 = vmatmul.bf16.gmra.mxu0 %v4062
  %v6505 = vpop.f32.mrf.mxu0
  %v6506 = vadd.f32 %v6337, %v6505
  %v6507 = vpop.f32.mrf.mxu0
  %v6508 = vadd.f32 %v6339, %v6507
  %6509 = vmatmul.bf16.gmra.mxu0 %v4063
  %v6510 = vpop.f32.mrf.mxu0
  %v6511 = vadd.f32 %v6342, %v6510
  %v6512 = vpop.f32.mrf.mxu0
  %v6513 = vadd.f32 %v6344, %v6512
  %6514 = vmatmul.bf16.gmra.mxu0 %v4064
  %v6515 = vpop.f32.mrf.mxu0
  %v6516 = vadd.f32 %v6347, %v6515
  %v6517 = vpop.f32.mrf.mxu0
  %v6518 = vadd.f32 %v6349, %v6517
  %6519 = vmatmul.bf16.gmra.mxu0 %v4065
  %v6520 = vpop.f32.mrf.mxu0
  %v6521 = vadd.f32 %v6352, %v6520
  %v6522 = vpop.f32.mrf.mxu0
  %v6523 = vadd.f32 %v6354, %v6522
  %6524 = vmatmul.bf16.gmra.mxu0 %v4066
  %v6525 = vpop.f32.mrf.mxu0
  %v6526 = vadd.f32 %v6357, %v6525
  %v6527 = vpop.f32.mrf.mxu0
  %v6528 = vadd.f32 %v6359, %v6527
  %6529 = vmatmul.bf16.gmra.mxu0 %v4067
  %v6530 = vpop.f32.mrf.mxu0
  %v6531 = vadd.f32 %v6362, %v6530
  %v6532 = vpop.f32.mrf.mxu0
  %v6533 = vadd.f32 %v6364, %v6532
  %6534 = vmatmul.bf16.gmra.mxu0 %v4068
  %v6535 = vpop.f32.mrf.mxu0
  %v6536 = vadd.f32 %v6367, %v6535
  %v6537 = vpop.f32.mrf.mxu0
  %v6538 = vadd.f32 %v6369, %v6537
  %6539 = vmatmul.bf16.gmra.mxu0 %v4069
  %v6540 = vpop.f32.mrf.mxu0
  %v6541 = vadd.f32 %v6372, %v6540
  %v6542 = vpop.f32.mrf.mxu0
  %v6543 = vadd.f32 %v6374, %v6542
  %6544 = vmatmul.bf16.gmra.mxu0 %v4070
  %v6545 = vpop.f32.mrf.mxu0
  %v6546 = vadd.f32 %v6377, %v6545
  %v6547 = vpop.f32.mrf.mxu0
  %v6548 = vadd.f32 %v6379, %v6547
  %6549 = vmatmul.bf16.gmra.mxu0 %v4071
  %v6550 = vpop.f32.mrf.mxu0
  %v6551 = vadd.f32 %v6382, %v6550
  %v6552 = vpop.f32.mrf.mxu0
  %v6553 = vadd.f32 %v6384, %v6552
  %6554 = vmatmul.bf16.gmra.mxu0 %v4072
  %v6555 = vpop.f32.mrf.mxu0
  %v6556 = vadd.f32 %v6387, %v6555
  %v6557 = vpop.f32.mrf.mxu0
  %v6558 = vadd.f32 %v6389, %v6557
  %6559 = vmatmul.bf16.gmra.mxu0 %v4073
  %v6560 = vpop.f32.mrf.mxu0
  %v6561 = vadd.f32 %v6392, %v6560
  %v6562 = vpop.f32.mrf.mxu0
  %v6563 = vadd.f32 %v6394, %v6562
  %6564 = vmatmul.bf16.gmra.mxu0 %v4074
  %v6565 = vpop.f32.mrf.mxu0
  %v6566 = vadd.f32 %v6397, %v6565
  %v6567 = vpop.f32.mrf.mxu0
  %v6568 = vadd.f32 %v6399, %v6567
  %6569 = vmatmul.bf16.gmra.mxu0 %v4075
  %v6570 = vpop.f32.mrf.mxu0
  %v6571 = vadd.f32 %v6402, %v6570
  %v6572 = vpop.f32.mrf.mxu0
  %v6573 = vadd.f32 %v6404, %v6572
  %6574 = vmatmul.bf16.gmra.mxu0 %v4076
  %v6575 = vpop.f32.mrf.mxu0
  %v6576 = vadd.f32 %v6407, %v6575
  %v6577 = vpop.f32.mrf.mxu0
  %v6578 = vadd.f32 %v6409, %v6577
  %6579 = vmatmul.bf16.gmra.mxu0 %v4077
  %v6580 = vpop.f32.mrf.mxu0
  %v6581 = vadd.f32 %v6412, %v6580
  %v6582 = vpop.f32.mrf.mxu0
  %v6583 = vadd.f32 %v6414, %v6582
  %6584 = vmatmul.bf16.gmra.mxu0 %v4078
  %v6585 = vpop.f32.mrf.mxu0
  %v6586 = vadd.f32 %v6417, %v6585
  %v6587 = vpop.f32.mrf.mxu0
  %v6588 = vadd.f32 %v6419, %v6587
  %6589 = vmatmul.bf16.gmra.mxu0 %v4079
  %v6590 = vpop.f32.mrf.mxu0
  %v6591 = vadd.f32 %v6422, %v6590
  %v6592 = vpop.f32.mrf.mxu0
  %v6593 = vadd.f32 %v6424, %v6592
  %6594 = vmatmul.bf16.gmra.mxu0 %v4080
  %v6595 = vpop.f32.mrf.mxu0
  %v6596 = vadd.f32 %v6427, %v6595
  %v6597 = vpop.f32.mrf.mxu0
  %v6598 = vadd.f32 %v6429, %v6597
  %6599 = vmatmul.bf16.gmra.mxu0 %v4081
  %v6600 = vpop.f32.mrf.mxu0
  %v6601 = vadd.f32 %v6432, %v6600
  %v6602 = vpop.f32.mrf.mxu0
  %v6603 = vadd.f32 %v6434, %v6602
  %6604 = vmatmul.bf16.gmra.mxu0 %v4082
  %v6605 = vpop.f32.mrf.mxu0
  %v6606 = vadd.f32 %v6437, %v6605
  %v6607 = vpop.f32.mrf.mxu0
  %v6608 = vadd.f32 %v6439, %v6607
  %6609 = vdwg.mxu0
  %6610 = vmatpush.bf16.msra.mxu0 %v5346
  %6611 = vmatpush.bf16.msra.mxu0 %v5345
  %6612 = vmatpush.bf16.msra.mxu0 %v5344
  %6613 = vmatpush.bf16.msra.mxu0 %v5343
  %6614 = vmatpush.bf16.msra.mxu0 %v5342
  %6615 = vmatpush.bf16.msra.mxu0 %v5341
  %6616 = vmatpush.bf16.msra.mxu0 %v5340
  %6617 = vmatpush.bf16.msra.mxu0 %v5339
  %6618 = vmatmul.bf16.gmra.mxu0 %v4222
  %v6619 = vpop.f32.mrf.mxu0
  %v6620 = vadd.f32 %v6451, %v6619
  %v6621 = vpop.f32.mrf.mxu0
  %v6622 = vadd.f32 %v6453, %v6621
  %6623 = vmatmul.bf16.gmra.mxu0 %v4234
  %v6624 = vpop.f32.mrf.mxu0
  %v6625 = vadd.f32 %v6456, %v6624
  %v6626 = vpop.f32.mrf.mxu0
  %v6627 = vadd.f32 %v6458, %v6626
  %6628 = vmatmul.bf16.gmra.mxu0 %v4246
  %v6629 = vpop.f32.mrf.mxu0
  %v6630 = vadd.f32 %v6461, %v6629
  %v6631 = vpop.f32.mrf.mxu0
  %v6632 = vadd.f32 %v6463, %v6631
  %6633 = vmatmul.bf16.gmra.mxu0 %v4258
  %v6634 = vpop.f32.mrf.mxu0
  %v6635 = vadd.f32 %v6466, %v6634
  %v6636 = vpop.f32.mrf.mxu0
  %v6637 = vadd.f32 %v6468, %v6636
  %6638 = vmatmul.bf16.gmra.mxu0 %v4270
  %v6639 = vpop.f32.mrf.mxu0
  %v6640 = vadd.f32 %v6471, %v6639
  %v6641 = vpop.f32.mrf.mxu0
  %v6642 = vadd.f32 %v6473, %v6641
  %6643 = vmatmul.bf16.gmra.mxu0 %v4282
  %v6644 = vpop.f32.mrf.mxu0
  %v6645 = vadd.f32 %v6476, %v6644
  %v6646 = vpop.f32.mrf.mxu0
  %v6647 = vadd.f32 %v6478, %v6646
  %6648 = vmatmul.bf16.gmra.mxu0 %v4294
  %v6649 = vpop.f32.mrf.mxu0
  %v6650 = vadd.f32 %v6481, %v6649
  %v6651 = vpop.f32.mrf.mxu0
  %v6652 = vadd.f32 %v6483, %v6651
  %6653 = vmatmul.bf16.gmra.mxu0 %v4306
  %v6654 = vpop.f32.mrf.mxu0
  %v6655 = vadd.f32 %v6486, %v6654
  %v6656 = vpop.f32.mrf.mxu0
  %v6657 = vadd.f32 %v6488, %v6656
  %6658 = vmatmul.bf16.gmra.mxu0 %v4318
  %v6659 = vpop.f32.mrf.mxu0
  %v6660 = vadd.f32 %v6491, %v6659
  %v6661 = vpop.f32.mrf.mxu0
  %v6662 = vadd.f32 %v6493, %v6661
  %6663 = vmatmul.bf16.gmra.mxu0 %v4330
  %v6664 = vpop.f32.mrf.mxu0
  %v6665 = vadd.f32 %v6496, %v6664
  %v6666 = vpop.f32.mrf.mxu0
  %v6667 = vadd.f32 %v6498, %v6666
  %6668 = vmatmul.bf16.gmra.mxu0 %v4342
  %v6669 = vpop.f32.mrf.mxu0
  %v6670 = vadd.f32 %v6501, %v6669
  %v6671 = vpop.f32.mrf.mxu0
  %v6672 = vadd.f32 %v6503, %v6671
  %6673 = vmatmul.bf16.gmra.mxu0 %v4354
  %v6674 = vpop.f32.mrf.mxu0
  %v6675 = vadd.f32 %v6506, %v6674
  %v6676 = vpop.f32.mrf.mxu0
  %v6677 = vadd.f32 %v6508, %v6676
  %6678 = vmatmul.bf16.gmra.mxu0 %v4366
  %v6679 = vpop.f32.mrf.mxu0
  %v6680 = vadd.f32 %v6511, %v6679
  %v6681 = vpop.f32.mrf.mxu0
  %v6682 = vadd.f32 %v6513, %v6681
  %6683 = vmatmul.bf16.gmra.mxu0 %v4378
  %v6684 = vpop.f32.mrf.mxu0
  %v6685 = vadd.f32 %v6516, %v6684
  %v6686 = vpop.f32.mrf.mxu0
  %v6687 = vadd.f32 %v6518, %v6686
  %6688 = vmatmul.bf16.gmra.mxu0 %v4390
  %v6689 = vpop.f32.mrf.mxu0
  %v6690 = vadd.f32 %v6521, %v6689
  %v6691 = vpop.f32.mrf.mxu0
  %v6692 = vadd.f32 %v6523, %v6691
  %6693 = vmatmul.bf16.gmra.mxu0 %v4402
  %v6694 = vpop.f32.mrf.mxu0
  %v6695 = vadd.f32 %v6526, %v6694
  %v6696 = vpop.f32.mrf.mxu0
  %v6697 = vadd.f32 %v6528, %v6696
  %6698 = vmatmul.bf16.gmra.mxu0 %v4414
  %v6699 = vpop.f32.mrf.mxu0
  %v6700 = vadd.f32 %v6531, %v6699
  %v6701 = vpop.f32.mrf.mxu0
  %v6702 = vadd.f32 %v6533, %v6701
  %6703 = vmatmul.bf16.gmra.mxu0 %v4426
  %v6704 = vpop.f32.mrf.mxu0
  %v6705 = vadd.f32 %v6536, %v6704
  %v6706 = vpop.f32.mrf.mxu0
  %v6707 = vadd.f32 %v6538, %v6706
  %6708 = vmatmul.bf16.gmra.mxu0 %v4438
  %v6709 = vpop.f32.mrf.mxu0
  %v6710 = vadd.f32 %v6541, %v6709
  %v6711 = vpop.f32.mrf.mxu0
  %v6712 = vadd.f32 %v6543, %v6711
  %6713 = vmatmul.bf16.gmra.mxu0 %v4450
  %v6714 = vpop.f32.mrf.mxu0
  %v6715 = vadd.f32 %v6546, %v6714
  %v6716 = vpop.f32.mrf.mxu0
  %v6717 = vadd.f32 %v6548, %v6716
  %6718 = vmatmul.bf16.gmra.mxu0 %v4462
  %v6719 = vpop.f32.mrf.mxu0
  %v6720 = vadd.f32 %v6551, %v6719
  %v6721 = vpop.f32.mrf.mxu0
  %v6722 = vadd.f32 %v6553, %v6721
  %6723 = vmatmul.bf16.gmra.mxu0 %v4474
  %v6724 = vpop.f32.mrf.mxu0
  %v6725 = vadd.f32 %v6556, %v6724
  %v6726 = vpop.f32.mrf.mxu0
  %v6727 = vadd.f32 %v6558, %v6726
  %6728 = vmatmul.bf16.gmra.mxu0 %v4486
  %v6729 = vpop.f32.mrf.mxu0
  %v6730 = vadd.f32 %v6561, %v6729
  %v6731 = vpop.f32.mrf.mxu0
  %v6732 = vadd.f32 %v6563, %v6731
  %6733 = vmatmul.bf16.gmra.mxu0 %v4498
  %v6734 = vpop.f32.mrf.mxu0
  %v6735 = vadd.f32 %v6566, %v6734
  %v6736 = vpop.f32.mrf.mxu0
  %v6737 = vadd.f32 %v6568, %v6736
  %6738 = vmatmul.bf16.gmra.mxu0 %v4510
  %v6739 = vpop.f32.mrf.mxu0
  %v6740 = vadd.f32 %v6571, %v6739
  %v6741 = vpop.f32.mrf.mxu0
  %v6742 = vadd.f32 %v6573, %v6741
  %6743 = vmatmul.bf16.gmra.mxu0 %v4522
  %v6744 = vpop.f32.mrf.mxu0
  %v6745 = vadd.f32 %v6576, %v6744
  %v6746 = vpop.f32.mrf.mxu0
  %v6747 = vadd.f32 %v6578, %v6746
  %6748 = vmatmul.bf16.gmra.mxu0 %v4534
  %v6749 = vpop.f32.mrf.mxu0
  %v6750 = vadd.f32 %v6581, %v6749
  %v6751 = vpop.f32.mrf.mxu0
  %v6752 = vadd.f32 %v6583, %v6751
  %6753 = vmatmul.bf16.gmra.mxu0 %v4546
  %v6754 = vpop.f32.mrf.mxu0
  %v6755 = vadd.f32 %v6586, %v6754
  %v6756 = vpop.f32.mrf.mxu0
  %v6757 = vadd.f32 %v6588, %v6756
  %6758 = vmatmul.bf16.gmra.mxu0 %v4558
  %v6759 = vpop.f32.mrf.mxu0
  %v6760 = vadd.f32 %v6591, %v6759
  %v6761 = vpop.f32.mrf.mxu0
  %v6762 = vadd.f32 %v6593, %v6761
  %6763 = vmatmul.bf16.gmra.mxu0 %v4570
  %v6764 = vpop.f32.mrf.mxu0
  %v6765 = vadd.f32 %v6596, %v6764
  %v6766 = vpop.f32.mrf.mxu0
  %v6767 = vadd.f32 %v6598, %v6766
  %6768 = vmatmul.bf16.gmra.mxu0 %v4582
  %v6769 = vpop.f32.mrf.mxu0
  %v6770 = vadd.f32 %v6601, %v6769
  %v6771 = vpop.f32.mrf.mxu0
  %v6772 = vadd.f32 %v6603, %v6771
  %6773 = vmatmul.bf16.gmra.mxu0 %v4594
  %v6774 = vpop.f32.mrf.mxu0
  %v6775 = vadd.f32 %v6606, %v6774
  %v6776 = vpop.f32.mrf.mxu0
  %v6777 = vadd.f32 %v6608, %v6776
  %6778 = vdwg.mxu0
  %6779 = vmatpush.bf16.msra.mxu0 %v5354
  %6780 = vmatpush.bf16.msra.mxu0 %v5353
  %6781 = vmatpush.bf16.msra.mxu0 %v5352
  %6782 = vmatpush.bf16.msra.mxu0 %v5351
  %6783 = vmatpush.bf16.msra.mxu0 %v5350
  %6784 = vmatpush.bf16.msra.mxu0 %v5349
  %6785 = vmatpush.bf16.msra.mxu0 %v5348
  %6786 = vmatpush.bf16.msra.mxu0 %v5347
  %6787 = vmatmul.bf16.gmra.mxu0 %v4725
  %v6788 = vpop.f32.mrf.mxu0
  %v6789 = vadd.f32 %v6620, %v6788
  %v6790 = vpop.f32.mrf.mxu0
  %v6791 = vadd.f32 %v6622, %v6790
  %6792 = vmatmul.bf16.gmra.mxu0 %v4728
  %v6793 = vpop.f32.mrf.mxu0
  %v6794 = vadd.f32 %v6625, %v6793
  %v6795 = vpop.f32.mrf.mxu0
  %v6796 = vadd.f32 %v6627, %v6795
  %6797 = vmatmul.bf16.gmra.mxu0 %v4731
  %v6798 = vpop.f32.mrf.mxu0
  %v6799 = vadd.f32 %v6630, %v6798
  %v6800 = vpop.f32.mrf.mxu0
  %v6801 = vadd.f32 %v6632, %v6800
  %6802 = vmatmul.bf16.gmra.mxu0 %v4734
  %v6803 = vpop.f32.mrf.mxu0
  %v6804 = vadd.f32 %v6635, %v6803
  %v6805 = vpop.f32.mrf.mxu0
  %v6806 = vadd.f32 %v6637, %v6805
  %6807 = vmatmul.bf16.gmra.mxu0 %v4737
  %v6808 = vpop.f32.mrf.mxu0
  %v6809 = vadd.f32 %v6640, %v6808
  %v6810 = vpop.f32.mrf.mxu0
  %v6811 = vadd.f32 %v6642, %v6810
  %6812 = vmatmul.bf16.gmra.mxu0 %v4740
  %v6813 = vpop.f32.mrf.mxu0
  %v6814 = vadd.f32 %v6645, %v6813
  %v6815 = vpop.f32.mrf.mxu0
  %v6816 = vadd.f32 %v6647, %v6815
  %6817 = vmatmul.bf16.gmra.mxu0 %v4743
  %v6818 = vpop.f32.mrf.mxu0
  %v6819 = vadd.f32 %v6650, %v6818
  %v6820 = vpop.f32.mrf.mxu0
  %v6821 = vadd.f32 %v6652, %v6820
  %6822 = vmatmul.bf16.gmra.mxu0 %v4746
  %v6823 = vpop.f32.mrf.mxu0
  %v6824 = vadd.f32 %v6655, %v6823
  %v6825 = vpop.f32.mrf.mxu0
  %v6826 = vadd.f32 %v6657, %v6825
  %6827 = vmatmul.bf16.gmra.mxu0 %v4749
  %v6828 = vpop.f32.mrf.mxu0
  %v6829 = vadd.f32 %v6660, %v6828
  %v6830 = vpop.f32.mrf.mxu0
  %v6831 = vadd.f32 %v6662, %v6830
  %6832 = vmatmul.bf16.gmra.mxu0 %v4752
  %v6833 = vpop.f32.mrf.mxu0
  %v6834 = vadd.f32 %v6665, %v6833
  %v6835 = vpop.f32.mrf.mxu0
  %v6836 = vadd.f32 %v6667, %v6835
  %6837 = vmatmul.bf16.gmra.mxu0 %v4755
  %v6838 = vpop.f32.mrf.mxu0
  %v6839 = vadd.f32 %v6670, %v6838
  %v6840 = vpop.f32.mrf.mxu0
  %v6841 = vadd.f32 %v6672, %v6840
  %6842 = vmatmul.bf16.gmra.mxu0 %v4758
  %v6843 = vpop.f32.mrf.mxu0
  %v6844 = vadd.f32 %v6675, %v6843
  %v6845 = vpop.f32.mrf.mxu0
  %v6846 = vadd.f32 %v6677, %v6845
  %6847 = vmatmul.bf16.gmra.mxu0 %v4761
  %v6848 = vpop.f32.mrf.mxu0
  %v6849 = vadd.f32 %v6680, %v6848
  %v6850 = vpop.f32.mrf.mxu0
  %v6851 = vadd.f32 %v6682, %v6850
  %6852 = vmatmul.bf16.gmra.mxu0 %v4764
  %v6853 = vpop.f32.mrf.mxu0
  %v6854 = vadd.f32 %v6685, %v6853
  %v6855 = vpop.f32.mrf.mxu0
  %v6856 = vadd.f32 %v6687, %v6855
  %6857 = vmatmul.bf16.gmra.mxu0 %v4767
  %v6858 = vpop.f32.mrf.mxu0
  %v6859 = vadd.f32 %v6690, %v6858
  %v6860 = vpop.f32.mrf.mxu0
  %v6861 = vadd.f32 %v6692, %v6860
  %6862 = vmatmul.bf16.gmra.mxu0 %v4770
  %v6863 = vpop.f32.mrf.mxu0
  %v6864 = vadd.f32 %v6695, %v6863
  %v6865 = vpop.f32.mrf.mxu0
  %v6866 = vadd.f32 %v6697, %v6865
  %6867 = vmatmul.bf16.gmra.mxu0 %v4773
  %v6868 = vpop.f32.mrf.mxu0
  %v6869 = vadd.f32 %v6700, %v6868
  %v6870 = vpop.f32.mrf.mxu0
  %v6871 = vadd.f32 %v6702, %v6870
  %6872 = vmatmul.bf16.gmra.mxu0 %v4776
  %v6873 = vpop.f32.mrf.mxu0
  %v6874 = vadd.f32 %v6705, %v6873
  %v6875 = vpop.f32.mrf.mxu0
  %v6876 = vadd.f32 %v6707, %v6875
  %6877 = vmatmul.bf16.gmra.mxu0 %v4779
  %v6878 = vpop.f32.mrf.mxu0
  %v6879 = vadd.f32 %v6710, %v6878
  %v6880 = vpop.f32.mrf.mxu0
  %v6881 = vadd.f32 %v6712, %v6880
  %6882 = vmatmul.bf16.gmra.mxu0 %v4782
  %v6883 = vpop.f32.mrf.mxu0
  %v6884 = vadd.f32 %v6715, %v6883
  %v6885 = vpop.f32.mrf.mxu0
  %v6886 = vadd.f32 %v6717, %v6885
  %6887 = vmatmul.bf16.gmra.mxu0 %v4785
  %v6888 = vpop.f32.mrf.mxu0
  %v6889 = vadd.f32 %v6720, %v6888
  %v6890 = vpop.f32.mrf.mxu0
  %v6891 = vadd.f32 %v6722, %v6890
  %6892 = vmatmul.bf16.gmra.mxu0 %v4788
  %v6893 = vpop.f32.mrf.mxu0
  %v6894 = vadd.f32 %v6725, %v6893
  %v6895 = vpop.f32.mrf.mxu0
  %v6896 = vadd.f32 %v6727, %v6895
  %6897 = vmatmul.bf16.gmra.mxu0 %v4791
  %v6898 = vpop.f32.mrf.mxu0
  %v6899 = vadd.f32 %v6730, %v6898
  %v6900 = vpop.f32.mrf.mxu0
  %v6901 = vadd.f32 %v6732, %v6900
  %6902 = vmatmul.bf16.gmra.mxu0 %v4794
  %v6903 = vpop.f32.mrf.mxu0
  %v6904 = vadd.f32 %v6735, %v6903
  %v6905 = vpop.f32.mrf.mxu0
  %v6906 = vadd.f32 %v6737, %v6905
  %6907 = vmatmul.bf16.gmra.mxu0 %v4797
  %v6908 = vpop.f32.mrf.mxu0
  %v6909 = vadd.f32 %v6740, %v6908
  %v6910 = vpop.f32.mrf.mxu0
  %v6911 = vadd.f32 %v6742, %v6910
  %6912 = vmatmul.bf16.gmra.mxu0 %v4800
  %v6913 = vpop.f32.mrf.mxu0
  %v6914 = vadd.f32 %v6745, %v6913
  %v6915 = vpop.f32.mrf.mxu0
  %v6916 = vadd.f32 %v6747, %v6915
  %6917 = vmatmul.bf16.gmra.mxu0 %v4803
  %v6918 = vpop.f32.mrf.mxu0
  %v6919 = vadd.f32 %v6750, %v6918
  %v6920 = vpop.f32.mrf.mxu0
  %v6921 = vadd.f32 %v6752, %v6920
  %6922 = vmatmul.bf16.gmra.mxu0 %v4806
  %v6923 = vpop.f32.mrf.mxu0
  %v6924 = vadd.f32 %v6755, %v6923
  %v6925 = vpop.f32.mrf.mxu0
  %v6926 = vadd.f32 %v6757, %v6925
  %6927 = vmatmul.bf16.gmra.mxu0 %v4809
  %v6928 = vpop.f32.mrf.mxu0
  %v6929 = vadd.f32 %v6760, %v6928
  %v6930 = vpop.f32.mrf.mxu0
  %v6931 = vadd.f32 %v6762, %v6930
  %6932 = vmatmul.bf16.gmra.mxu0 %v4812
  %v6933 = vpop.f32.mrf.mxu0
  %v6934 = vadd.f32 %v6765, %v6933
  %v6935 = vpop.f32.mrf.mxu0
  %v6936 = vadd.f32 %v6767, %v6935
  %6937 = vmatmul.bf16.gmra.mxu0 %v4815
  %v6938 = vpop.f32.mrf.mxu0
  %v6939 = vadd.f32 %v6770, %v6938
  %v6940 = vpop.f32.mrf.mxu0
  %v6941 = vadd.f32 %v6772, %v6940
  %6942 = vmatmul.bf16.gmra.mxu0 %v4818
  %v6943 = vpop.f32.mrf.mxu0
  %v6944 = vadd.f32 %v6775, %v6943
  %v6945 = vpop.f32.mrf.mxu0
  %v6946 = vadd.f32 %v6777, %v6945
  %6947 = vdwg.mxu0
  %v6948 = vadd.f32 %v6789, %v6791
  %v6949 = vadd.f32 %v6948, %v6794
  %v6950 = vadd.f32 %v6949, %v6796
  %v6951 = vadd.f32 %v6950, %v6799
  %v6952 = vadd.f32 %v6951, %v6801
  %v6953 = vadd.f32 %v6952, %v6804
  %v6954 = vadd.f32 %v6953, %v6806
  %v6955 = vadd.f32 %v6954, %v6809
  %v6956 = vadd.f32 %v6955, %v6811
  %v6957 = vadd.f32 %v6956, %v6814
  %v6958 = vadd.f32 %v6957, %v6816
  %v6959 = vadd.f32 %v6958, %v6819
  %v6960 = vadd.f32 %v6959, %v6821
  %v6961 = vadd.f32 %v6960, %v6824
  %v6962 = vadd.f32 %v6961, %v6826
  %v6963 = vadd.f32 %v6962, %v6829
  %v6964 = vadd.f32 %v6963, %v6831
  %v6965 = vadd.f32 %v6964, %v6834
  %v6966 = vadd.f32 %v6965, %v6836
  %v6967 = vadd.f32 %v6966, %v6839
  %v6968 = vadd.f32 %v6967, %v6841
  %v6969 = vadd.f32 %v6968, %v6844
  %v6970 = vadd.f32 %v6969, %v6846
  %v6971 = vadd.f32 %v6970, %v6849
  %v6972 = vadd.f32 %v6971, %v6851
  %v6973 = vadd.f32 %v6972, %v6854
  %v6974 = vadd.f32 %v6973, %v6856
  %v6975 = vadd.f32 %v6974, %v6859
  %v6976 = vadd.f32 %v6975, %v6861
  %v6977 = vadd.f32 %v6976, %v6864
  %v6978 = vadd.f32 %v6977, %v6866
  %v6979 = vadd.f32 %v6978, %v6869
  %v6980 = vadd.f32 %v6979, %v6871
  %v6981 = vadd.f32 %v6980, %v6874
  %v6982 = vadd.f32 %v6981, %v6876
  %v6983 = vadd.f32 %v6982, %v6879
  %v6984 = vadd.f32 %v6983, %v6881
  %v6985 = vadd.f32 %v6984, %v6884
  %v6986 = vadd.f32 %v6985, %v6886
  %v6987 = vadd.f32 %v6986, %v6889
  %v6988 = vadd.f32 %v6987, %v6891
  %v6989 = vadd.f32 %v6988, %v6894
  %v6990 = vadd.f32 %v6989, %v6896
  %v6991 = vadd.f32 %v6990, %v6899
  %v6992 = vadd.f32 %v6991, %v6901
  %v6993 = vadd.f32 %v6992, %v6904
  %v6994 = vadd.f32 %v6993, %v6906
  %v6995 = vadd.f32 %v6994, %v6909
  %v6996 = vadd.f32 %v6995, %v6911
  %v6997 = vadd.f32 %v6996, %v6914
  %v6998 = vadd.f32 %v6997, %v6916
  %v6999 = vadd.f32 %v6998, %v6919
  %v7000 = vadd.f32 %v6999, %v6921
  %v7001 = vadd.f32 %v7000, %v6924
  %v7002 = vadd.f32 %v7001, %v6926
  %v7003 = vadd.f32 %v7002, %v6929
  %v7004 = vadd.f32 %v7003, %v6931
  %v7005 = vadd.f32 %v7004, %v6934
  %v7006 = vadd.f32 %v7005, %v6936
  %v7007 = vadd.f32 %v7006, %v6939
  %v7008 = vadd.f32 %v7007, %v6941
  %v7009 = vadd.f32 %v7008, %v6944
  %v7010 = vadd.f32 %v7009, %v6946
  %v7011 = vrot.slane %v7010, 4
  %v7012 = vadd.f32 %v7010, %v7011
  %v7013 = vrot.slane %v7012, 2
  %v7014 = vadd.f32 %v7012, %v7013
  %v7015 = vrot.slane %v7014, 1
  %v7016 = vadd.f32 %v7014, %v7015
  %v7017 = vmul.f32 %v7016, 0.001953125
  %v7018 = vsub.f32 %v6789, %v7017
  %v7019 = vsub.f32 %v6791, %v7017
  %v7020 = vsub.f32 %v6794, %v7017
  %v7021 = vsub.f32 %v6796, %v7017
  %v7022 = vsub.f32 %v6799, %v7017
  %v7023 = vsub.f32 %v6801, %v7017
  %v7024 = vsub.f32 %v6804, %v7017
  %v7025 = vsub.f32 %v6806, %v7017
  %v7026 = vsub.f32 %v6809, %v7017
  %v7027 = vsub.f32 %v6811, %v7017
  %v7028 = vsub.f32 %v6814, %v7017
  %v7029 = vsub.f32 %v6816, %v7017
  %v7030 = vsub.f32 %v6819, %v7017
  %v7031 = vsub.f32 %v6821, %v7017
  %v7032 = vsub.f32 %v6824, %v7017
  %v7033 = vsub.f32 %v6826, %v7017
  %v7034 = vsub.f32 %v6829, %v7017
  %v7035 = vsub.f32 %v6831, %v7017
  %v7036 = vsub.f32 %v6834, %v7017
  %v7037 = vsub.f32 %v6836, %v7017
  %v7038 = vsub.f32 %v6839, %v7017
  %v7039 = vsub.f32 %v6841, %v7017
  %v7040 = vsub.f32 %v6844, %v7017
  %v7041 = vsub.f32 %v6846, %v7017
  %v7042 = vsub.f32 %v6849, %v7017
  %v7043 = vsub.f32 %v6851, %v7017
  %v7044 = vsub.f32 %v6854, %v7017
  %v7045 = vsub.f32 %v6856, %v7017
  %v7046 = vsub.f32 %v6859, %v7017
  %v7047 = vsub.f32 %v6861, %v7017
  %v7048 = vsub.f32 %v6864, %v7017
  %v7049 = vsub.f32 %v6866, %v7017
  %v7050 = vsub.f32 %v6869, %v7017
  %v7051 = vsub.f32 %v6871, %v7017
  %v7052 = vsub.f32 %v6874, %v7017
  %v7053 = vsub.f32 %v6876, %v7017
  %v7054 = vsub.f32 %v6879, %v7017
  %v7055 = vsub.f32 %v6881, %v7017
  %v7056 = vsub.f32 %v6884, %v7017
  %v7057 = vsub.f32 %v6886, %v7017
  %v7058 = vsub.f32 %v6889, %v7017
  %v7059 = vsub.f32 %v6891, %v7017
  %v7060 = vsub.f32 %v6894, %v7017
  %v7061 = vsub.f32 %v6896, %v7017
  %v7062 = vsub.f32 %v6899, %v7017
  %v7063 = vsub.f32 %v6901, %v7017
  %v7064 = vsub.f32 %v6904, %v7017
  %v7065 = vsub.f32 %v6906, %v7017
  %v7066 = vsub.f32 %v6909, %v7017
  %v7067 = vsub.f32 %v6911, %v7017
  %v7068 = vsub.f32 %v6914, %v7017
  %v7069 = vsub.f32 %v6916, %v7017
  %v7070 = vsub.f32 %v6919, %v7017
  %v7071 = vsub.f32 %v6921, %v7017
  %v7072 = vsub.f32 %v6924, %v7017
  %v7073 = vsub.f32 %v6926, %v7017
  %v7074 = vsub.f32 %v6929, %v7017
  %v7075 = vsub.f32 %v6931, %v7017
  %v7076 = vsub.f32 %v6934, %v7017
  %v7077 = vsub.f32 %v6936, %v7017
  %v7078 = vsub.f32 %v6939, %v7017
  %v7079 = vsub.f32 %v6941, %v7017
  %v7080 = vsub.f32 %v6944, %v7017
  %v7081 = vsub.f32 %v6946, %v7017
  %v7082 = vmul.f32 %v7018, %v7018
  %v7083 = vmul.f32 %v7019, %v7019
  %v7084 = vmul.f32 %v7020, %v7020
  %v7085 = vmul.f32 %v7021, %v7021
  %v7086 = vmul.f32 %v7022, %v7022
  %v7087 = vmul.f32 %v7023, %v7023
  %v7088 = vmul.f32 %v7024, %v7024
  %v7089 = vmul.f32 %v7025, %v7025
  %v7090 = vmul.f32 %v7026, %v7026
  %v7091 = vmul.f32 %v7027, %v7027
  %v7092 = vmul.f32 %v7028, %v7028
  %v7093 = vmul.f32 %v7029, %v7029
  %v7094 = vmul.f32 %v7030, %v7030
  %v7095 = vmul.f32 %v7031, %v7031
  %v7096 = vmul.f32 %v7032, %v7032
  %v7097 = vmul.f32 %v7033, %v7033
  %v7098 = vmul.f32 %v7034, %v7034
  %v7099 = vmul.f32 %v7035, %v7035
  %v7100 = vmul.f32 %v7036, %v7036
  %v7101 = vmul.f32 %v7037, %v7037
  %v7102 = vmul.f32 %v7038, %v7038
  %v7103 = vmul.f32 %v7039, %v7039
  %v7104 = vmul.f32 %v7040, %v7040
  %v7105 = vmul.f32 %v7041, %v7041
  %v7106 = vmul.f32 %v7042, %v7042
  %v7107 = vmul.f32 %v7043, %v7043
  %v7108 = vmul.f32 %v7044, %v7044
  %v7109 = vmul.f32 %v7045, %v7045
  %v7110 = vmul.f32 %v7046, %v7046
  %v7111 = vmul.f32 %v7047, %v7047
  %v7112 = vmul.f32 %v7048, %v7048
  %v7113 = vmul.f32 %v7049, %v7049
  %v7114 = vmul.f32 %v7050, %v7050
  %v7115 = vmul.f32 %v7051, %v7051
  %v7116 = vmul.f32 %v7052, %v7052
  %v7117 = vmul.f32 %v7053, %v7053
  %v7118 = vmul.f32 %v7054, %v7054
  %v7119 = vmul.f32 %v7055, %v7055
  %v7120 = vmul.f32 %v7056, %v7056
  %v7121 = vmul.f32 %v7057, %v7057
  %v7122 = vmul.f32 %v7058, %v7058
  %v7123 = vmul.f32 %v7059, %v7059
  %v7124 = vmul.f32 %v7060, %v7060
  %v7125 = vmul.f32 %v7061, %v7061
  %v7126 = vmul.f32 %v7062, %v7062
  %v7127 = vmul.f32 %v7063, %v7063
  %v7128 = vmul.f32 %v7064, %v7064
  %v7129 = vmul.f32 %v7065, %v7065
  %v7130 = vmul.f32 %v7066, %v7066
  %v7131 = vmul.f32 %v7067, %v7067
  %v7132 = vmul.f32 %v7068, %v7068
  %v7133 = vmul.f32 %v7069, %v7069
  %v7134 = vmul.f32 %v7070, %v7070
  %v7135 = vmul.f32 %v7071, %v7071
  %v7136 = vmul.f32 %v7072, %v7072
  %v7137 = vmul.f32 %v7073, %v7073
  %v7138 = vmul.f32 %v7074, %v7074
  %v7139 = vmul.f32 %v7075, %v7075
  %v7140 = vmul.f32 %v7076, %v7076
  %v7141 = vmul.f32 %v7077, %v7077
  %v7142 = vmul.f32 %v7078, %v7078
  %v7143 = vmul.f32 %v7079, %v7079
  %v7144 = vmul.f32 %v7080, %v7080
  %v7145 = vmul.f32 %v7081, %v7081
  %v7146 = vadd.f32 %v7082, %v7083
  %v7147 = vadd.f32 %v7146, %v7084
  %v7148 = vadd.f32 %v7147, %v7085
  %v7149 = vadd.f32 %v7148, %v7086
  %v7150 = vadd.f32 %v7149, %v7087
  %v7151 = vadd.f32 %v7150, %v7088
  %v7152 = vadd.f32 %v7151, %v7089
  %v7153 = vadd.f32 %v7152, %v7090
  %v7154 = vadd.f32 %v7153, %v7091
  %v7155 = vadd.f32 %v7154, %v7092
  %v7156 = vadd.f32 %v7155, %v7093
  %v7157 = vadd.f32 %v7156, %v7094
  %v7158 = vadd.f32 %v7157, %v7095
  %v7159 = vadd.f32 %v7158, %v7096
  %v7160 = vadd.f32 %v7159, %v7097
  %v7161 = vadd.f32 %v7160, %v7098
  %v7162 = vadd.f32 %v7161, %v7099
  %v7163 = vadd.f32 %v7162, %v7100
  %v7164 = vadd.f32 %v7163, %v7101
  %v7165 = vadd.f32 %v7164, %v7102
  %v7166 = vadd.f32 %v7165, %v7103
  %v7167 = vadd.f32 %v7166, %v7104
  %v7168 = vadd.f32 %v7167, %v7105
  %v7169 = vadd.f32 %v7168, %v7106
  %v7170 = vadd.f32 %v7169, %v7107
  %v7171 = vadd.f32 %v7170, %v7108
  %v7172 = vadd.f32 %v7171, %v7109
  %v7173 = vadd.f32 %v7172, %v7110
  %v7174 = vadd.f32 %v7173, %v7111
  %v7175 = vadd.f32 %v7174, %v7112
  %v7176 = vadd.f32 %v7175, %v7113
  %v7177 = vadd.f32 %v7176, %v7114
  %v7178 = vadd.f32 %v7177, %v7115
  %v7179 = vadd.f32 %v7178, %v7116
  %v7180 = vadd.f32 %v7179, %v7117
  %v7181 = vadd.f32 %v7180, %v7118
  %v7182 = vadd.f32 %v7181, %v7119
  %v7183 = vadd.f32 %v7182, %v7120
  %v7184 = vadd.f32 %v7183, %v7121
  %v7185 = vadd.f32 %v7184, %v7122
  %v7186 = vadd.f32 %v7185, %v7123
  %v7187 = vadd.f32 %v7186, %v7124
  %v7188 = vadd.f32 %v7187, %v7125
  %v7189 = vadd.f32 %v7188, %v7126
  %v7190 = vadd.f32 %v7189, %v7127
  %v7191 = vadd.f32 %v7190, %v7128
  %v7192 = vadd.f32 %v7191, %v7129
  %v7193 = vadd.f32 %v7192, %v7130
  %v7194 = vadd.f32 %v7193, %v7131
  %v7195 = vadd.f32 %v7194, %v7132
  %v7196 = vadd.f32 %v7195, %v7133
  %v7197 = vadd.f32 %v7196, %v7134
  %v7198 = vadd.f32 %v7197, %v7135
  %v7199 = vadd.f32 %v7198, %v7136
  %v7200 = vadd.f32 %v7199, %v7137
  %v7201 = vadd.f32 %v7200, %v7138
  %v7202 = vadd.f32 %v7201, %v7139
  %v7203 = vadd.f32 %v7202, %v7140
  %v7204 = vadd.f32 %v7203, %v7141
  %v7205 = vadd.f32 %v7204, %v7142
  %v7206 = vadd.f32 %v7205, %v7143
  %v7207 = vadd.f32 %v7206, %v7144
  %v7208 = vadd.f32 %v7207, %v7145
  %v7209 = vrot.slane %v7208, 4
  %v7210 = vadd.f32 %v7208, %v7209
  %v7211 = vrot.slane %v7210, 2
  %v7212 = vadd.f32 %v7210, %v7211
  %v7213 = vrot.slane %v7212, 1
  %v7214 = vadd.f32 %v7212, %v7213
  %v7215 = vmul.f32 %v7214, 0.001953125
  %v7216 = vld [vmem:[%s5] sm:$0x1]
  %v7217 = vadd.f32 %v7215, 1e-05
  %v7218 = vrsqrt.pop %v7217
  %v7219 = vmul.f32 %v7218, %v7217
  %v7220 = vmul.f32 %v7219, %v7218
  %v7221 = vmul.f32 0.5, %v7220
  %v7222 = vsub.f32 1.5, %v7221
  %v7223 = vmul.f32 %v7218, %v7222
  %vm7224 = vweird.f32 %v7217
  %vm7225 = vweird.f32 %v7218
  %vm7226 = vmor %vm7224, %vm7225
  %v7227 = vsel %vm7226, %v7218, %v7223
  %v7228 = vmul.f32 %v7216, %v7227
  %v7230 = vperm.slane %v7228, 0
  %v7232 = vmul.f32 %v7018, %v7230
  %v7233 = vmul.f32 %v7019, %v7230
  %v7234 = vmul.f32 %v7020, %v7230
  %v7235 = vmul.f32 %v7021, %v7230
  %v7236 = vmul.f32 %v7022, %v7230
  %v7237 = vmul.f32 %v7023, %v7230
  %v7238 = vmul.f32 %v7024, %v7230
  %v7239 = vmul.f32 %v7025, %v7230
  %v7240 = vmul.f32 %v7026, %v7230
  %v7241 = vmul.f32 %v7027, %v7230
  %v7242 = vmul.f32 %v7028, %v7230
  %v7243 = vmul.f32 %v7029, %v7230
  %v7244 = vmul.f32 %v7030, %v7230
  %v7245 = vmul.f32 %v7031, %v7230
  %v7246 = vmul.f32 %v7032, %v7230
  %v7247 = vmul.f32 %v7033, %v7230
  %v7248 = vmul.f32 %v7034, %v7230
  %v7249 = vmul.f32 %v7035, %v7230
  %v7250 = vmul.f32 %v7036, %v7230
  %v7251 = vmul.f32 %v7037, %v7230
  %v7252 = vmul.f32 %v7038, %v7230
  %v7253 = vmul.f32 %v7039, %v7230
  %v7254 = vmul.f32 %v7040, %v7230
  %v7255 = vmul.f32 %v7041, %v7230
  %v7256 = vmul.f32 %v7042, %v7230
  %v7257 = vmul.f32 %v7043, %v7230
  %v7258 = vmul.f32 %v7044, %v7230
  %v7259 = vmul.f32 %v7045, %v7230
  %v7260 = vmul.f32 %v7046, %v7230
  %v7261 = vmul.f32 %v7047, %v7230
  %v7262 = vmul.f32 %v7048, %v7230
  %v7263 = vmul.f32 %v7049, %v7230
  %v7264 = vmul.f32 %v7050, %v7230
  %v7265 = vmul.f32 %v7051, %v7230
  %v7266 = vmul.f32 %v7052, %v7230
  %v7267 = vmul.f32 %v7053, %v7230
  %v7268 = vmul.f32 %v7054, %v7230
  %v7269 = vmul.f32 %v7055, %v7230
  %v7270 = vmul.f32 %v7056, %v7230
  %v7271 = vmul.f32 %v7057, %v7230
  %v7272 = vmul.f32 %v7058, %v7230
  %v7273 = vmul.f32 %v7059, %v7230
  %v7274 = vmul.f32 %v7060, %v7230
  %v7275 = vmul.f32 %v7061, %v7230
  %v7276 = vmul.f32 %v7062, %v7230
  %v7277 = vmul.f32 %v7063, %v7230
  %v7278 = vmul.f32 %v7064, %v7230
  %v7279 = vmul.f32 %v7065, %v7230
  %v7280 = vmul.f32 %v7066, %v7230
  %v7281 = vmul.f32 %v7067, %v7230
  %v7282 = vmul.f32 %v7068, %v7230
  %v7283 = vmul.f32 %v7069, %v7230
  %v7284 = vmul.f32 %v7070, %v7230
  %v7285 = vmul.f32 %v7071, %v7230
  %v7286 = vmul.f32 %v7072, %v7230
  %v7287 = vmul.f32 %v7073, %v7230
  %v7288 = vmul.f32 %v7074, %v7230
  %v7289 = vmul.f32 %v7075, %v7230
  %v7290 = vmul.f32 %v7076, %v7230
  %v7291 = vmul.f32 %v7077, %v7230
  %v7292 = vmul.f32 %v7078, %v7230
  %v7293 = vmul.f32 %v7079, %v7230
  %v7294 = vmul.f32 %v7080, %v7230
  %v7295 = vmul.f32 %v7081, %v7230
  %v7296 = vld [vmem:[%s6] sm:$0x1]
  %v7298 = vperm.slane %v7296, 0
  %v7300 = vadd.f32 %v7232, %v7298
  %v7301 = vadd.f32 %v7233, %v7298
  %v7302 = vadd.f32 %v7234, %v7298
  %v7303 = vadd.f32 %v7235, %v7298
  %v7304 = vadd.f32 %v7236, %v7298
  %v7305 = vadd.f32 %v7237, %v7298
  %v7306 = vadd.f32 %v7238, %v7298
  %v7307 = vadd.f32 %v7239, %v7298
  %v7308 = vadd.f32 %v7240, %v7298
  %v7309 = vadd.f32 %v7241, %v7298
  %v7310 = vadd.f32 %v7242, %v7298
  %v7311 = vadd.f32 %v7243, %v7298
  %v7312 = vadd.f32 %v7244, %v7298
  %v7313 = vadd.f32 %v7245, %v7298
  %v7314 = vadd.f32 %v7246, %v7298
  %v7315 = vadd.f32 %v7247, %v7298
  %v7316 = vadd.f32 %v7248, %v7298
  %v7317 = vadd.f32 %v7249, %v7298
  %v7318 = vadd.f32 %v7250, %v7298
  %v7319 = vadd.f32 %v7251, %v7298
  %v7320 = vadd.f32 %v7252, %v7298
  %v7321 = vadd.f32 %v7253, %v7298
  %v7322 = vadd.f32 %v7254, %v7298
  %v7323 = vadd.f32 %v7255, %v7298
  %v7324 = vadd.f32 %v7256, %v7298
  %v7325 = vadd.f32 %v7257, %v7298
  %v7326 = vadd.f32 %v7258, %v7298
  %v7327 = vadd.f32 %v7259, %v7298
  %v7328 = vadd.f32 %v7260, %v7298
  %v7329 = vadd.f32 %v7261, %v7298
  %v7330 = vadd.f32 %v7262, %v7298
  %v7331 = vadd.f32 %v7263, %v7298
  %v7332 = vadd.f32 %v7264, %v7298
  %v7333 = vadd.f32 %v7265, %v7298
  %v7334 = vadd.f32 %v7266, %v7298
  %v7335 = vadd.f32 %v7267, %v7298
  %v7336 = vadd.f32 %v7268, %v7298
  %v7337 = vadd.f32 %v7269, %v7298
  %v7338 = vadd.f32 %v7270, %v7298
  %v7339 = vadd.f32 %v7271, %v7298
  %v7340 = vadd.f32 %v7272, %v7298
  %v7341 = vadd.f32 %v7273, %v7298
  %v7342 = vadd.f32 %v7274, %v7298
  %v7343 = vadd.f32 %v7275, %v7298
  %v7344 = vadd.f32 %v7276, %v7298
  %v7345 = vadd.f32 %v7277, %v7298
  %v7346 = vadd.f32 %v7278, %v7298
  %v7347 = vadd.f32 %v7279, %v7298
  %v7348 = vadd.f32 %v7280, %v7298
  %v7349 = vadd.f32 %v7281, %v7298
  %v7350 = vadd.f32 %v7282, %v7298
  %v7351 = vadd.f32 %v7283, %v7298
  %v7352 = vadd.f32 %v7284, %v7298
  %v7353 = vadd.f32 %v7285, %v7298
  %v7354 = vadd.f32 %v7286, %v7298
  %v7355 = vadd.f32 %v7287, %v7298
  %v7356 = vadd.f32 %v7288, %v7298
  %v7357 = vadd.f32 %v7289, %v7298
  %v7358 = vadd.f32 %v7290, %v7298
  %v7359 = vadd.f32 %v7291, %v7298
  %v7360 = vadd.f32 %v7292, %v7298
  %v7361 = vadd.f32 %v7293, %v7298
  %v7362 = vadd.f32 %v7294, %v7298
  %v7363 = vadd.f32 %v7295, %v7298
  %v7364 = vld [vmem:[%s1] sm:$0xf]
  %v7365 = vld [vmem:[%s1 + $0x4] sm:$0xf]
  %v7366 = vld [vmem:[%s1 + $0x8] sm:$0xf]
  %v7367 = vld [vmem:[%s1 + $0xc] sm:$0xf]
  %v7368 = vld [vmem:[%s1 + $0x10] sm:$0xf]
  %v7369 = vld [vmem:[%s1 + $0x14] sm:$0xf]
  %v7370 = vld [vmem:[%s1 + $0x18] sm:$0xf]
  %v7371 = vld [vmem:[%s1 + $0x1c] sm:$0xf]
  %v7372 = vld [vmem:[%s1 + $0x20] sm:$0xf]
  %v7373 = vld [vmem:[%s1 + $0x24] sm:$0xf]
  %v7374 = vld [vmem:[%s1 + $0x28] sm:$0xf]
  %v7375 = vld [vmem:[%s1 + $0x2c] sm:$0xf]
  %v7376 = vld [vmem:[%s1 + $0x30] sm:$0xf]
  %v7377 = vld [vmem:[%s1 + $0x34] sm:$0xf]
  %v7378 = vld [vmem:[%s1 + $0x38] sm:$0xf]
  %v7379 = vld [vmem:[%s1 + $0x3c] sm:$0xf]
  %v7380 = vld [vmem:[%s1 + $0x40] sm:$0xf]
  %v7381 = vld [vmem:[%s1 + $0x44] sm:$0xf]
  %v7382 = vld [vmem:[%s1 + $0x48] sm:$0xf]
  %v7383 = vld [vmem:[%s1 + $0x4c] sm:$0xf]
  %v7384 = vld [vmem:[%s1 + $0x50] sm:$0xf]
  %v7385 = vld [vmem:[%s1 + $0x54] sm:$0xf]
  %v7386 = vld [vmem:[%s1 + $0x58] sm:$0xf]
  %v7387 = vld [vmem:[%s1 + $0x5c] sm:$0xf]
  %v7388 = vld [vmem:[%s1 + $0x60] sm:$0xf]
  %v7389 = vld [vmem:[%s1 + $0x64] sm:$0xf]
  %v7390 = vld [vmem:[%s1 + $0x68] sm:$0xf]
  %v7391 = vld [vmem:[%s1 + $0x6c] sm:$0xf]
  %v7392 = vld [vmem:[%s1 + $0x70] sm:$0xf]
  %v7393 = vld [vmem:[%s1 + $0x74] sm:$0xf]
  %v7394 = vld [vmem:[%s1 + $0x78] sm:$0xf]
  %v7395 = vld [vmem:[%s1 + $0x7c] sm:$0xf]
  %v7396 = vld [vmem:[%s1 + $0x80] sm:$0xf]
  %v7397 = vld [vmem:[%s1 + $0x84] sm:$0xf]
  %v7398 = vld [vmem:[%s1 + $0x88] sm:$0xf]
  %v7399 = vld [vmem:[%s1 + $0x8c] sm:$0xf]
  %v7400 = vld [vmem:[%s1 + $0x90] sm:$0xf]
  %v7401 = vld [vmem:[%s1 + $0x94] sm:$0xf]
  %v7402 = vld [vmem:[%s1 + $0x98] sm:$0xf]
  %v7403 = vld [vmem:[%s1 + $0x9c] sm:$0xf]
  %v7404 = vld [vmem:[%s1 + $0xa0] sm:$0xf]
  %v7405 = vld [vmem:[%s1 + $0xa4] sm:$0xf]
  %v7406 = vld [vmem:[%s1 + $0xa8] sm:$0xf]
  %v7407 = vld [vmem:[%s1 + $0xac] sm:$0xf]
  %v7408 = vld [vmem:[%s1 + $0xb0] sm:$0xf]
  %v7409 = vld [vmem:[%s1 + $0xb4] sm:$0xf]
  %v7410 = vld [vmem:[%s1 + $0xb8] sm:$0xf]
  %v7411 = vld [vmem:[%s1 + $0xbc] sm:$0xf]
  %v7412 = vld [vmem:[%s1 + $0xc0] sm:$0xf]
  %v7413 = vld [vmem:[%s1 + $0xc4] sm:$0xf]
  %v7414 = vld [vmem:[%s1 + $0xc8] sm:$0xf]
  %v7415 = vld [vmem:[%s1 + $0xcc] sm:$0xf]
  %v7416 = vld [vmem:[%s1 + $0xd0] sm:$0xf]
  %v7417 = vld [vmem:[%s1 + $0xd4] sm:$0xf]
  %v7418 = vld [vmem:[%s1 + $0xd8] sm:$0xf]
  %v7419 = vld [vmem:[%s1 + $0xdc] sm:$0xf]
  %v7420 = vld [vmem:[%s1 + $0xe0] sm:$0xf]
  %v7421 = vld [vmem:[%s1 + $0xe4] sm:$0xf]
  %v7422 = vld [vmem:[%s1 + $0xe8] sm:$0xf]
  %v7423 = vld [vmem:[%s1 + $0xec] sm:$0xf]
  %v7424 = vld [vmem:[%s1 + $0xf0] sm:$0xf]
  %v7425 = vld [vmem:[%s1 + $0xf4] sm:$0xf]
  %v7426 = vld [vmem:[%s1 + $0xf8] sm:$0xf]
  %v7427 = vld [vmem:[%s1 + $0xfc] sm:$0xf]
  %v7428 = vunpack.c.l.bf16 %v7364
  %v7429 = vunpack.c.l.bf16 %v7365
  %v7430 = vunpack.c.l.bf16 %v7366
  %v7431 = vunpack.c.l.bf16 %v7367
  %v7432 = vunpack.c.l.bf16 %v7368
  %v7433 = vunpack.c.l.bf16 %v7369
  %v7434 = vunpack.c.l.bf16 %v7370
  %v7435 = vunpack.c.l.bf16 %v7371
  %v7436 = vunpack.c.l.bf16 %v7372
  %v7437 = vunpack.c.l.bf16 %v7373
  %v7438 = vunpack.c.l.bf16 %v7374
  %v7439 = vunpack.c.l.bf16 %v7375
  %v7440 = vunpack.c.l.bf16 %v7376
  %v7441 = vunpack.c.l.bf16 %v7377
  %v7442 = vunpack.c.l.bf16 %v7378
  %v7443 = vunpack.c.l.bf16 %v7379
  %v7444 = vunpack.c.l.bf16 %v7380
  %v7445 = vunpack.c.l.bf16 %v7381
  %v7446 = vunpack.c.l.bf16 %v7382
  %v7447 = vunpack.c.l.bf16 %v7383
  %v7448 = vunpack.c.l.bf16 %v7384
  %v7449 = vunpack.c.l.bf16 %v7385
  %v7450 = vunpack.c.l.bf16 %v7386
  %v7451 = vunpack.c.l.bf16 %v7387
  %v7452 = vunpack.c.l.bf16 %v7388
  %v7453 = vunpack.c.l.bf16 %v7389
  %v7454 = vunpack.c.l.bf16 %v7390
  %v7455 = vunpack.c.l.bf16 %v7391
  %v7456 = vunpack.c.l.bf16 %v7392
  %v7457 = vunpack.c.l.bf16 %v7393
  %v7458 = vunpack.c.l.bf16 %v7394
  %v7459 = vunpack.c.l.bf16 %v7395
  %v7460 = vunpack.c.l.bf16 %v7396
  %v7461 = vunpack.c.l.bf16 %v7397
  %v7462 = vunpack.c.l.bf16 %v7398
  %v7463 = vunpack.c.l.bf16 %v7399
  %v7464 = vunpack.c.l.bf16 %v7400
  %v7465 = vunpack.c.l.bf16 %v7401
  %v7466 = vunpack.c.l.bf16 %v7402
  %v7467 = vunpack.c.l.bf16 %v7403
  %v7468 = vunpack.c.l.bf16 %v7404
  %v7469 = vunpack.c.l.bf16 %v7405
  %v7470 = vunpack.c.l.bf16 %v7406
  %v7471 = vunpack.c.l.bf16 %v7407
  %v7472 = vunpack.c.l.bf16 %v7408
  %v7473 = vunpack.c.l.bf16 %v7409
  %v7474 = vunpack.c.l.bf16 %v7410
  %v7475 = vunpack.c.l.bf16 %v7411
  %v7476 = vunpack.c.l.bf16 %v7412
  %v7477 = vunpack.c.l.bf16 %v7413
  %v7478 = vunpack.c.l.bf16 %v7414
  %v7479 = vunpack.c.l.bf16 %v7415
  %v7480 = vunpack.c.l.bf16 %v7416
  %v7481 = vunpack.c.l.bf16 %v7417
  %v7482 = vunpack.c.l.bf16 %v7418
  %v7483 = vunpack.c.l.bf16 %v7419
  %v7484 = vunpack.c.l.bf16 %v7420
  %v7485 = vunpack.c.l.bf16 %v7421
  %v7486 = vunpack.c.l.bf16 %v7422
  %v7487 = vunpack.c.l.bf16 %v7423
  %v7488 = vunpack.c.l.bf16 %v7424
  %v7489 = vunpack.c.l.bf16 %v7425
  %v7490 = vunpack.c.l.bf16 %v7426
  %v7491 = vunpack.c.l.bf16 %v7427
  %v7492 = vadd.f32 %v7300, %v7428
  %v7493 = vadd.f32 %v7301, %v7429
  %v7494 = vadd.f32 %v7302, %v7430
  %v7495 = vadd.f32 %v7303, %v7431
  %v7496 = vadd.f32 %v7304, %v7432
  %v7497 = vadd.f32 %v7305, %v7433
  %v7498 = vadd.f32 %v7306, %v7434
  %v7499 = vadd.f32 %v7307, %v7435
  %v7500 = vadd.f32 %v7308, %v7436
  %v7501 = vadd.f32 %v7309, %v7437
  %v7502 = vadd.f32 %v7310, %v7438
  %v7503 = vadd.f32 %v7311, %v7439
  %v7504 = vadd.f32 %v7312, %v7440
  %v7505 = vadd.f32 %v7313, %v7441
  %v7506 = vadd.f32 %v7314, %v7442
  %v7507 = vadd.f32 %v7315, %v7443
  %v7508 = vadd.f32 %v7316, %v7444
  %v7509 = vadd.f32 %v7317, %v7445
  %v7510 = vadd.f32 %v7318, %v7446
  %v7511 = vadd.f32 %v7319, %v7447
  %v7512 = vadd.f32 %v7320, %v7448
  %v7513 = vadd.f32 %v7321, %v7449
  %v7514 = vadd.f32 %v7322, %v7450
  %v7515 = vadd.f32 %v7323, %v7451
  %v7516 = vadd.f32 %v7324, %v7452
  %v7517 = vadd.f32 %v7325, %v7453
  %v7518 = vadd.f32 %v7326, %v7454
  %v7519 = vadd.f32 %v7327, %v7455
  %v7520 = vadd.f32 %v7328, %v7456
  %v7521 = vadd.f32 %v7329, %v7457
  %v7522 = vadd.f32 %v7330, %v7458
  %v7523 = vadd.f32 %v7331, %v7459
  %v7524 = vadd.f32 %v7332, %v7460
  %v7525 = vadd.f32 %v7333, %v7461
  %v7526 = vadd.f32 %v7334, %v7462
  %v7527 = vadd.f32 %v7335, %v7463
  %v7528 = vadd.f32 %v7336, %v7464
  %v7529 = vadd.f32 %v7337, %v7465
  %v7530 = vadd.f32 %v7338, %v7466
  %v7531 = vadd.f32 %v7339, %v7467
  %v7532 = vadd.f32 %v7340, %v7468
  %v7533 = vadd.f32 %v7341, %v7469
  %v7534 = vadd.f32 %v7342, %v7470
  %v7535 = vadd.f32 %v7343, %v7471
  %v7536 = vadd.f32 %v7344, %v7472
  %v7537 = vadd.f32 %v7345, %v7473
  %v7538 = vadd.f32 %v7346, %v7474
  %v7539 = vadd.f32 %v7347, %v7475
  %v7540 = vadd.f32 %v7348, %v7476
  %v7541 = vadd.f32 %v7349, %v7477
  %v7542 = vadd.f32 %v7350, %v7478
  %v7543 = vadd.f32 %v7351, %v7479
  %v7544 = vadd.f32 %v7352, %v7480
  %v7545 = vadd.f32 %v7353, %v7481
  %v7546 = vadd.f32 %v7354, %v7482
  %v7547 = vadd.f32 %v7355, %v7483
  %v7548 = vadd.f32 %v7356, %v7484
  %v7549 = vadd.f32 %v7357, %v7485
  %v7550 = vadd.f32 %v7358, %v7486
  %v7551 = vadd.f32 %v7359, %v7487
  %v7552 = vadd.f32 %v7360, %v7488
  %v7553 = vadd.f32 %v7361, %v7489
  %v7554 = vadd.f32 %v7362, %v7490
  %v7555 = vadd.f32 %v7363, %v7491
  %v7556 = vmax.f32 %v7492, 0.0
  %v7557 = vmax.f32 %v7493, 0.0
  %v7558 = vmax.f32 %v7494, 0.0
  %v7559 = vmax.f32 %v7495, 0.0
  %v7560 = vmax.f32 %v7496, 0.0
  %v7561 = vmax.f32 %v7497, 0.0
  %v7562 = vmax.f32 %v7498, 0.0
  %v7563 = vmax.f32 %v7499, 0.0
  %v7564 = vmax.f32 %v7500, 0.0
  %v7565 = vmax.f32 %v7501, 0.0
  %v7566 = vmax.f32 %v7502, 0.0
  %v7567 = vmax.f32 %v7503, 0.0
  %v7568 = vmax.f32 %v7504, 0.0
  %v7569 = vmax.f32 %v7505, 0.0
  %v7570 = vmax.f32 %v7506, 0.0
  %v7571 = vmax.f32 %v7507, 0.0
  %v7572 = vmax.f32 %v7508, 0.0
  %v7573 = vmax.f32 %v7509, 0.0
  %v7574 = vmax.f32 %v7510, 0.0
  %v7575 = vmax.f32 %v7511, 0.0
  %v7576 = vmax.f32 %v7512, 0.0
  %v7577 = vmax.f32 %v7513, 0.0
  %v7578 = vmax.f32 %v7514, 0.0
  %v7579 = vmax.f32 %v7515, 0.0
  %v7580 = vmax.f32 %v7516, 0.0
  %v7581 = vmax.f32 %v7517, 0.0
  %v7582 = vmax.f32 %v7518, 0.0
  %v7583 = vmax.f32 %v7519, 0.0
  %v7584 = vmax.f32 %v7520, 0.0
  %v7585 = vmax.f32 %v7521, 0.0
  %v7586 = vmax.f32 %v7522, 0.0
  %v7587 = vmax.f32 %v7523, 0.0
  %v7588 = vmax.f32 %v7524, 0.0
  %v7589 = vmax.f32 %v7525, 0.0
  %v7590 = vmax.f32 %v7526, 0.0
  %v7591 = vmax.f32 %v7527, 0.0
  %v7592 = vmax.f32 %v7528, 0.0
  %v7593 = vmax.f32 %v7529, 0.0
  %v7594 = vmax.f32 %v7530, 0.0
  %v7595 = vmax.f32 %v7531, 0.0
  %v7596 = vmax.f32 %v7532, 0.0
  %v7597 = vmax.f32 %v7533, 0.0
  %v7598 = vmax.f32 %v7534, 0.0
  %v7599 = vmax.f32 %v7535, 0.0
  %v7600 = vmax.f32 %v7536, 0.0
  %v7601 = vmax.f32 %v7537, 0.0
  %v7602 = vmax.f32 %v7538, 0.0
  %v7603 = vmax.f32 %v7539, 0.0
  %v7604 = vmax.f32 %v7540, 0.0
  %v7605 = vmax.f32 %v7541, 0.0
  %v7606 = vmax.f32 %v7542, 0.0
  %v7607 = vmax.f32 %v7543, 0.0
  %v7608 = vmax.f32 %v7544, 0.0
  %v7609 = vmax.f32 %v7545, 0.0
  %v7610 = vmax.f32 %v7546, 0.0
  %v7611 = vmax.f32 %v7547, 0.0
  %v7612 = vmax.f32 %v7548, 0.0
  %v7613 = vmax.f32 %v7549, 0.0
  %v7614 = vmax.f32 %v7550, 0.0
  %v7615 = vmax.f32 %v7551, 0.0
  %v7616 = vmax.f32 %v7552, 0.0
  %v7617 = vmax.f32 %v7553, 0.0
  %v7618 = vmax.f32 %v7554, 0.0
  %v7619 = vmax.f32 %v7555, 0.0
  %7620 = vst [vmem:[%s7] sm:$0xff] %v7556
  %7621 = vst [vmem:[%s7 + $0x8] sm:$0xff] %v7557
  %7622 = vst [vmem:[%s7 + $0x10] sm:$0xff] %v7558
  %7623 = vst [vmem:[%s7 + $0x18] sm:$0xff] %v7559
  %7624 = vst [vmem:[%s7 + $0x20] sm:$0xff] %v7560
  %7625 = vst [vmem:[%s7 + $0x28] sm:$0xff] %v7561
  %7626 = vst [vmem:[%s7 + $0x30] sm:$0xff] %v7562
  %7627 = vst [vmem:[%s7 + $0x38] sm:$0xff] %v7563
  %7628 = vst [vmem:[%s7 + $0x40] sm:$0xff] %v7564
  %7629 = vst [vmem:[%s7 + $0x48] sm:$0xff] %v7565
  %7630 = vst [vmem:[%s7 + $0x50] sm:$0xff] %v7566
  %7631 = vst [vmem:[%s7 + $0x58] sm:$0xff] %v7567
  %7632 = vst [vmem:[%s7 + $0x60] sm:$0xff] %v7568
  %7633 = vst [vmem:[%s7 + $0x68] sm:$0xff] %v7569
  %7634 = vst [vmem:[%s7 + $0x70] sm:$0xff] %v7570
  %7635 = vst [vmem:[%s7 + $0x78] sm:$0xff] %v7571
  %7636 = vst [vmem:[%s7 + $0x80] sm:$0xff] %v7572
  %7637 = vst [vmem:[%s7 + $0x88] sm:$0xff] %v7573
  %7638 = vst [vmem:[%s7 + $0x90] sm:$0xff] %v7574
  %7639 = vst [vmem:[%s7 + $0x98] sm:$0xff] %v7575
  %7640 = vst [vmem:[%s7 + $0xa0] sm:$0xff] %v7576
  %7641 = vst [vmem:[%s7 + $0xa8] sm:$0xff] %v7577
  %7642 = vst [vmem:[%s7 + $0xb0] sm:$0xff] %v7578
  %7643 = vst [vmem:[%s7 + $0xb8] sm:$0xff] %v7579
  %7644 = vst [vmem:[%s7 + $0xc0] sm:$0xff] %v7580
  %7645 = vst [vmem:[%s7 + $0xc8] sm:$0xff] %v7581
  %7646 = vst [vmem:[%s7 + $0xd0] sm:$0xff] %v7582
  %7647 = vst [vmem:[%s7 + $0xd8] sm:$0xff] %v7583
  %7648 = vst [vmem:[%s7 + $0xe0] sm:$0xff] %v7584
  %7649 = vst [vmem:[%s7 + $0xe8] sm:$0xff] %v7585
  %7650 = vst [vmem:[%s7 + $0xf0] sm:$0xff] %v7586
  %7651 = vst [vmem:[%s7 + $0xf8] sm:$0xff] %v7587
  %7652 = vst [vmem:[%s7 + $0x100] sm:$0xff] %v7588
  %7653 = vst [vmem:[%s7 + $0x108] sm:$0xff] %v7589
  %7654 = vst [vmem:[%s7 + $0x110] sm:$0xff] %v7590
  %7655 = vst [vmem:[%s7 + $0x118] sm:$0xff] %v7591
  %7656 = vst [vmem:[%s7 + $0x120] sm:$0xff] %v7592
  %7657 = vst [vmem:[%s7 + $0x128] sm:$0xff] %v7593
  %7658 = vst [vmem:[%s7 + $0x130] sm:$0xff] %v7594
  %7659 = vst [vmem:[%s7 + $0x138] sm:$0xff] %v7595
  %7660 = vst [vmem:[%s7 + $0x140] sm:$0xff] %v7596
  %7661 = vst [vmem:[%s7 + $0x148] sm:$0xff] %v7597
  %7662 = vst [vmem:[%s7 + $0x150] sm:$0xff] %v7598
  %7663 = vst [vmem:[%s7 + $0x158] sm:$0xff] %v7599
  %7664 = vst [vmem:[%s7 + $0x160] sm:$0xff] %v7600
  %7665 = vst [vmem:[%s7 + $0x168] sm:$0xff] %v7601
  %7666 = vst [vmem:[%s7 + $0x170] sm:$0xff] %v7602
  %7667 = vst [vmem:[%s7 + $0x178] sm:$0xff] %v7603
  %7668 = vst [vmem:[%s7 + $0x180] sm:$0xff] %v7604
  %7669 = vst [vmem:[%s7 + $0x188] sm:$0xff] %v7605
  %7670 = vst [vmem:[%s7 + $0x190] sm:$0xff] %v7606
  %7671 = vst [vmem:[%s7 + $0x198] sm:$0xff] %v7607
  %7672 = vst [vmem:[%s7 + $0x1a0] sm:$0xff] %v7608
  %7673 = vst [vmem:[%s7 + $0x1a8] sm:$0xff] %v7609
  %7674 = vst [vmem:[%s7 + $0x1b0] sm:$0xff] %v7610
  %7675 = vst [vmem:[%s7 + $0x1b8] sm:$0xff] %v7611
  %7676 = vst [vmem:[%s7 + $0x1c0] sm:$0xff] %v7612
  %7677 = vst [vmem:[%s7 + $0x1c8] sm:$0xff] %v7613
  %7678 = vst [vmem:[%s7 + $0x1d0] sm:$0xff] %v7614
  %7679 = vst [vmem:[%s7 + $0x1d8] sm:$0xff] %v7615
  %7680 = vst [vmem:[%s7 + $0x1e0] sm:$0xff] %v7616
  %7681 = vst [vmem:[%s7 + $0x1e8] sm:$0xff] %v7617
  %7682 = vst [vmem:[%s7 + $0x1f0] sm:$0xff] %v7618
  %7683 = vst [vmem:[%s7 + $0x1f8] sm:$0xff] %v7619
  // Predicated region
  $region30: #{resnet_forward_pallas.3} parent=0 // pred_check
    _
  $region31: #{resnet_forward_pallas.3} parent=0 // pred_check_branch
    %7685 = sbr.rel (0) target = $region33
  $region32: #{resnet_forward_pallas.3} parent=0 // pred_region
    _
  $region33: #{resnet_forward_pallas.3} parent=0 // pred_fallthru
    _
  // Predicated region
  $region34: #{resnet_forward_pallas.3} parent=0 // pred_check
    _
  $region35: #{resnet_forward_pallas.3} parent=0 // pred_check_branch
    %7687 = sbr.rel (0) target = $region37
  $region36: #{resnet_forward_pallas.3} parent=0 // pred_region
    _
  $region37: #{resnet_forward_pallas.3} parent=0 // pred_fallthru
    _

</llo_original>
